<compile_context>
chip_gen: v6e
topology: v6e:2x2x1
jax: 0.10.0
libtpu: 0.0.40
codegen_flags: <defaults>
</compile_context>

<pallas_src>
import jax
import jax.numpy as jnp
from jax.experimental import pallas as pl
from jax.experimental.pallas import tpu as pltpu

_VMEM_LIMIT = 32 * 1024 * 1024  # explicit; worst-case tile usage here is <~12 MiB


# ----------------------------------------------------------------------------
# helpers
# ----------------------------------------------------------------------------
def _pick_tile(total, target, align=8):
    """Largest divisor of `total` that is <= target and a multiple of `align`
    (falling back to the full extent, which always satisfies the BlockSpec
    'equal to full dim' rule)."""
    if total <= target:
        return total
    for d in range(target, 0, -1):
        if total % d == 0 and d % align == 0:
            return d
    return total


# ----------------------------------------------------------------------------
# Pallas kernels
# ----------------------------------------------------------------------------
def _matmul_bias_relu_kernel(a_ref, w_ref, b_ref, o_ref):
    # a: (TM, K), w: (K, N), b: (1, N)  ->  o = relu(a @ w + b)
    acc = jnp.dot(a_ref[...], w_ref[...], preferred_element_type=jnp.float32)
    acc = acc + b_ref[...]
    o_ref[...] = jnp.maximum(acc, 0.0).astype(o_ref.dtype)


def _matmul_bias_logsoftmax_kernel(a_ref, w_ref, b_ref, o_ref):
    # a: (TM, K), w: (K, N), b: (1, N)  ->  o = log_softmax(a @ w + b, axis=-1)
    z = jnp.dot(a_ref[...], w_ref[...], preferred_element_type=jnp.float32)
    z = z + b_ref[...]
    m = jnp.max(z, axis=-1, keepdims=True)
    e = jnp.exp(z - m)
    s = jnp.sum(e, axis=-1, keepdims=True)
    o_ref[...] = (z - m - jnp.log(s)).astype(o_ref.dtype)


def _maxpool2x2_kernel(z_ref, o_ref):
    # z_ref: (TR, 2*Wo, C) -- TR "ho-pair" row groups, each holding the two
    #        feature-map rows (ho=2p, ho=2p+1) of one image, Wo wide, C deep.
    # o_ref: (TR, Wo//2, C)
    # 4-way max with strided in-VMEM reads; no HBM strided-slice copies.
    two_wo = z_ref.shape[1]
    wo = two_wo // 2
    pw = wo // 2
    v00 = z_ref[:, pl.ds(0, pw, stride=2), :]        # (2p,   even wo)
    v01 = z_ref[:, pl.ds(1, pw, stride=2), :]        # (2p,   odd  wo)
    v10 = z_ref[:, pl.ds(wo, pw, stride=2), :]       # (2p+1, even wo)
    v11 = z_ref[:, pl.ds(wo + 1, pw, stride=2), :]   # (2p+1, odd  wo)
    o_ref[...] = jnp.maximum(jnp.maximum(v00, v01), jnp.maximum(v10, v11))


# ----------------------------------------------------------------------------
# pallas_call wrappers (M-tiled, weight resident, megacore-parallel)
# ----------------------------------------------------------------------------
def _matmul_call(kernel, a, w, b, *, tm_target=512, transcendental_per_out=0):
    M, K = a.shape
    Kw, N = w.shape
    assert K == Kw, (K, Kw)
    tm = _pick_tile(M, tm_target, align=8)
    grid = (M // tm,)
    cost = pl.CostEstimate(
        flops=2 * M * K * N,
        transcendentals=transcendental_per_out * M * N,
        bytes_accessed=4 * (M * K + K * N + N + M * N))
    return pl.pallas_call(
        kernel,
        out_shape=jax.ShapeDtypeStruct((M, N), jnp.float32),
        grid=grid,
        in_specs=[
            pl.BlockSpec((tm, K), lambda i: (i, 0)),   # activation: tiled over M
            pl.BlockSpec((K, N), lambda i: (0, 0)),    # weight: resident
            pl.BlockSpec((1, N), lambda i: (0, 0)),    # bias:   resident
        ],
        out_specs=pl.BlockSpec((tm, N), lambda i: (i, 0)),
        compiler_params=pltpu.CompilerParams(
            dimension_semantics=("parallel",),
            vmem_limit_bytes=_VMEM_LIMIT),
        cost_estimate=cost,
    )(a, w, b)


def matmul_bias_relu(a, w, b):
    return _matmul_call(_matmul_bias_relu_kernel, a, w, b)


def matmul_bias_logsoftmax(a, w, b):
    return _matmul_call(_matmul_bias_logsoftmax_kernel, a, w, b,
                        transcendental_per_out=1)


def maxpool2x2_nhwc(x):
    # x: (B, Ho, Wo, C) with Ho, Wo even  ->  (B, Ho//2, Wo//2, C)
    B, Ho, Wo, C = x.shape
    Hp, Pw = Ho // 2, Wo // 2
    # Free (contiguous) reshape: group each ho-pair's 2*Wo rows together.
    z = x.reshape(B * Hp, 2 * Wo, C)
    R = B * Hp
    tr = _pick_tile(R, 256, align=1)
    cost = pl.CostEstimate(
        flops=3 * R * Pw * C,
        transcendentals=0,
        bytes_accessed=4 * (R * 2 * Wo * C + R * Pw * C))
    out = pl.pallas_call(
        _maxpool2x2_kernel,
        out_shape=jax.ShapeDtypeStruct((R, Pw, C), jnp.float32),
        grid=(R // tr,),
        in_specs=[pl.BlockSpec((tr, 2 * Wo, C), lambda i: (i, 0, 0))],
        out_specs=pl.BlockSpec((tr, Pw, C), lambda i: (i, 0, 0)),
        compiler_params=pltpu.CompilerParams(
            dimension_semantics=("parallel",),
            vmem_limit_bytes=_VMEM_LIMIT),
        cost_estimate=cost,
    )(z)
    return out.reshape(B, Hp, Pw, C)


# ----------------------------------------------------------------------------
# Conv: lightweight NHWC im2col (channel-axis concat, no big transpose)
# ----------------------------------------------------------------------------
def conv2d_relu_nhwc(x, w_mat, b, k):
    # x: (B, H, W, Cin) NHWC; w_mat: (k*k*Cin, Cout) with rows in (kh, kw, c)
    # order; b: (1, Cout).  Valid conv, stride 1, fused bias + ReLU.
    B, H, W, Cin = x.shape
    Ho, Wo = H - k + 1, W - k + 1
    Cout = w_mat.shape[1]
    slabs = [x[:, kh:kh + Ho, kw:kw + Wo, :] for kh in range(k) for kw in range(k)]
    patches = jnp.concatenate(slabs, axis=-1)            # (B, Ho, Wo, k*k*Cin)
    patches = patches.reshape(B * Ho * Wo, k * k * Cin)  # contiguous reshape
    out = matmul_bias_relu(patches, w_mat, b)            # (B*Ho*Wo, Cout)
    return out.reshape(B, Ho, Wo, Cout)                  # stays NHWC


# ----------------------------------------------------------------------------
# Parameters (PyTorch layout) + one-time relayout for the kernels
# ----------------------------------------------------------------------------
def init_torch_params(key):
    """Deterministic PyTorch-like uniform fan-in init, in PyTorch layouts."""
    def uni(k, shape, fan_in):
        bound = 1.0 / jnp.sqrt(jnp.float32(fan_in))
        return jax.random.uniform(k, shape, jnp.float32, -bound, bound)

    ks = jax.random.split(key, 10)
    return {
        "conv1_w": uni(ks[0], (64, 3, 5, 5), 3 * 5 * 5),
        "conv1_b": uni(ks[1], (64,), 3 * 5 * 5),
        "conv2_w": uni(ks[2], (128, 64, 5, 5), 64 * 5 * 5),
        "conv2_b": uni(ks[3], (128,), 64 * 5 * 5),
        "fc1_w": uni(ks[4], (512, 128 * 5 * 5), 128 * 5 * 5),
        "fc1_b": uni(ks[5], (512,), 128 * 5 * 5),
        "fc2_w": uni(ks[6], (256, 512), 512),
        "fc2_b": uni(ks[7], (256,), 512),
        "fc3_w": uni(ks[8], (10, 256), 256),
        "fc3_b": uni(ks[9], (10,), 256),
    }


def prepare_params(p):
    """One-time (outside jit) weight relayout so the forward pass never
    transposes/reshapes weights per call."""
    def conv_w(w):
        # (Cout, Cin, k, k) -> (k*k*Cin, Cout), rows ordered (kh, kw, c)
        Cout, Cin, k, _ = w.shape
        return jnp.transpose(w, (2, 3, 1, 0)).reshape(k * k * Cin, Cout)

    def fc_w(w):  # (out, in) -> (in, out)
        return jnp.transpose(w)

    return {
        "conv1_w": conv_w(p["conv1_w"]), "conv1_b": p["conv1_b"].reshape(1, -1),
        "conv2_w": conv_w(p["conv2_w"]), "conv2_b": p["conv2_b"].reshape(1, -1),
        "fc1_w": fc_w(p["fc1_w"]), "fc1_b": p["fc1_b"].reshape(1, -1),
        "fc2_w": fc_w(p["fc2_w"]), "fc2_b": p["fc2_b"].reshape(1, -1),
        "fc3_w": fc_w(p["fc3_w"]), "fc3_b": p["fc3_b"].reshape(1, -1),
    }


# ----------------------------------------------------------------------------
# Forward pass == CIFAR10_Deep_Net.forward
# ----------------------------------------------------------------------------
@jax.jit
def cifar10_deep_net_forward(params, x):
    # x: (B, 3, 32, 32) float32 NCHW (PyTorch layout)
    x = jnp.transpose(x, (0, 2, 3, 1))                                  # NHWC once (tiny)
    x = conv2d_relu_nhwc(x, params["conv1_w"], params["conv1_b"], 5)    # (B, 28, 28, 64)
    x = maxpool2x2_nhwc(x)                                              # (B, 14, 14, 64)
    x = conv2d_relu_nhwc(x, params["conv2_w"], params["conv2_b"], 5)    # (B, 10, 10, 128)
    x = maxpool2x2_nhwc(x)                                              # (B, 5, 5, 128)
    B = x.shape[0]
    # single tiny transpose so the flatten matches torch's view(-1, 128*5*5)
    x = jnp.transpose(x, (0, 3, 1, 2)).reshape(B, 128 * 5 * 5)
    x = matmul_bias_relu(x, params["fc1_w"], params["fc1_b"])           # (B, 512)
    x = matmul_bias_relu(x, params["fc2_w"], params["fc2_b"])           # (B, 256)
    x = matmul_bias_logsoftmax(x, params["fc3_w"], params["fc3_b"])     # (B, 10)
    return x


# ----------------------------------------------------------------------------
# Pure-JAX reference (for correctness check)
# ----------------------------------------------------------------------------
def reference_forward(p, x):
    hp = jax.lax.Precision.HIGHEST

    def conv(t, w, b):
        y = jax.lax.conv_general_dilated(
            t, w, window_strides=(1, 1), padding="VALID",
            dimension_numbers=("NCHW", "OIHW", "NCHW"), precision=hp)
        return jax.nn.relu(y + b.reshape(1, -1, 1, 1))

    def pool(t):
        B, C, H, W = t.shape
        return t.reshape(B, C, H // 2, 2, W // 2, 2).max(axis=(3, 5))

    x = pool(conv(x, p["conv1_w"], p["conv1_b"]))
    x = pool(conv(x, p["conv2_w"], p["conv2_b"]))
    x = x.reshape(x.shape[0], -1)
    x = jax.nn.relu(jnp.dot(x, p["fc1_w"].T, precision=hp) + p["fc1_b"])
    x = jax.nn.relu(jnp.dot(x, p["fc2_w"].T, precision=hp) + p["fc2_b"])
    x = jnp.dot(x, p["fc3_w"].T, precision=hp) + p["fc3_b"]
    return jax.nn.log_softmax(x, axis=-1)


if __name__ == "__main__":
    key = jax.random.PRNGKey(0)
    pkey, xkey = jax.random.split(key)
    torch_params = init_torch_params(pkey)
    params = prepare_params(torch_params)   # weight relayout once, outside jit
    # Input must be 32x32 spatially so the flatten to 128*5*5 is valid.
    x = jax.random.normal(xkey, (2, 3, 32, 32), jnp.float32)

    out = cifar10_deep_net_forward(params, x)
    out = jax.block_until_ready(out)

    assert out.shape == (2, 10)
    # rows of log_softmax should sum (in prob space) to ~1
    assert jnp.allclose(jnp.sum(jnp.exp(out), axis=-1), 1.0, atol=1e-4)
    # match the pure-JAX/XLA reference (loose tol: MXU vs HIGHEST-precision ref)
    ref = reference_forward(torch_params, x)
    assert jnp.allclose(out, ref, atol=2e-2, rtol=2e-2), \
        float(jnp.max(jnp.abs(out - ref)))

    print("KERNEL_OK")
</pallas_src>

<mosaic_0001>
module attributes {stable_mosaic.version = 11 : i64} {
  func.func @_matmul_bias_relu_kernel(%arg0: i32, %arg1: memref<392x75xf32, #tpu.memory_space<vmem>>, %arg2: memref<75x64xf32, #tpu.memory_space<vmem>>, %arg3: memref<1x64xf32, #tpu.memory_space<vmem>>, %arg4: memref<392x64xf32, #tpu.memory_space<vmem>>) attributes {dimension_semantics = [#tpu.dimension_semantics<parallel>], iteration_bounds = array<i64: 4>, scalar_prefetch = 0 : i64, scratch_operands = 0 : i64, tpu.core_type = #tpu.core_type<tc>, window_params = [{transform_indices = @transform_0, window_bounds = array<i64: 392, 75>}, {pipeline_mode = #tpu.pipeline_mode<synchronous>, transform_indices = @transform_1, window_bounds = array<i64: 75, 64>}, {pipeline_mode = #tpu.pipeline_mode<synchronous>, transform_indices = @transform_2, window_bounds = array<i64: 1, 64>}, {transform_indices = @transform_3, window_bounds = array<i64: 392, 64>}]} {
    %c0 = arith.constant 0 : index
    %c0_0 = arith.constant 0 : index
    %0 = vector.load %arg1[%c0, %c0_0] : memref<392x75xf32, #tpu.memory_space<vmem>>, vector<392x75xf32>
    %c0_1 = arith.constant 0 : index
    %c0_2 = arith.constant 0 : index
    %1 = vector.load %arg2[%c0_1, %c0_2] : memref<75x64xf32, #tpu.memory_space<vmem>>, vector<75x64xf32>
    %cst = arith.constant dense<0.000000e+00> : vector<392x64xf32>
    %2 = tpu.matmul %0, %1, %cst {dimension_numbers = #tpu.dot_dimension_numbers<[1], [0], [0], [1], [0, 0, 1, 1], [], []>} : vector<392x75xf32>, vector<75x64xf32>, vector<392x64xf32> -> vector<392x64xf32>
    %c0_3 = arith.constant 0 : index
    %c0_4 = arith.constant 0 : index
    %3 = vector.load %arg3[%c0_3, %c0_4] : memref<1x64xf32, #tpu.memory_space<vmem>>, vector<1x64xf32>
    %4 = vector.broadcast %3 : vector<1x64xf32> to vector<392x64xf32>
    %5 = arith.addf %2, %4 : vector<392x64xf32>
    %cst_5 = arith.constant 0.000000e+00 : f32
    %6 = vector.broadcast %cst_5 : f32 to vector<392x64xf32>
    %7 = arith.maximumf %5, %6 : vector<392x64xf32>
    %c0_6 = arith.constant 0 : index
    %c0_7 = arith.constant 0 : index
    %8 = vector.load %arg4[%c0_6, %c0_7] : memref<392x64xf32, #tpu.memory_space<vmem>>, vector<392x64xf32>
    tpu.vector_store %arg4[%c0_6, %c0_7], %7 {strides = array<i32>} : memref<392x64xf32, #tpu.memory_space<vmem>>, vector<392x64xf32>,
    return
  }
  func.func @transform_0(%arg0: i32) -> (i32, i32) {
    %c0_i32 = arith.constant 0 : i32
    %c0_i32_0 = arith.constant 0 : i32
    return %arg0, %c0_i32 : i32, i32
  }
  func.func @transform_1(%arg0: i32) -> (i32, i32) {
    %c0_i32 = arith.constant 0 : i32
    %c0_i32_0 = arith.constant 0 : i32
    %c0_i32_1 = arith.constant 0 : i32
    return %c0_i32, %c0_i32_0 : i32, i32
  }
  func.func @transform_2(%arg0: i32) -> (i32, i32) {
    %c0_i32 = arith.constant 0 : i32
    %c0_i32_0 = arith.constant 0 : i32
    %c0_i32_1 = arith.constant 0 : i32
    return %c0_i32, %c0_i32_0 : i32, i32
  }
  func.func @transform_3(%arg0: i32) -> (i32, i32) {
    %c0_i32 = arith.constant 0 : i32
    %c0_i32_0 = arith.constant 0 : i32
    return %arg0, %c0_i32 : i32, i32
  }
}

module attributes {stable_mosaic.version = 11 : i64} {
  func.func @_maxpool2x2_kernel(%arg0: i32, %arg1: memref<28x56x64xf32, #tpu.memory_space<vmem>>, %arg2: memref<28x14x64xf32, #tpu.memory_space<vmem>>) attributes {dimension_semantics = [#tpu.dimension_semantics<parallel>], iteration_bounds = array<i64: 1>, scalar_prefetch = 0 : i64, scratch_operands = 0 : i64, tpu.core_type = #tpu.core_type<tc>, window_params = [{transform_indices = @transform_0, window_bounds = array<i64: 28, 56, 64>}, {transform_indices = @transform_1, window_bounds = array<i64: 28, 14, 64>}]} {
    %c0 = arith.constant 0 : index
    %c0_0 = arith.constant 0 : index
    %c0_1 = arith.constant 0 : index
    %0 = tpu.strided_load %arg1[%c0, %c0_0, %c0_1] {strides = array<i32: 1, 2, 1>} : memref<28x56x64xf32, #tpu.memory_space<vmem>>, vector<28x14x64xf32>
    %c0_2 = arith.constant 0 : index
    %c1 = arith.constant 1 : index
    %c0_3 = arith.constant 0 : index
    %1 = tpu.strided_load %arg1[%c0_2, %c1, %c0_3] {strides = array<i32: 1, 2, 1>} : memref<28x56x64xf32, #tpu.memory_space<vmem>>, vector<28x14x64xf32>
    %c0_4 = arith.constant 0 : index
    %c28 = arith.constant 28 : index
    %c0_5 = arith.constant 0 : index
    %2 = tpu.strided_load %arg1[%c0_4, %c28, %c0_5] {strides = array<i32: 1, 2, 1>} : memref<28x56x64xf32, #tpu.memory_space<vmem>>, vector<28x14x64xf32>
    %c0_6 = arith.constant 0 : index
    %c29 = arith.constant 29 : index
    %c0_7 = arith.constant 0 : index
    %3 = tpu.strided_load %arg1[%c0_6, %c29, %c0_7] {strides = array<i32: 1, 2, 1>} : memref<28x56x64xf32, #tpu.memory_space<vmem>>, vector<28x14x64xf32>
    %4 = arith.maximumf %0, %1 : vector<28x14x64xf32>
    %5 = arith.maximumf %2, %3 : vector<28x14x64xf32>
    %6 = arith.maximumf %4, %5 : vector<28x14x64xf32>
    %c0_8 = arith.constant 0 : index
    %c0_9 = arith.constant 0 : index
    %c0_10 = arith.constant 0 : index
    %7 = vector.load %arg2[%c0_8, %c0_9, %c0_10] : memref<28x14x64xf32, #tpu.memory_space<vmem>>, vector<28x14x64xf32>
    tpu.vector_store %arg2[%c0_8, %c0_9, %c0_10], %6 {strides = array<i32>} : memref<28x14x64xf32, #tpu.memory_space<vmem>>, vector<28x14x64xf32>,
    return
  }
  func.func @transform_0(%arg0: i32) -> (i32, i32, i32) {
    %c0_i32 = arith.constant 0 : i32
    %c0_i32_0 = arith.constant 0 : i32
    %c0_i32_1 = arith.constant 0 : i32
    return %arg0, %c0_i32, %c0_i32_0 : i32, i32, i32
  }
  func.func @transform_1(%arg0: i32) -> (i32, i32, i32) {
    %c0_i32 = arith.constant 0 : i32
    %c0_i32_0 = arith.constant 0 : i32
    %c0_i32_1 = arith.constant 0 : i32
    return %arg0, %c0_i32, %c0_i32_0 : i32, i32, i32
  }
}

module attributes {stable_mosaic.version = 11 : i64} {
  func.func @_matmul_bias_relu_kernel(%arg0: i32, %arg1: memref<200x1600xf32, #tpu.memory_space<vmem>>, %arg2: memref<1600x128xf32, #tpu.memory_space<vmem>>, %arg3: memref<1x128xf32, #tpu.memory_space<vmem>>, %arg4: memref<200x128xf32, #tpu.memory_space<vmem>>) attributes {dimension_semantics = [#tpu.dimension_semantics<parallel>], iteration_bounds = array<i64: 1>, scalar_prefetch = 0 : i64, scratch_operands = 0 : i64, tpu.core_type = #tpu.core_type<tc>, window_params = [{transform_indices = @transform_0, window_bounds = array<i64: 200, 1600>}, {pipeline_mode = #tpu.pipeline_mode<synchronous>, transform_indices = @transform_1, window_bounds = array<i64: 1600, 128>}, {pipeline_mode = #tpu.pipeline_mode<synchronous>, transform_indices = @transform_2, window_bounds = array<i64: 1, 128>}, {transform_indices = @transform_3, window_bounds = array<i64: 200, 128>}]} {
    %c0 = arith.constant 0 : index
    %c0_0 = arith.constant 0 : index
    %0 = vector.load %arg1[%c0, %c0_0] : memref<200x1600xf32, #tpu.memory_space<vmem>>, vector<200x1600xf32>
    %c0_1 = arith.constant 0 : index
    %c0_2 = arith.constant 0 : index
    %1 = vector.load %arg2[%c0_1, %c0_2] : memref<1600x128xf32, #tpu.memory_space<vmem>>, vector<1600x128xf32>
    %cst = arith.constant dense<0.000000e+00> : vector<200x128xf32>
    %2 = tpu.matmul %0, %1, %cst {dimension_numbers = #tpu.dot_dimension_numbers<[1], [0], [0], [1], [0, 0, 1, 1], [], []>} : vector<200x1600xf32>, vector<1600x128xf32>, vector<200x128xf32> -> vector<200x128xf32>
    %c0_3 = arith.constant 0 : index
    %c0_4 = arith.constant 0 : index
    %3 = vector.load %arg3[%c0_3, %c0_4] : memref<1x128xf32, #tpu.memory_space<vmem>>, vector<1x128xf32>
    %4 = vector.broadcast %3 : vector<1x128xf32> to vector<200x128xf32>
    %5 = arith.addf %2, %4 : vector<200x128xf32>
    %cst_5 = arith.constant 0.000000e+00 : f32
    %6 = vector.broadcast %cst_5 : f32 to vector<200x128xf32>
    %7 = arith.maximumf %5, %6 : vector<200x128xf32>
    %c0_6 = arith.constant 0 : index
    %c0_7 = arith.constant 0 : index
    %8 = vector.load %arg4[%c0_6, %c0_7] : memref<200x128xf32, #tpu.memory_space<vmem>>, vector<200x128xf32>
    tpu.vector_store %arg4[%c0_6, %c0_7], %7 {strides = array<i32>} : memref<200x128xf32, #tpu.memory_space<vmem>>, vector<200x128xf32>,
    return
  }
  func.func @transform_0(%arg0: i32) -> (i32, i32) {
    %c0_i32 = arith.constant 0 : i32
    %c0_i32_0 = arith.constant 0 : i32
    return %arg0, %c0_i32 : i32, i32
  }
  func.func @transform_1(%arg0: i32) -> (i32, i32) {
    %c0_i32 = arith.constant 0 : i32
    %c0_i32_0 = arith.constant 0 : i32
    %c0_i32_1 = arith.constant 0 : i32
    return %c0_i32, %c0_i32_0 : i32, i32
  }
  func.func @transform_2(%arg0: i32) -> (i32, i32) {
    %c0_i32 = arith.constant 0 : i32
    %c0_i32_0 = arith.constant 0 : i32
    %c0_i32_1 = arith.constant 0 : i32
    return %c0_i32, %c0_i32_0 : i32, i32
  }
  func.func @transform_3(%arg0: i32) -> (i32, i32) {
    %c0_i32 = arith.constant 0 : i32
    %c0_i32_0 = arith.constant 0 : i32
    return %arg0, %c0_i32 : i32, i32
  }
}

module attributes {stable_mosaic.version = 11 : i64} {
  func.func @_maxpool2x2_kernel(%arg0: i32, %arg1: memref<10x20x128xf32, #tpu.memory_space<vmem>>, %arg2: memref<10x5x128xf32, #tpu.memory_space<vmem>>) attributes {dimension_semantics = [#tpu.dimension_semantics<parallel>], iteration_bounds = array<i64: 1>, scalar_prefetch = 0 : i64, scratch_operands = 0 : i64, tpu.core_type = #tpu.core_type<tc>, window_params = [{transform_indices = @transform_0, window_bounds = array<i64: 10, 20, 128>}, {transform_indices = @transform_1, window_bounds = array<i64: 10, 5, 128>}]} {
    %c0 = arith.constant 0 : index
    %c0_0 = arith.constant 0 : index
    %c0_1 = arith.constant 0 : index
    %0 = tpu.strided_load %arg1[%c0, %c0_0, %c0_1] {strides = array<i32: 1, 2, 1>} : memref<10x20x128xf32, #tpu.memory_space<vmem>>, vector<10x5x128xf32>
    %c0_2 = arith.constant 0 : index
    %c1 = arith.constant 1 : index
    %c0_3 = arith.constant 0 : index
    %1 = tpu.strided_load %arg1[%c0_2, %c1, %c0_3] {strides = array<i32: 1, 2, 1>} : memref<10x20x128xf32, #tpu.memory_space<vmem>>, vector<10x5x128xf32>
    %c0_4 = arith.constant 0 : index
    %c10 = arith.constant 10 : index
    %c0_5 = arith.constant 0 : index
    %2 = tpu.strided_load %arg1[%c0_4, %c10, %c0_5] {strides = array<i32: 1, 2, 1>} : memref<10x20x128xf32, #tpu.memory_space<vmem>>, vector<10x5x128xf32>
    %c0_6 = arith.constant 0 : index
    %c11 = arith.constant 11 : index
    %c0_7 = arith.constant 0 : index
    %3 = tpu.strided_load %arg1[%c0_6, %c11, %c0_7] {strides = array<i32: 1, 2, 1>} : memref<10x20x128xf32, #tpu.memory_space<vmem>>, vector<10x5x128xf32>
    %4 = arith.maximumf %0, %1 : vector<10x5x128xf32>
    %5 = arith.maximumf %2, %3 : vector<10x5x128xf32>
    %6 = arith.maximumf %4, %5 : vector<10x5x128xf32>
    %c0_8 = arith.constant 0 : index
    %c0_9 = arith.constant 0 : index
    %c0_10 = arith.constant 0 : index
    %7 = vector.load %arg2[%c0_8, %c0_9, %c0_10] : memref<10x5x128xf32, #tpu.memory_space<vmem>>, vector<10x5x128xf32>
    tpu.vector_store %arg2[%c0_8, %c0_9, %c0_10], %6 {strides = array<i32>} : memref<10x5x128xf32, #tpu.memory_space<vmem>>, vector<10x5x128xf32>,
    return
  }
  func.func @transform_0(%arg0: i32) -> (i32, i32, i32) {
    %c0_i32 = arith.constant 0 : i32
    %c0_i32_0 = arith.constant 0 : i32
    %c0_i32_1 = arith.constant 0 : i32
    return %arg0, %c0_i32, %c0_i32_0 : i32, i32, i32
  }
  func.func @transform_1(%arg0: i32) -> (i32, i32, i32) {
    %c0_i32 = arith.constant 0 : i32
    %c0_i32_0 = arith.constant 0 : i32
    %c0_i32_1 = arith.constant 0 : i32
    return %arg0, %c0_i32, %c0_i32_0 : i32, i32, i32
  }
}

module attributes {stable_mosaic.version = 11 : i64} {
  func.func @_matmul_bias_relu_kernel(%arg0: i32, %arg1: memref<2x3200xf32, #tpu.memory_space<vmem>>, %arg2: memref<3200x512xf32, #tpu.memory_space<vmem>>, %arg3: memref<1x512xf32, #tpu.memory_space<vmem>>, %arg4: memref<2x512xf32, #tpu.memory_space<vmem>>) attributes {dimension_semantics = [#tpu.dimension_semantics<parallel>], iteration_bounds = array<i64: 1>, scalar_prefetch = 0 : i64, scratch_operands = 0 : i64, tpu.core_type = #tpu.core_type<tc>, window_params = [{transform_indices = @transform_0, window_bounds = array<i64: 2, 3200>}, {pipeline_mode = #tpu.pipeline_mode<synchronous>, transform_indices = @transform_1, window_bounds = array<i64: 3200, 512>}, {pipeline_mode = #tpu.pipeline_mode<synchronous>, transform_indices = @transform_2, window_bounds = array<i64: 1, 512>}, {transform_indices = @transform_3, window_bounds = array<i64: 2, 512>}]} {
    %c0 = arith.constant 0 : index
    %c0_0 = arith.constant 0 : index
    %0 = vector.load %arg1[%c0, %c0_0] : memref<2x3200xf32, #tpu.memory_space<vmem>>, vector<2x3200xf32>
    %c0_1 = arith.constant 0 : index
    %c0_2 = arith.constant 0 : index
    %1 = vector.load %arg2[%c0_1, %c0_2] : memref<3200x512xf32, #tpu.memory_space<vmem>>, vector<3200x512xf32>
    %cst = arith.constant dense<0.000000e+00> : vector<2x512xf32>
    %2 = tpu.matmul %0, %1, %cst {dimension_numbers = #tpu.dot_dimension_numbers<[1], [0], [0], [1], [0, 0, 1, 1], [], []>} : vector<2x3200xf32>, vector<3200x512xf32>, vector<2x512xf32> -> vector<2x512xf32>
    %c0_3 = arith.constant 0 : index
    %c0_4 = arith.constant 0 : index
    %3 = vector.load %arg3[%c0_3, %c0_4] : memref<1x512xf32, #tpu.memory_space<vmem>>, vector<1x512xf32>
    %4 = vector.broadcast %3 : vector<1x512xf32> to vector<2x512xf32>
    %5 = arith.addf %2, %4 : vector<2x512xf32>
    %cst_5 = arith.constant 0.000000e+00 : f32
    %6 = vector.broadcast %cst_5 : f32 to vector<2x512xf32>
    %7 = arith.maximumf %5, %6 : vector<2x512xf32>
    %c0_6 = arith.constant 0 : index
    %c0_7 = arith.constant 0 : index
    %8 = vector.load %arg4[%c0_6, %c0_7] : memref<2x512xf32, #tpu.memory_space<vmem>>, vector<2x512xf32>
    tpu.vector_store %arg4[%c0_6, %c0_7], %7 {strides = array<i32>} : memref<2x512xf32, #tpu.memory_space<vmem>>, vector<2x512xf32>,
    return
  }
  func.func @transform_0(%arg0: i32) -> (i32, i32) {
    %c0_i32 = arith.constant 0 : i32
    %c0_i32_0 = arith.constant 0 : i32
    return %arg0, %c0_i32 : i32, i32
  }
  func.func @transform_1(%arg0: i32) -> (i32, i32) {
    %c0_i32 = arith.constant 0 : i32
    %c0_i32_0 = arith.constant 0 : i32
    %c0_i32_1 = arith.constant 0 : i32
    return %c0_i32, %c0_i32_0 : i32, i32
  }
  func.func @transform_2(%arg0: i32) -> (i32, i32) {
    %c0_i32 = arith.constant 0 : i32
    %c0_i32_0 = arith.constant 0 : i32
    %c0_i32_1 = arith.constant 0 : i32
    return %c0_i32, %c0_i32_0 : i32, i32
  }
  func.func @transform_3(%arg0: i32) -> (i32, i32) {
    %c0_i32 = arith.constant 0 : i32
    %c0_i32_0 = arith.constant 0 : i32
    return %arg0, %c0_i32 : i32, i32
  }
}

module attributes {stable_mosaic.version = 11 : i64} {
  func.func @_matmul_bias_relu_kernel(%arg0: i32, %arg1: memref<2x512xf32, #tpu.memory_space<vmem>>, %arg2: memref<512x256xf32, #tpu.memory_space<vmem>>, %arg3: memref<1x256xf32, #tpu.memory_space<vmem>>, %arg4: memref<2x256xf32, #tpu.memory_space<vmem>>) attributes {dimension_semantics = [#tpu.dimension_semantics<parallel>], iteration_bounds = array<i64: 1>, scalar_prefetch = 0 : i64, scratch_operands = 0 : i64, tpu.core_type = #tpu.core_type<tc>, window_params = [{transform_indices = @transform_0, window_bounds = array<i64: 2, 512>}, {pipeline_mode = #tpu.pipeline_mode<synchronous>, transform_indices = @transform_1, window_bounds = array<i64: 512, 256>}, {pipeline_mode = #tpu.pipeline_mode<synchronous>, transform_indices = @transform_2, window_bounds = array<i64: 1, 256>}, {transform_indices = @transform_3, window_bounds = array<i64: 2, 256>}]} {
    %c0 = arith.constant 0 : index
    %c0_0 = arith.constant 0 : index
    %0 = vector.load %arg1[%c0, %c0_0] : memref<2x512xf32, #tpu.memory_space<vmem>>, vector<2x512xf32>
    %c0_1 = arith.constant 0 : index
    %c0_2 = arith.constant 0 : index
    %1 = vector.load %arg2[%c0_1, %c0_2] : memref<512x256xf32, #tpu.memory_space<vmem>>, vector<512x256xf32>
    %cst = arith.constant dense<0.000000e+00> : vector<2x256xf32>
    %2 = tpu.matmul %0, %1, %cst {dimension_numbers = #tpu.dot_dimension_numbers<[1], [0], [0], [1], [0, 0, 1, 1], [], []>} : vector<2x512xf32>, vector<512x256xf32>, vector<2x256xf32> -> vector<2x256xf32>
    %c0_3 = arith.constant 0 : index
    %c0_4 = arith.constant 0 : index
    %3 = vector.load %arg3[%c0_3, %c0_4] : memref<1x256xf32, #tpu.memory_space<vmem>>, vector<1x256xf32>
    %4 = vector.broadcast %3 : vector<1x256xf32> to vector<2x256xf32>
    %5 = arith.addf %2, %4 : vector<2x256xf32>
    %cst_5 = arith.constant 0.000000e+00 : f32
    %6 = vector.broadcast %cst_5 : f32 to vector<2x256xf32>
    %7 = arith.maximumf %5, %6 : vector<2x256xf32>
    %c0_6 = arith.constant 0 : index
    %c0_7 = arith.constant 0 : index
    %8 = vector.load %arg4[%c0_6, %c0_7] : memref<2x256xf32, #tpu.memory_space<vmem>>, vector<2x256xf32>
    tpu.vector_store %arg4[%c0_6, %c0_7], %7 {strides = array<i32>} : memref<2x256xf32, #tpu.memory_space<vmem>>, vector<2x256xf32>,
    return
  }
  func.func @transform_0(%arg0: i32) -> (i32, i32) {
    %c0_i32 = arith.constant 0 : i32
    %c0_i32_0 = arith.constant 0 : i32
    return %arg0, %c0_i32 : i32, i32
  }
  func.func @transform_1(%arg0: i32) -> (i32, i32) {
    %c0_i32 = arith.constant 0 : i32
    %c0_i32_0 = arith.constant 0 : i32
    %c0_i32_1 = arith.constant 0 : i32
    return %c0_i32, %c0_i32_0 : i32, i32
  }
  func.func @transform_2(%arg0: i32) -> (i32, i32) {
    %c0_i32 = arith.constant 0 : i32
    %c0_i32_0 = arith.constant 0 : i32
    %c0_i32_1 = arith.constant 0 : i32
    return %c0_i32, %c0_i32_0 : i32, i32
  }
  func.func @transform_3(%arg0: i32) -> (i32, i32) {
    %c0_i32 = arith.constant 0 : i32
    %c0_i32_0 = arith.constant 0 : i32
    return %arg0, %c0_i32 : i32, i32
  }
}

module attributes {stable_mosaic.version = 11 : i64} {
  func.func @_matmul_bias_logsoftmax_kernel(%arg0: i32, %arg1: memref<2x256xf32, #tpu.memory_space<vmem>>, %arg2: memref<256x10xf32, #tpu.memory_space<vmem>>, %arg3: memref<1x10xf32, #tpu.memory_space<vmem>>, %arg4: memref<2x10xf32, #tpu.memory_space<vmem>>) attributes {dimension_semantics = [#tpu.dimension_semantics<parallel>], iteration_bounds = array<i64: 1>, scalar_prefetch = 0 : i64, scratch_operands = 0 : i64, tpu.core_type = #tpu.core_type<tc>, window_params = [{transform_indices = @transform_0, window_bounds = array<i64: 2, 256>}, {pipeline_mode = #tpu.pipeline_mode<synchronous>, transform_indices = @transform_1, window_bounds = array<i64: 256, 10>}, {pipeline_mode = #tpu.pipeline_mode<synchronous>, transform_indices = @transform_2, window_bounds = array<i64: 1, 10>}, {transform_indices = @transform_3, window_bounds = array<i64: 2, 10>}]} {
    %c0 = arith.constant 0 : index
    %c0_0 = arith.constant 0 : index
    %0 = vector.load %arg1[%c0, %c0_0] : memref<2x256xf32, #tpu.memory_space<vmem>>, vector<2x256xf32>
    %c0_1 = arith.constant 0 : index
    %c0_2 = arith.constant 0 : index
    %1 = vector.load %arg2[%c0_1, %c0_2] : memref<256x10xf32, #tpu.memory_space<vmem>>, vector<256x10xf32>
    %cst = arith.constant dense<0.000000e+00> : vector<2x10xf32>
    %2 = tpu.matmul %0, %1, %cst {dimension_numbers = #tpu.dot_dimension_numbers<[1], [0], [0], [1], [0, 0, 1, 1], [], []>} : vector<2x256xf32>, vector<256x10xf32>, vector<2x10xf32> -> vector<2x10xf32>
    %c0_3 = arith.constant 0 : index
    %c0_4 = arith.constant 0 : index
    %3 = vector.load %arg3[%c0_3, %c0_4] : memref<1x10xf32, #tpu.memory_space<vmem>>, vector<1x10xf32>
    %4 = vector.broadcast %3 : vector<1x10xf32> to vector<2x10xf32>
    %5 = arith.addf %2, %4 : vector<2x10xf32>
    %cst_5 = arith.constant dense<0xFF800000> : vector<2xf32>
    %6 = vector.multi_reduction <maximumf>, %5, %cst_5 [1] : vector<2x10xf32> to vector<2xf32>
    %7 = vector.shape_cast %6 : vector<2xf32> to vector<2x1xf32>
    %8 = vector.broadcast %7 : vector<2x1xf32> to vector<2x10xf32>
    %9 = arith.subf %5, %8 : vector<2x10xf32>
    %10 = math.exp %9 : vector<2x10xf32>
    %cst_6 = arith.constant dense<0.000000e+00> : vector<2xf32>
    %11 = vector.multi_reduction <add>, %10, %cst_6 [1] : vector<2x10xf32> to vector<2xf32>
    %12 = vector.shape_cast %11 : vector<2xf32> to vector<2x1xf32>
    %13 = vector.broadcast %7 : vector<2x1xf32> to vector<2x10xf32>
    %14 = arith.subf %5, %13 : vector<2x10xf32>
    %15 = math.log %12 : vector<2x1xf32>
    %16 = vector.broadcast %15 : vector<2x1xf32> to vector<2x10xf32>
    %17 = arith.subf %14, %16 : vector<2x10xf32>
    %c0_7 = arith.constant 0 : index
    %c0_8 = arith.constant 0 : index
    %18 = vector.load %arg4[%c0_7, %c0_8] : memref<2x10xf32, #tpu.memory_space<vmem>>, vector<2x10xf32>
    tpu.vector_store %arg4[%c0_7, %c0_8], %17 {strides = array<i32>} : memref<2x10xf32, #tpu.memory_space<vmem>>, vector<2x10xf32>,
    return
  }
  func.func @transform_0(%arg0: i32) -> (i32, i32) {
    %c0_i32 = arith.constant 0 : i32
    %c0_i32_0 = arith.constant 0 : i32
    return %arg0, %c0_i32 : i32, i32
  }
  func.func @transform_1(%arg0: i32) -> (i32, i32) {
    %c0_i32 = arith.constant 0 : i32
    %c0_i32_0 = arith.constant 0 : i32
    %c0_i32_1 = arith.constant 0 : i32
    return %c0_i32, %c0_i32_0 : i32, i32
  }
  func.func @transform_2(%arg0: i32) -> (i32, i32) {
    %c0_i32 = arith.constant 0 : i32
    %c0_i32_0 = arith.constant 0 : i32
    %c0_i32_1 = arith.constant 0 : i32
    return %c0_i32, %c0_i32_0 : i32, i32
  }
  func.func @transform_3(%arg0: i32) -> (i32, i32) {
    %c0_i32 = arith.constant 0 : i32
    %c0_i32_0 = arith.constant 0 : i32
    return %arg0, %c0_i32 : i32, i32
  }
}

</mosaic_0001>

<llo_original>
// kernel: cifar10_deep_net_forward.7
$region0: #{cifar10_deep_net_forward.7}
  #allocation0 [shape = 'u32[]', space=smem, size = 0x4, offset = 0x4, fixed_abs, tag = 'smem constant byte address 0x4 - core index']
  #allocation1 [shape = 'u32[144,128]{1,0:T(1,128)}', space=vmem, size = 0x12000, scoped, tag = 'internal scratch']
  %s0 = inlined_call_operand.vmem [shape: f32[1568,75], index: 0, kind: input, shape index: {}]
  %s1 = inlined_call_operand.vmem [shape: f32[75,64], index: 1, kind: input, shape index: {}]
  %s2 = inlined_call_operand.vmem [shape: f32[1,64], index: 2, kind: input, shape index: {}]
  %s3 = inlined_call_operand.vmem [shape: f32[1568,64], index: 3, kind: output, shape index: {}]
  %s4 = sld [smem:[#allocation0]]
  $region45: #{cifar10_deep_net_forward.7} parent=0
    _
  %s6 = ssub.s32 1, %s4
  %s7 = scalar_select 0, %s6, %s4
  loop: start=0, step=1, limit=6
  $region2: #{cifar10_deep_net_forward.7} parent=0 // loop_pre_header
    _
  $region3: #{cifar10_deep_net_forward.7} parent=0 // loop_header
    %s9 = sphi 0, %s13
    %p10 = scmp.ge.s32.totalorder %s9, 6
    %s19 = sphi 0, %s21
    %s22 = sphi 0, %s19
    %s23 = sphi 0, %s22
    %s39 = sphi 0, %s23
    %s43 = sphi 0, %s43
    %s45 = sphi 0, %s43
    %s46 = sphi 0, %s45
    %s60 = sphi 0, %s46
    %s64 = sphi 0, %s64
    %s66 = sphi 0, %s64
    %s67 = sphi 0, %s66
    %s81 = sphi 0, %s67
    %s87 = sphi 0, %s89
    %s90 = sphi 0, %s87
    %s91 = sphi 0, %s90
    %s107 = sphi 0, %s91
  $region4: #{cifar10_deep_net_forward.7} parent=0 // loop_header_branch
    %12 = sbr.rel (%p10) target = $region8
  $region5: #{cifar10_deep_net_forward.7} parent=0 // loop_body
    %s14 = ssub.s32 %s9, 1
    %s15 = ssub.s32 %s9, 2
    %s16 = sadd.s32 %s9, 1
    %s17 = ssub.s32 %s9, %s16
    %p18 = scmp.eq.s32.totalorder %s17, 0
    %s20 = sadd.s32 %s19, 1
    %s21 = scalar_select %p18, %s19, %s20
    %p24 = pneg %p18
    %p25 = scmp.eq.s32.totalorder %s9, 3
    %p26 = por %p24, %p25
    %p27 = scmp.ne.s32.totalorder %s19, %s22
    %p28 = scmp.eq.s32.totalorder %s9, 0
    %p29 = por %p27, %p28
    %p30 = scmp.ne.s32.totalorder %s19, %s22
    %p31 = scmp.eq.s32.totalorder %s14, 3
    %p32 = por %p30, %p31
    %p33 = scmp.ne.s32.totalorder %s22, %s23
    %p34 = scmp.eq.s32.totalorder %s14, 0
    %p35 = por %p33, %p34
    %p36 = scmp.ne.s32.totalorder %s22, %s23
    %p37 = scmp.eq.s32.totalorder %s15, 3
    %p38 = por %p36, %p37
    %p40 = scmp.ne.s32.totalorder %s23, %s39
    %p41 = scmp.eq.s32.totalorder %s15, 0
    %p42 = por %p40, %p41
    %s44 = sadd.s32 %s43, 1
    %p47 = scmp.eq.s32.totalorder %s9, 3
    %p48 = scmp.ne.s32.totalorder %s43, %s45
    %p49 = scmp.eq.s32.totalorder %s9, 0
    %p50 = por %p48, %p49
    %p51 = scmp.ne.s32.totalorder %s43, %s45
    %p52 = scmp.eq.s32.totalorder %s14, 3
    %p53 = por %p51, %p52
    %p54 = scmp.ne.s32.totalorder %s45, %s46
    %p55 = scmp.eq.s32.totalorder %s14, 0
    %p56 = por %p54, %p55
    %p57 = scmp.ne.s32.totalorder %s45, %s46
    %p58 = scmp.eq.s32.totalorder %s15, 3
    %p59 = por %p57, %p58
    %p61 = scmp.ne.s32.totalorder %s46, %s60
    %p62 = scmp.eq.s32.totalorder %s15, 0
    %p63 = por %p61, %p62
    %s65 = sadd.s32 %s64, 1
    %p68 = scmp.eq.s32.totalorder %s9, 3
    %p69 = scmp.ne.s32.totalorder %s64, %s66
    %p70 = scmp.eq.s32.totalorder %s9, 0
    %p71 = por %p69, %p70
    %p72 = scmp.ne.s32.totalorder %s64, %s66
    %p73 = scmp.eq.s32.totalorder %s14, 3
    %p74 = por %p72, %p73
    %p75 = scmp.ne.s32.totalorder %s66, %s67
    %p76 = scmp.eq.s32.totalorder %s14, 0
    %p77 = por %p75, %p76
    %p78 = scmp.ne.s32.totalorder %s66, %s67
    %p79 = scmp.eq.s32.totalorder %s15, 3
    %p80 = por %p78, %p79
    %p82 = scmp.ne.s32.totalorder %s67, %s81
    %p83 = scmp.eq.s32.totalorder %s15, 0
    %p84 = por %p82, %p83
    %s85 = ssub.s32 %s9, %s16
    %p86 = scmp.eq.s32.totalorder %s85, 0
    %s88 = sadd.s32 %s87, 1
    %s89 = scalar_select %p86, %s87, %s88
    %p92 = pneg %p86
    %p93 = scmp.eq.s32.totalorder %s9, 3
    %p94 = por %p92, %p93
    %p95 = scmp.ne.s32.totalorder %s87, %s90
    %p96 = scmp.eq.s32.totalorder %s9, 0
    %p97 = por %p95, %p96
    %p98 = scmp.ne.s32.totalorder %s87, %s90
    %p99 = scmp.eq.s32.totalorder %s14, 3
    %p100 = por %p98, %p99
    %p101 = scmp.ne.s32.totalorder %s90, %s91
    %p102 = scmp.eq.s32.totalorder %s14, 0
    %p103 = por %p101, %p102
    %p104 = scmp.ne.s32.totalorder %s90, %s91
    %p105 = scmp.eq.s32.totalorder %s15, 3
    %p106 = por %p104, %p105
    %p108 = scmp.ne.s32.totalorder %s91, %s107
    %p109 = scmp.eq.s32.totalorder %s15, 0
    %p110 = por %p108, %p109
    %p111 = scmp.le.s32.totalorder 1, %s9
    %p112 = scmp.lt.s32.totalorder %s9, 5
    %p113 = pnand %p111, %p112
    %p114 = pneg %p113
    // Predicated region
    $region9: #{cifar10_deep_net_forward.7} parent=5 // pred_check
      _
    $region10: #{cifar10_deep_net_forward.7} parent=5 // pred_check_branch
      %116 = sbr.rel (%p113) target = $region12
    $region11: #{cifar10_deep_net_forward.7} parent=5 // pred_region
      %s117 = ssub.s32 %s9, 1
      // Predicated region
      $region13: #{cifar10_deep_net_forward.7} parent=11 // pred_check
        %p118 = pneg %p56
      $region14: #{cifar10_deep_net_forward.7} parent=11 // pred_check_branch
        %120 = sbr.rel (%p118) target = $region16
      $region15: #{cifar10_deep_net_forward.7} parent=11 // pred_region
        _
      $region16: #{cifar10_deep_net_forward.7} parent=11 // pred_fallthru
        _
      // Predicated region
      $region17: #{cifar10_deep_net_forward.7} parent=11 // pred_check
        %p121 = pneg %p77
      $region18: #{cifar10_deep_net_forward.7} parent=11 // pred_check_branch
        %123 = sbr.rel (%p121) target = $region20
      $region19: #{cifar10_deep_net_forward.7} parent=11 // pred_region
        _
      $region20: #{cifar10_deep_net_forward.7} parent=11 // pred_fallthru
        _
    $region12: #{cifar10_deep_net_forward.7} parent=5 // pred_fallthru
      _
    %p124 = scmp.lt.s32.totalorder %s9, 4
    // Predicated region
    $region21: #{cifar10_deep_net_forward.7} parent=5 // pred_check
      %p125 = pneg %p124
    $region22: #{cifar10_deep_net_forward.7} parent=5 // pred_check_branch
      %127 = sbr.rel (%p125) target = $region24
    $region23: #{cifar10_deep_net_forward.7} parent=5 // pred_region
      // Predicated region
      $region25: #{cifar10_deep_net_forward.7} parent=23 // pred_check
        %p128 = pneg %p29
      $region26: #{cifar10_deep_net_forward.7} parent=23 // pred_check_branch
        %130 = sbr.rel (%p128) target = $region28
      $region27: #{cifar10_deep_net_forward.7} parent=23 // pred_region
        %s131 = smul.u32 49, %s9
        %p132 = scmp.lt.s32.totalorder %s131, 195
        %s133 = scalar_select %p132, %s131, 195
        %s134 = smul.addr %s133, 8
        %s135 = scalar_lea.vmem %s0, %s134
        %s136 = smul.u32 49, %s9
      $region28: #{cifar10_deep_net_forward.7} parent=23 // pred_fallthru
        _
    $region24: #{cifar10_deep_net_forward.7} parent=5 // pred_fallthru
      _
    %p137 = scmp.le.s32.totalorder 1, %s9
    %p138 = scmp.lt.s32.totalorder %s9, 5
    %p139 = pnand %p137, %p138
    %p140 = pneg %p139
    // Predicated region
    $region29: #{cifar10_deep_net_forward.7} parent=5 // pred_check
      _
    $region30: #{cifar10_deep_net_forward.7} parent=5 // pred_check_branch
      %142 = sbr.rel (%p139) target = $region32
    $region31: #{cifar10_deep_net_forward.7} parent=5 // pred_region
      %s143 = ssub.s32 %s9, 1
      %s144 = smul.u32 49, %s14
      %p145 = scmp.lt.s32.totalorder %s144, 195
      %s146 = scalar_select %p145, %s144, 195
      %s147 = smul.addr %s146, 8
      %s148 = scalar_lea.vmem %s0, %s147
      %p149 = pneg %p35
      %p150 = pneg %p32
      %p151 = pneg %p56
      %p152 = pneg %p53
      %p153 = pneg %p77
      %p154 = pneg %p74
      %p155 = pneg %p103
      %p156 = pneg %p100
      %s157 = smul.u32 49, %s14
      %p158 = scmp.lt.s32.totalorder %s157, 195
      %s159 = scalar_select %p158, %s157, 195
      %s160 = smul.addr %s159, 8
      %s161 = scalar_lea.vmem %s3, %s160
      %s162 = smul.u32 49, %s14
      %p163 = scmp.lt.s32.totalorder %s162, 195
      %s164 = scalar_select %p163, %s162, 195
      %s165 = smul.addr %s164, 8
      %s166 = scalar_lea.vmem %s0, %s165
      %s167 = smul.u32 49, %s14
      %s168 = smul.u32 49, %s14
      %p169 = scmp.lt.s32.totalorder %s168, 195
      %s170 = scalar_select %p169, %s168, 195
      %s171 = smul.addr %s170, 8
      %s172 = scalar_lea.vmem %s3, %s171
      %s173 = smul.u32 49, %s14
      %v174 = vld [vmem:[%s166] sm:$0xff]
      %v175 = vld [vmem:[%s166 + $0x8] sm:$0xff]
      %v176 = vld [vmem:[%s166 + $0x10] sm:$0xff]
      %v177 = vld [vmem:[%s166 + $0x18] sm:$0xff]
      %v178 = vld [vmem:[%s166 + $0x20] sm:$0xff]
      %v179 = vld [vmem:[%s166 + $0x28] sm:$0xff]
      %v180 = vld [vmem:[%s166 + $0x30] sm:$0xff]
      %v181 = vld [vmem:[%s166 + $0x38] sm:$0xff]
      %v182 = vld [vmem:[%s166 + $0x40] sm:$0xff]
      %v183 = vld [vmem:[%s166 + $0x48] sm:$0xff]
      %v184 = vld [vmem:[%s166 + $0x50] sm:$0xff]
      %v185 = vld [vmem:[%s166 + $0x58] sm:$0xff]
      %v186 = vld [vmem:[%s166 + $0x60] sm:$0xff]
      %v187 = vld [vmem:[%s166 + $0x68] sm:$0xff]
      %v188 = vld [vmem:[%s166 + $0x70] sm:$0xff]
      %v189 = vld [vmem:[%s166 + $0x78] sm:$0xff]
      %v190 = vld [vmem:[%s166 + $0x80] sm:$0xff]
      %v191 = vld [vmem:[%s166 + $0x88] sm:$0xff]
      %v192 = vld [vmem:[%s166 + $0x90] sm:$0xff]
      %v193 = vld [vmem:[%s166 + $0x98] sm:$0xff]
      %v194 = vld [vmem:[%s166 + $0xa0] sm:$0xff]
      %v195 = vld [vmem:[%s166 + $0xa8] sm:$0xff]
      %v196 = vld [vmem:[%s166 + $0xb0] sm:$0xff]
      %v197 = vld [vmem:[%s166 + $0xb8] sm:$0xff]
      %v198 = vld [vmem:[%s166 + $0xc0] sm:$0xff]
      %v199 = vld [vmem:[%s166 + $0xc8] sm:$0xff]
      %v200 = vld [vmem:[%s166 + $0xd0] sm:$0xff]
      %v201 = vld [vmem:[%s166 + $0xd8] sm:$0xff]
      %v202 = vld [vmem:[%s166 + $0xe0] sm:$0xff]
      %v203 = vld [vmem:[%s166 + $0xe8] sm:$0xff]
      %v204 = vld [vmem:[%s166 + $0xf0] sm:$0xff]
      %v205 = vld [vmem:[%s166 + $0xf8] sm:$0xff]
      %v206 = vld [vmem:[%s166 + $0x100] sm:$0xff]
      %v207 = vld [vmem:[%s166 + $0x108] sm:$0xff]
      %v208 = vld [vmem:[%s166 + $0x110] sm:$0xff]
      %v209 = vld [vmem:[%s166 + $0x118] sm:$0xff]
      %v210 = vld [vmem:[%s166 + $0x120] sm:$0xff]
      %v211 = vld [vmem:[%s166 + $0x128] sm:$0xff]
      %v212 = vld [vmem:[%s166 + $0x130] sm:$0xff]
      %v213 = vld [vmem:[%s166 + $0x138] sm:$0xff]
      %v214 = vld [vmem:[%s166 + $0x140] sm:$0xff]
      %v215 = vld [vmem:[%s166 + $0x148] sm:$0xff]
      %v216 = vld [vmem:[%s166 + $0x150] sm:$0xff]
      %v217 = vld [vmem:[%s166 + $0x158] sm:$0xff]
      %v218 = vld [vmem:[%s166 + $0x160] sm:$0xff]
      %v219 = vld [vmem:[%s166 + $0x168] sm:$0xff]
      %v220 = vld [vmem:[%s166 + $0x170] sm:$0xff]
      %v221 = vld [vmem:[%s166 + $0x178] sm:$0xff]
      %v222 = vld [vmem:[%s166 + $0x180] sm:$0xff]
      %v223 = vld [vmem:[%s1] sm:$0xff]
      %v224 = vld [vmem:[%s1 + $0x8] sm:$0xff]
      %v225 = vld [vmem:[%s1 + $0x10] sm:$0xff]
      %v226 = vld [vmem:[%s1 + $0x18] sm:$0xff]
      %v227 = vld [vmem:[%s1 + $0x20] sm:$0xff]
      %v228 = vld [vmem:[%s1 + $0x28] sm:$0xff]
      %v229 = vld [vmem:[%s1 + $0x30] sm:$0xff]
      %v230 = vld [vmem:[%s1 + $0x38] sm:$0xff]
      %v231 = vld [vmem:[%s1 + $0x40] sm:$0xff]
      %v232 = vld [vmem:[%s1 + $0x48] sm:$0x7]
      %v233 = vld [vmem:[%s2] sm:$0x1]
      %v235 = vlaneseq
      %v236 = vshrl.u32 %v235, 7
      %v237 = vsub.s32 0, %v236
      %v238 = vrot.slane %v233, %v237
      %vm240 = vcmask 613376
      %v242 = vsel %vm240, %v174, 0
      %v245 = vsel %vm240, %v175, 0
      %v248 = vsel %vm240, %v176, 0
      %v251 = vsel %vm240, %v177, 0
      %v254 = vsel %vm240, %v178, 0
      %v257 = vsel %vm240, %v179, 0
      %v260 = vsel %vm240, %v180, 0
      %v263 = vsel %vm240, %v181, 0
      %v266 = vsel %vm240, %v182, 0
      %v269 = vsel %vm240, %v183, 0
      %v272 = vsel %vm240, %v184, 0
      %v275 = vsel %vm240, %v185, 0
      %v278 = vsel %vm240, %v186, 0
      %v281 = vsel %vm240, %v187, 0
      %v284 = vsel %vm240, %v188, 0
      %v287 = vsel %vm240, %v189, 0
      %v290 = vsel %vm240, %v190, 0
      %v293 = vsel %vm240, %v191, 0
      %v296 = vsel %vm240, %v192, 0
      %v299 = vsel %vm240, %v193, 0
      %v302 = vsel %vm240, %v194, 0
      %v305 = vsel %vm240, %v195, 0
      %v308 = vsel %vm240, %v196, 0
      %v311 = vsel %vm240, %v197, 0
      %v314 = vsel %vm240, %v198, 0
      %v317 = vsel %vm240, %v199, 0
      %v320 = vsel %vm240, %v200, 0
      %v323 = vsel %vm240, %v201, 0
      %v326 = vsel %vm240, %v202, 0
      %v329 = vsel %vm240, %v203, 0
      %v332 = vsel %vm240, %v204, 0
      %v335 = vsel %vm240, %v205, 0
      %v338 = vsel %vm240, %v206, 0
      %v341 = vsel %vm240, %v207, 0
      %v344 = vsel %vm240, %v208, 0
      %v347 = vsel %vm240, %v209, 0
      %v350 = vsel %vm240, %v210, 0
      %v353 = vsel %vm240, %v211, 0
      %v356 = vsel %vm240, %v212, 0
      %v359 = vsel %vm240, %v213, 0
      %v362 = vsel %vm240, %v214, 0
      %v365 = vsel %vm240, %v215, 0
      %v368 = vsel %vm240, %v216, 0
      %v371 = vsel %vm240, %v217, 0
      %v374 = vsel %vm240, %v218, 0
      %v377 = vsel %vm240, %v219, 0
      %v380 = vsel %vm240, %v220, 0
      %v383 = vsel %vm240, %v221, 0
      %v386 = vsel %vm240, %v222, 0
      %vm388 = vcmask 1042432
      %v390 = vsel %vm388, %v232, 0
      %392 = vmatprep.subr.mxu0 0.0
      %393 = vmatpush1.msra.mxu0 0.0
      %394 = vmatprep.subr.mxu0 0.0
      %395 = vmatpush1.msra.mxu0 0.0
      %396 = vmatprep.subr.mxu0 0.0
      %397 = vmatpush1.msra.mxu0 0.0
      %398 = vmatprep.subr.mxu0 0.0
      %399 = vmatpush1.msra.mxu0 0.0
      %400 = vmatprep.subr.mxu0 0.0
      %401 = vmatpush1.msra.mxu0 0.0
      %402 = vmatprep.subr.mxu0 0.0
      %403 = vmatpush1.msra.mxu0 0.0
      %404 = vmatprep.subr.mxu0 0.0
      %405 = vmatpush1.msra.mxu0 %v390
      %406 = vmatprep.subr.mxu0 0.0
      %407 = vmatpush1.msra.mxu0 %v231
      %408 = vmatprep.subr.mxu0 0.0
      %409 = vmatpush1.msra.mxu0 %v230
      %410 = vmatprep.subr.mxu0 0.0
      %411 = vmatpush1.msra.mxu0 %v229
      %412 = vmatprep.subr.mxu0 0.0
      %413 = vmatpush1.msra.mxu0 %v228
      %414 = vmatprep.subr.mxu0 0.0
      %415 = vmatpush1.msra.mxu0 %v227
      %416 = vmatprep.subr.mxu0 0.0
      %417 = vmatpush1.msra.mxu0 %v226
      %418 = vmatprep.subr.mxu0 0.0
      %419 = vmatpush1.msra.mxu0 %v225
      %420 = vmatprep.subr.mxu0 0.0
      %421 = vmatpush1.msra.mxu0 %v224
      %422 = vmatprep.subr.mxu0 0.0
      %423 = vmatpush1.msra.mxu0 %v223
      %424 = vmatprep.subr.mxu0 0.0
      %425 = vmatpush2.msra.mxu0 0.0
      %426 = vmatprep.subr.mxu0 0.0
      %427 = vmatpush2.msra.mxu0 0.0
      %428 = vmatprep.subr.mxu0 0.0
      %429 = vmatpush2.msra.mxu0 0.0
      %430 = vmatprep.subr.mxu0 0.0
      %431 = vmatpush2.msra.mxu0 0.0
      %432 = vmatprep.subr.mxu0 0.0
      %433 = vmatpush2.msra.mxu0 0.0
      %434 = vmatprep.subr.mxu0 0.0
      %435 = vmatpush2.msra.mxu0 0.0
      %436 = vmatprep.subr.mxu0 0.0
      %437 = vmatpush2.msra.mxu0 0.0
      %438 = vmatprep.subr.mxu0 0.0
      %439 = vmatpush2.msra.mxu0 0.0
      %440 = vmatprep.subr.mxu0 0.0
      %441 = vmatpush2.msra.mxu0 0.0
      %442 = vmatprep.subr.mxu0 0.0
      %443 = vmatpush2.msra.mxu0 0.0
      %444 = vmatprep.subr.mxu0 0.0
      %445 = vmatpush2.msra.mxu0 0.0
      %446 = vmatprep.subr.mxu0 0.0
      %447 = vmatpush2.msra.mxu0 0.0
      %448 = vmatprep.subr.mxu0 0.0
      %449 = vmatpush2.msra.mxu0 0.0
      %450 = vmatprep.subr.mxu0 0.0
      %451 = vmatpush2.msra.mxu0 0.0
      %452 = vmatprep.subr.mxu0 0.0
      %453 = vmatpush2.msra.mxu0 0.0
      %454 = vmatprep.subr.mxu0 0.0
      %455 = vmatpush2.msra.mxu0 0.0
      %456 = vmatprep.mubr.f32.mxu0 0.0
      %457 = vmatmul.mubr.f32.gmra.mxu0 %v242
      %v458 = vpop.f32.mrf.mxu0
      %v459 = vadd.f32 %v238, %v458
      %v460 = vpop.f32.mrf.mxu0
      %461 = vmatprep.mubr.f32.mxu0 0.0
      %462 = vmatmul.mubr.f32.gmra.mxu0 %v245
      %v463 = vpop.f32.mrf.mxu0
      %v464 = vadd.f32 %v238, %v463
      %v465 = vpop.f32.mrf.mxu0
      %466 = vmatprep.mubr.f32.mxu0 0.0
      %467 = vmatmul.mubr.f32.gmra.mxu0 %v248
      %v468 = vpop.f32.mrf.mxu0
      %v469 = vadd.f32 %v238, %v468
      %v470 = vpop.f32.mrf.mxu0
      %471 = vmatprep.mubr.f32.mxu0 0.0
      %472 = vmatmul.mubr.f32.gmra.mxu0 %v251
      %v473 = vpop.f32.mrf.mxu0
      %v474 = vadd.f32 %v238, %v473
      %v475 = vpop.f32.mrf.mxu0
      %476 = vmatprep.mubr.f32.mxu0 0.0
      %477 = vmatmul.mubr.f32.gmra.mxu0 %v254
      %v478 = vpop.f32.mrf.mxu0
      %v479 = vadd.f32 %v238, %v478
      %v480 = vpop.f32.mrf.mxu0
      %481 = vmatprep.mubr.f32.mxu0 0.0
      %482 = vmatmul.mubr.f32.gmra.mxu0 %v257
      %v483 = vpop.f32.mrf.mxu0
      %v484 = vadd.f32 %v238, %v483
      %v485 = vpop.f32.mrf.mxu0
      %486 = vmatprep.mubr.f32.mxu0 0.0
      %487 = vmatmul.mubr.f32.gmra.mxu0 %v260
      %v488 = vpop.f32.mrf.mxu0
      %v489 = vadd.f32 %v238, %v488
      %v490 = vpop.f32.mrf.mxu0
      %491 = vmatprep.mubr.f32.mxu0 0.0
      %492 = vmatmul.mubr.f32.gmra.mxu0 %v263
      %v493 = vpop.f32.mrf.mxu0
      %v494 = vadd.f32 %v238, %v493
      %v495 = vpop.f32.mrf.mxu0
      %496 = vmatprep.mubr.f32.mxu0 0.0
      %497 = vmatmul.mubr.f32.gmra.mxu0 %v266
      %v498 = vpop.f32.mrf.mxu0
      %v499 = vadd.f32 %v238, %v498
      %v500 = vpop.f32.mrf.mxu0
      %501 = vmatprep.mubr.f32.mxu0 0.0
      %502 = vmatmul.mubr.f32.gmra.mxu0 %v269
      %v503 = vpop.f32.mrf.mxu0
      %v504 = vadd.f32 %v238, %v503
      %v505 = vpop.f32.mrf.mxu0
      %506 = vmatprep.mubr.f32.mxu0 0.0
      %507 = vmatmul.mubr.f32.gmra.mxu0 %v272
      %v508 = vpop.f32.mrf.mxu0
      %v509 = vadd.f32 %v238, %v508
      %v510 = vpop.f32.mrf.mxu0
      %511 = vmatprep.mubr.f32.mxu0 0.0
      %512 = vmatmul.mubr.f32.gmra.mxu0 %v275
      %v513 = vpop.f32.mrf.mxu0
      %v514 = vadd.f32 %v238, %v513
      %v515 = vpop.f32.mrf.mxu0
      %516 = vmatprep.mubr.f32.mxu0 0.0
      %517 = vmatmul.mubr.f32.gmra.mxu0 %v278
      %v518 = vpop.f32.mrf.mxu0
      %v519 = vadd.f32 %v238, %v518
      %v520 = vpop.f32.mrf.mxu0
      %521 = vmatprep.mubr.f32.mxu0 0.0
      %522 = vmatmul.mubr.f32.gmra.mxu0 %v281
      %v523 = vpop.f32.mrf.mxu0
      %v524 = vadd.f32 %v238, %v523
      %v525 = vpop.f32.mrf.mxu0
      %526 = vmatprep.mubr.f32.mxu0 0.0
      %527 = vmatmul.mubr.f32.gmra.mxu0 %v284
      %v528 = vpop.f32.mrf.mxu0
      %v529 = vadd.f32 %v238, %v528
      %v530 = vpop.f32.mrf.mxu0
      %531 = vmatprep.mubr.f32.mxu0 0.0
      %532 = vmatmul.mubr.f32.gmra.mxu0 %v287
      %v533 = vpop.f32.mrf.mxu0
      %v534 = vadd.f32 %v238, %v533
      %v535 = vpop.f32.mrf.mxu0
      %536 = vmatprep.mubr.f32.mxu0 0.0
      %537 = vmatmul.mubr.f32.gmra.mxu0 %v290
      %v538 = vpop.f32.mrf.mxu0
      %v539 = vadd.f32 %v238, %v538
      %v540 = vpop.f32.mrf.mxu0
      %541 = vmatprep.mubr.f32.mxu0 0.0
      %542 = vmatmul.mubr.f32.gmra.mxu0 %v293
      %v543 = vpop.f32.mrf.mxu0
      %v544 = vadd.f32 %v238, %v543
      %v545 = vpop.f32.mrf.mxu0
      %546 = vmatprep.mubr.f32.mxu0 0.0
      %547 = vmatmul.mubr.f32.gmra.mxu0 %v296
      %v548 = vpop.f32.mrf.mxu0
      %v549 = vadd.f32 %v238, %v548
      %v550 = vpop.f32.mrf.mxu0
      %551 = vmatprep.mubr.f32.mxu0 0.0
      %552 = vmatmul.mubr.f32.gmra.mxu0 %v299
      %v553 = vpop.f32.mrf.mxu0
      %v554 = vadd.f32 %v238, %v553
      %v555 = vpop.f32.mrf.mxu0
      %556 = vmatprep.mubr.f32.mxu0 0.0
      %557 = vmatmul.mubr.f32.gmra.mxu0 %v302
      %v558 = vpop.f32.mrf.mxu0
      %v559 = vadd.f32 %v238, %v558
      %v560 = vpop.f32.mrf.mxu0
      %561 = vmatprep.mubr.f32.mxu0 0.0
      %562 = vmatmul.mubr.f32.gmra.mxu0 %v305
      %v563 = vpop.f32.mrf.mxu0
      %v564 = vadd.f32 %v238, %v563
      %v565 = vpop.f32.mrf.mxu0
      %566 = vmatprep.mubr.f32.mxu0 0.0
      %567 = vmatmul.mubr.f32.gmra.mxu0 %v308
      %v568 = vpop.f32.mrf.mxu0
      %v569 = vadd.f32 %v238, %v568
      %v570 = vpop.f32.mrf.mxu0
      %571 = vmatprep.mubr.f32.mxu0 0.0
      %572 = vmatmul.mubr.f32.gmra.mxu0 %v311
      %v573 = vpop.f32.mrf.mxu0
      %v574 = vadd.f32 %v238, %v573
      %v575 = vpop.f32.mrf.mxu0
      %576 = vmatprep.mubr.f32.mxu0 0.0
      %577 = vmatmul.mubr.f32.gmra.mxu0 %v314
      %v578 = vpop.f32.mrf.mxu0
      %v579 = vadd.f32 %v238, %v578
      %v580 = vpop.f32.mrf.mxu0
      %581 = vmatprep.mubr.f32.mxu0 0.0
      %582 = vmatmul.mubr.f32.gmra.mxu0 %v317
      %v583 = vpop.f32.mrf.mxu0
      %v584 = vadd.f32 %v238, %v583
      %v585 = vpop.f32.mrf.mxu0
      %586 = vmatprep.mubr.f32.mxu0 0.0
      %587 = vmatmul.mubr.f32.gmra.mxu0 %v320
      %v588 = vpop.f32.mrf.mxu0
      %v589 = vadd.f32 %v238, %v588
      %v590 = vpop.f32.mrf.mxu0
      %591 = vmatprep.mubr.f32.mxu0 0.0
      %592 = vmatmul.mubr.f32.gmra.mxu0 %v323
      %v593 = vpop.f32.mrf.mxu0
      %v594 = vadd.f32 %v238, %v593
      %v595 = vpop.f32.mrf.mxu0
      %596 = vmatprep.mubr.f32.mxu0 0.0
      %597 = vmatmul.mubr.f32.gmra.mxu0 %v326
      %v598 = vpop.f32.mrf.mxu0
      %v599 = vadd.f32 %v238, %v598
      %v600 = vpop.f32.mrf.mxu0
      %601 = vmatprep.mubr.f32.mxu0 0.0
      %602 = vmatmul.mubr.f32.gmra.mxu0 %v329
      %v603 = vpop.f32.mrf.mxu0
      %v604 = vadd.f32 %v238, %v603
      %v605 = vpop.f32.mrf.mxu0
      %606 = vmatprep.mubr.f32.mxu0 0.0
      %607 = vmatmul.mubr.f32.gmra.mxu0 %v332
      %v608 = vpop.f32.mrf.mxu0
      %v609 = vadd.f32 %v238, %v608
      %v610 = vpop.f32.mrf.mxu0
      %611 = vmatprep.mubr.f32.mxu0 0.0
      %612 = vmatmul.mubr.f32.gmra.mxu0 %v335
      %v613 = vpop.f32.mrf.mxu0
      %v614 = vadd.f32 %v238, %v613
      %v615 = vpop.f32.mrf.mxu0
      %616 = vmatprep.mubr.f32.mxu0 0.0
      %617 = vmatmul.mubr.f32.gmra.mxu0 %v338
      %v618 = vpop.f32.mrf.mxu0
      %v619 = vadd.f32 %v238, %v618
      %v620 = vpop.f32.mrf.mxu0
      %621 = vmatprep.mubr.f32.mxu0 0.0
      %622 = vmatmul.mubr.f32.gmra.mxu0 %v341
      %v623 = vpop.f32.mrf.mxu0
      %v624 = vadd.f32 %v238, %v623
      %v625 = vpop.f32.mrf.mxu0
      %626 = vmatprep.mubr.f32.mxu0 0.0
      %627 = vmatmul.mubr.f32.gmra.mxu0 %v344
      %v628 = vpop.f32.mrf.mxu0
      %v629 = vadd.f32 %v238, %v628
      %v630 = vpop.f32.mrf.mxu0
      %631 = vmatprep.mubr.f32.mxu0 0.0
      %632 = vmatmul.mubr.f32.gmra.mxu0 %v347
      %v633 = vpop.f32.mrf.mxu0
      %v634 = vadd.f32 %v238, %v633
      %v635 = vpop.f32.mrf.mxu0
      %636 = vmatprep.mubr.f32.mxu0 0.0
      %637 = vmatmul.mubr.f32.gmra.mxu0 %v350
      %v638 = vpop.f32.mrf.mxu0
      %v639 = vadd.f32 %v238, %v638
      %v640 = vpop.f32.mrf.mxu0
      %641 = vmatprep.mubr.f32.mxu0 0.0
      %642 = vmatmul.mubr.f32.gmra.mxu0 %v353
      %v643 = vpop.f32.mrf.mxu0
      %v644 = vadd.f32 %v238, %v643
      %v645 = vpop.f32.mrf.mxu0
      %646 = vmatprep.mubr.f32.mxu0 0.0
      %647 = vmatmul.mubr.f32.gmra.mxu0 %v356
      %v648 = vpop.f32.mrf.mxu0
      %v649 = vadd.f32 %v238, %v648
      %v650 = vpop.f32.mrf.mxu0
      %651 = vmatprep.mubr.f32.mxu0 0.0
      %652 = vmatmul.mubr.f32.gmra.mxu0 %v359
      %v653 = vpop.f32.mrf.mxu0
      %v654 = vadd.f32 %v238, %v653
      %v655 = vpop.f32.mrf.mxu0
      %656 = vmatprep.mubr.f32.mxu0 0.0
      %657 = vmatmul.mubr.f32.gmra.mxu0 %v362
      %v658 = vpop.f32.mrf.mxu0
      %v659 = vadd.f32 %v238, %v658
      %v660 = vpop.f32.mrf.mxu0
      %661 = vmatprep.mubr.f32.mxu0 0.0
      %662 = vmatmul.mubr.f32.gmra.mxu0 %v365
      %v663 = vpop.f32.mrf.mxu0
      %v664 = vadd.f32 %v238, %v663
      %v665 = vpop.f32.mrf.mxu0
      %666 = vmatprep.mubr.f32.mxu0 0.0
      %667 = vmatmul.mubr.f32.gmra.mxu0 %v368
      %v668 = vpop.f32.mrf.mxu0
      %v669 = vadd.f32 %v238, %v668
      %v670 = vpop.f32.mrf.mxu0
      %671 = vmatprep.mubr.f32.mxu0 0.0
      %672 = vmatmul.mubr.f32.gmra.mxu0 %v371
      %v673 = vpop.f32.mrf.mxu0
      %v674 = vadd.f32 %v238, %v673
      %v675 = vpop.f32.mrf.mxu0
      %676 = vmatprep.mubr.f32.mxu0 0.0
      %677 = vmatmul.mubr.f32.gmra.mxu0 %v374
      %v678 = vpop.f32.mrf.mxu0
      %v679 = vadd.f32 %v238, %v678
      %v680 = vpop.f32.mrf.mxu0
      %681 = vmatprep.mubr.f32.mxu0 0.0
      %682 = vmatmul.mubr.f32.gmra.mxu0 %v377
      %v683 = vpop.f32.mrf.mxu0
      %v684 = vadd.f32 %v238, %v683
      %v685 = vpop.f32.mrf.mxu0
      %686 = vmatprep.mubr.f32.mxu0 0.0
      %687 = vmatmul.mubr.f32.gmra.mxu0 %v380
      %v688 = vpop.f32.mrf.mxu0
      %v689 = vadd.f32 %v238, %v688
      %v690 = vpop.f32.mrf.mxu0
      %691 = vmatprep.mubr.f32.mxu0 0.0
      %692 = vmatmul.mubr.f32.gmra.mxu0 %v383
      %v693 = vpop.f32.mrf.mxu0
      %v694 = vadd.f32 %v238, %v693
      %v695 = vpop.f32.mrf.mxu0
      %696 = vmatprep.mubr.f32.mxu0 0.0
      %697 = vmatmul.mubr.f32.gmra.mxu0 %v386
      %v698 = vpop.f32.mrf.mxu0
      %v699 = vadd.f32 %v238, %v698
      %v700 = vpop.f32.mrf.mxu0
      %701 = vdwg.mxu0
      %v702 = vmax.f32 %v459, 0.0
      %v703 = vmax.f32 %v464, 0.0
      %v704 = vmax.f32 %v469, 0.0
      %v705 = vmax.f32 %v474, 0.0
      %v706 = vmax.f32 %v479, 0.0
      %v707 = vmax.f32 %v484, 0.0
      %v708 = vmax.f32 %v489, 0.0
      %v709 = vmax.f32 %v494, 0.0
      %v710 = vmax.f32 %v499, 0.0
      %v711 = vmax.f32 %v504, 0.0
      %v712 = vmax.f32 %v509, 0.0
      %v713 = vmax.f32 %v514, 0.0
      %v714 = vmax.f32 %v519, 0.0
      %v715 = vmax.f32 %v524, 0.0
      %v716 = vmax.f32 %v529, 0.0
      %v717 = vmax.f32 %v534, 0.0
      %v718 = vmax.f32 %v539, 0.0
      %v719 = vmax.f32 %v544, 0.0
      %v720 = vmax.f32 %v549, 0.0
      %v721 = vmax.f32 %v554, 0.0
      %v722 = vmax.f32 %v559, 0.0
      %v723 = vmax.f32 %v564, 0.0
      %v724 = vmax.f32 %v569, 0.0
      %v725 = vmax.f32 %v574, 0.0
      %v726 = vmax.f32 %v579, 0.0
      %v727 = vmax.f32 %v584, 0.0
      %v728 = vmax.f32 %v589, 0.0
      %v729 = vmax.f32 %v594, 0.0
      %v730 = vmax.f32 %v599, 0.0
      %v731 = vmax.f32 %v604, 0.0
      %v732 = vmax.f32 %v609, 0.0
      %v733 = vmax.f32 %v614, 0.0
      %v734 = vmax.f32 %v619, 0.0
      %v735 = vmax.f32 %v624, 0.0
      %v736 = vmax.f32 %v629, 0.0
      %v737 = vmax.f32 %v634, 0.0
      %v738 = vmax.f32 %v639, 0.0
      %v739 = vmax.f32 %v644, 0.0
      %v740 = vmax.f32 %v649, 0.0
      %v741 = vmax.f32 %v654, 0.0
      %v742 = vmax.f32 %v659, 0.0
      %v743 = vmax.f32 %v664, 0.0
      %v744 = vmax.f32 %v669, 0.0
      %v745 = vmax.f32 %v674, 0.0
      %v746 = vmax.f32 %v679, 0.0
      %v747 = vmax.f32 %v684, 0.0
      %v748 = vmax.f32 %v689, 0.0
      %v749 = vmax.f32 %v694, 0.0
      %v750 = vmax.f32 %v699, 0.0
      %vm751 = vcmask 523264
      %752 = vst.msk [vmem:[%s172] sm:$0xff] %vm751, %v702
      %753 = vst.msk [vmem:[%s172 + $0x8] sm:$0xff] %vm751, %v703
      %754 = vst.msk [vmem:[%s172 + $0x10] sm:$0xff] %vm751, %v704
      %755 = vst.msk [vmem:[%s172 + $0x18] sm:$0xff] %vm751, %v705
      %756 = vst.msk [vmem:[%s172 + $0x20] sm:$0xff] %vm751, %v706
      %757 = vst.msk [vmem:[%s172 + $0x28] sm:$0xff] %vm751, %v707
      %758 = vst.msk [vmem:[%s172 + $0x30] sm:$0xff] %vm751, %v708
      %759 = vst.msk [vmem:[%s172 + $0x38] sm:$0xff] %vm751, %v709
      %760 = vst.msk [vmem:[%s172 + $0x40] sm:$0xff] %vm751, %v710
      %761 = vst.msk [vmem:[%s172 + $0x48] sm:$0xff] %vm751, %v711
      %762 = vst.msk [vmem:[%s172 + $0x50] sm:$0xff] %vm751, %v712
      %763 = vst.msk [vmem:[%s172 + $0x58] sm:$0xff] %vm751, %v713
      %764 = vst.msk [vmem:[%s172 + $0x60] sm:$0xff] %vm751, %v714
      %765 = vst.msk [vmem:[%s172 + $0x68] sm:$0xff] %vm751, %v715
      %766 = vst.msk [vmem:[%s172 + $0x70] sm:$0xff] %vm751, %v716
      %767 = vst.msk [vmem:[%s172 + $0x78] sm:$0xff] %vm751, %v717
      %768 = vst.msk [vmem:[%s172 + $0x80] sm:$0xff] %vm751, %v718
      %769 = vst.msk [vmem:[%s172 + $0x88] sm:$0xff] %vm751, %v719
      %770 = vst.msk [vmem:[%s172 + $0x90] sm:$0xff] %vm751, %v720
      %771 = vst.msk [vmem:[%s172 + $0x98] sm:$0xff] %vm751, %v721
      %772 = vst.msk [vmem:[%s172 + $0xa0] sm:$0xff] %vm751, %v722
      %773 = vst.msk [vmem:[%s172 + $0xa8] sm:$0xff] %vm751, %v723
      %774 = vst.msk [vmem:[%s172 + $0xb0] sm:$0xff] %vm751, %v724
      %775 = vst.msk [vmem:[%s172 + $0xb8] sm:$0xff] %vm751, %v725
      %776 = vst.msk [vmem:[%s172 + $0xc0] sm:$0xff] %vm751, %v726
      %777 = vst.msk [vmem:[%s172 + $0xc8] sm:$0xff] %vm751, %v727
      %778 = vst.msk [vmem:[%s172 + $0xd0] sm:$0xff] %vm751, %v728
      %779 = vst.msk [vmem:[%s172 + $0xd8] sm:$0xff] %vm751, %v729
      %780 = vst.msk [vmem:[%s172 + $0xe0] sm:$0xff] %vm751, %v730
      %781 = vst.msk [vmem:[%s172 + $0xe8] sm:$0xff] %vm751, %v731
      %782 = vst.msk [vmem:[%s172 + $0xf0] sm:$0xff] %vm751, %v732
      %783 = vst.msk [vmem:[%s172 + $0xf8] sm:$0xff] %vm751, %v733
      %784 = vst.msk [vmem:[%s172 + $0x100] sm:$0xff] %vm751, %v734
      %785 = vst.msk [vmem:[%s172 + $0x108] sm:$0xff] %vm751, %v735
      %786 = vst.msk [vmem:[%s172 + $0x110] sm:$0xff] %vm751, %v736
      %787 = vst.msk [vmem:[%s172 + $0x118] sm:$0xff] %vm751, %v737
      %788 = vst.msk [vmem:[%s172 + $0x120] sm:$0xff] %vm751, %v738
      %789 = vst.msk [vmem:[%s172 + $0x128] sm:$0xff] %vm751, %v739
      %790 = vst.msk [vmem:[%s172 + $0x130] sm:$0xff] %vm751, %v740
      %791 = vst.msk [vmem:[%s172 + $0x138] sm:$0xff] %vm751, %v741
      %792 = vst.msk [vmem:[%s172 + $0x140] sm:$0xff] %vm751, %v742
      %793 = vst.msk [vmem:[%s172 + $0x148] sm:$0xff] %vm751, %v743
      %794 = vst.msk [vmem:[%s172 + $0x150] sm:$0xff] %vm751, %v744
      %795 = vst.msk [vmem:[%s172 + $0x158] sm:$0xff] %vm751, %v745
      %796 = vst.msk [vmem:[%s172 + $0x160] sm:$0xff] %vm751, %v746
      %797 = vst.msk [vmem:[%s172 + $0x168] sm:$0xff] %vm751, %v747
      %798 = vst.msk [vmem:[%s172 + $0x170] sm:$0xff] %vm751, %v748
      %799 = vst.msk [vmem:[%s172 + $0x178] sm:$0xff] %vm751, %v749
      %800 = vst.msk [vmem:[%s172 + $0x180] sm:$0xff] %vm751, %v750
      %s801 = smul.u32 49, %s14
      %p802 = scmp.lt.s32.totalorder %s801, 195
      %s803 = scalar_select %p802, %s801, 195
      %s804 = smul.addr %s803, 8
      %s805 = scalar_lea.vmem %s3, %s804
      // Predicated region
      $region33: #{cifar10_deep_net_forward.7} parent=31 // pred_check
        %p806 = pneg %p100
      $region34: #{cifar10_deep_net_forward.7} parent=31 // pred_check_branch
        %808 = sbr.rel (%p806) target = $region36
      $region35: #{cifar10_deep_net_forward.7} parent=31 // pred_region
        %s809 = smul.u32 49, %s14
      $region36: #{cifar10_deep_net_forward.7} parent=31 // pred_fallthru
        _
    $region32: #{cifar10_deep_net_forward.7} parent=5 // pred_fallthru
      _
    %p810 = scmp.le.s32.totalorder 2, %s9
    // Predicated region
    $region37: #{cifar10_deep_net_forward.7} parent=5 // pred_check
      %p811 = pneg %p810
    $region38: #{cifar10_deep_net_forward.7} parent=5 // pred_check_branch
      %813 = sbr.rel (%p811) target = $region40
    $region39: #{cifar10_deep_net_forward.7} parent=5 // pred_region
      %s814 = ssub.s32 %s9, 2
      // Predicated region
      $region41: #{cifar10_deep_net_forward.7} parent=39 // pred_check
        %p815 = pneg %p106
      $region42: #{cifar10_deep_net_forward.7} parent=39 // pred_check_branch
        %817 = sbr.rel (%p815) target = $region44
      $region43: #{cifar10_deep_net_forward.7} parent=39 // pred_region
        %s818 = smul.u32 49, %s15
        %p819 = scmp.lt.s32.totalorder %s818, 195
        %s820 = scalar_select %p819, %s818, 195
        %s821 = smul.addr %s820, 8
        %s822 = scalar_lea.vmem %s3, %s821
      $region44: #{cifar10_deep_net_forward.7} parent=39 // pred_fallthru
        _
    $region40: #{cifar10_deep_net_forward.7} parent=5 // pred_fallthru
      _
  $region6: #{cifar10_deep_net_forward.7} parent=0 // loop_footer
    %s13 = sadd.s32 1, %s9
  $region7: #{cifar10_deep_net_forward.7} parent=0 // loop_footer_branch
    %8 = sbr.rel target = $region3
  $region8: #{cifar10_deep_net_forward.7} parent=0 // loop_exit
    _

// kernel: cifar10_deep_net_forward.8
$region0: #{cifar10_deep_net_forward.8}
  #allocation0 [shape = 'u32[]', space=smem, size = 0x4, offset = 0x4, fixed_abs, tag = 'smem constant byte address 0x4 - core index']
  #allocation1 [shape = 'u32[144,128]{1,0:T(1,128)}', space=vmem, size = 0x12000, scoped, tag = 'internal scratch']
  %s0 = inlined_call_operand.vmem [shape: f32[28,56,64], index: 0, kind: input, shape index: {}]
  %s1 = inlined_call_operand.vmem [shape: f32[28,14,64], index: 1, kind: output, shape index: {}]
  %s2 = sld [smem:[#allocation0]]
  $region14: #{cifar10_deep_net_forward.8} parent=0
    _
  %s4 = ssub.s32 1, %s2
  %s5 = scalar_select 0, %s4, %s2
  // Predicated region
  $region2: #{cifar10_deep_net_forward.8} parent=0 // pred_check
    _
  $region3: #{cifar10_deep_net_forward.8} parent=0 // pred_check_branch
    %7 = sbr.rel (0) target = $region5
  $region4: #{cifar10_deep_net_forward.8} parent=0 // pred_region
    _
  $region5: #{cifar10_deep_net_forward.8} parent=0 // pred_fallthru
    _
  %v8 = vld [vmem:[%s0] ss:$2 sm:$0xff]
  %s9 = scalar_lea.vmem %s0, 16
  %v10 = vld [vmem:[%s9] ss:$2 sm:$0x3f]
  %s11 = scalar_lea.vmem %s0, 56
  %v12 = vld [vmem:[%s11] ss:$2 sm:$0xff]
  %s13 = scalar_lea.vmem %s0, 72
  %v14 = vld [vmem:[%s13] ss:$2 sm:$0x3f]
  %s15 = scalar_lea.vmem %s0, 112
  %v16 = vld [vmem:[%s15] ss:$2 sm:$0xff]
  %s17 = scalar_lea.vmem %s0, 128
  %v18 = vld [vmem:[%s17] ss:$2 sm:$0x3f]
  %s19 = scalar_lea.vmem %s0, 168
  %v20 = vld [vmem:[%s19] ss:$2 sm:$0xff]
  %s21 = scalar_lea.vmem %s0, 184
  %v22 = vld [vmem:[%s21] ss:$2 sm:$0x3f]
  %s23 = scalar_lea.vmem %s0, 224
  %v24 = vld [vmem:[%s23] ss:$2 sm:$0xff]
  %s25 = scalar_lea.vmem %s0, 240
  %v26 = vld [vmem:[%s25] ss:$2 sm:$0x3f]
  %s27 = scalar_lea.vmem %s0, 280
  %v28 = vld [vmem:[%s27] ss:$2 sm:$0xff]
  %s29 = scalar_lea.vmem %s0, 296
  %v30 = vld [vmem:[%s29] ss:$2 sm:$0x3f]
  %s31 = scalar_lea.vmem %s0, 336
  %v32 = vld [vmem:[%s31] ss:$2 sm:$0xff]
  %s33 = scalar_lea.vmem %s0, 352
  %v34 = vld [vmem:[%s33] ss:$2 sm:$0x3f]
  %s35 = scalar_lea.vmem %s0, 392
  %v36 = vld [vmem:[%s35] ss:$2 sm:$0xff]
  %s37 = scalar_lea.vmem %s0, 408
  %v38 = vld [vmem:[%s37] ss:$2 sm:$0x3f]
  %s39 = scalar_lea.vmem %s0, 448
  %v40 = vld [vmem:[%s39] ss:$2 sm:$0xff]
  %s41 = scalar_lea.vmem %s0, 464
  %v42 = vld [vmem:[%s41] ss:$2 sm:$0x3f]
  %s43 = scalar_lea.vmem %s0, 504
  %v44 = vld [vmem:[%s43] ss:$2 sm:$0xff]
  %s45 = scalar_lea.vmem %s0, 520
  %v46 = vld [vmem:[%s45] ss:$2 sm:$0x3f]
  %s47 = scalar_lea.vmem %s0, 560
  %v48 = vld [vmem:[%s47] ss:$2 sm:$0xff]
  %s49 = scalar_lea.vmem %s0, 576
  %v50 = vld [vmem:[%s49] ss:$2 sm:$0x3f]
  %s51 = scalar_lea.vmem %s0, 616
  %v52 = vld [vmem:[%s51] ss:$2 sm:$0xff]
  %s53 = scalar_lea.vmem %s0, 632
  %v54 = vld [vmem:[%s53] ss:$2 sm:$0x3f]
  %s55 = scalar_lea.vmem %s0, 672
  %v56 = vld [vmem:[%s55] ss:$2 sm:$0xff]
  %s57 = scalar_lea.vmem %s0, 688
  %v58 = vld [vmem:[%s57] ss:$2 sm:$0x3f]
  %s59 = scalar_lea.vmem %s0, 728
  %v60 = vld [vmem:[%s59] ss:$2 sm:$0xff]
  %s61 = scalar_lea.vmem %s0, 744
  %v62 = vld [vmem:[%s61] ss:$2 sm:$0x3f]
  %s63 = scalar_lea.vmem %s0, 784
  %v64 = vld [vmem:[%s63] ss:$2 sm:$0xff]
  %s65 = scalar_lea.vmem %s0, 800
  %v66 = vld [vmem:[%s65] ss:$2 sm:$0x3f]
  %s67 = scalar_lea.vmem %s0, 840
  %v68 = vld [vmem:[%s67] ss:$2 sm:$0xff]
  %s69 = scalar_lea.vmem %s0, 856
  %v70 = vld [vmem:[%s69] ss:$2 sm:$0x3f]
  %s71 = scalar_lea.vmem %s0, 896
  %v72 = vld [vmem:[%s71] ss:$2 sm:$0xff]
  %s73 = scalar_lea.vmem %s0, 912
  %v74 = vld [vmem:[%s73] ss:$2 sm:$0x3f]
  %s75 = scalar_lea.vmem %s0, 952
  %v76 = vld [vmem:[%s75] ss:$2 sm:$0xff]
  %s77 = scalar_lea.vmem %s0, 968
  %v78 = vld [vmem:[%s77] ss:$2 sm:$0x3f]
  %s79 = scalar_lea.vmem %s0, 1008
  %v80 = vld [vmem:[%s79] ss:$2 sm:$0xff]
  %s81 = scalar_lea.vmem %s0, 1024
  %v82 = vld [vmem:[%s81] ss:$2 sm:$0x3f]
  %s83 = scalar_lea.vmem %s0, 1064
  %v84 = vld [vmem:[%s83] ss:$2 sm:$0xff]
  %s85 = scalar_lea.vmem %s0, 1080
  %v86 = vld [vmem:[%s85] ss:$2 sm:$0x3f]
  %s87 = scalar_lea.vmem %s0, 1120
  %v88 = vld [vmem:[%s87] ss:$2 sm:$0xff]
  %s89 = scalar_lea.vmem %s0, 1136
  %v90 = vld [vmem:[%s89] ss:$2 sm:$0x3f]
  %s91 = scalar_lea.vmem %s0, 1176
  %v92 = vld [vmem:[%s91] ss:$2 sm:$0xff]
  %s93 = scalar_lea.vmem %s0, 1192
  %v94 = vld [vmem:[%s93] ss:$2 sm:$0x3f]
  %s95 = scalar_lea.vmem %s0, 1232
  %v96 = vld [vmem:[%s95] ss:$2 sm:$0xff]
  %s97 = scalar_lea.vmem %s0, 1248
  %v98 = vld [vmem:[%s97] ss:$2 sm:$0x3f]
  %s99 = scalar_lea.vmem %s0, 1288
  %v100 = vld [vmem:[%s99] ss:$2 sm:$0xff]
  %s101 = scalar_lea.vmem %s0, 1304
  %v102 = vld [vmem:[%s101] ss:$2 sm:$0x3f]
  %s103 = scalar_lea.vmem %s0, 1344
  %v104 = vld [vmem:[%s103] ss:$2 sm:$0xff]
  %s105 = scalar_lea.vmem %s0, 1360
  %v106 = vld [vmem:[%s105] ss:$2 sm:$0x3f]
  %s107 = scalar_lea.vmem %s0, 1400
  %v108 = vld [vmem:[%s107] ss:$2 sm:$0xff]
  %s109 = scalar_lea.vmem %s0, 1416
  %v110 = vld [vmem:[%s109] ss:$2 sm:$0x3f]
  %s111 = scalar_lea.vmem %s0, 1456
  %v112 = vld [vmem:[%s111] ss:$2 sm:$0xff]
  %s113 = scalar_lea.vmem %s0, 1472
  %v114 = vld [vmem:[%s113] ss:$2 sm:$0x3f]
  %s115 = scalar_lea.vmem %s0, 1512
  %v116 = vld [vmem:[%s115] ss:$2 sm:$0xff]
  %s117 = scalar_lea.vmem %s0, 1528
  %v118 = vld [vmem:[%s117] ss:$2 sm:$0x3f]
  %s119 = scalar_lea.vmem %s0, 1
  %v120 = vld [vmem:[%s119] ss:$2 sm:$0xff]
  %s121 = scalar_lea.vmem %s0, 17
  %v122 = vld [vmem:[%s121] ss:$2 sm:$0x3f]
  %s123 = scalar_lea.vmem %s0, 57
  %v124 = vld [vmem:[%s123] ss:$2 sm:$0xff]
  %s125 = scalar_lea.vmem %s0, 73
  %v126 = vld [vmem:[%s125] ss:$2 sm:$0x3f]
  %s127 = scalar_lea.vmem %s0, 113
  %v128 = vld [vmem:[%s127] ss:$2 sm:$0xff]
  %s129 = scalar_lea.vmem %s0, 129
  %v130 = vld [vmem:[%s129] ss:$2 sm:$0x3f]
  %s131 = scalar_lea.vmem %s0, 169
  %v132 = vld [vmem:[%s131] ss:$2 sm:$0xff]
  %s133 = scalar_lea.vmem %s0, 185
  %v134 = vld [vmem:[%s133] ss:$2 sm:$0x3f]
  %s135 = scalar_lea.vmem %s0, 225
  %v136 = vld [vmem:[%s135] ss:$2 sm:$0xff]
  %s137 = scalar_lea.vmem %s0, 241
  %v138 = vld [vmem:[%s137] ss:$2 sm:$0x3f]
  %s139 = scalar_lea.vmem %s0, 281
  %v140 = vld [vmem:[%s139] ss:$2 sm:$0xff]
  %s141 = scalar_lea.vmem %s0, 297
  %v142 = vld [vmem:[%s141] ss:$2 sm:$0x3f]
  %s143 = scalar_lea.vmem %s0, 337
  %v144 = vld [vmem:[%s143] ss:$2 sm:$0xff]
  %s145 = scalar_lea.vmem %s0, 353
  %v146 = vld [vmem:[%s145] ss:$2 sm:$0x3f]
  %s147 = scalar_lea.vmem %s0, 393
  %v148 = vld [vmem:[%s147] ss:$2 sm:$0xff]
  %s149 = scalar_lea.vmem %s0, 409
  %v150 = vld [vmem:[%s149] ss:$2 sm:$0x3f]
  %s151 = scalar_lea.vmem %s0, 449
  %v152 = vld [vmem:[%s151] ss:$2 sm:$0xff]
  %s153 = scalar_lea.vmem %s0, 465
  %v154 = vld [vmem:[%s153] ss:$2 sm:$0x3f]
  %s155 = scalar_lea.vmem %s0, 505
  %v156 = vld [vmem:[%s155] ss:$2 sm:$0xff]
  %s157 = scalar_lea.vmem %s0, 521
  %v158 = vld [vmem:[%s157] ss:$2 sm:$0x3f]
  %s159 = scalar_lea.vmem %s0, 561
  %v160 = vld [vmem:[%s159] ss:$2 sm:$0xff]
  %s161 = scalar_lea.vmem %s0, 577
  %v162 = vld [vmem:[%s161] ss:$2 sm:$0x3f]
  %s163 = scalar_lea.vmem %s0, 617
  %v164 = vld [vmem:[%s163] ss:$2 sm:$0xff]
  %s165 = scalar_lea.vmem %s0, 633
  %v166 = vld [vmem:[%s165] ss:$2 sm:$0x3f]
  %s167 = scalar_lea.vmem %s0, 673
  %v168 = vld [vmem:[%s167] ss:$2 sm:$0xff]
  %s169 = scalar_lea.vmem %s0, 689
  %v170 = vld [vmem:[%s169] ss:$2 sm:$0x3f]
  %s171 = scalar_lea.vmem %s0, 729
  %v172 = vld [vmem:[%s171] ss:$2 sm:$0xff]
  %s173 = scalar_lea.vmem %s0, 745
  %v174 = vld [vmem:[%s173] ss:$2 sm:$0x3f]
  %s175 = scalar_lea.vmem %s0, 785
  %v176 = vld [vmem:[%s175] ss:$2 sm:$0xff]
  %s177 = scalar_lea.vmem %s0, 801
  %v178 = vld [vmem:[%s177] ss:$2 sm:$0x3f]
  %s179 = scalar_lea.vmem %s0, 841
  %v180 = vld [vmem:[%s179] ss:$2 sm:$0xff]
  %s181 = scalar_lea.vmem %s0, 857
  %v182 = vld [vmem:[%s181] ss:$2 sm:$0x3f]
  %s183 = scalar_lea.vmem %s0, 897
  %v184 = vld [vmem:[%s183] ss:$2 sm:$0xff]
  %s185 = scalar_lea.vmem %s0, 913
  %v186 = vld [vmem:[%s185] ss:$2 sm:$0x3f]
  %s187 = scalar_lea.vmem %s0, 953
  %v188 = vld [vmem:[%s187] ss:$2 sm:$0xff]
  %s189 = scalar_lea.vmem %s0, 969
  %v190 = vld [vmem:[%s189] ss:$2 sm:$0x3f]
  %s191 = scalar_lea.vmem %s0, 1009
  %v192 = vld [vmem:[%s191] ss:$2 sm:$0xff]
  %s193 = scalar_lea.vmem %s0, 1025
  %v194 = vld [vmem:[%s193] ss:$2 sm:$0x3f]
  %s195 = scalar_lea.vmem %s0, 1065
  %v196 = vld [vmem:[%s195] ss:$2 sm:$0xff]
  %s197 = scalar_lea.vmem %s0, 1081
  %v198 = vld [vmem:[%s197] ss:$2 sm:$0x3f]
  %s199 = scalar_lea.vmem %s0, 1121
  %v200 = vld [vmem:[%s199] ss:$2 sm:$0xff]
  %s201 = scalar_lea.vmem %s0, 1137
  %v202 = vld [vmem:[%s201] ss:$2 sm:$0x3f]
  %s203 = scalar_lea.vmem %s0, 1177
  %v204 = vld [vmem:[%s203] ss:$2 sm:$0xff]
  %s205 = scalar_lea.vmem %s0, 1193
  %v206 = vld [vmem:[%s205] ss:$2 sm:$0x3f]
  %s207 = scalar_lea.vmem %s0, 1233
  %v208 = vld [vmem:[%s207] ss:$2 sm:$0xff]
  %s209 = scalar_lea.vmem %s0, 1249
  %v210 = vld [vmem:[%s209] ss:$2 sm:$0x3f]
  %s211 = scalar_lea.vmem %s0, 1289
  %v212 = vld [vmem:[%s211] ss:$2 sm:$0xff]
  %s213 = scalar_lea.vmem %s0, 1305
  %v214 = vld [vmem:[%s213] ss:$2 sm:$0x3f]
  %s215 = scalar_lea.vmem %s0, 1345
  %v216 = vld [vmem:[%s215] ss:$2 sm:$0xff]
  %s217 = scalar_lea.vmem %s0, 1361
  %v218 = vld [vmem:[%s217] ss:$2 sm:$0x3f]
  %s219 = scalar_lea.vmem %s0, 1401
  %v220 = vld [vmem:[%s219] ss:$2 sm:$0xff]
  %s221 = scalar_lea.vmem %s0, 1417
  %v222 = vld [vmem:[%s221] ss:$2 sm:$0x3f]
  %s223 = scalar_lea.vmem %s0, 1457
  %v224 = vld [vmem:[%s223] ss:$2 sm:$0xff]
  %s225 = scalar_lea.vmem %s0, 1473
  %v226 = vld [vmem:[%s225] ss:$2 sm:$0x3f]
  %s227 = scalar_lea.vmem %s0, 1513
  %v228 = vld [vmem:[%s227] ss:$2 sm:$0xff]
  %s229 = scalar_lea.vmem %s0, 1529
  %v230 = vld [vmem:[%s229] ss:$2 sm:$0x3f]
  %s231 = scalar_lea.vmem %s0, 28
  %v232 = vld [vmem:[%s231] ss:$2 sm:$0xff]
  %s233 = scalar_lea.vmem %s0, 44
  %v234 = vld [vmem:[%s233] ss:$2 sm:$0x3f]
  %s235 = scalar_lea.vmem %s0, 84
  %v236 = vld [vmem:[%s235] ss:$2 sm:$0xff]
  %s237 = scalar_lea.vmem %s0, 100
  %v238 = vld [vmem:[%s237] ss:$2 sm:$0x3f]
  %s239 = scalar_lea.vmem %s0, 140
  %v240 = vld [vmem:[%s239] ss:$2 sm:$0xff]
  %s241 = scalar_lea.vmem %s0, 156
  %v242 = vld [vmem:[%s241] ss:$2 sm:$0x3f]
  %s243 = scalar_lea.vmem %s0, 196
  %v244 = vld [vmem:[%s243] ss:$2 sm:$0xff]
  %s245 = scalar_lea.vmem %s0, 212
  %v246 = vld [vmem:[%s245] ss:$2 sm:$0x3f]
  %s247 = scalar_lea.vmem %s0, 252
  %v248 = vld [vmem:[%s247] ss:$2 sm:$0xff]
  %s249 = scalar_lea.vmem %s0, 268
  %v250 = vld [vmem:[%s249] ss:$2 sm:$0x3f]
  %s251 = scalar_lea.vmem %s0, 308
  %v252 = vld [vmem:[%s251] ss:$2 sm:$0xff]
  %s253 = scalar_lea.vmem %s0, 324
  %v254 = vld [vmem:[%s253] ss:$2 sm:$0x3f]
  %s255 = scalar_lea.vmem %s0, 364
  %v256 = vld [vmem:[%s255] ss:$2 sm:$0xff]
  %s257 = scalar_lea.vmem %s0, 380
  %v258 = vld [vmem:[%s257] ss:$2 sm:$0x3f]
  %s259 = scalar_lea.vmem %s0, 420
  %v260 = vld [vmem:[%s259] ss:$2 sm:$0xff]
  %s261 = scalar_lea.vmem %s0, 436
  %v262 = vld [vmem:[%s261] ss:$2 sm:$0x3f]
  %s263 = scalar_lea.vmem %s0, 476
  %v264 = vld [vmem:[%s263] ss:$2 sm:$0xff]
  %s265 = scalar_lea.vmem %s0, 492
  %v266 = vld [vmem:[%s265] ss:$2 sm:$0x3f]
  %s267 = scalar_lea.vmem %s0, 532
  %v268 = vld [vmem:[%s267] ss:$2 sm:$0xff]
  %s269 = scalar_lea.vmem %s0, 548
  %v270 = vld [vmem:[%s269] ss:$2 sm:$0x3f]
  %s271 = scalar_lea.vmem %s0, 588
  %v272 = vld [vmem:[%s271] ss:$2 sm:$0xff]
  %s273 = scalar_lea.vmem %s0, 604
  %v274 = vld [vmem:[%s273] ss:$2 sm:$0x3f]
  %s275 = scalar_lea.vmem %s0, 644
  %v276 = vld [vmem:[%s275] ss:$2 sm:$0xff]
  %s277 = scalar_lea.vmem %s0, 660
  %v278 = vld [vmem:[%s277] ss:$2 sm:$0x3f]
  %s279 = scalar_lea.vmem %s0, 700
  %v280 = vld [vmem:[%s279] ss:$2 sm:$0xff]
  %s281 = scalar_lea.vmem %s0, 716
  %v282 = vld [vmem:[%s281] ss:$2 sm:$0x3f]
  %s283 = scalar_lea.vmem %s0, 756
  %v284 = vld [vmem:[%s283] ss:$2 sm:$0xff]
  %s285 = scalar_lea.vmem %s0, 772
  %v286 = vld [vmem:[%s285] ss:$2 sm:$0x3f]
  %s287 = scalar_lea.vmem %s0, 812
  %v288 = vld [vmem:[%s287] ss:$2 sm:$0xff]
  %s289 = scalar_lea.vmem %s0, 828
  %v290 = vld [vmem:[%s289] ss:$2 sm:$0x3f]
  %s291 = scalar_lea.vmem %s0, 868
  %v292 = vld [vmem:[%s291] ss:$2 sm:$0xff]
  %s293 = scalar_lea.vmem %s0, 884
  %v294 = vld [vmem:[%s293] ss:$2 sm:$0x3f]
  %s295 = scalar_lea.vmem %s0, 924
  %v296 = vld [vmem:[%s295] ss:$2 sm:$0xff]
  %s297 = scalar_lea.vmem %s0, 940
  %v298 = vld [vmem:[%s297] ss:$2 sm:$0x3f]
  %s299 = scalar_lea.vmem %s0, 980
  %v300 = vld [vmem:[%s299] ss:$2 sm:$0xff]
  %s301 = scalar_lea.vmem %s0, 996
  %v302 = vld [vmem:[%s301] ss:$2 sm:$0x3f]
  %s303 = scalar_lea.vmem %s0, 1036
  %v304 = vld [vmem:[%s303] ss:$2 sm:$0xff]
  %s305 = scalar_lea.vmem %s0, 1052
  %v306 = vld [vmem:[%s305] ss:$2 sm:$0x3f]
  %s307 = scalar_lea.vmem %s0, 1092
  %v308 = vld [vmem:[%s307] ss:$2 sm:$0xff]
  %s309 = scalar_lea.vmem %s0, 1108
  %v310 = vld [vmem:[%s309] ss:$2 sm:$0x3f]
  %s311 = scalar_lea.vmem %s0, 1148
  %v312 = vld [vmem:[%s311] ss:$2 sm:$0xff]
  %s313 = scalar_lea.vmem %s0, 1164
  %v314 = vld [vmem:[%s313] ss:$2 sm:$0x3f]
  %s315 = scalar_lea.vmem %s0, 1204
  %v316 = vld [vmem:[%s315] ss:$2 sm:$0xff]
  %s317 = scalar_lea.vmem %s0, 1220
  %v318 = vld [vmem:[%s317] ss:$2 sm:$0x3f]
  %s319 = scalar_lea.vmem %s0, 1260
  %v320 = vld [vmem:[%s319] ss:$2 sm:$0xff]
  %s321 = scalar_lea.vmem %s0, 1276
  %v322 = vld [vmem:[%s321] ss:$2 sm:$0x3f]
  %s323 = scalar_lea.vmem %s0, 1316
  %v324 = vld [vmem:[%s323] ss:$2 sm:$0xff]
  %s325 = scalar_lea.vmem %s0, 1332
  %v326 = vld [vmem:[%s325] ss:$2 sm:$0x3f]
  %s327 = scalar_lea.vmem %s0, 1372
  %v328 = vld [vmem:[%s327] ss:$2 sm:$0xff]
  %s329 = scalar_lea.vmem %s0, 1388
  %v330 = vld [vmem:[%s329] ss:$2 sm:$0x3f]
  %s331 = scalar_lea.vmem %s0, 1428
  %v332 = vld [vmem:[%s331] ss:$2 sm:$0xff]
  %s333 = scalar_lea.vmem %s0, 1444
  %v334 = vld [vmem:[%s333] ss:$2 sm:$0x3f]
  %s335 = scalar_lea.vmem %s0, 1484
  %v336 = vld [vmem:[%s335] ss:$2 sm:$0xff]
  %s337 = scalar_lea.vmem %s0, 1500
  %v338 = vld [vmem:[%s337] ss:$2 sm:$0x3f]
  %s339 = scalar_lea.vmem %s0, 1540
  %v340 = vld [vmem:[%s339] ss:$2 sm:$0xff]
  %s341 = scalar_lea.vmem %s0, 1556
  %v342 = vld [vmem:[%s341] ss:$2 sm:$0x3f]
  %s343 = scalar_lea.vmem %s0, 29
  %v344 = vld [vmem:[%s343] ss:$2 sm:$0xff]
  %s345 = scalar_lea.vmem %s0, 45
  %v346 = vld [vmem:[%s345] ss:$2 sm:$0x3f]
  %s347 = scalar_lea.vmem %s0, 85
  %v348 = vld [vmem:[%s347] ss:$2 sm:$0xff]
  %s349 = scalar_lea.vmem %s0, 101
  %v350 = vld [vmem:[%s349] ss:$2 sm:$0x3f]
  %s351 = scalar_lea.vmem %s0, 141
  %v352 = vld [vmem:[%s351] ss:$2 sm:$0xff]
  %s353 = scalar_lea.vmem %s0, 157
  %v354 = vld [vmem:[%s353] ss:$2 sm:$0x3f]
  %s355 = scalar_lea.vmem %s0, 197
  %v356 = vld [vmem:[%s355] ss:$2 sm:$0xff]
  %s357 = scalar_lea.vmem %s0, 213
  %v358 = vld [vmem:[%s357] ss:$2 sm:$0x3f]
  %s359 = scalar_lea.vmem %s0, 253
  %v360 = vld [vmem:[%s359] ss:$2 sm:$0xff]
  %s361 = scalar_lea.vmem %s0, 269
  %v362 = vld [vmem:[%s361] ss:$2 sm:$0x3f]
  %s363 = scalar_lea.vmem %s0, 309
  %v364 = vld [vmem:[%s363] ss:$2 sm:$0xff]
  %s365 = scalar_lea.vmem %s0, 325
  %v366 = vld [vmem:[%s365] ss:$2 sm:$0x3f]
  %s367 = scalar_lea.vmem %s0, 365
  %v368 = vld [vmem:[%s367] ss:$2 sm:$0xff]
  %s369 = scalar_lea.vmem %s0, 381
  %v370 = vld [vmem:[%s369] ss:$2 sm:$0x3f]
  %s371 = scalar_lea.vmem %s0, 421
  %v372 = vld [vmem:[%s371] ss:$2 sm:$0xff]
  %s373 = scalar_lea.vmem %s0, 437
  %v374 = vld [vmem:[%s373] ss:$2 sm:$0x3f]
  %s375 = scalar_lea.vmem %s0, 477
  %v376 = vld [vmem:[%s375] ss:$2 sm:$0xff]
  %s377 = scalar_lea.vmem %s0, 493
  %v378 = vld [vmem:[%s377] ss:$2 sm:$0x3f]
  %s379 = scalar_lea.vmem %s0, 533
  %v380 = vld [vmem:[%s379] ss:$2 sm:$0xff]
  %s381 = scalar_lea.vmem %s0, 549
  %v382 = vld [vmem:[%s381] ss:$2 sm:$0x3f]
  %s383 = scalar_lea.vmem %s0, 589
  %v384 = vld [vmem:[%s383] ss:$2 sm:$0xff]
  %s385 = scalar_lea.vmem %s0, 605
  %v386 = vld [vmem:[%s385] ss:$2 sm:$0x3f]
  %s387 = scalar_lea.vmem %s0, 645
  %v388 = vld [vmem:[%s387] ss:$2 sm:$0xff]
  %s389 = scalar_lea.vmem %s0, 661
  %v390 = vld [vmem:[%s389] ss:$2 sm:$0x3f]
  %s391 = scalar_lea.vmem %s0, 701
  %v392 = vld [vmem:[%s391] ss:$2 sm:$0xff]
  %s393 = scalar_lea.vmem %s0, 717
  %v394 = vld [vmem:[%s393] ss:$2 sm:$0x3f]
  %s395 = scalar_lea.vmem %s0, 757
  %v396 = vld [vmem:[%s395] ss:$2 sm:$0xff]
  %s397 = scalar_lea.vmem %s0, 773
  %v398 = vld [vmem:[%s397] ss:$2 sm:$0x3f]
  %s399 = scalar_lea.vmem %s0, 813
  %v400 = vld [vmem:[%s399] ss:$2 sm:$0xff]
  %s401 = scalar_lea.vmem %s0, 829
  %v402 = vld [vmem:[%s401] ss:$2 sm:$0x3f]
  %s403 = scalar_lea.vmem %s0, 869
  %v404 = vld [vmem:[%s403] ss:$2 sm:$0xff]
  %s405 = scalar_lea.vmem %s0, 885
  %v406 = vld [vmem:[%s405] ss:$2 sm:$0x3f]
  %s407 = scalar_lea.vmem %s0, 925
  %v408 = vld [vmem:[%s407] ss:$2 sm:$0xff]
  %s409 = scalar_lea.vmem %s0, 941
  %v410 = vld [vmem:[%s409] ss:$2 sm:$0x3f]
  %s411 = scalar_lea.vmem %s0, 981
  %v412 = vld [vmem:[%s411] ss:$2 sm:$0xff]
  %s413 = scalar_lea.vmem %s0, 997
  %v414 = vld [vmem:[%s413] ss:$2 sm:$0x3f]
  %s415 = scalar_lea.vmem %s0, 1037
  %v416 = vld [vmem:[%s415] ss:$2 sm:$0xff]
  %s417 = scalar_lea.vmem %s0, 1053
  %v418 = vld [vmem:[%s417] ss:$2 sm:$0x3f]
  %s419 = scalar_lea.vmem %s0, 1093
  %v420 = vld [vmem:[%s419] ss:$2 sm:$0xff]
  %s421 = scalar_lea.vmem %s0, 1109
  %v422 = vld [vmem:[%s421] ss:$2 sm:$0x3f]
  %s423 = scalar_lea.vmem %s0, 1149
  %v424 = vld [vmem:[%s423] ss:$2 sm:$0xff]
  %s425 = scalar_lea.vmem %s0, 1165
  %v426 = vld [vmem:[%s425] ss:$2 sm:$0x3f]
  %s427 = scalar_lea.vmem %s0, 1205
  %v428 = vld [vmem:[%s427] ss:$2 sm:$0xff]
  %s429 = scalar_lea.vmem %s0, 1221
  %v430 = vld [vmem:[%s429] ss:$2 sm:$0x3f]
  %s431 = scalar_lea.vmem %s0, 1261
  %v432 = vld [vmem:[%s431] ss:$2 sm:$0xff]
  %s433 = scalar_lea.vmem %s0, 1277
  %v434 = vld [vmem:[%s433] ss:$2 sm:$0x3f]
  %s435 = scalar_lea.vmem %s0, 1317
  %v436 = vld [vmem:[%s435] ss:$2 sm:$0xff]
  %s437 = scalar_lea.vmem %s0, 1333
  %v438 = vld [vmem:[%s437] ss:$2 sm:$0x3f]
  %s439 = scalar_lea.vmem %s0, 1373
  %v440 = vld [vmem:[%s439] ss:$2 sm:$0xff]
  %s441 = scalar_lea.vmem %s0, 1389
  %v442 = vld [vmem:[%s441] ss:$2 sm:$0x3f]
  %s443 = scalar_lea.vmem %s0, 1429
  %v444 = vld [vmem:[%s443] ss:$2 sm:$0xff]
  %s445 = scalar_lea.vmem %s0, 1445
  %v446 = vld [vmem:[%s445] ss:$2 sm:$0x3f]
  %s447 = scalar_lea.vmem %s0, 1485
  %v448 = vld [vmem:[%s447] ss:$2 sm:$0xff]
  %s449 = scalar_lea.vmem %s0, 1501
  %v450 = vld [vmem:[%s449] ss:$2 sm:$0x3f]
  %s451 = scalar_lea.vmem %s0, 1541
  %v452 = vld [vmem:[%s451] ss:$2 sm:$0xff]
  %s453 = scalar_lea.vmem %s0, 1557
  %v454 = vld [vmem:[%s453] ss:$2 sm:$0x3f]
  %v455 = vmax.f32 %v8, %v120
  %v456 = vmax.f32 %v10, %v122
  %v457 = vmax.f32 %v12, %v124
  %v458 = vmax.f32 %v14, %v126
  %v459 = vmax.f32 %v16, %v128
  %v460 = vmax.f32 %v18, %v130
  %v461 = vmax.f32 %v20, %v132
  %v462 = vmax.f32 %v22, %v134
  %v463 = vmax.f32 %v24, %v136
  %v464 = vmax.f32 %v26, %v138
  %v465 = vmax.f32 %v28, %v140
  %v466 = vmax.f32 %v30, %v142
  %v467 = vmax.f32 %v32, %v144
  %v468 = vmax.f32 %v34, %v146
  %v469 = vmax.f32 %v36, %v148
  %v470 = vmax.f32 %v38, %v150
  %v471 = vmax.f32 %v40, %v152
  %v472 = vmax.f32 %v42, %v154
  %v473 = vmax.f32 %v44, %v156
  %v474 = vmax.f32 %v46, %v158
  %v475 = vmax.f32 %v48, %v160
  %v476 = vmax.f32 %v50, %v162
  %v477 = vmax.f32 %v52, %v164
  %v478 = vmax.f32 %v54, %v166
  %v479 = vmax.f32 %v56, %v168
  %v480 = vmax.f32 %v58, %v170
  %v481 = vmax.f32 %v60, %v172
  %v482 = vmax.f32 %v62, %v174
  %v483 = vmax.f32 %v64, %v176
  %v484 = vmax.f32 %v66, %v178
  %v485 = vmax.f32 %v68, %v180
  %v486 = vmax.f32 %v70, %v182
  %v487 = vmax.f32 %v72, %v184
  %v488 = vmax.f32 %v74, %v186
  %v489 = vmax.f32 %v76, %v188
  %v490 = vmax.f32 %v78, %v190
  %v491 = vmax.f32 %v80, %v192
  %v492 = vmax.f32 %v82, %v194
  %v493 = vmax.f32 %v84, %v196
  %v494 = vmax.f32 %v86, %v198
  %v495 = vmax.f32 %v88, %v200
  %v496 = vmax.f32 %v90, %v202
  %v497 = vmax.f32 %v92, %v204
  %v498 = vmax.f32 %v94, %v206
  %v499 = vmax.f32 %v96, %v208
  %v500 = vmax.f32 %v98, %v210
  %v501 = vmax.f32 %v100, %v212
  %v502 = vmax.f32 %v102, %v214
  %v503 = vmax.f32 %v104, %v216
  %v504 = vmax.f32 %v106, %v218
  %v505 = vmax.f32 %v108, %v220
  %v506 = vmax.f32 %v110, %v222
  %v507 = vmax.f32 %v112, %v224
  %v508 = vmax.f32 %v114, %v226
  %v509 = vmax.f32 %v116, %v228
  %v510 = vmax.f32 %v118, %v230
  %v511 = vmax.f32 %v232, %v344
  %v512 = vmax.f32 %v234, %v346
  %v513 = vmax.f32 %v236, %v348
  %v514 = vmax.f32 %v238, %v350
  %v515 = vmax.f32 %v240, %v352
  %v516 = vmax.f32 %v242, %v354
  %v517 = vmax.f32 %v244, %v356
  %v518 = vmax.f32 %v246, %v358
  %v519 = vmax.f32 %v248, %v360
  %v520 = vmax.f32 %v250, %v362
  %v521 = vmax.f32 %v252, %v364
  %v522 = vmax.f32 %v254, %v366
  %v523 = vmax.f32 %v256, %v368
  %v524 = vmax.f32 %v258, %v370
  %v525 = vmax.f32 %v260, %v372
  %v526 = vmax.f32 %v262, %v374
  %v527 = vmax.f32 %v264, %v376
  %v528 = vmax.f32 %v266, %v378
  %v529 = vmax.f32 %v268, %v380
  %v530 = vmax.f32 %v270, %v382
  %v531 = vmax.f32 %v272, %v384
  %v532 = vmax.f32 %v274, %v386
  %v533 = vmax.f32 %v276, %v388
  %v534 = vmax.f32 %v278, %v390
  %v535 = vmax.f32 %v280, %v392
  %v536 = vmax.f32 %v282, %v394
  %v537 = vmax.f32 %v284, %v396
  %v538 = vmax.f32 %v286, %v398
  %v539 = vmax.f32 %v288, %v400
  %v540 = vmax.f32 %v290, %v402
  %v541 = vmax.f32 %v292, %v404
  %v542 = vmax.f32 %v294, %v406
  %v543 = vmax.f32 %v296, %v408
  %v544 = vmax.f32 %v298, %v410
  %v545 = vmax.f32 %v300, %v412
  %v546 = vmax.f32 %v302, %v414
  %v547 = vmax.f32 %v304, %v416
  %v548 = vmax.f32 %v306, %v418
  %v549 = vmax.f32 %v308, %v420
  %v550 = vmax.f32 %v310, %v422
  %v551 = vmax.f32 %v312, %v424
  %v552 = vmax.f32 %v314, %v426
  %v553 = vmax.f32 %v316, %v428
  %v554 = vmax.f32 %v318, %v430
  %v555 = vmax.f32 %v320, %v432
  %v556 = vmax.f32 %v322, %v434
  %v557 = vmax.f32 %v324, %v436
  %v558 = vmax.f32 %v326, %v438
  %v559 = vmax.f32 %v328, %v440
  %v560 = vmax.f32 %v330, %v442
  %v561 = vmax.f32 %v332, %v444
  %v562 = vmax.f32 %v334, %v446
  %v563 = vmax.f32 %v336, %v448
  %v564 = vmax.f32 %v338, %v450
  %v565 = vmax.f32 %v340, %v452
  %v566 = vmax.f32 %v342, %v454
  %v567 = vmax.f32 %v455, %v511
  %v568 = vmax.f32 %v456, %v512
  %v569 = vmax.f32 %v457, %v513
  %v570 = vmax.f32 %v458, %v514
  %v571 = vmax.f32 %v459, %v515
  %v572 = vmax.f32 %v460, %v516
  %v573 = vmax.f32 %v461, %v517
  %v574 = vmax.f32 %v462, %v518
  %v575 = vmax.f32 %v463, %v519
  %v576 = vmax.f32 %v464, %v520
  %v577 = vmax.f32 %v465, %v521
  %v578 = vmax.f32 %v466, %v522
  %v579 = vmax.f32 %v467, %v523
  %v580 = vmax.f32 %v468, %v524
  %v581 = vmax.f32 %v469, %v525
  %v582 = vmax.f32 %v470, %v526
  %v583 = vmax.f32 %v471, %v527
  %v584 = vmax.f32 %v472, %v528
  %v585 = vmax.f32 %v473, %v529
  %v586 = vmax.f32 %v474, %v530
  %v587 = vmax.f32 %v475, %v531
  %v588 = vmax.f32 %v476, %v532
  %v589 = vmax.f32 %v477, %v533
  %v590 = vmax.f32 %v478, %v534
  %v591 = vmax.f32 %v479, %v535
  %v592 = vmax.f32 %v480, %v536
  %v593 = vmax.f32 %v481, %v537
  %v594 = vmax.f32 %v482, %v538
  %v595 = vmax.f32 %v483, %v539
  %v596 = vmax.f32 %v484, %v540
  %v597 = vmax.f32 %v485, %v541
  %v598 = vmax.f32 %v486, %v542
  %v599 = vmax.f32 %v487, %v543
  %v600 = vmax.f32 %v488, %v544
  %v601 = vmax.f32 %v489, %v545
  %v602 = vmax.f32 %v490, %v546
  %v603 = vmax.f32 %v491, %v547
  %v604 = vmax.f32 %v492, %v548
  %v605 = vmax.f32 %v493, %v549
  %v606 = vmax.f32 %v494, %v550
  %v607 = vmax.f32 %v495, %v551
  %v608 = vmax.f32 %v496, %v552
  %v609 = vmax.f32 %v497, %v553
  %v610 = vmax.f32 %v498, %v554
  %v611 = vmax.f32 %v499, %v555
  %v612 = vmax.f32 %v500, %v556
  %v613 = vmax.f32 %v501, %v557
  %v614 = vmax.f32 %v502, %v558
  %v615 = vmax.f32 %v503, %v559
  %v616 = vmax.f32 %v504, %v560
  %v617 = vmax.f32 %v505, %v561
  %v618 = vmax.f32 %v506, %v562
  %v619 = vmax.f32 %v507, %v563
  %v620 = vmax.f32 %v508, %v564
  %v621 = vmax.f32 %v509, %v565
  %v622 = vmax.f32 %v510, %v566
  %vm623 = vcmask 523264
  %624 = vst.msk [vmem:[%s1] sm:$0xff] %vm623, %v567
  %vm625 = vcmask 521216
  %626 = vst.msk [vmem:[%s1 + $0x8] sm:$0x3f] %vm625, %v568
  %627 = vst.msk [vmem:[%s1 + $0x10] sm:$0xff] %vm623, %v569
  %628 = vst.msk [vmem:[%s1 + $0x18] sm:$0x3f] %vm625, %v570
  %629 = vst.msk [vmem:[%s1 + $0x20] sm:$0xff] %vm623, %v571
  %630 = vst.msk [vmem:[%s1 + $0x28] sm:$0x3f] %vm625, %v572
  %631 = vst.msk [vmem:[%s1 + $0x30] sm:$0xff] %vm623, %v573
  %632 = vst.msk [vmem:[%s1 + $0x38] sm:$0x3f] %vm625, %v574
  %633 = vst.msk [vmem:[%s1 + $0x40] sm:$0xff] %vm623, %v575
  %634 = vst.msk [vmem:[%s1 + $0x48] sm:$0x3f] %vm625, %v576
  %635 = vst.msk [vmem:[%s1 + $0x50] sm:$0xff] %vm623, %v577
  %636 = vst.msk [vmem:[%s1 + $0x58] sm:$0x3f] %vm625, %v578
  %637 = vst.msk [vmem:[%s1 + $0x60] sm:$0xff] %vm623, %v579
  %638 = vst.msk [vmem:[%s1 + $0x68] sm:$0x3f] %vm625, %v580
  %639 = vst.msk [vmem:[%s1 + $0x70] sm:$0xff] %vm623, %v581
  %640 = vst.msk [vmem:[%s1 + $0x78] sm:$0x3f] %vm625, %v582
  %641 = vst.msk [vmem:[%s1 + $0x80] sm:$0xff] %vm623, %v583
  %642 = vst.msk [vmem:[%s1 + $0x88] sm:$0x3f] %vm625, %v584
  %643 = vst.msk [vmem:[%s1 + $0x90] sm:$0xff] %vm623, %v585
  %644 = vst.msk [vmem:[%s1 + $0x98] sm:$0x3f] %vm625, %v586
  %645 = vst.msk [vmem:[%s1 + $0xa0] sm:$0xff] %vm623, %v587
  %646 = vst.msk [vmem:[%s1 + $0xa8] sm:$0x3f] %vm625, %v588
  %647 = vst.msk [vmem:[%s1 + $0xb0] sm:$0xff] %vm623, %v589
  %648 = vst.msk [vmem:[%s1 + $0xb8] sm:$0x3f] %vm625, %v590
  %649 = vst.msk [vmem:[%s1 + $0xc0] sm:$0xff] %vm623, %v591
  %650 = vst.msk [vmem:[%s1 + $0xc8] sm:$0x3f] %vm625, %v592
  %651 = vst.msk [vmem:[%s1 + $0xd0] sm:$0xff] %vm623, %v593
  %652 = vst.msk [vmem:[%s1 + $0xd8] sm:$0x3f] %vm625, %v594
  %653 = vst.msk [vmem:[%s1 + $0xe0] sm:$0xff] %vm623, %v595
  %654 = vst.msk [vmem:[%s1 + $0xe8] sm:$0x3f] %vm625, %v596
  %655 = vst.msk [vmem:[%s1 + $0xf0] sm:$0xff] %vm623, %v597
  %656 = vst.msk [vmem:[%s1 + $0xf8] sm:$0x3f] %vm625, %v598
  %657 = vst.msk [vmem:[%s1 + $0x100] sm:$0xff] %vm623, %v599
  %658 = vst.msk [vmem:[%s1 + $0x108] sm:$0x3f] %vm625, %v600
  %659 = vst.msk [vmem:[%s1 + $0x110] sm:$0xff] %vm623, %v601
  %660 = vst.msk [vmem:[%s1 + $0x118] sm:$0x3f] %vm625, %v602
  %661 = vst.msk [vmem:[%s1 + $0x120] sm:$0xff] %vm623, %v603
  %662 = vst.msk [vmem:[%s1 + $0x128] sm:$0x3f] %vm625, %v604
  %663 = vst.msk [vmem:[%s1 + $0x130] sm:$0xff] %vm623, %v605
  %664 = vst.msk [vmem:[%s1 + $0x138] sm:$0x3f] %vm625, %v606
  %665 = vst.msk [vmem:[%s1 + $0x140] sm:$0xff] %vm623, %v607
  %666 = vst.msk [vmem:[%s1 + $0x148] sm:$0x3f] %vm625, %v608
  %667 = vst.msk [vmem:[%s1 + $0x150] sm:$0xff] %vm623, %v609
  %668 = vst.msk [vmem:[%s1 + $0x158] sm:$0x3f] %vm625, %v610
  %669 = vst.msk [vmem:[%s1 + $0x160] sm:$0xff] %vm623, %v611
  %670 = vst.msk [vmem:[%s1 + $0x168] sm:$0x3f] %vm625, %v612
  %671 = vst.msk [vmem:[%s1 + $0x170] sm:$0xff] %vm623, %v613
  %672 = vst.msk [vmem:[%s1 + $0x178] sm:$0x3f] %vm625, %v614
  %673 = vst.msk [vmem:[%s1 + $0x180] sm:$0xff] %vm623, %v615
  %674 = vst.msk [vmem:[%s1 + $0x188] sm:$0x3f] %vm625, %v616
  %675 = vst.msk [vmem:[%s1 + $0x190] sm:$0xff] %vm623, %v617
  %676 = vst.msk [vmem:[%s1 + $0x198] sm:$0x3f] %vm625, %v618
  %677 = vst.msk [vmem:[%s1 + $0x1a0] sm:$0xff] %vm623, %v619
  %678 = vst.msk [vmem:[%s1 + $0x1a8] sm:$0x3f] %vm625, %v620
  %679 = vst.msk [vmem:[%s1 + $0x1b0] sm:$0xff] %vm623, %v621
  %680 = vst.msk [vmem:[%s1 + $0x1b8] sm:$0x3f] %vm625, %v622
  // Predicated region
  $region6: #{cifar10_deep_net_forward.8} parent=0 // pred_check
    _
  $region7: #{cifar10_deep_net_forward.8} parent=0 // pred_check_branch
    %682 = sbr.rel (0) target = $region9
  $region8: #{cifar10_deep_net_forward.8} parent=0 // pred_region
    _
  $region9: #{cifar10_deep_net_forward.8} parent=0 // pred_fallthru
    _
  // Predicated region
  $region10: #{cifar10_deep_net_forward.8} parent=0 // pred_check
    _
  $region11: #{cifar10_deep_net_forward.8} parent=0 // pred_check_branch
    %684 = sbr.rel (0) target = $region13
  $region12: #{cifar10_deep_net_forward.8} parent=0 // pred_region
    _
  $region13: #{cifar10_deep_net_forward.8} parent=0 // pred_fallthru
    _

// kernel: cifar10_deep_net_forward.10
$region0: #{cifar10_deep_net_forward.10}
  #allocation0 [shape = 'u32[]', space=smem, size = 0x4, offset = 0x4, fixed_abs, tag = 'smem constant byte address 0x4 - core index']
  #allocation1 [shape = 'u32[144,128]{1,0:T(1,128)}', space=vmem, size = 0x12000, scoped, tag = 'internal scratch']
  %s0 = inlined_call_operand.vmem [shape: f32[10,20,128], index: 0, kind: input, shape index: {}]
  %s1 = inlined_call_operand.vmem [shape: f32[10,5,128], index: 1, kind: output, shape index: {}]
  %s2 = sld [smem:[#allocation0]]
  $region14: #{cifar10_deep_net_forward.10} parent=0
    _
  %s4 = ssub.s32 1, %s2
  %s5 = scalar_select 0, %s4, %s2
  // Predicated region
  $region2: #{cifar10_deep_net_forward.10} parent=0 // pred_check
    _
  $region3: #{cifar10_deep_net_forward.10} parent=0 // pred_check_branch
    %7 = sbr.rel (0) target = $region5
  $region4: #{cifar10_deep_net_forward.10} parent=0 // pred_region
    _
  $region5: #{cifar10_deep_net_forward.10} parent=0 // pred_fallthru
    _
  %v8 = vld [vmem:[%s0] ss:$2 sm:$0x1f]
  %s9 = scalar_lea.vmem %s0, 24
  %v10 = vld [vmem:[%s9] ss:$2 sm:$0x1f]
  %s11 = scalar_lea.vmem %s0, 48
  %v12 = vld [vmem:[%s11] ss:$2 sm:$0x1f]
  %s13 = scalar_lea.vmem %s0, 72
  %v14 = vld [vmem:[%s13] ss:$2 sm:$0x1f]
  %s15 = scalar_lea.vmem %s0, 96
  %v16 = vld [vmem:[%s15] ss:$2 sm:$0x1f]
  %s17 = scalar_lea.vmem %s0, 120
  %v18 = vld [vmem:[%s17] ss:$2 sm:$0x1f]
  %s19 = scalar_lea.vmem %s0, 144
  %v20 = vld [vmem:[%s19] ss:$2 sm:$0x1f]
  %s21 = scalar_lea.vmem %s0, 168
  %v22 = vld [vmem:[%s21] ss:$2 sm:$0x1f]
  %s23 = scalar_lea.vmem %s0, 192
  %v24 = vld [vmem:[%s23] ss:$2 sm:$0x1f]
  %s25 = scalar_lea.vmem %s0, 216
  %v26 = vld [vmem:[%s25] ss:$2 sm:$0x1f]
  %s27 = scalar_lea.vmem %s0, 1
  %v28 = vld [vmem:[%s27] ss:$2 sm:$0x1f]
  %s29 = scalar_lea.vmem %s0, 25
  %v30 = vld [vmem:[%s29] ss:$2 sm:$0x1f]
  %s31 = scalar_lea.vmem %s0, 49
  %v32 = vld [vmem:[%s31] ss:$2 sm:$0x1f]
  %s33 = scalar_lea.vmem %s0, 73
  %v34 = vld [vmem:[%s33] ss:$2 sm:$0x1f]
  %s35 = scalar_lea.vmem %s0, 97
  %v36 = vld [vmem:[%s35] ss:$2 sm:$0x1f]
  %s37 = scalar_lea.vmem %s0, 121
  %v38 = vld [vmem:[%s37] ss:$2 sm:$0x1f]
  %s39 = scalar_lea.vmem %s0, 145
  %v40 = vld [vmem:[%s39] ss:$2 sm:$0x1f]
  %s41 = scalar_lea.vmem %s0, 169
  %v42 = vld [vmem:[%s41] ss:$2 sm:$0x1f]
  %s43 = scalar_lea.vmem %s0, 193
  %v44 = vld [vmem:[%s43] ss:$2 sm:$0x1f]
  %s45 = scalar_lea.vmem %s0, 217
  %v46 = vld [vmem:[%s45] ss:$2 sm:$0x1f]
  %s47 = scalar_lea.vmem %s0, 10
  %v48 = vld [vmem:[%s47] ss:$2 sm:$0x1f]
  %s49 = scalar_lea.vmem %s0, 34
  %v50 = vld [vmem:[%s49] ss:$2 sm:$0x1f]
  %s51 = scalar_lea.vmem %s0, 58
  %v52 = vld [vmem:[%s51] ss:$2 sm:$0x1f]
  %s53 = scalar_lea.vmem %s0, 82
  %v54 = vld [vmem:[%s53] ss:$2 sm:$0x1f]
  %s55 = scalar_lea.vmem %s0, 106
  %v56 = vld [vmem:[%s55] ss:$2 sm:$0x1f]
  %s57 = scalar_lea.vmem %s0, 130
  %v58 = vld [vmem:[%s57] ss:$2 sm:$0x1f]
  %s59 = scalar_lea.vmem %s0, 154
  %v60 = vld [vmem:[%s59] ss:$2 sm:$0x1f]
  %s61 = scalar_lea.vmem %s0, 178
  %v62 = vld [vmem:[%s61] ss:$2 sm:$0x1f]
  %s63 = scalar_lea.vmem %s0, 202
  %v64 = vld [vmem:[%s63] ss:$2 sm:$0x1f]
  %s65 = scalar_lea.vmem %s0, 226
  %v66 = vld [vmem:[%s65] ss:$2 sm:$0x1f]
  %s67 = scalar_lea.vmem %s0, 11
  %v68 = vld [vmem:[%s67] ss:$2 sm:$0x1f]
  %s69 = scalar_lea.vmem %s0, 35
  %v70 = vld [vmem:[%s69] ss:$2 sm:$0x1f]
  %s71 = scalar_lea.vmem %s0, 59
  %v72 = vld [vmem:[%s71] ss:$2 sm:$0x1f]
  %s73 = scalar_lea.vmem %s0, 83
  %v74 = vld [vmem:[%s73] ss:$2 sm:$0x1f]
  %s75 = scalar_lea.vmem %s0, 107
  %v76 = vld [vmem:[%s75] ss:$2 sm:$0x1f]
  %s77 = scalar_lea.vmem %s0, 131
  %v78 = vld [vmem:[%s77] ss:$2 sm:$0x1f]
  %s79 = scalar_lea.vmem %s0, 155
  %v80 = vld [vmem:[%s79] ss:$2 sm:$0x1f]
  %s81 = scalar_lea.vmem %s0, 179
  %v82 = vld [vmem:[%s81] ss:$2 sm:$0x1f]
  %s83 = scalar_lea.vmem %s0, 203
  %v84 = vld [vmem:[%s83] ss:$2 sm:$0x1f]
  %s85 = scalar_lea.vmem %s0, 227
  %v86 = vld [vmem:[%s85] ss:$2 sm:$0x1f]
  %v87 = vmax.f32 %v8, %v28
  %v88 = vmax.f32 %v10, %v30
  %v89 = vmax.f32 %v12, %v32
  %v90 = vmax.f32 %v14, %v34
  %v91 = vmax.f32 %v16, %v36
  %v92 = vmax.f32 %v18, %v38
  %v93 = vmax.f32 %v20, %v40
  %v94 = vmax.f32 %v22, %v42
  %v95 = vmax.f32 %v24, %v44
  %v96 = vmax.f32 %v26, %v46
  %v97 = vmax.f32 %v48, %v68
  %v98 = vmax.f32 %v50, %v70
  %v99 = vmax.f32 %v52, %v72
  %v100 = vmax.f32 %v54, %v74
  %v101 = vmax.f32 %v56, %v76
  %v102 = vmax.f32 %v58, %v78
  %v103 = vmax.f32 %v60, %v80
  %v104 = vmax.f32 %v62, %v82
  %v105 = vmax.f32 %v64, %v84
  %v106 = vmax.f32 %v66, %v86
  %v107 = vmax.f32 %v87, %v97
  %v108 = vmax.f32 %v88, %v98
  %v109 = vmax.f32 %v89, %v99
  %v110 = vmax.f32 %v90, %v100
  %v111 = vmax.f32 %v91, %v101
  %v112 = vmax.f32 %v92, %v102
  %v113 = vmax.f32 %v93, %v103
  %v114 = vmax.f32 %v94, %v104
  %v115 = vmax.f32 %v95, %v105
  %v116 = vmax.f32 %v96, %v106
  %117 = vst [vmem:[%s1] sm:$0x1f] %v107
  %118 = vst [vmem:[%s1 + $0x8] sm:$0x1f] %v108
  %119 = vst [vmem:[%s1 + $0x10] sm:$0x1f] %v109
  %120 = vst [vmem:[%s1 + $0x18] sm:$0x1f] %v110
  %121 = vst [vmem:[%s1 + $0x20] sm:$0x1f] %v111
  %122 = vst [vmem:[%s1 + $0x28] sm:$0x1f] %v112
  %123 = vst [vmem:[%s1 + $0x30] sm:$0x1f] %v113
  %124 = vst [vmem:[%s1 + $0x38] sm:$0x1f] %v114
  %125 = vst [vmem:[%s1 + $0x40] sm:$0x1f] %v115
  %126 = vst [vmem:[%s1 + $0x48] sm:$0x1f] %v116
  // Predicated region
  $region6: #{cifar10_deep_net_forward.10} parent=0 // pred_check
    _
  $region7: #{cifar10_deep_net_forward.10} parent=0 // pred_check_branch
    %128 = sbr.rel (0) target = $region9
  $region8: #{cifar10_deep_net_forward.10} parent=0 // pred_region
    _
  $region9: #{cifar10_deep_net_forward.10} parent=0 // pred_fallthru
    _
  // Predicated region
  $region10: #{cifar10_deep_net_forward.10} parent=0 // pred_check
    _
  $region11: #{cifar10_deep_net_forward.10} parent=0 // pred_check_branch
    %130 = sbr.rel (0) target = $region13
  $region12: #{cifar10_deep_net_forward.10} parent=0 // pred_region
    _
  $region13: #{cifar10_deep_net_forward.10} parent=0 // pred_fallthru
    _

// kernel: cifar10_deep_net_forward.9
$region0: #{cifar10_deep_net_forward.9}
  #allocation0 [shape = 'u32[]', space=smem, size = 0x4, offset = 0x4, fixed_abs, tag = 'smem constant byte address 0x4 - core index']
  #allocation1 [shape = 'u32[144,128]{1,0:T(1,128)}', space=vmem, size = 0x12000, scoped, tag = 'internal scratch']
  %s0 = inlined_call_operand.vmem [shape: f32[200,1600], index: 0, kind: input, shape index: {}]
  %s1 = inlined_call_operand.vmem [shape: f32[1600,128], index: 1, kind: input, shape index: {}]
  %s2 = inlined_call_operand.vmem [shape: f32[1,128], index: 2, kind: input, shape index: {}]
  %s3 = inlined_call_operand.vmem [shape: f32[200,128], index: 3, kind: output, shape index: {}]
  %s4 = sld [smem:[#allocation0]]
  $region22: #{cifar10_deep_net_forward.9} parent=0
    _
  %s6 = ssub.s32 1, %s4
  %s7 = scalar_select 0, %s6, %s4
  // Predicated region
  $region2: #{cifar10_deep_net_forward.9} parent=0 // pred_check
    _
  $region3: #{cifar10_deep_net_forward.9} parent=0 // pred_check_branch
    %9 = sbr.rel (0) target = $region5
  $region4: #{cifar10_deep_net_forward.9} parent=0 // pred_region
    _
  $region5: #{cifar10_deep_net_forward.9} parent=0 // pred_fallthru
    _
  // Predicated region
  $region6: #{cifar10_deep_net_forward.9} parent=0 // pred_check
    _
  $region7: #{cifar10_deep_net_forward.9} parent=0 // pred_check_branch
    %11 = sbr.rel (0) target = $region9
  $region8: #{cifar10_deep_net_forward.9} parent=0 // pred_region
    _
  $region9: #{cifar10_deep_net_forward.9} parent=0 // pred_fallthru
    _
  // Predicated region
  $region10: #{cifar10_deep_net_forward.9} parent=0 // pred_check
    _
  $region11: #{cifar10_deep_net_forward.9} parent=0 // pred_check_branch
    %13 = sbr.rel (0) target = $region13
  $region12: #{cifar10_deep_net_forward.9} parent=0 // pred_region
    _
  $region13: #{cifar10_deep_net_forward.9} parent=0 // pred_fallthru
    _
  %v14 = vld [vmem:[%s0] sm:$0xff]
  %v15 = vld [vmem:[%s0 + $0x8] sm:$0xff]
  %v16 = vld [vmem:[%s0 + $0x10] sm:$0xff]
  %v17 = vld [vmem:[%s0 + $0x18] sm:$0xff]
  %v18 = vld [vmem:[%s0 + $0x20] sm:$0xff]
  %v19 = vld [vmem:[%s0 + $0x28] sm:$0xff]
  %v20 = vld [vmem:[%s0 + $0x30] sm:$0xff]
  %v21 = vld [vmem:[%s0 + $0x38] sm:$0xff]
  %v22 = vld [vmem:[%s0 + $0x40] sm:$0xff]
  %v23 = vld [vmem:[%s0 + $0x48] sm:$0xff]
  %v24 = vld [vmem:[%s0 + $0x50] sm:$0xff]
  %v25 = vld [vmem:[%s0 + $0x58] sm:$0xff]
  %v26 = vld [vmem:[%s0 + $0x60] sm:$0xff]
  %v27 = vld [vmem:[%s0 + $0x68] sm:$0xff]
  %v28 = vld [vmem:[%s0 + $0x70] sm:$0xff]
  %v29 = vld [vmem:[%s0 + $0x78] sm:$0xff]
  %v30 = vld [vmem:[%s0 + $0x80] sm:$0xff]
  %v31 = vld [vmem:[%s0 + $0x88] sm:$0xff]
  %v32 = vld [vmem:[%s0 + $0x90] sm:$0xff]
  %v33 = vld [vmem:[%s0 + $0x98] sm:$0xff]
  %v34 = vld [vmem:[%s0 + $0xa0] sm:$0xff]
  %v35 = vld [vmem:[%s0 + $0xa8] sm:$0xff]
  %v36 = vld [vmem:[%s0 + $0xb0] sm:$0xff]
  %v37 = vld [vmem:[%s0 + $0xb8] sm:$0xff]
  %v38 = vld [vmem:[%s0 + $0xc0] sm:$0xff]
  %v39 = vld [vmem:[%s0 + $0xc8] sm:$0xff]
  %v40 = vld [vmem:[%s0 + $0xd0] sm:$0xff]
  %v41 = vld [vmem:[%s0 + $0xd8] sm:$0xff]
  %v42 = vld [vmem:[%s0 + $0xe0] sm:$0xff]
  %v43 = vld [vmem:[%s0 + $0xe8] sm:$0xff]
  %v44 = vld [vmem:[%s0 + $0xf0] sm:$0xff]
  %v45 = vld [vmem:[%s0 + $0xf8] sm:$0xff]
  %v46 = vld [vmem:[%s0 + $0x100] sm:$0xff]
  %v47 = vld [vmem:[%s0 + $0x108] sm:$0xff]
  %v48 = vld [vmem:[%s0 + $0x110] sm:$0xff]
  %v49 = vld [vmem:[%s0 + $0x118] sm:$0xff]
  %v50 = vld [vmem:[%s0 + $0x120] sm:$0xff]
  %v51 = vld [vmem:[%s0 + $0x128] sm:$0xff]
  %v52 = vld [vmem:[%s0 + $0x130] sm:$0xff]
  %v53 = vld [vmem:[%s0 + $0x138] sm:$0xff]
  %v54 = vld [vmem:[%s0 + $0x140] sm:$0xff]
  %v55 = vld [vmem:[%s0 + $0x148] sm:$0xff]
  %v56 = vld [vmem:[%s0 + $0x150] sm:$0xff]
  %v57 = vld [vmem:[%s0 + $0x158] sm:$0xff]
  %v58 = vld [vmem:[%s0 + $0x160] sm:$0xff]
  %v59 = vld [vmem:[%s0 + $0x168] sm:$0xff]
  %v60 = vld [vmem:[%s0 + $0x170] sm:$0xff]
  %v61 = vld [vmem:[%s0 + $0x178] sm:$0xff]
  %v62 = vld [vmem:[%s0 + $0x180] sm:$0xff]
  %v63 = vld [vmem:[%s0 + $0x188] sm:$0xff]
  %v64 = vld [vmem:[%s0 + $0x190] sm:$0xff]
  %v65 = vld [vmem:[%s0 + $0x198] sm:$0xff]
  %v66 = vld [vmem:[%s0 + $0x1a0] sm:$0xff]
  %v67 = vld [vmem:[%s0 + $0x1a8] sm:$0xff]
  %v68 = vld [vmem:[%s0 + $0x1b0] sm:$0xff]
  %v69 = vld [vmem:[%s0 + $0x1b8] sm:$0xff]
  %v70 = vld [vmem:[%s0 + $0x1c0] sm:$0xff]
  %v71 = vld [vmem:[%s0 + $0x1c8] sm:$0xff]
  %v72 = vld [vmem:[%s0 + $0x1d0] sm:$0xff]
  %v73 = vld [vmem:[%s0 + $0x1d8] sm:$0xff]
  %v74 = vld [vmem:[%s0 + $0x1e0] sm:$0xff]
  %v75 = vld [vmem:[%s0 + $0x1e8] sm:$0xff]
  %v76 = vld [vmem:[%s0 + $0x1f0] sm:$0xff]
  %v77 = vld [vmem:[%s0 + $0x1f8] sm:$0xff]
  %v78 = vld [vmem:[%s0 + $0x200] sm:$0xff]
  %v79 = vld [vmem:[%s0 + $0x208] sm:$0xff]
  %v80 = vld [vmem:[%s0 + $0x210] sm:$0xff]
  %v81 = vld [vmem:[%s0 + $0x218] sm:$0xff]
  %v82 = vld [vmem:[%s0 + $0x220] sm:$0xff]
  %v83 = vld [vmem:[%s0 + $0x228] sm:$0xff]
  %v84 = vld [vmem:[%s0 + $0x230] sm:$0xff]
  %v85 = vld [vmem:[%s0 + $0x238] sm:$0xff]
  %v86 = vld [vmem:[%s0 + $0x240] sm:$0xff]
  %v87 = vld [vmem:[%s0 + $0x248] sm:$0xff]
  %v88 = vld [vmem:[%s0 + $0x250] sm:$0xff]
  %v89 = vld [vmem:[%s0 + $0x258] sm:$0xff]
  %v90 = vld [vmem:[%s0 + $0x260] sm:$0xff]
  %v91 = vld [vmem:[%s0 + $0x268] sm:$0xff]
  %v92 = vld [vmem:[%s0 + $0x270] sm:$0xff]
  %v93 = vld [vmem:[%s0 + $0x278] sm:$0xff]
  %v94 = vld [vmem:[%s0 + $0x280] sm:$0xff]
  %v95 = vld [vmem:[%s0 + $0x288] sm:$0xff]
  %v96 = vld [vmem:[%s0 + $0x290] sm:$0xff]
  %v97 = vld [vmem:[%s0 + $0x298] sm:$0xff]
  %v98 = vld [vmem:[%s0 + $0x2a0] sm:$0xff]
  %v99 = vld [vmem:[%s0 + $0x2a8] sm:$0xff]
  %v100 = vld [vmem:[%s0 + $0x2b0] sm:$0xff]
  %v101 = vld [vmem:[%s0 + $0x2b8] sm:$0xff]
  %v102 = vld [vmem:[%s0 + $0x2c0] sm:$0xff]
  %v103 = vld [vmem:[%s0 + $0x2c8] sm:$0xff]
  %v104 = vld [vmem:[%s0 + $0x2d0] sm:$0xff]
  %v105 = vld [vmem:[%s0 + $0x2d8] sm:$0xff]
  %v106 = vld [vmem:[%s0 + $0x2e0] sm:$0xff]
  %v107 = vld [vmem:[%s0 + $0x2e8] sm:$0xff]
  %v108 = vld [vmem:[%s0 + $0x2f0] sm:$0xff]
  %v109 = vld [vmem:[%s0 + $0x2f8] sm:$0xff]
  %v110 = vld [vmem:[%s0 + $0x300] sm:$0xff]
  %v111 = vld [vmem:[%s0 + $0x308] sm:$0xff]
  %v112 = vld [vmem:[%s0 + $0x310] sm:$0xff]
  %v113 = vld [vmem:[%s0 + $0x318] sm:$0xff]
  %v114 = vld [vmem:[%s0 + $0x320] sm:$0xff]
  %v115 = vld [vmem:[%s0 + $0x328] sm:$0xff]
  %v116 = vld [vmem:[%s0 + $0x330] sm:$0xff]
  %v117 = vld [vmem:[%s0 + $0x338] sm:$0xff]
  %v118 = vld [vmem:[%s0 + $0x340] sm:$0xff]
  %v119 = vld [vmem:[%s0 + $0x348] sm:$0xff]
  %v120 = vld [vmem:[%s0 + $0x350] sm:$0xff]
  %v121 = vld [vmem:[%s0 + $0x358] sm:$0xff]
  %v122 = vld [vmem:[%s0 + $0x360] sm:$0xff]
  %v123 = vld [vmem:[%s0 + $0x368] sm:$0xff]
  %v124 = vld [vmem:[%s0 + $0x370] sm:$0xff]
  %v125 = vld [vmem:[%s0 + $0x378] sm:$0xff]
  %v126 = vld [vmem:[%s0 + $0x380] sm:$0xff]
  %v127 = vld [vmem:[%s0 + $0x388] sm:$0xff]
  %v128 = vld [vmem:[%s0 + $0x390] sm:$0xff]
  %v129 = vld [vmem:[%s0 + $0x398] sm:$0xff]
  %v130 = vld [vmem:[%s0 + $0x3a0] sm:$0xff]
  %v131 = vld [vmem:[%s0 + $0x3a8] sm:$0xff]
  %v132 = vld [vmem:[%s0 + $0x3b0] sm:$0xff]
  %v133 = vld [vmem:[%s0 + $0x3b8] sm:$0xff]
  %v134 = vld [vmem:[%s0 + $0x3c0] sm:$0xff]
  %v135 = vld [vmem:[%s0 + $0x3c8] sm:$0xff]
  %v136 = vld [vmem:[%s0 + $0x3d0] sm:$0xff]
  %v137 = vld [vmem:[%s0 + $0x3d8] sm:$0xff]
  %v138 = vld [vmem:[%s0 + $0x3e0] sm:$0xff]
  %v139 = vld [vmem:[%s0 + $0x3e8] sm:$0xff]
  %v140 = vld [vmem:[%s0 + $0x3f0] sm:$0xff]
  %v141 = vld [vmem:[%s0 + $0x3f8] sm:$0xff]
  %v142 = vld [vmem:[%s0 + $0x400] sm:$0xff]
  %v143 = vld [vmem:[%s0 + $0x408] sm:$0xff]
  %v144 = vld [vmem:[%s0 + $0x410] sm:$0xff]
  %v145 = vld [vmem:[%s0 + $0x418] sm:$0xff]
  %v146 = vld [vmem:[%s0 + $0x420] sm:$0xff]
  %v147 = vld [vmem:[%s0 + $0x428] sm:$0xff]
  %v148 = vld [vmem:[%s0 + $0x430] sm:$0xff]
  %v149 = vld [vmem:[%s0 + $0x438] sm:$0xff]
  %v150 = vld [vmem:[%s0 + $0x440] sm:$0xff]
  %v151 = vld [vmem:[%s0 + $0x448] sm:$0xff]
  %v152 = vld [vmem:[%s0 + $0x450] sm:$0xff]
  %v153 = vld [vmem:[%s0 + $0x458] sm:$0xff]
  %v154 = vld [vmem:[%s0 + $0x460] sm:$0xff]
  %v155 = vld [vmem:[%s0 + $0x468] sm:$0xff]
  %v156 = vld [vmem:[%s0 + $0x470] sm:$0xff]
  %v157 = vld [vmem:[%s0 + $0x478] sm:$0xff]
  %v158 = vld [vmem:[%s0 + $0x480] sm:$0xff]
  %v159 = vld [vmem:[%s0 + $0x488] sm:$0xff]
  %v160 = vld [vmem:[%s0 + $0x490] sm:$0xff]
  %v161 = vld [vmem:[%s0 + $0x498] sm:$0xff]
  %v162 = vld [vmem:[%s0 + $0x4a0] sm:$0xff]
  %v163 = vld [vmem:[%s0 + $0x4a8] sm:$0xff]
  %v164 = vld [vmem:[%s0 + $0x4b0] sm:$0xff]
  %v165 = vld [vmem:[%s0 + $0x4b8] sm:$0xff]
  %v166 = vld [vmem:[%s0 + $0x4c0] sm:$0xff]
  %v167 = vld [vmem:[%s0 + $0x4c8] sm:$0xff]
  %v168 = vld [vmem:[%s0 + $0x4d0] sm:$0xff]
  %v169 = vld [vmem:[%s0 + $0x4d8] sm:$0xff]
  %v170 = vld [vmem:[%s0 + $0x4e0] sm:$0xff]
  %v171 = vld [vmem:[%s0 + $0x4e8] sm:$0xff]
  %v172 = vld [vmem:[%s0 + $0x4f0] sm:$0xff]
  %v173 = vld [vmem:[%s0 + $0x4f8] sm:$0xff]
  %v174 = vld [vmem:[%s0 + $0x500] sm:$0xff]
  %v175 = vld [vmem:[%s0 + $0x508] sm:$0xff]
  %v176 = vld [vmem:[%s0 + $0x510] sm:$0xff]
  %v177 = vld [vmem:[%s0 + $0x518] sm:$0xff]
  %v178 = vld [vmem:[%s0 + $0x520] sm:$0xff]
  %v179 = vld [vmem:[%s0 + $0x528] sm:$0xff]
  %v180 = vld [vmem:[%s0 + $0x530] sm:$0xff]
  %v181 = vld [vmem:[%s0 + $0x538] sm:$0xff]
  %v182 = vld [vmem:[%s0 + $0x540] sm:$0xff]
  %v183 = vld [vmem:[%s0 + $0x548] sm:$0xff]
  %v184 = vld [vmem:[%s0 + $0x550] sm:$0xff]
  %v185 = vld [vmem:[%s0 + $0x558] sm:$0xff]
  %v186 = vld [vmem:[%s0 + $0x560] sm:$0xff]
  %v187 = vld [vmem:[%s0 + $0x568] sm:$0xff]
  %v188 = vld [vmem:[%s0 + $0x570] sm:$0xff]
  %v189 = vld [vmem:[%s0 + $0x578] sm:$0xff]
  %v190 = vld [vmem:[%s0 + $0x580] sm:$0xff]
  %v191 = vld [vmem:[%s0 + $0x588] sm:$0xff]
  %v192 = vld [vmem:[%s0 + $0x590] sm:$0xff]
  %v193 = vld [vmem:[%s0 + $0x598] sm:$0xff]
  %v194 = vld [vmem:[%s0 + $0x5a0] sm:$0xff]
  %v195 = vld [vmem:[%s0 + $0x5a8] sm:$0xff]
  %v196 = vld [vmem:[%s0 + $0x5b0] sm:$0xff]
  %v197 = vld [vmem:[%s0 + $0x5b8] sm:$0xff]
  %v198 = vld [vmem:[%s0 + $0x5c0] sm:$0xff]
  %v199 = vld [vmem:[%s0 + $0x5c8] sm:$0xff]
  %v200 = vld [vmem:[%s0 + $0x5d0] sm:$0xff]
  %v201 = vld [vmem:[%s0 + $0x5d8] sm:$0xff]
  %v202 = vld [vmem:[%s0 + $0x5e0] sm:$0xff]
  %v203 = vld [vmem:[%s0 + $0x5e8] sm:$0xff]
  %v204 = vld [vmem:[%s0 + $0x5f0] sm:$0xff]
  %v205 = vld [vmem:[%s0 + $0x5f8] sm:$0xff]
  %v206 = vld [vmem:[%s0 + $0x600] sm:$0xff]
  %v207 = vld [vmem:[%s0 + $0x608] sm:$0xff]
  %v208 = vld [vmem:[%s0 + $0x610] sm:$0xff]
  %v209 = vld [vmem:[%s0 + $0x618] sm:$0xff]
  %v210 = vld [vmem:[%s0 + $0x620] sm:$0xff]
  %v211 = vld [vmem:[%s0 + $0x628] sm:$0xff]
  %v212 = vld [vmem:[%s0 + $0x630] sm:$0xff]
  %v213 = vld [vmem:[%s0 + $0x638] sm:$0xff]
  %v214 = vld [vmem:[%s0 + $0x640] sm:$0xff]
  %v215 = vld [vmem:[%s0 + $0x648] sm:$0xff]
  %v216 = vld [vmem:[%s0 + $0x650] sm:$0xff]
  %v217 = vld [vmem:[%s0 + $0x658] sm:$0xff]
  %v218 = vld [vmem:[%s0 + $0x660] sm:$0xff]
  %v219 = vld [vmem:[%s0 + $0x668] sm:$0xff]
  %v220 = vld [vmem:[%s0 + $0x670] sm:$0xff]
  %v221 = vld [vmem:[%s0 + $0x678] sm:$0xff]
  %v222 = vld [vmem:[%s0 + $0x680] sm:$0xff]
  %v223 = vld [vmem:[%s0 + $0x688] sm:$0xff]
  %v224 = vld [vmem:[%s0 + $0x690] sm:$0xff]
  %v225 = vld [vmem:[%s0 + $0x698] sm:$0xff]
  %v226 = vld [vmem:[%s0 + $0x6a0] sm:$0xff]
  %v227 = vld [vmem:[%s0 + $0x6a8] sm:$0xff]
  %v228 = vld [vmem:[%s0 + $0x6b0] sm:$0xff]
  %v229 = vld [vmem:[%s0 + $0x6b8] sm:$0xff]
  %v230 = vld [vmem:[%s0 + $0x6c0] sm:$0xff]
  %v231 = vld [vmem:[%s0 + $0x6c8] sm:$0xff]
  %v232 = vld [vmem:[%s0 + $0x6d0] sm:$0xff]
  %v233 = vld [vmem:[%s0 + $0x6d8] sm:$0xff]
  %v234 = vld [vmem:[%s0 + $0x6e0] sm:$0xff]
  %v235 = vld [vmem:[%s0 + $0x6e8] sm:$0xff]
  %v236 = vld [vmem:[%s0 + $0x6f0] sm:$0xff]
  %v237 = vld [vmem:[%s0 + $0x6f8] sm:$0xff]
  %v238 = vld [vmem:[%s0 + $0x700] sm:$0xff]
  %v239 = vld [vmem:[%s0 + $0x708] sm:$0xff]
  %v240 = vld [vmem:[%s0 + $0x710] sm:$0xff]
  %v241 = vld [vmem:[%s0 + $0x718] sm:$0xff]
  %v242 = vld [vmem:[%s0 + $0x720] sm:$0xff]
  %v243 = vld [vmem:[%s0 + $0x728] sm:$0xff]
  %v244 = vld [vmem:[%s0 + $0x730] sm:$0xff]
  %v245 = vld [vmem:[%s0 + $0x738] sm:$0xff]
  %v246 = vld [vmem:[%s0 + $0x740] sm:$0xff]
  %v247 = vld [vmem:[%s0 + $0x748] sm:$0xff]
  %v248 = vld [vmem:[%s0 + $0x750] sm:$0xff]
  %v249 = vld [vmem:[%s0 + $0x758] sm:$0xff]
  %v250 = vld [vmem:[%s0 + $0x760] sm:$0xff]
  %v251 = vld [vmem:[%s0 + $0x768] sm:$0xff]
  %v252 = vld [vmem:[%s0 + $0x770] sm:$0xff]
  %v253 = vld [vmem:[%s0 + $0x778] sm:$0xff]
  %v254 = vld [vmem:[%s0 + $0x780] sm:$0xff]
  %v255 = vld [vmem:[%s0 + $0x788] sm:$0xff]
  %v256 = vld [vmem:[%s0 + $0x790] sm:$0xff]
  %v257 = vld [vmem:[%s0 + $0x798] sm:$0xff]
  %v258 = vld [vmem:[%s0 + $0x7a0] sm:$0xff]
  %v259 = vld [vmem:[%s0 + $0x7a8] sm:$0xff]
  %v260 = vld [vmem:[%s0 + $0x7b0] sm:$0xff]
  %v261 = vld [vmem:[%s0 + $0x7b8] sm:$0xff]
  %v262 = vld [vmem:[%s0 + $0x7c0] sm:$0xff]
  %v263 = vld [vmem:[%s0 + $0x7c8] sm:$0xff]
  %v264 = vld [vmem:[%s0 + $0x7d0] sm:$0xff]
  %v265 = vld [vmem:[%s0 + $0x7d8] sm:$0xff]
  %v266 = vld [vmem:[%s0 + $0x7e0] sm:$0xff]
  %v267 = vld [vmem:[%s0 + $0x7e8] sm:$0xff]
  %v268 = vld [vmem:[%s0 + $0x7f0] sm:$0xff]
  %v269 = vld [vmem:[%s0 + $0x7f8] sm:$0xff]
  %v270 = vld [vmem:[%s0 + $0x800] sm:$0xff]
  %v271 = vld [vmem:[%s0 + $0x808] sm:$0xff]
  %v272 = vld [vmem:[%s0 + $0x810] sm:$0xff]
  %v273 = vld [vmem:[%s0 + $0x818] sm:$0xff]
  %v274 = vld [vmem:[%s0 + $0x820] sm:$0xff]
  %v275 = vld [vmem:[%s0 + $0x828] sm:$0xff]
  %v276 = vld [vmem:[%s0 + $0x830] sm:$0xff]
  %v277 = vld [vmem:[%s0 + $0x838] sm:$0xff]
  %v278 = vld [vmem:[%s0 + $0x840] sm:$0xff]
  %v279 = vld [vmem:[%s0 + $0x848] sm:$0xff]
  %v280 = vld [vmem:[%s0 + $0x850] sm:$0xff]
  %v281 = vld [vmem:[%s0 + $0x858] sm:$0xff]
  %v282 = vld [vmem:[%s0 + $0x860] sm:$0xff]
  %v283 = vld [vmem:[%s0 + $0x868] sm:$0xff]
  %v284 = vld [vmem:[%s0 + $0x870] sm:$0xff]
  %v285 = vld [vmem:[%s0 + $0x878] sm:$0xff]
  %v286 = vld [vmem:[%s0 + $0x880] sm:$0xff]
  %v287 = vld [vmem:[%s0 + $0x888] sm:$0xff]
  %v288 = vld [vmem:[%s0 + $0x890] sm:$0xff]
  %v289 = vld [vmem:[%s0 + $0x898] sm:$0xff]
  %v290 = vld [vmem:[%s0 + $0x8a0] sm:$0xff]
  %v291 = vld [vmem:[%s0 + $0x8a8] sm:$0xff]
  %v292 = vld [vmem:[%s0 + $0x8b0] sm:$0xff]
  %v293 = vld [vmem:[%s0 + $0x8b8] sm:$0xff]
  %v294 = vld [vmem:[%s0 + $0x8c0] sm:$0xff]
  %v295 = vld [vmem:[%s0 + $0x8c8] sm:$0xff]
  %v296 = vld [vmem:[%s0 + $0x8d0] sm:$0xff]
  %v297 = vld [vmem:[%s0 + $0x8d8] sm:$0xff]
  %v298 = vld [vmem:[%s0 + $0x8e0] sm:$0xff]
  %v299 = vld [vmem:[%s0 + $0x8e8] sm:$0xff]
  %v300 = vld [vmem:[%s0 + $0x8f0] sm:$0xff]
  %v301 = vld [vmem:[%s0 + $0x8f8] sm:$0xff]
  %v302 = vld [vmem:[%s0 + $0x900] sm:$0xff]
  %v303 = vld [vmem:[%s0 + $0x908] sm:$0xff]
  %v304 = vld [vmem:[%s0 + $0x910] sm:$0xff]
  %v305 = vld [vmem:[%s0 + $0x918] sm:$0xff]
  %v306 = vld [vmem:[%s0 + $0x920] sm:$0xff]
  %v307 = vld [vmem:[%s0 + $0x928] sm:$0xff]
  %v308 = vld [vmem:[%s0 + $0x930] sm:$0xff]
  %v309 = vld [vmem:[%s0 + $0x938] sm:$0xff]
  %v310 = vld [vmem:[%s0 + $0x940] sm:$0xff]
  %v311 = vld [vmem:[%s0 + $0x948] sm:$0xff]
  %v312 = vld [vmem:[%s0 + $0x950] sm:$0xff]
  %v313 = vld [vmem:[%s0 + $0x958] sm:$0xff]
  %v314 = vld [vmem:[%s0 + $0x960] sm:$0xff]
  %v315 = vld [vmem:[%s0 + $0x968] sm:$0xff]
  %v316 = vld [vmem:[%s0 + $0x970] sm:$0xff]
  %v317 = vld [vmem:[%s0 + $0x978] sm:$0xff]
  %v318 = vld [vmem:[%s0 + $0x980] sm:$0xff]
  %v319 = vld [vmem:[%s0 + $0x988] sm:$0xff]
  %v320 = vld [vmem:[%s0 + $0x990] sm:$0xff]
  %v321 = vld [vmem:[%s0 + $0x998] sm:$0xff]
  %v322 = vld [vmem:[%s0 + $0x9a0] sm:$0xff]
  %v323 = vld [vmem:[%s0 + $0x9a8] sm:$0xff]
  %v324 = vld [vmem:[%s0 + $0x9b0] sm:$0xff]
  %v325 = vld [vmem:[%s0 + $0x9b8] sm:$0xff]
  %v326 = vld [vmem:[%s0 + $0x9c0] sm:$0xff]
  %v327 = vld [vmem:[%s0 + $0x9c8] sm:$0xff]
  %v328 = vld [vmem:[%s0 + $0x9d0] sm:$0xff]
  %v329 = vld [vmem:[%s0 + $0x9d8] sm:$0xff]
  %v330 = vld [vmem:[%s0 + $0x9e0] sm:$0xff]
  %v331 = vld [vmem:[%s0 + $0x9e8] sm:$0xff]
  %v332 = vld [vmem:[%s0 + $0x9f0] sm:$0xff]
  %v333 = vld [vmem:[%s0 + $0x9f8] sm:$0xff]
  %v334 = vld [vmem:[%s0 + $0xa00] sm:$0xff]
  %v335 = vld [vmem:[%s0 + $0xa08] sm:$0xff]
  %v336 = vld [vmem:[%s0 + $0xa10] sm:$0xff]
  %v337 = vld [vmem:[%s0 + $0xa18] sm:$0xff]
  %v338 = vld [vmem:[%s0 + $0xa20] sm:$0xff]
  %v339 = vld [vmem:[%s1] sm:$0xff]
  %v340 = vld [vmem:[%s1 + $0x8] sm:$0xff]
  %v341 = vld [vmem:[%s1 + $0x10] sm:$0xff]
  %v342 = vld [vmem:[%s1 + $0x18] sm:$0xff]
  %v343 = vld [vmem:[%s1 + $0x20] sm:$0xff]
  %v344 = vld [vmem:[%s1 + $0x28] sm:$0xff]
  %v345 = vld [vmem:[%s1 + $0x30] sm:$0xff]
  %v346 = vld [vmem:[%s1 + $0x38] sm:$0xff]
  %v347 = vld [vmem:[%s1 + $0x40] sm:$0xff]
  %v348 = vld [vmem:[%s1 + $0x48] sm:$0xff]
  %v349 = vld [vmem:[%s1 + $0x50] sm:$0xff]
  %v350 = vld [vmem:[%s1 + $0x58] sm:$0xff]
  %v351 = vld [vmem:[%s1 + $0x60] sm:$0xff]
  %v352 = vld [vmem:[%s1 + $0x68] sm:$0xff]
  %v353 = vld [vmem:[%s1 + $0x70] sm:$0xff]
  %v354 = vld [vmem:[%s1 + $0x78] sm:$0xff]
  %v355 = vld [vmem:[%s1 + $0x80] sm:$0xff]
  %v356 = vld [vmem:[%s1 + $0x88] sm:$0xff]
  %v357 = vld [vmem:[%s1 + $0x90] sm:$0xff]
  %v358 = vld [vmem:[%s1 + $0x98] sm:$0xff]
  %v359 = vld [vmem:[%s1 + $0xa0] sm:$0xff]
  %v360 = vld [vmem:[%s1 + $0xa8] sm:$0xff]
  %v361 = vld [vmem:[%s1 + $0xb0] sm:$0xff]
  %v362 = vld [vmem:[%s1 + $0xb8] sm:$0xff]
  %v363 = vld [vmem:[%s1 + $0xc0] sm:$0xff]
  %v364 = vld [vmem:[%s1 + $0xc8] sm:$0xff]
  %v365 = vld [vmem:[%s1 + $0xd0] sm:$0xff]
  %v366 = vld [vmem:[%s1 + $0xd8] sm:$0xff]
  %v367 = vld [vmem:[%s1 + $0xe0] sm:$0xff]
  %v368 = vld [vmem:[%s1 + $0xe8] sm:$0xff]
  %v369 = vld [vmem:[%s1 + $0xf0] sm:$0xff]
  %v370 = vld [vmem:[%s1 + $0xf8] sm:$0xff]
  %v371 = vld [vmem:[%s1 + $0x100] sm:$0xff]
  %v372 = vld [vmem:[%s1 + $0x108] sm:$0xff]
  %v373 = vld [vmem:[%s1 + $0x110] sm:$0xff]
  %v374 = vld [vmem:[%s1 + $0x118] sm:$0xff]
  %v375 = vld [vmem:[%s1 + $0x120] sm:$0xff]
  %v376 = vld [vmem:[%s1 + $0x128] sm:$0xff]
  %v377 = vld [vmem:[%s1 + $0x130] sm:$0xff]
  %v378 = vld [vmem:[%s1 + $0x138] sm:$0xff]
  %v379 = vld [vmem:[%s1 + $0x140] sm:$0xff]
  %v380 = vld [vmem:[%s1 + $0x148] sm:$0xff]
  %v381 = vld [vmem:[%s1 + $0x150] sm:$0xff]
  %v382 = vld [vmem:[%s1 + $0x158] sm:$0xff]
  %v383 = vld [vmem:[%s1 + $0x160] sm:$0xff]
  %v384 = vld [vmem:[%s1 + $0x168] sm:$0xff]
  %v385 = vld [vmem:[%s1 + $0x170] sm:$0xff]
  %v386 = vld [vmem:[%s1 + $0x178] sm:$0xff]
  %v387 = vld [vmem:[%s1 + $0x180] sm:$0xff]
  %v388 = vld [vmem:[%s1 + $0x188] sm:$0xff]
  %v389 = vld [vmem:[%s1 + $0x190] sm:$0xff]
  %v390 = vld [vmem:[%s1 + $0x198] sm:$0xff]
  %v391 = vld [vmem:[%s1 + $0x1a0] sm:$0xff]
  %v392 = vld [vmem:[%s1 + $0x1a8] sm:$0xff]
  %v393 = vld [vmem:[%s1 + $0x1b0] sm:$0xff]
  %v394 = vld [vmem:[%s1 + $0x1b8] sm:$0xff]
  %v395 = vld [vmem:[%s1 + $0x1c0] sm:$0xff]
  %v396 = vld [vmem:[%s1 + $0x1c8] sm:$0xff]
  %v397 = vld [vmem:[%s1 + $0x1d0] sm:$0xff]
  %v398 = vld [vmem:[%s1 + $0x1d8] sm:$0xff]
  %v399 = vld [vmem:[%s1 + $0x1e0] sm:$0xff]
  %v400 = vld [vmem:[%s1 + $0x1e8] sm:$0xff]
  %v401 = vld [vmem:[%s1 + $0x1f0] sm:$0xff]
  %v402 = vld [vmem:[%s1 + $0x1f8] sm:$0xff]
  %v403 = vld [vmem:[%s1 + $0x200] sm:$0xff]
  %v404 = vld [vmem:[%s1 + $0x208] sm:$0xff]
  %v405 = vld [vmem:[%s1 + $0x210] sm:$0xff]
  %v406 = vld [vmem:[%s1 + $0x218] sm:$0xff]
  %v407 = vld [vmem:[%s1 + $0x220] sm:$0xff]
  %v408 = vld [vmem:[%s1 + $0x228] sm:$0xff]
  %v409 = vld [vmem:[%s1 + $0x230] sm:$0xff]
  %v410 = vld [vmem:[%s1 + $0x238] sm:$0xff]
  %v411 = vld [vmem:[%s1 + $0x240] sm:$0xff]
  %v412 = vld [vmem:[%s1 + $0x248] sm:$0xff]
  %v413 = vld [vmem:[%s1 + $0x250] sm:$0xff]
  %v414 = vld [vmem:[%s1 + $0x258] sm:$0xff]
  %v415 = vld [vmem:[%s1 + $0x260] sm:$0xff]
  %v416 = vld [vmem:[%s1 + $0x268] sm:$0xff]
  %v417 = vld [vmem:[%s1 + $0x270] sm:$0xff]
  %v418 = vld [vmem:[%s1 + $0x278] sm:$0xff]
  %v419 = vld [vmem:[%s1 + $0x280] sm:$0xff]
  %v420 = vld [vmem:[%s1 + $0x288] sm:$0xff]
  %v421 = vld [vmem:[%s1 + $0x290] sm:$0xff]
  %v422 = vld [vmem:[%s1 + $0x298] sm:$0xff]
  %v423 = vld [vmem:[%s1 + $0x2a0] sm:$0xff]
  %v424 = vld [vmem:[%s1 + $0x2a8] sm:$0xff]
  %v425 = vld [vmem:[%s1 + $0x2b0] sm:$0xff]
  %v426 = vld [vmem:[%s1 + $0x2b8] sm:$0xff]
  %v427 = vld [vmem:[%s1 + $0x2c0] sm:$0xff]
  %v428 = vld [vmem:[%s1 + $0x2c8] sm:$0xff]
  %v429 = vld [vmem:[%s1 + $0x2d0] sm:$0xff]
  %v430 = vld [vmem:[%s1 + $0x2d8] sm:$0xff]
  %v431 = vld [vmem:[%s1 + $0x2e0] sm:$0xff]
  %v432 = vld [vmem:[%s1 + $0x2e8] sm:$0xff]
  %v433 = vld [vmem:[%s1 + $0x2f0] sm:$0xff]
  %v434 = vld [vmem:[%s1 + $0x2f8] sm:$0xff]
  %v435 = vld [vmem:[%s1 + $0x300] sm:$0xff]
  %v436 = vld [vmem:[%s1 + $0x308] sm:$0xff]
  %v437 = vld [vmem:[%s1 + $0x310] sm:$0xff]
  %v438 = vld [vmem:[%s1 + $0x318] sm:$0xff]
  %v439 = vld [vmem:[%s1 + $0x320] sm:$0xff]
  %v440 = vld [vmem:[%s1 + $0x328] sm:$0xff]
  %v441 = vld [vmem:[%s1 + $0x330] sm:$0xff]
  %v442 = vld [vmem:[%s1 + $0x338] sm:$0xff]
  %v443 = vld [vmem:[%s1 + $0x340] sm:$0xff]
  %v444 = vld [vmem:[%s1 + $0x348] sm:$0xff]
  %v445 = vld [vmem:[%s1 + $0x350] sm:$0xff]
  %v446 = vld [vmem:[%s1 + $0x358] sm:$0xff]
  %v447 = vld [vmem:[%s1 + $0x360] sm:$0xff]
  %v448 = vld [vmem:[%s1 + $0x368] sm:$0xff]
  %v449 = vld [vmem:[%s1 + $0x370] sm:$0xff]
  %v450 = vld [vmem:[%s1 + $0x378] sm:$0xff]
  %v451 = vld [vmem:[%s1 + $0x380] sm:$0xff]
  %v452 = vld [vmem:[%s1 + $0x388] sm:$0xff]
  %v453 = vld [vmem:[%s1 + $0x390] sm:$0xff]
  %v454 = vld [vmem:[%s1 + $0x398] sm:$0xff]
  %v455 = vld [vmem:[%s1 + $0x3a0] sm:$0xff]
  %v456 = vld [vmem:[%s1 + $0x3a8] sm:$0xff]
  %v457 = vld [vmem:[%s1 + $0x3b0] sm:$0xff]
  %v458 = vld [vmem:[%s1 + $0x3b8] sm:$0xff]
  %v459 = vld [vmem:[%s1 + $0x3c0] sm:$0xff]
  %v460 = vld [vmem:[%s1 + $0x3c8] sm:$0xff]
  %v461 = vld [vmem:[%s1 + $0x3d0] sm:$0xff]
  %v462 = vld [vmem:[%s1 + $0x3d8] sm:$0xff]
  %v463 = vld [vmem:[%s1 + $0x3e0] sm:$0xff]
  %v464 = vld [vmem:[%s1 + $0x3e8] sm:$0xff]
  %v465 = vld [vmem:[%s1 + $0x3f0] sm:$0xff]
  %v466 = vld [vmem:[%s1 + $0x3f8] sm:$0xff]
  %v467 = vld [vmem:[%s1 + $0x400] sm:$0xff]
  %v468 = vld [vmem:[%s1 + $0x408] sm:$0xff]
  %v469 = vld [vmem:[%s1 + $0x410] sm:$0xff]
  %v470 = vld [vmem:[%s1 + $0x418] sm:$0xff]
  %v471 = vld [vmem:[%s1 + $0x420] sm:$0xff]
  %v472 = vld [vmem:[%s1 + $0x428] sm:$0xff]
  %v473 = vld [vmem:[%s1 + $0x430] sm:$0xff]
  %v474 = vld [vmem:[%s1 + $0x438] sm:$0xff]
  %v475 = vld [vmem:[%s1 + $0x440] sm:$0xff]
  %v476 = vld [vmem:[%s1 + $0x448] sm:$0xff]
  %v477 = vld [vmem:[%s1 + $0x450] sm:$0xff]
  %v478 = vld [vmem:[%s1 + $0x458] sm:$0xff]
  %v479 = vld [vmem:[%s1 + $0x460] sm:$0xff]
  %v480 = vld [vmem:[%s1 + $0x468] sm:$0xff]
  %v481 = vld [vmem:[%s1 + $0x470] sm:$0xff]
  %v482 = vld [vmem:[%s1 + $0x478] sm:$0xff]
  %v483 = vld [vmem:[%s1 + $0x480] sm:$0xff]
  %v484 = vld [vmem:[%s1 + $0x488] sm:$0xff]
  %v485 = vld [vmem:[%s1 + $0x490] sm:$0xff]
  %v486 = vld [vmem:[%s1 + $0x498] sm:$0xff]
  %v487 = vld [vmem:[%s1 + $0x4a0] sm:$0xff]
  %v488 = vld [vmem:[%s1 + $0x4a8] sm:$0xff]
  %v489 = vld [vmem:[%s1 + $0x4b0] sm:$0xff]
  %v490 = vld [vmem:[%s1 + $0x4b8] sm:$0xff]
  %v491 = vld [vmem:[%s1 + $0x4c0] sm:$0xff]
  %v492 = vld [vmem:[%s1 + $0x4c8] sm:$0xff]
  %v493 = vld [vmem:[%s1 + $0x4d0] sm:$0xff]
  %v494 = vld [vmem:[%s1 + $0x4d8] sm:$0xff]
  %v495 = vld [vmem:[%s1 + $0x4e0] sm:$0xff]
  %v496 = vld [vmem:[%s1 + $0x4e8] sm:$0xff]
  %v497 = vld [vmem:[%s1 + $0x4f0] sm:$0xff]
  %v498 = vld [vmem:[%s1 + $0x4f8] sm:$0xff]
  %v499 = vld [vmem:[%s1 + $0x500] sm:$0xff]
  %v500 = vld [vmem:[%s1 + $0x508] sm:$0xff]
  %v501 = vld [vmem:[%s1 + $0x510] sm:$0xff]
  %v502 = vld [vmem:[%s1 + $0x518] sm:$0xff]
  %v503 = vld [vmem:[%s1 + $0x520] sm:$0xff]
  %v504 = vld [vmem:[%s1 + $0x528] sm:$0xff]
  %v505 = vld [vmem:[%s1 + $0x530] sm:$0xff]
  %v506 = vld [vmem:[%s1 + $0x538] sm:$0xff]
  %v507 = vld [vmem:[%s1 + $0x540] sm:$0xff]
  %v508 = vld [vmem:[%s1 + $0x548] sm:$0xff]
  %v509 = vld [vmem:[%s1 + $0x550] sm:$0xff]
  %v510 = vld [vmem:[%s1 + $0x558] sm:$0xff]
  %v511 = vld [vmem:[%s1 + $0x560] sm:$0xff]
  %v512 = vld [vmem:[%s1 + $0x568] sm:$0xff]
  %v513 = vld [vmem:[%s1 + $0x570] sm:$0xff]
  %v514 = vld [vmem:[%s1 + $0x578] sm:$0xff]
  %v515 = vld [vmem:[%s1 + $0x580] sm:$0xff]
  %v516 = vld [vmem:[%s1 + $0x588] sm:$0xff]
  %v517 = vld [vmem:[%s1 + $0x590] sm:$0xff]
  %v518 = vld [vmem:[%s1 + $0x598] sm:$0xff]
  %v519 = vld [vmem:[%s1 + $0x5a0] sm:$0xff]
  %v520 = vld [vmem:[%s1 + $0x5a8] sm:$0xff]
  %v521 = vld [vmem:[%s1 + $0x5b0] sm:$0xff]
  %v522 = vld [vmem:[%s1 + $0x5b8] sm:$0xff]
  %v523 = vld [vmem:[%s1 + $0x5c0] sm:$0xff]
  %v524 = vld [vmem:[%s1 + $0x5c8] sm:$0xff]
  %v525 = vld [vmem:[%s1 + $0x5d0] sm:$0xff]
  %v526 = vld [vmem:[%s1 + $0x5d8] sm:$0xff]
  %v527 = vld [vmem:[%s1 + $0x5e0] sm:$0xff]
  %v528 = vld [vmem:[%s1 + $0x5e8] sm:$0xff]
  %v529 = vld [vmem:[%s1 + $0x5f0] sm:$0xff]
  %v530 = vld [vmem:[%s1 + $0x5f8] sm:$0xff]
  %v531 = vld [vmem:[%s1 + $0x600] sm:$0xff]
  %v532 = vld [vmem:[%s1 + $0x608] sm:$0xff]
  %v533 = vld [vmem:[%s1 + $0x610] sm:$0xff]
  %v534 = vld [vmem:[%s1 + $0x618] sm:$0xff]
  %v535 = vld [vmem:[%s1 + $0x620] sm:$0xff]
  %v536 = vld [vmem:[%s1 + $0x628] sm:$0xff]
  %v537 = vld [vmem:[%s1 + $0x630] sm:$0xff]
  %v538 = vld [vmem:[%s1 + $0x638] sm:$0xff]
  %v539 = vld [vmem:[%s2] sm:$0x1]
  %v541 = vlaneseq
  %v542 = vshrl.u32 %v541, 7
  %v543 = vsub.s32 0, %v542
  %v544 = vrot.slane %v539, %v543
  %vm546 = vcmask 523264
  %v548 = vsel %vm546, %v26, 0
  %v551 = vsel %vm546, %v39, 0
  %v554 = vsel %vm546, %v52, 0
  %v557 = vsel %vm546, %v65, 0
  %v560 = vsel %vm546, %v78, 0
  %v563 = vsel %vm546, %v91, 0
  %v566 = vsel %vm546, %v104, 0
  %v569 = vsel %vm546, %v117, 0
  %v572 = vsel %vm546, %v130, 0
  %v575 = vsel %vm546, %v143, 0
  %v578 = vsel %vm546, %v156, 0
  %v581 = vsel %vm546, %v169, 0
  %v584 = vsel %vm546, %v182, 0
  %v587 = vsel %vm546, %v195, 0
  %v590 = vsel %vm546, %v208, 0
  %v593 = vsel %vm546, %v221, 0
  %v596 = vsel %vm546, %v234, 0
  %v599 = vsel %vm546, %v247, 0
  %v602 = vsel %vm546, %v260, 0
  %v605 = vsel %vm546, %v273, 0
  %v608 = vsel %vm546, %v286, 0
  %v611 = vsel %vm546, %v299, 0
  %v614 = vsel %vm546, %v312, 0
  %v617 = vsel %vm546, %v325, 0
  %v620 = vsel %vm546, %v338, 0
  %622 = vmatprep.subr.mxu0 0.0
  %623 = vmatpush1.msra.mxu0 %v354
  %624 = vmatprep.subr.mxu0 0.0
  %625 = vmatpush1.msra.mxu0 %v353
  %626 = vmatprep.subr.mxu0 0.0
  %627 = vmatpush1.msra.mxu0 %v352
  %628 = vmatprep.subr.mxu0 0.0
  %629 = vmatpush1.msra.mxu0 %v351
  %630 = vmatprep.subr.mxu0 0.0
  %631 = vmatpush1.msra.mxu0 %v350
  %632 = vmatprep.subr.mxu0 0.0
  %633 = vmatpush1.msra.mxu0 %v349
  %634 = vmatprep.subr.mxu0 0.0
  %635 = vmatpush1.msra.mxu0 %v348
  %636 = vmatprep.subr.mxu0 0.0
  %637 = vmatpush1.msra.mxu0 %v347
  %638 = vmatprep.subr.mxu0 0.0
  %639 = vmatpush1.msra.mxu0 %v346
  %640 = vmatprep.subr.mxu0 0.0
  %641 = vmatpush1.msra.mxu0 %v345
  %642 = vmatprep.subr.mxu0 0.0
  %643 = vmatpush1.msra.mxu0 %v344
  %644 = vmatprep.subr.mxu0 0.0
  %645 = vmatpush1.msra.mxu0 %v343
  %646 = vmatprep.subr.mxu0 0.0
  %647 = vmatpush1.msra.mxu0 %v342
  %648 = vmatprep.subr.mxu0 0.0
  %649 = vmatpush1.msra.mxu0 %v341
  %650 = vmatprep.subr.mxu0 0.0
  %651 = vmatpush1.msra.mxu0 %v340
  %652 = vmatprep.subr.mxu0 0.0
  %653 = vmatpush1.msra.mxu0 %v339
  %654 = vmatprep.subr.mxu0 0.0
  %655 = vmatpush2.msra.mxu0 %v370
  %656 = vmatprep.subr.mxu0 0.0
  %657 = vmatpush2.msra.mxu0 %v369
  %658 = vmatprep.subr.mxu0 0.0
  %659 = vmatpush2.msra.mxu0 %v368
  %660 = vmatprep.subr.mxu0 0.0
  %661 = vmatpush2.msra.mxu0 %v367
  %662 = vmatprep.subr.mxu0 0.0
  %663 = vmatpush2.msra.mxu0 %v366
  %664 = vmatprep.subr.mxu0 0.0
  %665 = vmatpush2.msra.mxu0 %v365
  %666 = vmatprep.subr.mxu0 0.0
  %667 = vmatpush2.msra.mxu0 %v364
  %668 = vmatprep.subr.mxu0 0.0
  %669 = vmatpush2.msra.mxu0 %v363
  %670 = vmatprep.subr.mxu0 0.0
  %671 = vmatpush2.msra.mxu0 %v362
  %672 = vmatprep.subr.mxu0 0.0
  %673 = vmatpush2.msra.mxu0 %v361
  %674 = vmatprep.subr.mxu0 0.0
  %675 = vmatpush2.msra.mxu0 %v360
  %676 = vmatprep.subr.mxu0 0.0
  %677 = vmatpush2.msra.mxu0 %v359
  %678 = vmatprep.subr.mxu0 0.0
  %679 = vmatpush2.msra.mxu0 %v358
  %680 = vmatprep.subr.mxu0 0.0
  %681 = vmatpush2.msra.mxu0 %v357
  %682 = vmatprep.subr.mxu0 0.0
  %683 = vmatpush2.msra.mxu0 %v356
  %684 = vmatprep.subr.mxu0 0.0
  %685 = vmatpush2.msra.mxu0 %v355
  %686 = vmatprep.mubr.f32.mxu0 %v15
  %687 = vmatmul.mubr.f32.gmra.mxu0 %v14
  %v688 = vpop.f32.mrf.mxu0
  %v689 = vadd.f32 %v544, %v688
  %v690 = vpop.f32.mrf.mxu0
  %691 = vmatprep.mubr.f32.mxu0 %v28
  %692 = vmatmul.mubr.f32.gmra.mxu0 %v27
  %v693 = vpop.f32.mrf.mxu0
  %v694 = vadd.f32 %v544, %v693
  %v695 = vpop.f32.mrf.mxu0
  %696 = vmatprep.mubr.f32.mxu0 %v41
  %697 = vmatmul.mubr.f32.gmra.mxu0 %v40
  %v698 = vpop.f32.mrf.mxu0
  %v699 = vadd.f32 %v544, %v698
  %v700 = vpop.f32.mrf.mxu0
  %701 = vmatprep.mubr.f32.mxu0 %v54
  %702 = vmatmul.mubr.f32.gmra.mxu0 %v53
  %v703 = vpop.f32.mrf.mxu0
  %v704 = vadd.f32 %v544, %v703
  %v705 = vpop.f32.mrf.mxu0
  %706 = vmatprep.mubr.f32.mxu0 %v67
  %707 = vmatmul.mubr.f32.gmra.mxu0 %v66
  %v708 = vpop.f32.mrf.mxu0
  %v709 = vadd.f32 %v544, %v708
  %v710 = vpop.f32.mrf.mxu0
  %711 = vmatprep.mubr.f32.mxu0 %v80
  %712 = vmatmul.mubr.f32.gmra.mxu0 %v79
  %v713 = vpop.f32.mrf.mxu0
  %v714 = vadd.f32 %v544, %v713
  %v715 = vpop.f32.mrf.mxu0
  %716 = vmatprep.mubr.f32.mxu0 %v93
  %717 = vmatmul.mubr.f32.gmra.mxu0 %v92
  %v718 = vpop.f32.mrf.mxu0
  %v719 = vadd.f32 %v544, %v718
  %v720 = vpop.f32.mrf.mxu0
  %721 = vmatprep.mubr.f32.mxu0 %v106
  %722 = vmatmul.mubr.f32.gmra.mxu0 %v105
  %v723 = vpop.f32.mrf.mxu0
  %v724 = vadd.f32 %v544, %v723
  %v725 = vpop.f32.mrf.mxu0
  %726 = vmatprep.mubr.f32.mxu0 %v119
  %727 = vmatmul.mubr.f32.gmra.mxu0 %v118
  %v728 = vpop.f32.mrf.mxu0
  %v729 = vadd.f32 %v544, %v728
  %v730 = vpop.f32.mrf.mxu0
  %731 = vmatprep.mubr.f32.mxu0 %v132
  %732 = vmatmul.mubr.f32.gmra.mxu0 %v131
  %v733 = vpop.f32.mrf.mxu0
  %v734 = vadd.f32 %v544, %v733
  %v735 = vpop.f32.mrf.mxu0
  %736 = vmatprep.mubr.f32.mxu0 %v145
  %737 = vmatmul.mubr.f32.gmra.mxu0 %v144
  %v738 = vpop.f32.mrf.mxu0
  %v739 = vadd.f32 %v544, %v738
  %v740 = vpop.f32.mrf.mxu0
  %741 = vmatprep.mubr.f32.mxu0 %v158
  %742 = vmatmul.mubr.f32.gmra.mxu0 %v157
  %v743 = vpop.f32.mrf.mxu0
  %v744 = vadd.f32 %v544, %v743
  %v745 = vpop.f32.mrf.mxu0
  %746 = vmatprep.mubr.f32.mxu0 %v171
  %747 = vmatmul.mubr.f32.gmra.mxu0 %v170
  %v748 = vpop.f32.mrf.mxu0
  %v749 = vadd.f32 %v544, %v748
  %v750 = vpop.f32.mrf.mxu0
  %751 = vmatprep.mubr.f32.mxu0 %v184
  %752 = vmatmul.mubr.f32.gmra.mxu0 %v183
  %v753 = vpop.f32.mrf.mxu0
  %v754 = vadd.f32 %v544, %v753
  %v755 = vpop.f32.mrf.mxu0
  %756 = vmatprep.mubr.f32.mxu0 %v197
  %757 = vmatmul.mubr.f32.gmra.mxu0 %v196
  %v758 = vpop.f32.mrf.mxu0
  %v759 = vadd.f32 %v544, %v758
  %v760 = vpop.f32.mrf.mxu0
  %761 = vmatprep.mubr.f32.mxu0 %v210
  %762 = vmatmul.mubr.f32.gmra.mxu0 %v209
  %v763 = vpop.f32.mrf.mxu0
  %v764 = vadd.f32 %v544, %v763
  %v765 = vpop.f32.mrf.mxu0
  %766 = vmatprep.mubr.f32.mxu0 %v223
  %767 = vmatmul.mubr.f32.gmra.mxu0 %v222
  %v768 = vpop.f32.mrf.mxu0
  %v769 = vadd.f32 %v544, %v768
  %v770 = vpop.f32.mrf.mxu0
  %771 = vmatprep.mubr.f32.mxu0 %v236
  %772 = vmatmul.mubr.f32.gmra.mxu0 %v235
  %v773 = vpop.f32.mrf.mxu0
  %v774 = vadd.f32 %v544, %v773
  %v775 = vpop.f32.mrf.mxu0
  %776 = vmatprep.mubr.f32.mxu0 %v249
  %777 = vmatmul.mubr.f32.gmra.mxu0 %v248
  %v778 = vpop.f32.mrf.mxu0
  %v779 = vadd.f32 %v544, %v778
  %v780 = vpop.f32.mrf.mxu0
  %781 = vmatprep.mubr.f32.mxu0 %v262
  %782 = vmatmul.mubr.f32.gmra.mxu0 %v261
  %v783 = vpop.f32.mrf.mxu0
  %v784 = vadd.f32 %v544, %v783
  %v785 = vpop.f32.mrf.mxu0
  %786 = vmatprep.mubr.f32.mxu0 %v275
  %787 = vmatmul.mubr.f32.gmra.mxu0 %v274
  %v788 = vpop.f32.mrf.mxu0
  %v789 = vadd.f32 %v544, %v788
  %v790 = vpop.f32.mrf.mxu0
  %791 = vmatprep.mubr.f32.mxu0 %v288
  %792 = vmatmul.mubr.f32.gmra.mxu0 %v287
  %v793 = vpop.f32.mrf.mxu0
  %v794 = vadd.f32 %v544, %v793
  %v795 = vpop.f32.mrf.mxu0
  %796 = vmatprep.mubr.f32.mxu0 %v301
  %797 = vmatmul.mubr.f32.gmra.mxu0 %v300
  %v798 = vpop.f32.mrf.mxu0
  %v799 = vadd.f32 %v544, %v798
  %v800 = vpop.f32.mrf.mxu0
  %801 = vmatprep.mubr.f32.mxu0 %v314
  %802 = vmatmul.mubr.f32.gmra.mxu0 %v313
  %v803 = vpop.f32.mrf.mxu0
  %v804 = vadd.f32 %v544, %v803
  %v805 = vpop.f32.mrf.mxu0
  %806 = vmatprep.mubr.f32.mxu0 %v327
  %807 = vmatmul.mubr.f32.gmra.mxu0 %v326
  %v808 = vpop.f32.mrf.mxu0
  %v809 = vadd.f32 %v544, %v808
  %v810 = vpop.f32.mrf.mxu0
  %811 = vdwg.mxu0
  %812 = vmatprep.subr.mxu0 0.0
  %813 = vmatpush1.msra.mxu0 %v386
  %814 = vmatprep.subr.mxu0 0.0
  %815 = vmatpush1.msra.mxu0 %v385
  %816 = vmatprep.subr.mxu0 0.0
  %817 = vmatpush1.msra.mxu0 %v384
  %818 = vmatprep.subr.mxu0 0.0
  %819 = vmatpush1.msra.mxu0 %v383
  %820 = vmatprep.subr.mxu0 0.0
  %821 = vmatpush1.msra.mxu0 %v382
  %822 = vmatprep.subr.mxu0 0.0
  %823 = vmatpush1.msra.mxu0 %v381
  %824 = vmatprep.subr.mxu0 0.0
  %825 = vmatpush1.msra.mxu0 %v380
  %826 = vmatprep.subr.mxu0 0.0
  %827 = vmatpush1.msra.mxu0 %v379
  %828 = vmatprep.subr.mxu0 0.0
  %829 = vmatpush1.msra.mxu0 %v378
  %830 = vmatprep.subr.mxu0 0.0
  %831 = vmatpush1.msra.mxu0 %v377
  %832 = vmatprep.subr.mxu0 0.0
  %833 = vmatpush1.msra.mxu0 %v376
  %834 = vmatprep.subr.mxu0 0.0
  %835 = vmatpush1.msra.mxu0 %v375
  %836 = vmatprep.subr.mxu0 0.0
  %837 = vmatpush1.msra.mxu0 %v374
  %838 = vmatprep.subr.mxu0 0.0
  %839 = vmatpush1.msra.mxu0 %v373
  %840 = vmatprep.subr.mxu0 0.0
  %841 = vmatpush1.msra.mxu0 %v372
  %842 = vmatprep.subr.mxu0 0.0
  %843 = vmatpush1.msra.mxu0 %v371
  %844 = vmatprep.subr.mxu0 0.0
  %845 = vmatpush2.msra.mxu0 %v402
  %846 = vmatprep.subr.mxu0 0.0
  %847 = vmatpush2.msra.mxu0 %v401
  %848 = vmatprep.subr.mxu0 0.0
  %849 = vmatpush2.msra.mxu0 %v400
  %850 = vmatprep.subr.mxu0 0.0
  %851 = vmatpush2.msra.mxu0 %v399
  %852 = vmatprep.subr.mxu0 0.0
  %853 = vmatpush2.msra.mxu0 %v398
  %854 = vmatprep.subr.mxu0 0.0
  %855 = vmatpush2.msra.mxu0 %v397
  %856 = vmatprep.subr.mxu0 0.0
  %857 = vmatpush2.msra.mxu0 %v396
  %858 = vmatprep.subr.mxu0 0.0
  %859 = vmatpush2.msra.mxu0 %v395
  %860 = vmatprep.subr.mxu0 0.0
  %861 = vmatpush2.msra.mxu0 %v394
  %862 = vmatprep.subr.mxu0 0.0
  %863 = vmatpush2.msra.mxu0 %v393
  %864 = vmatprep.subr.mxu0 0.0
  %865 = vmatpush2.msra.mxu0 %v392
  %866 = vmatprep.subr.mxu0 0.0
  %867 = vmatpush2.msra.mxu0 %v391
  %868 = vmatprep.subr.mxu0 0.0
  %869 = vmatpush2.msra.mxu0 %v390
  %870 = vmatprep.subr.mxu0 0.0
  %871 = vmatpush2.msra.mxu0 %v389
  %872 = vmatprep.subr.mxu0 0.0
  %873 = vmatpush2.msra.mxu0 %v388
  %874 = vmatprep.subr.mxu0 0.0
  %875 = vmatpush2.msra.mxu0 %v387
  %876 = vmatprep.mubr.f32.mxu0 %v17
  %877 = vmatmul.mubr.f32.gmra.mxu0 %v16
  %v878 = vpop.f32.mrf.mxu0
  %v879 = vadd.f32 %v689, %v878
  %v880 = vpop.f32.mrf.mxu0
  %881 = vmatprep.mubr.f32.mxu0 %v30
  %882 = vmatmul.mubr.f32.gmra.mxu0 %v29
  %v883 = vpop.f32.mrf.mxu0
  %v884 = vadd.f32 %v694, %v883
  %v885 = vpop.f32.mrf.mxu0
  %886 = vmatprep.mubr.f32.mxu0 %v43
  %887 = vmatmul.mubr.f32.gmra.mxu0 %v42
  %v888 = vpop.f32.mrf.mxu0
  %v889 = vadd.f32 %v699, %v888
  %v890 = vpop.f32.mrf.mxu0
  %891 = vmatprep.mubr.f32.mxu0 %v56
  %892 = vmatmul.mubr.f32.gmra.mxu0 %v55
  %v893 = vpop.f32.mrf.mxu0
  %v894 = vadd.f32 %v704, %v893
  %v895 = vpop.f32.mrf.mxu0
  %896 = vmatprep.mubr.f32.mxu0 %v69
  %897 = vmatmul.mubr.f32.gmra.mxu0 %v68
  %v898 = vpop.f32.mrf.mxu0
  %v899 = vadd.f32 %v709, %v898
  %v900 = vpop.f32.mrf.mxu0
  %901 = vmatprep.mubr.f32.mxu0 %v82
  %902 = vmatmul.mubr.f32.gmra.mxu0 %v81
  %v903 = vpop.f32.mrf.mxu0
  %v904 = vadd.f32 %v714, %v903
  %v905 = vpop.f32.mrf.mxu0
  %906 = vmatprep.mubr.f32.mxu0 %v95
  %907 = vmatmul.mubr.f32.gmra.mxu0 %v94
  %v908 = vpop.f32.mrf.mxu0
  %v909 = vadd.f32 %v719, %v908
  %v910 = vpop.f32.mrf.mxu0
  %911 = vmatprep.mubr.f32.mxu0 %v108
  %912 = vmatmul.mubr.f32.gmra.mxu0 %v107
  %v913 = vpop.f32.mrf.mxu0
  %v914 = vadd.f32 %v724, %v913
  %v915 = vpop.f32.mrf.mxu0
  %916 = vmatprep.mubr.f32.mxu0 %v121
  %917 = vmatmul.mubr.f32.gmra.mxu0 %v120
  %v918 = vpop.f32.mrf.mxu0
  %v919 = vadd.f32 %v729, %v918
  %v920 = vpop.f32.mrf.mxu0
  %921 = vmatprep.mubr.f32.mxu0 %v134
  %922 = vmatmul.mubr.f32.gmra.mxu0 %v133
  %v923 = vpop.f32.mrf.mxu0
  %v924 = vadd.f32 %v734, %v923
  %v925 = vpop.f32.mrf.mxu0
  %926 = vmatprep.mubr.f32.mxu0 %v147
  %927 = vmatmul.mubr.f32.gmra.mxu0 %v146
  %v928 = vpop.f32.mrf.mxu0
  %v929 = vadd.f32 %v739, %v928
  %v930 = vpop.f32.mrf.mxu0
  %931 = vmatprep.mubr.f32.mxu0 %v160
  %932 = vmatmul.mubr.f32.gmra.mxu0 %v159
  %v933 = vpop.f32.mrf.mxu0
  %v934 = vadd.f32 %v744, %v933
  %v935 = vpop.f32.mrf.mxu0
  %936 = vmatprep.mubr.f32.mxu0 %v173
  %937 = vmatmul.mubr.f32.gmra.mxu0 %v172
  %v938 = vpop.f32.mrf.mxu0
  %v939 = vadd.f32 %v749, %v938
  %v940 = vpop.f32.mrf.mxu0
  %941 = vmatprep.mubr.f32.mxu0 %v186
  %942 = vmatmul.mubr.f32.gmra.mxu0 %v185
  %v943 = vpop.f32.mrf.mxu0
  %v944 = vadd.f32 %v754, %v943
  %v945 = vpop.f32.mrf.mxu0
  %946 = vmatprep.mubr.f32.mxu0 %v199
  %947 = vmatmul.mubr.f32.gmra.mxu0 %v198
  %v948 = vpop.f32.mrf.mxu0
  %v949 = vadd.f32 %v759, %v948
  %v950 = vpop.f32.mrf.mxu0
  %951 = vmatprep.mubr.f32.mxu0 %v212
  %952 = vmatmul.mubr.f32.gmra.mxu0 %v211
  %v953 = vpop.f32.mrf.mxu0
  %v954 = vadd.f32 %v764, %v953
  %v955 = vpop.f32.mrf.mxu0
  %956 = vmatprep.mubr.f32.mxu0 %v225
  %957 = vmatmul.mubr.f32.gmra.mxu0 %v224
  %v958 = vpop.f32.mrf.mxu0
  %v959 = vadd.f32 %v769, %v958
  %v960 = vpop.f32.mrf.mxu0
  %961 = vmatprep.mubr.f32.mxu0 %v238
  %962 = vmatmul.mubr.f32.gmra.mxu0 %v237
  %v963 = vpop.f32.mrf.mxu0
  %v964 = vadd.f32 %v774, %v963
  %v965 = vpop.f32.mrf.mxu0
  %966 = vmatprep.mubr.f32.mxu0 %v251
  %967 = vmatmul.mubr.f32.gmra.mxu0 %v250
  %v968 = vpop.f32.mrf.mxu0
  %v969 = vadd.f32 %v779, %v968
  %v970 = vpop.f32.mrf.mxu0
  %971 = vmatprep.mubr.f32.mxu0 %v264
  %972 = vmatmul.mubr.f32.gmra.mxu0 %v263
  %v973 = vpop.f32.mrf.mxu0
  %v974 = vadd.f32 %v784, %v973
  %v975 = vpop.f32.mrf.mxu0
  %976 = vmatprep.mubr.f32.mxu0 %v277
  %977 = vmatmul.mubr.f32.gmra.mxu0 %v276
  %v978 = vpop.f32.mrf.mxu0
  %v979 = vadd.f32 %v789, %v978
  %v980 = vpop.f32.mrf.mxu0
  %981 = vmatprep.mubr.f32.mxu0 %v290
  %982 = vmatmul.mubr.f32.gmra.mxu0 %v289
  %v983 = vpop.f32.mrf.mxu0
  %v984 = vadd.f32 %v794, %v983
  %v985 = vpop.f32.mrf.mxu0
  %986 = vmatprep.mubr.f32.mxu0 %v303
  %987 = vmatmul.mubr.f32.gmra.mxu0 %v302
  %v988 = vpop.f32.mrf.mxu0
  %v989 = vadd.f32 %v799, %v988
  %v990 = vpop.f32.mrf.mxu0
  %991 = vmatprep.mubr.f32.mxu0 %v316
  %992 = vmatmul.mubr.f32.gmra.mxu0 %v315
  %v993 = vpop.f32.mrf.mxu0
  %v994 = vadd.f32 %v804, %v993
  %v995 = vpop.f32.mrf.mxu0
  %996 = vmatprep.mubr.f32.mxu0 %v329
  %997 = vmatmul.mubr.f32.gmra.mxu0 %v328
  %v998 = vpop.f32.mrf.mxu0
  %v999 = vadd.f32 %v809, %v998
  %v1000 = vpop.f32.mrf.mxu0
  %1001 = vdwg.mxu0
  %1002 = vmatprep.subr.mxu0 0.0
  %1003 = vmatpush1.msra.mxu0 %v418
  %1004 = vmatprep.subr.mxu0 0.0
  %1005 = vmatpush1.msra.mxu0 %v417
  %1006 = vmatprep.subr.mxu0 0.0
  %1007 = vmatpush1.msra.mxu0 %v416
  %1008 = vmatprep.subr.mxu0 0.0
  %1009 = vmatpush1.msra.mxu0 %v415
  %1010 = vmatprep.subr.mxu0 0.0
  %1011 = vmatpush1.msra.mxu0 %v414
  %1012 = vmatprep.subr.mxu0 0.0
  %1013 = vmatpush1.msra.mxu0 %v413
  %1014 = vmatprep.subr.mxu0 0.0
  %1015 = vmatpush1.msra.mxu0 %v412
  %1016 = vmatprep.subr.mxu0 0.0
  %1017 = vmatpush1.msra.mxu0 %v411
  %1018 = vmatprep.subr.mxu0 0.0
  %1019 = vmatpush1.msra.mxu0 %v410
  %1020 = vmatprep.subr.mxu0 0.0
  %1021 = vmatpush1.msra.mxu0 %v409
  %1022 = vmatprep.subr.mxu0 0.0
  %1023 = vmatpush1.msra.mxu0 %v408
  %1024 = vmatprep.subr.mxu0 0.0
  %1025 = vmatpush1.msra.mxu0 %v407
  %1026 = vmatprep.subr.mxu0 0.0
  %1027 = vmatpush1.msra.mxu0 %v406
  %1028 = vmatprep.subr.mxu0 0.0
  %1029 = vmatpush1.msra.mxu0 %v405
  %1030 = vmatprep.subr.mxu0 0.0
  %1031 = vmatpush1.msra.mxu0 %v404
  %1032 = vmatprep.subr.mxu0 0.0
  %1033 = vmatpush1.msra.mxu0 %v403
  %1034 = vmatprep.subr.mxu0 0.0
  %1035 = vmatpush2.msra.mxu0 %v434
  %1036 = vmatprep.subr.mxu0 0.0
  %1037 = vmatpush2.msra.mxu0 %v433
  %1038 = vmatprep.subr.mxu0 0.0
  %1039 = vmatpush2.msra.mxu0 %v432
  %1040 = vmatprep.subr.mxu0 0.0
  %1041 = vmatpush2.msra.mxu0 %v431
  %1042 = vmatprep.subr.mxu0 0.0
  %1043 = vmatpush2.msra.mxu0 %v430
  %1044 = vmatprep.subr.mxu0 0.0
  %1045 = vmatpush2.msra.mxu0 %v429
  %1046 = vmatprep.subr.mxu0 0.0
  %1047 = vmatpush2.msra.mxu0 %v428
  %1048 = vmatprep.subr.mxu0 0.0
  %1049 = vmatpush2.msra.mxu0 %v427
  %1050 = vmatprep.subr.mxu0 0.0
  %1051 = vmatpush2.msra.mxu0 %v426
  %1052 = vmatprep.subr.mxu0 0.0
  %1053 = vmatpush2.msra.mxu0 %v425
  %1054 = vmatprep.subr.mxu0 0.0
  %1055 = vmatpush2.msra.mxu0 %v424
  %1056 = vmatprep.subr.mxu0 0.0
  %1057 = vmatpush2.msra.mxu0 %v423
  %1058 = vmatprep.subr.mxu0 0.0
  %1059 = vmatpush2.msra.mxu0 %v422
  %1060 = vmatprep.subr.mxu0 0.0
  %1061 = vmatpush2.msra.mxu0 %v421
  %1062 = vmatprep.subr.mxu0 0.0
  %1063 = vmatpush2.msra.mxu0 %v420
  %1064 = vmatprep.subr.mxu0 0.0
  %1065 = vmatpush2.msra.mxu0 %v419
  %1066 = vmatprep.mubr.f32.mxu0 %v19
  %1067 = vmatmul.mubr.f32.gmra.mxu0 %v18
  %v1068 = vpop.f32.mrf.mxu0
  %v1069 = vadd.f32 %v879, %v1068
  %v1070 = vpop.f32.mrf.mxu0
  %1071 = vmatprep.mubr.f32.mxu0 %v32
  %1072 = vmatmul.mubr.f32.gmra.mxu0 %v31
  %v1073 = vpop.f32.mrf.mxu0
  %v1074 = vadd.f32 %v884, %v1073
  %v1075 = vpop.f32.mrf.mxu0
  %1076 = vmatprep.mubr.f32.mxu0 %v45
  %1077 = vmatmul.mubr.f32.gmra.mxu0 %v44
  %v1078 = vpop.f32.mrf.mxu0
  %v1079 = vadd.f32 %v889, %v1078
  %v1080 = vpop.f32.mrf.mxu0
  %1081 = vmatprep.mubr.f32.mxu0 %v58
  %1082 = vmatmul.mubr.f32.gmra.mxu0 %v57
  %v1083 = vpop.f32.mrf.mxu0
  %v1084 = vadd.f32 %v894, %v1083
  %v1085 = vpop.f32.mrf.mxu0
  %1086 = vmatprep.mubr.f32.mxu0 %v71
  %1087 = vmatmul.mubr.f32.gmra.mxu0 %v70
  %v1088 = vpop.f32.mrf.mxu0
  %v1089 = vadd.f32 %v899, %v1088
  %v1090 = vpop.f32.mrf.mxu0
  %1091 = vmatprep.mubr.f32.mxu0 %v84
  %1092 = vmatmul.mubr.f32.gmra.mxu0 %v83
  %v1093 = vpop.f32.mrf.mxu0
  %v1094 = vadd.f32 %v904, %v1093
  %v1095 = vpop.f32.mrf.mxu0
  %1096 = vmatprep.mubr.f32.mxu0 %v97
  %1097 = vmatmul.mubr.f32.gmra.mxu0 %v96
  %v1098 = vpop.f32.mrf.mxu0
  %v1099 = vadd.f32 %v909, %v1098
  %v1100 = vpop.f32.mrf.mxu0
  %1101 = vmatprep.mubr.f32.mxu0 %v110
  %1102 = vmatmul.mubr.f32.gmra.mxu0 %v109
  %v1103 = vpop.f32.mrf.mxu0
  %v1104 = vadd.f32 %v914, %v1103
  %v1105 = vpop.f32.mrf.mxu0
  %1106 = vmatprep.mubr.f32.mxu0 %v123
  %1107 = vmatmul.mubr.f32.gmra.mxu0 %v122
  %v1108 = vpop.f32.mrf.mxu0
  %v1109 = vadd.f32 %v919, %v1108
  %v1110 = vpop.f32.mrf.mxu0
  %1111 = vmatprep.mubr.f32.mxu0 %v136
  %1112 = vmatmul.mubr.f32.gmra.mxu0 %v135
  %v1113 = vpop.f32.mrf.mxu0
  %v1114 = vadd.f32 %v924, %v1113
  %v1115 = vpop.f32.mrf.mxu0
  %1116 = vmatprep.mubr.f32.mxu0 %v149
  %1117 = vmatmul.mubr.f32.gmra.mxu0 %v148
  %v1118 = vpop.f32.mrf.mxu0
  %v1119 = vadd.f32 %v929, %v1118
  %v1120 = vpop.f32.mrf.mxu0
  %1121 = vmatprep.mubr.f32.mxu0 %v162
  %1122 = vmatmul.mubr.f32.gmra.mxu0 %v161
  %v1123 = vpop.f32.mrf.mxu0
  %v1124 = vadd.f32 %v934, %v1123
  %v1125 = vpop.f32.mrf.mxu0
  %1126 = vmatprep.mubr.f32.mxu0 %v175
  %1127 = vmatmul.mubr.f32.gmra.mxu0 %v174
  %v1128 = vpop.f32.mrf.mxu0
  %v1129 = vadd.f32 %v939, %v1128
  %v1130 = vpop.f32.mrf.mxu0
  %1131 = vmatprep.mubr.f32.mxu0 %v188
  %1132 = vmatmul.mubr.f32.gmra.mxu0 %v187
  %v1133 = vpop.f32.mrf.mxu0
  %v1134 = vadd.f32 %v944, %v1133
  %v1135 = vpop.f32.mrf.mxu0
  %1136 = vmatprep.mubr.f32.mxu0 %v201
  %1137 = vmatmul.mubr.f32.gmra.mxu0 %v200
  %v1138 = vpop.f32.mrf.mxu0
  %v1139 = vadd.f32 %v949, %v1138
  %v1140 = vpop.f32.mrf.mxu0
  %1141 = vmatprep.mubr.f32.mxu0 %v214
  %1142 = vmatmul.mubr.f32.gmra.mxu0 %v213
  %v1143 = vpop.f32.mrf.mxu0
  %v1144 = vadd.f32 %v954, %v1143
  %v1145 = vpop.f32.mrf.mxu0
  %1146 = vmatprep.mubr.f32.mxu0 %v227
  %1147 = vmatmul.mubr.f32.gmra.mxu0 %v226
  %v1148 = vpop.f32.mrf.mxu0
  %v1149 = vadd.f32 %v959, %v1148
  %v1150 = vpop.f32.mrf.mxu0
  %1151 = vmatprep.mubr.f32.mxu0 %v240
  %1152 = vmatmul.mubr.f32.gmra.mxu0 %v239
  %v1153 = vpop.f32.mrf.mxu0
  %v1154 = vadd.f32 %v964, %v1153
  %v1155 = vpop.f32.mrf.mxu0
  %1156 = vmatprep.mubr.f32.mxu0 %v253
  %1157 = vmatmul.mubr.f32.gmra.mxu0 %v252
  %v1158 = vpop.f32.mrf.mxu0
  %v1159 = vadd.f32 %v969, %v1158
  %v1160 = vpop.f32.mrf.mxu0
  %1161 = vmatprep.mubr.f32.mxu0 %v266
  %1162 = vmatmul.mubr.f32.gmra.mxu0 %v265
  %v1163 = vpop.f32.mrf.mxu0
  %v1164 = vadd.f32 %v974, %v1163
  %v1165 = vpop.f32.mrf.mxu0
  %1166 = vmatprep.mubr.f32.mxu0 %v279
  %1167 = vmatmul.mubr.f32.gmra.mxu0 %v278
  %v1168 = vpop.f32.mrf.mxu0
  %v1169 = vadd.f32 %v979, %v1168
  %v1170 = vpop.f32.mrf.mxu0
  %1171 = vmatprep.mubr.f32.mxu0 %v292
  %1172 = vmatmul.mubr.f32.gmra.mxu0 %v291
  %v1173 = vpop.f32.mrf.mxu0
  %v1174 = vadd.f32 %v984, %v1173
  %v1175 = vpop.f32.mrf.mxu0
  %1176 = vmatprep.mubr.f32.mxu0 %v305
  %1177 = vmatmul.mubr.f32.gmra.mxu0 %v304
  %v1178 = vpop.f32.mrf.mxu0
  %v1179 = vadd.f32 %v989, %v1178
  %v1180 = vpop.f32.mrf.mxu0
  %1181 = vmatprep.mubr.f32.mxu0 %v318
  %1182 = vmatmul.mubr.f32.gmra.mxu0 %v317
  %v1183 = vpop.f32.mrf.mxu0
  %v1184 = vadd.f32 %v994, %v1183
  %v1185 = vpop.f32.mrf.mxu0
  %1186 = vmatprep.mubr.f32.mxu0 %v331
  %1187 = vmatmul.mubr.f32.gmra.mxu0 %v330
  %v1188 = vpop.f32.mrf.mxu0
  %v1189 = vadd.f32 %v999, %v1188
  %v1190 = vpop.f32.mrf.mxu0
  %1191 = vdwg.mxu0
  %1192 = vmatprep.subr.mxu0 0.0
  %1193 = vmatpush1.msra.mxu0 %v450
  %1194 = vmatprep.subr.mxu0 0.0
  %1195 = vmatpush1.msra.mxu0 %v449
  %1196 = vmatprep.subr.mxu0 0.0
  %1197 = vmatpush1.msra.mxu0 %v448
  %1198 = vmatprep.subr.mxu0 0.0
  %1199 = vmatpush1.msra.mxu0 %v447
  %1200 = vmatprep.subr.mxu0 0.0
  %1201 = vmatpush1.msra.mxu0 %v446
  %1202 = vmatprep.subr.mxu0 0.0
  %1203 = vmatpush1.msra.mxu0 %v445
  %1204 = vmatprep.subr.mxu0 0.0
  %1205 = vmatpush1.msra.mxu0 %v444
  %1206 = vmatprep.subr.mxu0 0.0
  %1207 = vmatpush1.msra.mxu0 %v443
  %1208 = vmatprep.subr.mxu0 0.0
  %1209 = vmatpush1.msra.mxu0 %v442
  %1210 = vmatprep.subr.mxu0 0.0
  %1211 = vmatpush1.msra.mxu0 %v441
  %1212 = vmatprep.subr.mxu0 0.0
  %1213 = vmatpush1.msra.mxu0 %v440
  %1214 = vmatprep.subr.mxu0 0.0
  %1215 = vmatpush1.msra.mxu0 %v439
  %1216 = vmatprep.subr.mxu0 0.0
  %1217 = vmatpush1.msra.mxu0 %v438
  %1218 = vmatprep.subr.mxu0 0.0
  %1219 = vmatpush1.msra.mxu0 %v437
  %1220 = vmatprep.subr.mxu0 0.0
  %1221 = vmatpush1.msra.mxu0 %v436
  %1222 = vmatprep.subr.mxu0 0.0
  %1223 = vmatpush1.msra.mxu0 %v435
  %1224 = vmatprep.subr.mxu0 0.0
  %1225 = vmatpush2.msra.mxu0 %v466
  %1226 = vmatprep.subr.mxu0 0.0
  %1227 = vmatpush2.msra.mxu0 %v465
  %1228 = vmatprep.subr.mxu0 0.0
  %1229 = vmatpush2.msra.mxu0 %v464
  %1230 = vmatprep.subr.mxu0 0.0
  %1231 = vmatpush2.msra.mxu0 %v463
  %1232 = vmatprep.subr.mxu0 0.0
  %1233 = vmatpush2.msra.mxu0 %v462
  %1234 = vmatprep.subr.mxu0 0.0
  %1235 = vmatpush2.msra.mxu0 %v461
  %1236 = vmatprep.subr.mxu0 0.0
  %1237 = vmatpush2.msra.mxu0 %v460
  %1238 = vmatprep.subr.mxu0 0.0
  %1239 = vmatpush2.msra.mxu0 %v459
  %1240 = vmatprep.subr.mxu0 0.0
  %1241 = vmatpush2.msra.mxu0 %v458
  %1242 = vmatprep.subr.mxu0 0.0
  %1243 = vmatpush2.msra.mxu0 %v457
  %1244 = vmatprep.subr.mxu0 0.0
  %1245 = vmatpush2.msra.mxu0 %v456
  %1246 = vmatprep.subr.mxu0 0.0
  %1247 = vmatpush2.msra.mxu0 %v455
  %1248 = vmatprep.subr.mxu0 0.0
  %1249 = vmatpush2.msra.mxu0 %v454
  %1250 = vmatprep.subr.mxu0 0.0
  %1251 = vmatpush2.msra.mxu0 %v453
  %1252 = vmatprep.subr.mxu0 0.0
  %1253 = vmatpush2.msra.mxu0 %v452
  %1254 = vmatprep.subr.mxu0 0.0
  %1255 = vmatpush2.msra.mxu0 %v451
  %1256 = vmatprep.mubr.f32.mxu0 %v21
  %1257 = vmatmul.mubr.f32.gmra.mxu0 %v20
  %v1258 = vpop.f32.mrf.mxu0
  %v1259 = vadd.f32 %v1069, %v1258
  %v1260 = vpop.f32.mrf.mxu0
  %1261 = vmatprep.mubr.f32.mxu0 %v34
  %1262 = vmatmul.mubr.f32.gmra.mxu0 %v33
  %v1263 = vpop.f32.mrf.mxu0
  %v1264 = vadd.f32 %v1074, %v1263
  %v1265 = vpop.f32.mrf.mxu0
  %1266 = vmatprep.mubr.f32.mxu0 %v47
  %1267 = vmatmul.mubr.f32.gmra.mxu0 %v46
  %v1268 = vpop.f32.mrf.mxu0
  %v1269 = vadd.f32 %v1079, %v1268
  %v1270 = vpop.f32.mrf.mxu0
  %1271 = vmatprep.mubr.f32.mxu0 %v60
  %1272 = vmatmul.mubr.f32.gmra.mxu0 %v59
  %v1273 = vpop.f32.mrf.mxu0
  %v1274 = vadd.f32 %v1084, %v1273
  %v1275 = vpop.f32.mrf.mxu0
  %1276 = vmatprep.mubr.f32.mxu0 %v73
  %1277 = vmatmul.mubr.f32.gmra.mxu0 %v72
  %v1278 = vpop.f32.mrf.mxu0
  %v1279 = vadd.f32 %v1089, %v1278
  %v1280 = vpop.f32.mrf.mxu0
  %1281 = vmatprep.mubr.f32.mxu0 %v86
  %1282 = vmatmul.mubr.f32.gmra.mxu0 %v85
  %v1283 = vpop.f32.mrf.mxu0
  %v1284 = vadd.f32 %v1094, %v1283
  %v1285 = vpop.f32.mrf.mxu0
  %1286 = vmatprep.mubr.f32.mxu0 %v99
  %1287 = vmatmul.mubr.f32.gmra.mxu0 %v98
  %v1288 = vpop.f32.mrf.mxu0
  %v1289 = vadd.f32 %v1099, %v1288
  %v1290 = vpop.f32.mrf.mxu0
  %1291 = vmatprep.mubr.f32.mxu0 %v112
  %1292 = vmatmul.mubr.f32.gmra.mxu0 %v111
  %v1293 = vpop.f32.mrf.mxu0
  %v1294 = vadd.f32 %v1104, %v1293
  %v1295 = vpop.f32.mrf.mxu0
  %1296 = vmatprep.mubr.f32.mxu0 %v125
  %1297 = vmatmul.mubr.f32.gmra.mxu0 %v124
  %v1298 = vpop.f32.mrf.mxu0
  %v1299 = vadd.f32 %v1109, %v1298
  %v1300 = vpop.f32.mrf.mxu0
  %1301 = vmatprep.mubr.f32.mxu0 %v138
  %1302 = vmatmul.mubr.f32.gmra.mxu0 %v137
  %v1303 = vpop.f32.mrf.mxu0
  %v1304 = vadd.f32 %v1114, %v1303
  %v1305 = vpop.f32.mrf.mxu0
  %1306 = vmatprep.mubr.f32.mxu0 %v151
  %1307 = vmatmul.mubr.f32.gmra.mxu0 %v150
  %v1308 = vpop.f32.mrf.mxu0
  %v1309 = vadd.f32 %v1119, %v1308
  %v1310 = vpop.f32.mrf.mxu0
  %1311 = vmatprep.mubr.f32.mxu0 %v164
  %1312 = vmatmul.mubr.f32.gmra.mxu0 %v163
  %v1313 = vpop.f32.mrf.mxu0
  %v1314 = vadd.f32 %v1124, %v1313
  %v1315 = vpop.f32.mrf.mxu0
  %1316 = vmatprep.mubr.f32.mxu0 %v177
  %1317 = vmatmul.mubr.f32.gmra.mxu0 %v176
  %v1318 = vpop.f32.mrf.mxu0
  %v1319 = vadd.f32 %v1129, %v1318
  %v1320 = vpop.f32.mrf.mxu0
  %1321 = vmatprep.mubr.f32.mxu0 %v190
  %1322 = vmatmul.mubr.f32.gmra.mxu0 %v189
  %v1323 = vpop.f32.mrf.mxu0
  %v1324 = vadd.f32 %v1134, %v1323
  %v1325 = vpop.f32.mrf.mxu0
  %1326 = vmatprep.mubr.f32.mxu0 %v203
  %1327 = vmatmul.mubr.f32.gmra.mxu0 %v202
  %v1328 = vpop.f32.mrf.mxu0
  %v1329 = vadd.f32 %v1139, %v1328
  %v1330 = vpop.f32.mrf.mxu0
  %1331 = vmatprep.mubr.f32.mxu0 %v216
  %1332 = vmatmul.mubr.f32.gmra.mxu0 %v215
  %v1333 = vpop.f32.mrf.mxu0
  %v1334 = vadd.f32 %v1144, %v1333
  %v1335 = vpop.f32.mrf.mxu0
  %1336 = vmatprep.mubr.f32.mxu0 %v229
  %1337 = vmatmul.mubr.f32.gmra.mxu0 %v228
  %v1338 = vpop.f32.mrf.mxu0
  %v1339 = vadd.f32 %v1149, %v1338
  %v1340 = vpop.f32.mrf.mxu0
  %1341 = vmatprep.mubr.f32.mxu0 %v242
  %1342 = vmatmul.mubr.f32.gmra.mxu0 %v241
  %v1343 = vpop.f32.mrf.mxu0
  %v1344 = vadd.f32 %v1154, %v1343
  %v1345 = vpop.f32.mrf.mxu0
  %1346 = vmatprep.mubr.f32.mxu0 %v255
  %1347 = vmatmul.mubr.f32.gmra.mxu0 %v254
  %v1348 = vpop.f32.mrf.mxu0
  %v1349 = vadd.f32 %v1159, %v1348
  %v1350 = vpop.f32.mrf.mxu0
  %1351 = vmatprep.mubr.f32.mxu0 %v268
  %1352 = vmatmul.mubr.f32.gmra.mxu0 %v267
  %v1353 = vpop.f32.mrf.mxu0
  %v1354 = vadd.f32 %v1164, %v1353
  %v1355 = vpop.f32.mrf.mxu0
  %1356 = vmatprep.mubr.f32.mxu0 %v281
  %1357 = vmatmul.mubr.f32.gmra.mxu0 %v280
  %v1358 = vpop.f32.mrf.mxu0
  %v1359 = vadd.f32 %v1169, %v1358
  %v1360 = vpop.f32.mrf.mxu0
  %1361 = vmatprep.mubr.f32.mxu0 %v294
  %1362 = vmatmul.mubr.f32.gmra.mxu0 %v293
  %v1363 = vpop.f32.mrf.mxu0
  %v1364 = vadd.f32 %v1174, %v1363
  %v1365 = vpop.f32.mrf.mxu0
  %1366 = vmatprep.mubr.f32.mxu0 %v307
  %1367 = vmatmul.mubr.f32.gmra.mxu0 %v306
  %v1368 = vpop.f32.mrf.mxu0
  %v1369 = vadd.f32 %v1179, %v1368
  %v1370 = vpop.f32.mrf.mxu0
  %1371 = vmatprep.mubr.f32.mxu0 %v320
  %1372 = vmatmul.mubr.f32.gmra.mxu0 %v319
  %v1373 = vpop.f32.mrf.mxu0
  %v1374 = vadd.f32 %v1184, %v1373
  %v1375 = vpop.f32.mrf.mxu0
  %1376 = vmatprep.mubr.f32.mxu0 %v333
  %1377 = vmatmul.mubr.f32.gmra.mxu0 %v332
  %v1378 = vpop.f32.mrf.mxu0
  %v1379 = vadd.f32 %v1189, %v1378
  %v1380 = vpop.f32.mrf.mxu0
  %1381 = vdwg.mxu0
  %1382 = vmatprep.subr.mxu0 0.0
  %1383 = vmatpush1.msra.mxu0 %v482
  %1384 = vmatprep.subr.mxu0 0.0
  %1385 = vmatpush1.msra.mxu0 %v481
  %1386 = vmatprep.subr.mxu0 0.0
  %1387 = vmatpush1.msra.mxu0 %v480
  %1388 = vmatprep.subr.mxu0 0.0
  %1389 = vmatpush1.msra.mxu0 %v479
  %1390 = vmatprep.subr.mxu0 0.0
  %1391 = vmatpush1.msra.mxu0 %v478
  %1392 = vmatprep.subr.mxu0 0.0
  %1393 = vmatpush1.msra.mxu0 %v477
  %1394 = vmatprep.subr.mxu0 0.0
  %1395 = vmatpush1.msra.mxu0 %v476
  %1396 = vmatprep.subr.mxu0 0.0
  %1397 = vmatpush1.msra.mxu0 %v475
  %1398 = vmatprep.subr.mxu0 0.0
  %1399 = vmatpush1.msra.mxu0 %v474
  %1400 = vmatprep.subr.mxu0 0.0
  %1401 = vmatpush1.msra.mxu0 %v473
  %1402 = vmatprep.subr.mxu0 0.0
  %1403 = vmatpush1.msra.mxu0 %v472
  %1404 = vmatprep.subr.mxu0 0.0
  %1405 = vmatpush1.msra.mxu0 %v471
  %1406 = vmatprep.subr.mxu0 0.0
  %1407 = vmatpush1.msra.mxu0 %v470
  %1408 = vmatprep.subr.mxu0 0.0
  %1409 = vmatpush1.msra.mxu0 %v469
  %1410 = vmatprep.subr.mxu0 0.0
  %1411 = vmatpush1.msra.mxu0 %v468
  %1412 = vmatprep.subr.mxu0 0.0
  %1413 = vmatpush1.msra.mxu0 %v467
  %1414 = vmatprep.subr.mxu0 0.0
  %1415 = vmatpush2.msra.mxu0 %v498
  %1416 = vmatprep.subr.mxu0 0.0
  %1417 = vmatpush2.msra.mxu0 %v497
  %1418 = vmatprep.subr.mxu0 0.0
  %1419 = vmatpush2.msra.mxu0 %v496
  %1420 = vmatprep.subr.mxu0 0.0
  %1421 = vmatpush2.msra.mxu0 %v495
  %1422 = vmatprep.subr.mxu0 0.0
  %1423 = vmatpush2.msra.mxu0 %v494
  %1424 = vmatprep.subr.mxu0 0.0
  %1425 = vmatpush2.msra.mxu0 %v493
  %1426 = vmatprep.subr.mxu0 0.0
  %1427 = vmatpush2.msra.mxu0 %v492
  %1428 = vmatprep.subr.mxu0 0.0
  %1429 = vmatpush2.msra.mxu0 %v491
  %1430 = vmatprep.subr.mxu0 0.0
  %1431 = vmatpush2.msra.mxu0 %v490
  %1432 = vmatprep.subr.mxu0 0.0
  %1433 = vmatpush2.msra.mxu0 %v489
  %1434 = vmatprep.subr.mxu0 0.0
  %1435 = vmatpush2.msra.mxu0 %v488
  %1436 = vmatprep.subr.mxu0 0.0
  %1437 = vmatpush2.msra.mxu0 %v487
  %1438 = vmatprep.subr.mxu0 0.0
  %1439 = vmatpush2.msra.mxu0 %v486
  %1440 = vmatprep.subr.mxu0 0.0
  %1441 = vmatpush2.msra.mxu0 %v485
  %1442 = vmatprep.subr.mxu0 0.0
  %1443 = vmatpush2.msra.mxu0 %v484
  %1444 = vmatprep.subr.mxu0 0.0
  %1445 = vmatpush2.msra.mxu0 %v483
  %1446 = vmatprep.mubr.f32.mxu0 %v23
  %1447 = vmatmul.mubr.f32.gmra.mxu0 %v22
  %v1448 = vpop.f32.mrf.mxu0
  %v1449 = vadd.f32 %v1259, %v1448
  %v1450 = vpop.f32.mrf.mxu0
  %1451 = vmatprep.mubr.f32.mxu0 %v36
  %1452 = vmatmul.mubr.f32.gmra.mxu0 %v35
  %v1453 = vpop.f32.mrf.mxu0
  %v1454 = vadd.f32 %v1264, %v1453
  %v1455 = vpop.f32.mrf.mxu0
  %1456 = vmatprep.mubr.f32.mxu0 %v49
  %1457 = vmatmul.mubr.f32.gmra.mxu0 %v48
  %v1458 = vpop.f32.mrf.mxu0
  %v1459 = vadd.f32 %v1269, %v1458
  %v1460 = vpop.f32.mrf.mxu0
  %1461 = vmatprep.mubr.f32.mxu0 %v62
  %1462 = vmatmul.mubr.f32.gmra.mxu0 %v61
  %v1463 = vpop.f32.mrf.mxu0
  %v1464 = vadd.f32 %v1274, %v1463
  %v1465 = vpop.f32.mrf.mxu0
  %1466 = vmatprep.mubr.f32.mxu0 %v75
  %1467 = vmatmul.mubr.f32.gmra.mxu0 %v74
  %v1468 = vpop.f32.mrf.mxu0
  %v1469 = vadd.f32 %v1279, %v1468
  %v1470 = vpop.f32.mrf.mxu0
  %1471 = vmatprep.mubr.f32.mxu0 %v88
  %1472 = vmatmul.mubr.f32.gmra.mxu0 %v87
  %v1473 = vpop.f32.mrf.mxu0
  %v1474 = vadd.f32 %v1284, %v1473
  %v1475 = vpop.f32.mrf.mxu0
  %1476 = vmatprep.mubr.f32.mxu0 %v101
  %1477 = vmatmul.mubr.f32.gmra.mxu0 %v100
  %v1478 = vpop.f32.mrf.mxu0
  %v1479 = vadd.f32 %v1289, %v1478
  %v1480 = vpop.f32.mrf.mxu0
  %1481 = vmatprep.mubr.f32.mxu0 %v114
  %1482 = vmatmul.mubr.f32.gmra.mxu0 %v113
  %v1483 = vpop.f32.mrf.mxu0
  %v1484 = vadd.f32 %v1294, %v1483
  %v1485 = vpop.f32.mrf.mxu0
  %1486 = vmatprep.mubr.f32.mxu0 %v127
  %1487 = vmatmul.mubr.f32.gmra.mxu0 %v126
  %v1488 = vpop.f32.mrf.mxu0
  %v1489 = vadd.f32 %v1299, %v1488
  %v1490 = vpop.f32.mrf.mxu0
  %1491 = vmatprep.mubr.f32.mxu0 %v140
  %1492 = vmatmul.mubr.f32.gmra.mxu0 %v139
  %v1493 = vpop.f32.mrf.mxu0
  %v1494 = vadd.f32 %v1304, %v1493
  %v1495 = vpop.f32.mrf.mxu0
  %1496 = vmatprep.mubr.f32.mxu0 %v153
  %1497 = vmatmul.mubr.f32.gmra.mxu0 %v152
  %v1498 = vpop.f32.mrf.mxu0
  %v1499 = vadd.f32 %v1309, %v1498
  %v1500 = vpop.f32.mrf.mxu0
  %1501 = vmatprep.mubr.f32.mxu0 %v166
  %1502 = vmatmul.mubr.f32.gmra.mxu0 %v165
  %v1503 = vpop.f32.mrf.mxu0
  %v1504 = vadd.f32 %v1314, %v1503
  %v1505 = vpop.f32.mrf.mxu0
  %1506 = vmatprep.mubr.f32.mxu0 %v179
  %1507 = vmatmul.mubr.f32.gmra.mxu0 %v178
  %v1508 = vpop.f32.mrf.mxu0
  %v1509 = vadd.f32 %v1319, %v1508
  %v1510 = vpop.f32.mrf.mxu0
  %1511 = vmatprep.mubr.f32.mxu0 %v192
  %1512 = vmatmul.mubr.f32.gmra.mxu0 %v191
  %v1513 = vpop.f32.mrf.mxu0
  %v1514 = vadd.f32 %v1324, %v1513
  %v1515 = vpop.f32.mrf.mxu0
  %1516 = vmatprep.mubr.f32.mxu0 %v205
  %1517 = vmatmul.mubr.f32.gmra.mxu0 %v204
  %v1518 = vpop.f32.mrf.mxu0
  %v1519 = vadd.f32 %v1329, %v1518
  %v1520 = vpop.f32.mrf.mxu0
  %1521 = vmatprep.mubr.f32.mxu0 %v218
  %1522 = vmatmul.mubr.f32.gmra.mxu0 %v217
  %v1523 = vpop.f32.mrf.mxu0
  %v1524 = vadd.f32 %v1334, %v1523
  %v1525 = vpop.f32.mrf.mxu0
  %1526 = vmatprep.mubr.f32.mxu0 %v231
  %1527 = vmatmul.mubr.f32.gmra.mxu0 %v230
  %v1528 = vpop.f32.mrf.mxu0
  %v1529 = vadd.f32 %v1339, %v1528
  %v1530 = vpop.f32.mrf.mxu0
  %1531 = vmatprep.mubr.f32.mxu0 %v244
  %1532 = vmatmul.mubr.f32.gmra.mxu0 %v243
  %v1533 = vpop.f32.mrf.mxu0
  %v1534 = vadd.f32 %v1344, %v1533
  %v1535 = vpop.f32.mrf.mxu0
  %1536 = vmatprep.mubr.f32.mxu0 %v257
  %1537 = vmatmul.mubr.f32.gmra.mxu0 %v256
  %v1538 = vpop.f32.mrf.mxu0
  %v1539 = vadd.f32 %v1349, %v1538
  %v1540 = vpop.f32.mrf.mxu0
  %1541 = vmatprep.mubr.f32.mxu0 %v270
  %1542 = vmatmul.mubr.f32.gmra.mxu0 %v269
  %v1543 = vpop.f32.mrf.mxu0
  %v1544 = vadd.f32 %v1354, %v1543
  %v1545 = vpop.f32.mrf.mxu0
  %1546 = vmatprep.mubr.f32.mxu0 %v283
  %1547 = vmatmul.mubr.f32.gmra.mxu0 %v282
  %v1548 = vpop.f32.mrf.mxu0
  %v1549 = vadd.f32 %v1359, %v1548
  %v1550 = vpop.f32.mrf.mxu0
  %1551 = vmatprep.mubr.f32.mxu0 %v296
  %1552 = vmatmul.mubr.f32.gmra.mxu0 %v295
  %v1553 = vpop.f32.mrf.mxu0
  %v1554 = vadd.f32 %v1364, %v1553
  %v1555 = vpop.f32.mrf.mxu0
  %1556 = vmatprep.mubr.f32.mxu0 %v309
  %1557 = vmatmul.mubr.f32.gmra.mxu0 %v308
  %v1558 = vpop.f32.mrf.mxu0
  %v1559 = vadd.f32 %v1369, %v1558
  %v1560 = vpop.f32.mrf.mxu0
  %1561 = vmatprep.mubr.f32.mxu0 %v322
  %1562 = vmatmul.mubr.f32.gmra.mxu0 %v321
  %v1563 = vpop.f32.mrf.mxu0
  %v1564 = vadd.f32 %v1374, %v1563
  %v1565 = vpop.f32.mrf.mxu0
  %1566 = vmatprep.mubr.f32.mxu0 %v335
  %1567 = vmatmul.mubr.f32.gmra.mxu0 %v334
  %v1568 = vpop.f32.mrf.mxu0
  %v1569 = vadd.f32 %v1379, %v1568
  %v1570 = vpop.f32.mrf.mxu0
  %1571 = vdwg.mxu0
  %1572 = vmatprep.subr.mxu0 0.0
  %1573 = vmatpush1.msra.mxu0 %v514
  %1574 = vmatprep.subr.mxu0 0.0
  %1575 = vmatpush1.msra.mxu0 %v513
  %1576 = vmatprep.subr.mxu0 0.0
  %1577 = vmatpush1.msra.mxu0 %v512
  %1578 = vmatprep.subr.mxu0 0.0
  %1579 = vmatpush1.msra.mxu0 %v511
  %1580 = vmatprep.subr.mxu0 0.0
  %1581 = vmatpush1.msra.mxu0 %v510
  %1582 = vmatprep.subr.mxu0 0.0
  %1583 = vmatpush1.msra.mxu0 %v509
  %1584 = vmatprep.subr.mxu0 0.0
  %1585 = vmatpush1.msra.mxu0 %v508
  %1586 = vmatprep.subr.mxu0 0.0
  %1587 = vmatpush1.msra.mxu0 %v507
  %1588 = vmatprep.subr.mxu0 0.0
  %1589 = vmatpush1.msra.mxu0 %v506
  %1590 = vmatprep.subr.mxu0 0.0
  %1591 = vmatpush1.msra.mxu0 %v505
  %1592 = vmatprep.subr.mxu0 0.0
  %1593 = vmatpush1.msra.mxu0 %v504
  %1594 = vmatprep.subr.mxu0 0.0
  %1595 = vmatpush1.msra.mxu0 %v503
  %1596 = vmatprep.subr.mxu0 0.0
  %1597 = vmatpush1.msra.mxu0 %v502
  %1598 = vmatprep.subr.mxu0 0.0
  %1599 = vmatpush1.msra.mxu0 %v501
  %1600 = vmatprep.subr.mxu0 0.0
  %1601 = vmatpush1.msra.mxu0 %v500
  %1602 = vmatprep.subr.mxu0 0.0
  %1603 = vmatpush1.msra.mxu0 %v499
  %1604 = vmatprep.subr.mxu0 0.0
  %1605 = vmatpush2.msra.mxu0 %v530
  %1606 = vmatprep.subr.mxu0 0.0
  %1607 = vmatpush2.msra.mxu0 %v529
  %1608 = vmatprep.subr.mxu0 0.0
  %1609 = vmatpush2.msra.mxu0 %v528
  %1610 = vmatprep.subr.mxu0 0.0
  %1611 = vmatpush2.msra.mxu0 %v527
  %1612 = vmatprep.subr.mxu0 0.0
  %1613 = vmatpush2.msra.mxu0 %v526
  %1614 = vmatprep.subr.mxu0 0.0
  %1615 = vmatpush2.msra.mxu0 %v525
  %1616 = vmatprep.subr.mxu0 0.0
  %1617 = vmatpush2.msra.mxu0 %v524
  %1618 = vmatprep.subr.mxu0 0.0
  %1619 = vmatpush2.msra.mxu0 %v523
  %1620 = vmatprep.subr.mxu0 0.0
  %1621 = vmatpush2.msra.mxu0 %v522
  %1622 = vmatprep.subr.mxu0 0.0
  %1623 = vmatpush2.msra.mxu0 %v521
  %1624 = vmatprep.subr.mxu0 0.0
  %1625 = vmatpush2.msra.mxu0 %v520
  %1626 = vmatprep.subr.mxu0 0.0
  %1627 = vmatpush2.msra.mxu0 %v519
  %1628 = vmatprep.subr.mxu0 0.0
  %1629 = vmatpush2.msra.mxu0 %v518
  %1630 = vmatprep.subr.mxu0 0.0
  %1631 = vmatpush2.msra.mxu0 %v517
  %1632 = vmatprep.subr.mxu0 0.0
  %1633 = vmatpush2.msra.mxu0 %v516
  %1634 = vmatprep.subr.mxu0 0.0
  %1635 = vmatpush2.msra.mxu0 %v515
  %1636 = vmatprep.mubr.f32.mxu0 %v25
  %1637 = vmatmul.mubr.f32.gmra.mxu0 %v24
  %v1638 = vpop.f32.mrf.mxu0
  %v1639 = vadd.f32 %v1449, %v1638
  %v1640 = vpop.f32.mrf.mxu0
  %1641 = vmatprep.mubr.f32.mxu0 %v38
  %1642 = vmatmul.mubr.f32.gmra.mxu0 %v37
  %v1643 = vpop.f32.mrf.mxu0
  %v1644 = vadd.f32 %v1454, %v1643
  %v1645 = vpop.f32.mrf.mxu0
  %1646 = vmatprep.mubr.f32.mxu0 %v51
  %1647 = vmatmul.mubr.f32.gmra.mxu0 %v50
  %v1648 = vpop.f32.mrf.mxu0
  %v1649 = vadd.f32 %v1459, %v1648
  %v1650 = vpop.f32.mrf.mxu0
  %1651 = vmatprep.mubr.f32.mxu0 %v64
  %1652 = vmatmul.mubr.f32.gmra.mxu0 %v63
  %v1653 = vpop.f32.mrf.mxu0
  %v1654 = vadd.f32 %v1464, %v1653
  %v1655 = vpop.f32.mrf.mxu0
  %1656 = vmatprep.mubr.f32.mxu0 %v77
  %1657 = vmatmul.mubr.f32.gmra.mxu0 %v76
  %v1658 = vpop.f32.mrf.mxu0
  %v1659 = vadd.f32 %v1469, %v1658
  %v1660 = vpop.f32.mrf.mxu0
  %1661 = vmatprep.mubr.f32.mxu0 %v90
  %1662 = vmatmul.mubr.f32.gmra.mxu0 %v89
  %v1663 = vpop.f32.mrf.mxu0
  %v1664 = vadd.f32 %v1474, %v1663
  %v1665 = vpop.f32.mrf.mxu0
  %1666 = vmatprep.mubr.f32.mxu0 %v103
  %1667 = vmatmul.mubr.f32.gmra.mxu0 %v102
  %v1668 = vpop.f32.mrf.mxu0
  %v1669 = vadd.f32 %v1479, %v1668
  %v1670 = vpop.f32.mrf.mxu0
  %1671 = vmatprep.mubr.f32.mxu0 %v116
  %1672 = vmatmul.mubr.f32.gmra.mxu0 %v115
  %v1673 = vpop.f32.mrf.mxu0
  %v1674 = vadd.f32 %v1484, %v1673
  %v1675 = vpop.f32.mrf.mxu0
  %1676 = vmatprep.mubr.f32.mxu0 %v129
  %1677 = vmatmul.mubr.f32.gmra.mxu0 %v128
  %v1678 = vpop.f32.mrf.mxu0
  %v1679 = vadd.f32 %v1489, %v1678
  %v1680 = vpop.f32.mrf.mxu0
  %1681 = vmatprep.mubr.f32.mxu0 %v142
  %1682 = vmatmul.mubr.f32.gmra.mxu0 %v141
  %v1683 = vpop.f32.mrf.mxu0
  %v1684 = vadd.f32 %v1494, %v1683
  %v1685 = vpop.f32.mrf.mxu0
  %1686 = vmatprep.mubr.f32.mxu0 %v155
  %1687 = vmatmul.mubr.f32.gmra.mxu0 %v154
  %v1688 = vpop.f32.mrf.mxu0
  %v1689 = vadd.f32 %v1499, %v1688
  %v1690 = vpop.f32.mrf.mxu0
  %1691 = vmatprep.mubr.f32.mxu0 %v168
  %1692 = vmatmul.mubr.f32.gmra.mxu0 %v167
  %v1693 = vpop.f32.mrf.mxu0
  %v1694 = vadd.f32 %v1504, %v1693
  %v1695 = vpop.f32.mrf.mxu0
  %1696 = vmatprep.mubr.f32.mxu0 %v181
  %1697 = vmatmul.mubr.f32.gmra.mxu0 %v180
  %v1698 = vpop.f32.mrf.mxu0
  %v1699 = vadd.f32 %v1509, %v1698
  %v1700 = vpop.f32.mrf.mxu0
  %1701 = vmatprep.mubr.f32.mxu0 %v194
  %1702 = vmatmul.mubr.f32.gmra.mxu0 %v193
  %v1703 = vpop.f32.mrf.mxu0
  %v1704 = vadd.f32 %v1514, %v1703
  %v1705 = vpop.f32.mrf.mxu0
  %1706 = vmatprep.mubr.f32.mxu0 %v207
  %1707 = vmatmul.mubr.f32.gmra.mxu0 %v206
  %v1708 = vpop.f32.mrf.mxu0
  %v1709 = vadd.f32 %v1519, %v1708
  %v1710 = vpop.f32.mrf.mxu0
  %1711 = vmatprep.mubr.f32.mxu0 %v220
  %1712 = vmatmul.mubr.f32.gmra.mxu0 %v219
  %v1713 = vpop.f32.mrf.mxu0
  %v1714 = vadd.f32 %v1524, %v1713
  %v1715 = vpop.f32.mrf.mxu0
  %1716 = vmatprep.mubr.f32.mxu0 %v233
  %1717 = vmatmul.mubr.f32.gmra.mxu0 %v232
  %v1718 = vpop.f32.mrf.mxu0
  %v1719 = vadd.f32 %v1529, %v1718
  %v1720 = vpop.f32.mrf.mxu0
  %1721 = vmatprep.mubr.f32.mxu0 %v246
  %1722 = vmatmul.mubr.f32.gmra.mxu0 %v245
  %v1723 = vpop.f32.mrf.mxu0
  %v1724 = vadd.f32 %v1534, %v1723
  %v1725 = vpop.f32.mrf.mxu0
  %1726 = vmatprep.mubr.f32.mxu0 %v259
  %1727 = vmatmul.mubr.f32.gmra.mxu0 %v258
  %v1728 = vpop.f32.mrf.mxu0
  %v1729 = vadd.f32 %v1539, %v1728
  %v1730 = vpop.f32.mrf.mxu0
  %1731 = vmatprep.mubr.f32.mxu0 %v272
  %1732 = vmatmul.mubr.f32.gmra.mxu0 %v271
  %v1733 = vpop.f32.mrf.mxu0
  %v1734 = vadd.f32 %v1544, %v1733
  %v1735 = vpop.f32.mrf.mxu0
  %1736 = vmatprep.mubr.f32.mxu0 %v285
  %1737 = vmatmul.mubr.f32.gmra.mxu0 %v284
  %v1738 = vpop.f32.mrf.mxu0
  %v1739 = vadd.f32 %v1549, %v1738
  %v1740 = vpop.f32.mrf.mxu0
  %1741 = vmatprep.mubr.f32.mxu0 %v298
  %1742 = vmatmul.mubr.f32.gmra.mxu0 %v297
  %v1743 = vpop.f32.mrf.mxu0
  %v1744 = vadd.f32 %v1554, %v1743
  %v1745 = vpop.f32.mrf.mxu0
  %1746 = vmatprep.mubr.f32.mxu0 %v311
  %1747 = vmatmul.mubr.f32.gmra.mxu0 %v310
  %v1748 = vpop.f32.mrf.mxu0
  %v1749 = vadd.f32 %v1559, %v1748
  %v1750 = vpop.f32.mrf.mxu0
  %1751 = vmatprep.mubr.f32.mxu0 %v324
  %1752 = vmatmul.mubr.f32.gmra.mxu0 %v323
  %v1753 = vpop.f32.mrf.mxu0
  %v1754 = vadd.f32 %v1564, %v1753
  %v1755 = vpop.f32.mrf.mxu0
  %1756 = vmatprep.mubr.f32.mxu0 %v337
  %1757 = vmatmul.mubr.f32.gmra.mxu0 %v336
  %v1758 = vpop.f32.mrf.mxu0
  %v1759 = vadd.f32 %v1569, %v1758
  %v1760 = vpop.f32.mrf.mxu0
  %1761 = vdwg.mxu0
  %1762 = vmatprep.subr.mxu0 0.0
  %1763 = vmatpush1.msra.mxu0 0.0
  %1764 = vmatprep.subr.mxu0 0.0
  %1765 = vmatpush1.msra.mxu0 0.0
  %1766 = vmatprep.subr.mxu0 0.0
  %1767 = vmatpush1.msra.mxu0 0.0
  %1768 = vmatprep.subr.mxu0 0.0
  %1769 = vmatpush1.msra.mxu0 0.0
  %1770 = vmatprep.subr.mxu0 0.0
  %1771 = vmatpush1.msra.mxu0 0.0
  %1772 = vmatprep.subr.mxu0 0.0
  %1773 = vmatpush1.msra.mxu0 0.0
  %1774 = vmatprep.subr.mxu0 0.0
  %1775 = vmatpush1.msra.mxu0 0.0
  %1776 = vmatprep.subr.mxu0 0.0
  %1777 = vmatpush1.msra.mxu0 0.0
  %1778 = vmatprep.subr.mxu0 0.0
  %1779 = vmatpush1.msra.mxu0 %v538
  %1780 = vmatprep.subr.mxu0 0.0
  %1781 = vmatpush1.msra.mxu0 %v537
  %1782 = vmatprep.subr.mxu0 0.0
  %1783 = vmatpush1.msra.mxu0 %v536
  %1784 = vmatprep.subr.mxu0 0.0
  %1785 = vmatpush1.msra.mxu0 %v535
  %1786 = vmatprep.subr.mxu0 0.0
  %1787 = vmatpush1.msra.mxu0 %v534
  %1788 = vmatprep.subr.mxu0 0.0
  %1789 = vmatpush1.msra.mxu0 %v533
  %1790 = vmatprep.subr.mxu0 0.0
  %1791 = vmatpush1.msra.mxu0 %v532
  %1792 = vmatprep.subr.mxu0 0.0
  %1793 = vmatpush1.msra.mxu0 %v531
  %1794 = vmatprep.subr.mxu0 0.0
  %1795 = vmatpush2.msra.mxu0 0.0
  %1796 = vmatprep.subr.mxu0 0.0
  %1797 = vmatpush2.msra.mxu0 0.0
  %1798 = vmatprep.subr.mxu0 0.0
  %1799 = vmatpush2.msra.mxu0 0.0
  %1800 = vmatprep.subr.mxu0 0.0
  %1801 = vmatpush2.msra.mxu0 0.0
  %1802 = vmatprep.subr.mxu0 0.0
  %1803 = vmatpush2.msra.mxu0 0.0
  %1804 = vmatprep.subr.mxu0 0.0
  %1805 = vmatpush2.msra.mxu0 0.0
  %1806 = vmatprep.subr.mxu0 0.0
  %1807 = vmatpush2.msra.mxu0 0.0
  %1808 = vmatprep.subr.mxu0 0.0
  %1809 = vmatpush2.msra.mxu0 0.0
  %1810 = vmatprep.subr.mxu0 0.0
  %1811 = vmatpush2.msra.mxu0 0.0
  %1812 = vmatprep.subr.mxu0 0.0
  %1813 = vmatpush2.msra.mxu0 0.0
  %1814 = vmatprep.subr.mxu0 0.0
  %1815 = vmatpush2.msra.mxu0 0.0
  %1816 = vmatprep.subr.mxu0 0.0
  %1817 = vmatpush2.msra.mxu0 0.0
  %1818 = vmatprep.subr.mxu0 0.0
  %1819 = vmatpush2.msra.mxu0 0.0
  %1820 = vmatprep.subr.mxu0 0.0
  %1821 = vmatpush2.msra.mxu0 0.0
  %1822 = vmatprep.subr.mxu0 0.0
  %1823 = vmatpush2.msra.mxu0 0.0
  %1824 = vmatprep.subr.mxu0 0.0
  %1825 = vmatpush2.msra.mxu0 0.0
  %1826 = vmatprep.mubr.f32.mxu0 0.0
  %1827 = vmatmul.mubr.f32.gmra.mxu0 %v548
  %v1828 = vpop.f32.mrf.mxu0
  %v1829 = vadd.f32 %v1639, %v1828
  %v1830 = vpop.f32.mrf.mxu0
  %1831 = vmatprep.mubr.f32.mxu0 0.0
  %1832 = vmatmul.mubr.f32.gmra.mxu0 %v551
  %v1833 = vpop.f32.mrf.mxu0
  %v1834 = vadd.f32 %v1644, %v1833
  %v1835 = vpop.f32.mrf.mxu0
  %1836 = vmatprep.mubr.f32.mxu0 0.0
  %1837 = vmatmul.mubr.f32.gmra.mxu0 %v554
  %v1838 = vpop.f32.mrf.mxu0
  %v1839 = vadd.f32 %v1649, %v1838
  %v1840 = vpop.f32.mrf.mxu0
  %1841 = vmatprep.mubr.f32.mxu0 0.0
  %1842 = vmatmul.mubr.f32.gmra.mxu0 %v557
  %v1843 = vpop.f32.mrf.mxu0
  %v1844 = vadd.f32 %v1654, %v1843
  %v1845 = vpop.f32.mrf.mxu0
  %1846 = vmatprep.mubr.f32.mxu0 0.0
  %1847 = vmatmul.mubr.f32.gmra.mxu0 %v560
  %v1848 = vpop.f32.mrf.mxu0
  %v1849 = vadd.f32 %v1659, %v1848
  %v1850 = vpop.f32.mrf.mxu0
  %1851 = vmatprep.mubr.f32.mxu0 0.0
  %1852 = vmatmul.mubr.f32.gmra.mxu0 %v563
  %v1853 = vpop.f32.mrf.mxu0
  %v1854 = vadd.f32 %v1664, %v1853
  %v1855 = vpop.f32.mrf.mxu0
  %1856 = vmatprep.mubr.f32.mxu0 0.0
  %1857 = vmatmul.mubr.f32.gmra.mxu0 %v566
  %v1858 = vpop.f32.mrf.mxu0
  %v1859 = vadd.f32 %v1669, %v1858
  %v1860 = vpop.f32.mrf.mxu0
  %1861 = vmatprep.mubr.f32.mxu0 0.0
  %1862 = vmatmul.mubr.f32.gmra.mxu0 %v569
  %v1863 = vpop.f32.mrf.mxu0
  %v1864 = vadd.f32 %v1674, %v1863
  %v1865 = vpop.f32.mrf.mxu0
  %1866 = vmatprep.mubr.f32.mxu0 0.0
  %1867 = vmatmul.mubr.f32.gmra.mxu0 %v572
  %v1868 = vpop.f32.mrf.mxu0
  %v1869 = vadd.f32 %v1679, %v1868
  %v1870 = vpop.f32.mrf.mxu0
  %1871 = vmatprep.mubr.f32.mxu0 0.0
  %1872 = vmatmul.mubr.f32.gmra.mxu0 %v575
  %v1873 = vpop.f32.mrf.mxu0
  %v1874 = vadd.f32 %v1684, %v1873
  %v1875 = vpop.f32.mrf.mxu0
  %1876 = vmatprep.mubr.f32.mxu0 0.0
  %1877 = vmatmul.mubr.f32.gmra.mxu0 %v578
  %v1878 = vpop.f32.mrf.mxu0
  %v1879 = vadd.f32 %v1689, %v1878
  %v1880 = vpop.f32.mrf.mxu0
  %1881 = vmatprep.mubr.f32.mxu0 0.0
  %1882 = vmatmul.mubr.f32.gmra.mxu0 %v581
  %v1883 = vpop.f32.mrf.mxu0
  %v1884 = vadd.f32 %v1694, %v1883
  %v1885 = vpop.f32.mrf.mxu0
  %1886 = vmatprep.mubr.f32.mxu0 0.0
  %1887 = vmatmul.mubr.f32.gmra.mxu0 %v584
  %v1888 = vpop.f32.mrf.mxu0
  %v1889 = vadd.f32 %v1699, %v1888
  %v1890 = vpop.f32.mrf.mxu0
  %1891 = vmatprep.mubr.f32.mxu0 0.0
  %1892 = vmatmul.mubr.f32.gmra.mxu0 %v587
  %v1893 = vpop.f32.mrf.mxu0
  %v1894 = vadd.f32 %v1704, %v1893
  %v1895 = vpop.f32.mrf.mxu0
  %1896 = vmatprep.mubr.f32.mxu0 0.0
  %1897 = vmatmul.mubr.f32.gmra.mxu0 %v590
  %v1898 = vpop.f32.mrf.mxu0
  %v1899 = vadd.f32 %v1709, %v1898
  %v1900 = vpop.f32.mrf.mxu0
  %1901 = vmatprep.mubr.f32.mxu0 0.0
  %1902 = vmatmul.mubr.f32.gmra.mxu0 %v593
  %v1903 = vpop.f32.mrf.mxu0
  %v1904 = vadd.f32 %v1714, %v1903
  %v1905 = vpop.f32.mrf.mxu0
  %1906 = vmatprep.mubr.f32.mxu0 0.0
  %1907 = vmatmul.mubr.f32.gmra.mxu0 %v596
  %v1908 = vpop.f32.mrf.mxu0
  %v1909 = vadd.f32 %v1719, %v1908
  %v1910 = vpop.f32.mrf.mxu0
  %1911 = vmatprep.mubr.f32.mxu0 0.0
  %1912 = vmatmul.mubr.f32.gmra.mxu0 %v599
  %v1913 = vpop.f32.mrf.mxu0
  %v1914 = vadd.f32 %v1724, %v1913
  %v1915 = vpop.f32.mrf.mxu0
  %1916 = vmatprep.mubr.f32.mxu0 0.0
  %1917 = vmatmul.mubr.f32.gmra.mxu0 %v602
  %v1918 = vpop.f32.mrf.mxu0
  %v1919 = vadd.f32 %v1729, %v1918
  %v1920 = vpop.f32.mrf.mxu0
  %1921 = vmatprep.mubr.f32.mxu0 0.0
  %1922 = vmatmul.mubr.f32.gmra.mxu0 %v605
  %v1923 = vpop.f32.mrf.mxu0
  %v1924 = vadd.f32 %v1734, %v1923
  %v1925 = vpop.f32.mrf.mxu0
  %1926 = vmatprep.mubr.f32.mxu0 0.0
  %1927 = vmatmul.mubr.f32.gmra.mxu0 %v608
  %v1928 = vpop.f32.mrf.mxu0
  %v1929 = vadd.f32 %v1739, %v1928
  %v1930 = vpop.f32.mrf.mxu0
  %1931 = vmatprep.mubr.f32.mxu0 0.0
  %1932 = vmatmul.mubr.f32.gmra.mxu0 %v611
  %v1933 = vpop.f32.mrf.mxu0
  %v1934 = vadd.f32 %v1744, %v1933
  %v1935 = vpop.f32.mrf.mxu0
  %1936 = vmatprep.mubr.f32.mxu0 0.0
  %1937 = vmatmul.mubr.f32.gmra.mxu0 %v614
  %v1938 = vpop.f32.mrf.mxu0
  %v1939 = vadd.f32 %v1749, %v1938
  %v1940 = vpop.f32.mrf.mxu0
  %1941 = vmatprep.mubr.f32.mxu0 0.0
  %1942 = vmatmul.mubr.f32.gmra.mxu0 %v617
  %v1943 = vpop.f32.mrf.mxu0
  %v1944 = vadd.f32 %v1754, %v1943
  %v1945 = vpop.f32.mrf.mxu0
  %1946 = vmatprep.mubr.f32.mxu0 0.0
  %1947 = vmatmul.mubr.f32.gmra.mxu0 %v620
  %v1948 = vpop.f32.mrf.mxu0
  %v1949 = vadd.f32 %v1759, %v1948
  %v1950 = vpop.f32.mrf.mxu0
  %1951 = vdwg.mxu0
  %v1952 = vmax.f32 %v1829, 0.0
  %v1953 = vmax.f32 %v1834, 0.0
  %v1954 = vmax.f32 %v1839, 0.0
  %v1955 = vmax.f32 %v1844, 0.0
  %v1956 = vmax.f32 %v1849, 0.0
  %v1957 = vmax.f32 %v1854, 0.0
  %v1958 = vmax.f32 %v1859, 0.0
  %v1959 = vmax.f32 %v1864, 0.0
  %v1960 = vmax.f32 %v1869, 0.0
  %v1961 = vmax.f32 %v1874, 0.0
  %v1962 = vmax.f32 %v1879, 0.0
  %v1963 = vmax.f32 %v1884, 0.0
  %v1964 = vmax.f32 %v1889, 0.0
  %v1965 = vmax.f32 %v1894, 0.0
  %v1966 = vmax.f32 %v1899, 0.0
  %v1967 = vmax.f32 %v1904, 0.0
  %v1968 = vmax.f32 %v1909, 0.0
  %v1969 = vmax.f32 %v1914, 0.0
  %v1970 = vmax.f32 %v1919, 0.0
  %v1971 = vmax.f32 %v1924, 0.0
  %v1972 = vmax.f32 %v1929, 0.0
  %v1973 = vmax.f32 %v1934, 0.0
  %v1974 = vmax.f32 %v1939, 0.0
  %v1975 = vmax.f32 %v1944, 0.0
  %v1976 = vmax.f32 %v1949, 0.0
  %1977 = vst [vmem:[%s3] sm:$0xff] %v1952
  %1978 = vst [vmem:[%s3 + $0x8] sm:$0xff] %v1953
  %1979 = vst [vmem:[%s3 + $0x10] sm:$0xff] %v1954
  %1980 = vst [vmem:[%s3 + $0x18] sm:$0xff] %v1955
  %1981 = vst [vmem:[%s3 + $0x20] sm:$0xff] %v1956
  %1982 = vst [vmem:[%s3 + $0x28] sm:$0xff] %v1957
  %1983 = vst [vmem:[%s3 + $0x30] sm:$0xff] %v1958
  %1984 = vst [vmem:[%s3 + $0x38] sm:$0xff] %v1959
  %1985 = vst [vmem:[%s3 + $0x40] sm:$0xff] %v1960
  %1986 = vst [vmem:[%s3 + $0x48] sm:$0xff] %v1961
  %1987 = vst [vmem:[%s3 + $0x50] sm:$0xff] %v1962
  %1988 = vst [vmem:[%s3 + $0x58] sm:$0xff] %v1963
  %1989 = vst [vmem:[%s3 + $0x60] sm:$0xff] %v1964
  %1990 = vst [vmem:[%s3 + $0x68] sm:$0xff] %v1965
  %1991 = vst [vmem:[%s3 + $0x70] sm:$0xff] %v1966
  %1992 = vst [vmem:[%s3 + $0x78] sm:$0xff] %v1967
  %1993 = vst [vmem:[%s3 + $0x80] sm:$0xff] %v1968
  %1994 = vst [vmem:[%s3 + $0x88] sm:$0xff] %v1969
  %1995 = vst [vmem:[%s3 + $0x90] sm:$0xff] %v1970
  %1996 = vst [vmem:[%s3 + $0x98] sm:$0xff] %v1971
  %1997 = vst [vmem:[%s3 + $0xa0] sm:$0xff] %v1972
  %1998 = vst [vmem:[%s3 + $0xa8] sm:$0xff] %v1973
  %1999 = vst [vmem:[%s3 + $0xb0] sm:$0xff] %v1974
  %2000 = vst [vmem:[%s3 + $0xb8] sm:$0xff] %v1975
  %2001 = vst [vmem:[%s3 + $0xc0] sm:$0xff] %v1976
  // Predicated region
  $region14: #{cifar10_deep_net_forward.9} parent=0 // pred_check
    _
  $region15: #{cifar10_deep_net_forward.9} parent=0 // pred_check_branch
    %2003 = sbr.rel (0) target = $region17
  $region16: #{cifar10_deep_net_forward.9} parent=0 // pred_region
    _
  $region17: #{cifar10_deep_net_forward.9} parent=0 // pred_fallthru
    _
  // Predicated region
  $region18: #{cifar10_deep_net_forward.9} parent=0 // pred_check
    _
  $region19: #{cifar10_deep_net_forward.9} parent=0 // pred_check_branch
    %2005 = sbr.rel (0) target = $region21
  $region20: #{cifar10_deep_net_forward.9} parent=0 // pred_region
    _
  $region21: #{cifar10_deep_net_forward.9} parent=0 // pred_fallthru
    _

// kernel: cifar10_deep_net_forward.12
$region0: #{cifar10_deep_net_forward.12}
  #allocation0 [shape = 'u32[]', space=smem, size = 0x4, offset = 0x4, fixed_abs, tag = 'smem constant byte address 0x4 - core index']
  #allocation1 [shape = 'u32[144,128]{1,0:T(1,128)}', space=vmem, size = 0x12000, scoped, tag = 'internal scratch']
  %s0 = inlined_call_operand.vmem [shape: f32[2,512], index: 0, kind: input, shape index: {}]
  %s1 = inlined_call_operand.vmem [shape: f32[512,256], index: 1, kind: input, shape index: {}]
  %s2 = inlined_call_operand.vmem [shape: f32[1,256], index: 2, kind: input, shape index: {}]
  %s3 = inlined_call_operand.vmem [shape: f32[2,256], index: 3, kind: output, shape index: {}]
  %s4 = sld [smem:[#allocation0]]
  $region22: #{cifar10_deep_net_forward.12} parent=0
    _
  %s6 = ssub.s32 1, %s4
  %s7 = scalar_select 0, %s6, %s4
  // Predicated region
  $region2: #{cifar10_deep_net_forward.12} parent=0 // pred_check
    _
  $region3: #{cifar10_deep_net_forward.12} parent=0 // pred_check_branch
    %9 = sbr.rel (0) target = $region5
  $region4: #{cifar10_deep_net_forward.12} parent=0 // pred_region
    _
  $region5: #{cifar10_deep_net_forward.12} parent=0 // pred_fallthru
    _
  // Predicated region
  $region6: #{cifar10_deep_net_forward.12} parent=0 // pred_check
    _
  $region7: #{cifar10_deep_net_forward.12} parent=0 // pred_check_branch
    %11 = sbr.rel (0) target = $region9
  $region8: #{cifar10_deep_net_forward.12} parent=0 // pred_region
    _
  $region9: #{cifar10_deep_net_forward.12} parent=0 // pred_fallthru
    _
  // Predicated region
  $region10: #{cifar10_deep_net_forward.12} parent=0 // pred_check
    _
  $region11: #{cifar10_deep_net_forward.12} parent=0 // pred_check_branch
    %13 = sbr.rel (0) target = $region13
  $region12: #{cifar10_deep_net_forward.12} parent=0 // pred_region
    _
  $region13: #{cifar10_deep_net_forward.12} parent=0 // pred_fallthru
    _
  %v14 = vld [vmem:[%s0] sm:$0xff]
  %v15 = vld [vmem:[%s1] sm:$0xff]
  %v16 = vld [vmem:[%s1 + $0x8] sm:$0xff]
  %v17 = vld [vmem:[%s1 + $0x10] sm:$0xff]
  %v18 = vld [vmem:[%s1 + $0x18] sm:$0xff]
  %v19 = vld [vmem:[%s1 + $0x20] sm:$0xff]
  %v20 = vld [vmem:[%s1 + $0x28] sm:$0xff]
  %v21 = vld [vmem:[%s1 + $0x30] sm:$0xff]
  %v22 = vld [vmem:[%s1 + $0x38] sm:$0xff]
  %v23 = vld [vmem:[%s1 + $0x40] sm:$0xff]
  %v24 = vld [vmem:[%s1 + $0x48] sm:$0xff]
  %v25 = vld [vmem:[%s1 + $0x50] sm:$0xff]
  %v26 = vld [vmem:[%s1 + $0x58] sm:$0xff]
  %v27 = vld [vmem:[%s1 + $0x60] sm:$0xff]
  %v28 = vld [vmem:[%s1 + $0x68] sm:$0xff]
  %v29 = vld [vmem:[%s1 + $0x70] sm:$0xff]
  %v30 = vld [vmem:[%s1 + $0x78] sm:$0xff]
  %v31 = vld [vmem:[%s1 + $0x80] sm:$0xff]
  %v32 = vld [vmem:[%s1 + $0x88] sm:$0xff]
  %v33 = vld [vmem:[%s1 + $0x90] sm:$0xff]
  %v34 = vld [vmem:[%s1 + $0x98] sm:$0xff]
  %v35 = vld [vmem:[%s1 + $0xa0] sm:$0xff]
  %v36 = vld [vmem:[%s1 + $0xa8] sm:$0xff]
  %v37 = vld [vmem:[%s1 + $0xb0] sm:$0xff]
  %v38 = vld [vmem:[%s1 + $0xb8] sm:$0xff]
  %v39 = vld [vmem:[%s1 + $0xc0] sm:$0xff]
  %v40 = vld [vmem:[%s1 + $0xc8] sm:$0xff]
  %v41 = vld [vmem:[%s1 + $0xd0] sm:$0xff]
  %v42 = vld [vmem:[%s1 + $0xd8] sm:$0xff]
  %v43 = vld [vmem:[%s1 + $0xe0] sm:$0xff]
  %v44 = vld [vmem:[%s1 + $0xe8] sm:$0xff]
  %v45 = vld [vmem:[%s1 + $0xf0] sm:$0xff]
  %v46 = vld [vmem:[%s1 + $0xf8] sm:$0xff]
  %v47 = vld [vmem:[%s1 + $0x100] sm:$0xff]
  %v48 = vld [vmem:[%s1 + $0x108] sm:$0xff]
  %v49 = vld [vmem:[%s1 + $0x110] sm:$0xff]
  %v50 = vld [vmem:[%s1 + $0x118] sm:$0xff]
  %v51 = vld [vmem:[%s1 + $0x120] sm:$0xff]
  %v52 = vld [vmem:[%s1 + $0x128] sm:$0xff]
  %v53 = vld [vmem:[%s1 + $0x130] sm:$0xff]
  %v54 = vld [vmem:[%s1 + $0x138] sm:$0xff]
  %v55 = vld [vmem:[%s1 + $0x140] sm:$0xff]
  %v56 = vld [vmem:[%s1 + $0x148] sm:$0xff]
  %v57 = vld [vmem:[%s1 + $0x150] sm:$0xff]
  %v58 = vld [vmem:[%s1 + $0x158] sm:$0xff]
  %v59 = vld [vmem:[%s1 + $0x160] sm:$0xff]
  %v60 = vld [vmem:[%s1 + $0x168] sm:$0xff]
  %v61 = vld [vmem:[%s1 + $0x170] sm:$0xff]
  %v62 = vld [vmem:[%s1 + $0x178] sm:$0xff]
  %v63 = vld [vmem:[%s1 + $0x180] sm:$0xff]
  %v64 = vld [vmem:[%s1 + $0x188] sm:$0xff]
  %v65 = vld [vmem:[%s1 + $0x190] sm:$0xff]
  %v66 = vld [vmem:[%s1 + $0x198] sm:$0xff]
  %v67 = vld [vmem:[%s1 + $0x1a0] sm:$0xff]
  %v68 = vld [vmem:[%s1 + $0x1a8] sm:$0xff]
  %v69 = vld [vmem:[%s1 + $0x1b0] sm:$0xff]
  %v70 = vld [vmem:[%s1 + $0x1b8] sm:$0xff]
  %v71 = vld [vmem:[%s1 + $0x1c0] sm:$0xff]
  %v72 = vld [vmem:[%s1 + $0x1c8] sm:$0xff]
  %v73 = vld [vmem:[%s1 + $0x1d0] sm:$0xff]
  %v74 = vld [vmem:[%s1 + $0x1d8] sm:$0xff]
  %v75 = vld [vmem:[%s1 + $0x1e0] sm:$0xff]
  %v76 = vld [vmem:[%s1 + $0x1e8] sm:$0xff]
  %v77 = vld [vmem:[%s1 + $0x1f0] sm:$0xff]
  %v78 = vld [vmem:[%s1 + $0x1f8] sm:$0xff]
  %v79 = vld [vmem:[%s1 + $0x200] sm:$0xff]
  %v80 = vld [vmem:[%s1 + $0x208] sm:$0xff]
  %v81 = vld [vmem:[%s1 + $0x210] sm:$0xff]
  %v82 = vld [vmem:[%s1 + $0x218] sm:$0xff]
  %v83 = vld [vmem:[%s1 + $0x220] sm:$0xff]
  %v84 = vld [vmem:[%s1 + $0x228] sm:$0xff]
  %v85 = vld [vmem:[%s1 + $0x230] sm:$0xff]
  %v86 = vld [vmem:[%s1 + $0x238] sm:$0xff]
  %v87 = vld [vmem:[%s1 + $0x240] sm:$0xff]
  %v88 = vld [vmem:[%s1 + $0x248] sm:$0xff]
  %v89 = vld [vmem:[%s1 + $0x250] sm:$0xff]
  %v90 = vld [vmem:[%s1 + $0x258] sm:$0xff]
  %v91 = vld [vmem:[%s1 + $0x260] sm:$0xff]
  %v92 = vld [vmem:[%s1 + $0x268] sm:$0xff]
  %v93 = vld [vmem:[%s1 + $0x270] sm:$0xff]
  %v94 = vld [vmem:[%s1 + $0x278] sm:$0xff]
  %v95 = vld [vmem:[%s1 + $0x280] sm:$0xff]
  %v96 = vld [vmem:[%s1 + $0x288] sm:$0xff]
  %v97 = vld [vmem:[%s1 + $0x290] sm:$0xff]
  %v98 = vld [vmem:[%s1 + $0x298] sm:$0xff]
  %v99 = vld [vmem:[%s1 + $0x2a0] sm:$0xff]
  %v100 = vld [vmem:[%s1 + $0x2a8] sm:$0xff]
  %v101 = vld [vmem:[%s1 + $0x2b0] sm:$0xff]
  %v102 = vld [vmem:[%s1 + $0x2b8] sm:$0xff]
  %v103 = vld [vmem:[%s1 + $0x2c0] sm:$0xff]
  %v104 = vld [vmem:[%s1 + $0x2c8] sm:$0xff]
  %v105 = vld [vmem:[%s1 + $0x2d0] sm:$0xff]
  %v106 = vld [vmem:[%s1 + $0x2d8] sm:$0xff]
  %v107 = vld [vmem:[%s1 + $0x2e0] sm:$0xff]
  %v108 = vld [vmem:[%s1 + $0x2e8] sm:$0xff]
  %v109 = vld [vmem:[%s1 + $0x2f0] sm:$0xff]
  %v110 = vld [vmem:[%s1 + $0x2f8] sm:$0xff]
  %v111 = vld [vmem:[%s1 + $0x300] sm:$0xff]
  %v112 = vld [vmem:[%s1 + $0x308] sm:$0xff]
  %v113 = vld [vmem:[%s1 + $0x310] sm:$0xff]
  %v114 = vld [vmem:[%s1 + $0x318] sm:$0xff]
  %v115 = vld [vmem:[%s1 + $0x320] sm:$0xff]
  %v116 = vld [vmem:[%s1 + $0x328] sm:$0xff]
  %v117 = vld [vmem:[%s1 + $0x330] sm:$0xff]
  %v118 = vld [vmem:[%s1 + $0x338] sm:$0xff]
  %v119 = vld [vmem:[%s1 + $0x340] sm:$0xff]
  %v120 = vld [vmem:[%s1 + $0x348] sm:$0xff]
  %v121 = vld [vmem:[%s1 + $0x350] sm:$0xff]
  %v122 = vld [vmem:[%s1 + $0x358] sm:$0xff]
  %v123 = vld [vmem:[%s1 + $0x360] sm:$0xff]
  %v124 = vld [vmem:[%s1 + $0x368] sm:$0xff]
  %v125 = vld [vmem:[%s1 + $0x370] sm:$0xff]
  %v126 = vld [vmem:[%s1 + $0x378] sm:$0xff]
  %v127 = vld [vmem:[%s1 + $0x380] sm:$0xff]
  %v128 = vld [vmem:[%s1 + $0x388] sm:$0xff]
  %v129 = vld [vmem:[%s1 + $0x390] sm:$0xff]
  %v130 = vld [vmem:[%s1 + $0x398] sm:$0xff]
  %v131 = vld [vmem:[%s1 + $0x3a0] sm:$0xff]
  %v132 = vld [vmem:[%s1 + $0x3a8] sm:$0xff]
  %v133 = vld [vmem:[%s1 + $0x3b0] sm:$0xff]
  %v134 = vld [vmem:[%s1 + $0x3b8] sm:$0xff]
  %v135 = vld [vmem:[%s1 + $0x3c0] sm:$0xff]
  %v136 = vld [vmem:[%s1 + $0x3c8] sm:$0xff]
  %v137 = vld [vmem:[%s1 + $0x3d0] sm:$0xff]
  %v138 = vld [vmem:[%s1 + $0x3d8] sm:$0xff]
  %v139 = vld [vmem:[%s1 + $0x3e0] sm:$0xff]
  %v140 = vld [vmem:[%s1 + $0x3e8] sm:$0xff]
  %v141 = vld [vmem:[%s1 + $0x3f0] sm:$0xff]
  %v142 = vld [vmem:[%s1 + $0x3f8] sm:$0xff]
  %v143 = vld [vmem:[%s2] sm:$0x3]
  %v145 = vlaneseq
  %v146 = vshrl.u32 %v145, 7
  %v147 = vsub.s32 0, %v146
  %v148 = vrot.slane %v143, %v147
  %v149 = vlaneseq
  %v150 = vshrl.u32 %v149, 7
  %v151 = vsub.s32 1, %v150
  %v152 = vrot.slane %v143, %v151
  %v156 = vcombine.high %v14, %v14
  %v158 = vunpack.c.l.s4 1983009808
  %v159 = vunpack.c.0.s8 %v158
  %v160 = vlaneseq
  %v161 = vshrl.u32 %v160, 7
  %v162 = vsub.s32 %v159, %v161
  %v163 = vrot.slane %v14, %v162
  %v165 = vunpack.c.l.s4 1983009808
  %v166 = vunpack.c.0.s8 %v165
  %v167 = vlaneseq
  %v168 = vshrl.u32 %v167, 7
  %v169 = vsub.s32 %v166, %v168
  %v170 = vrot.slane %v156, %v169
  %v171 = vcombine.high %v163, %v163
  %v172 = vcombine.high %v170, %v170
  %177 = vmatprep.subr.mxu0 %v46
  %178 = vmatpush1.msra.mxu0 %v45
  %179 = vmatprep.subr.mxu0 %v44
  %180 = vmatpush1.msra.mxu0 %v43
  %181 = vmatprep.subr.mxu0 %v42
  %182 = vmatpush1.msra.mxu0 %v41
  %183 = vmatprep.subr.mxu0 %v40
  %184 = vmatpush1.msra.mxu0 %v39
  %185 = vmatprep.subr.mxu0 %v38
  %186 = vmatpush1.msra.mxu0 %v37
  %187 = vmatprep.subr.mxu0 %v36
  %188 = vmatpush1.msra.mxu0 %v35
  %189 = vmatprep.subr.mxu0 %v34
  %190 = vmatpush1.msra.mxu0 %v33
  %191 = vmatprep.subr.mxu0 %v32
  %192 = vmatpush1.msra.mxu0 %v31
  %193 = vmatprep.subr.mxu0 %v30
  %194 = vmatpush1.msra.mxu0 %v29
  %195 = vmatprep.subr.mxu0 %v28
  %196 = vmatpush1.msra.mxu0 %v27
  %197 = vmatprep.subr.mxu0 %v26
  %198 = vmatpush1.msra.mxu0 %v25
  %199 = vmatprep.subr.mxu0 %v24
  %200 = vmatpush1.msra.mxu0 %v23
  %201 = vmatprep.subr.mxu0 %v22
  %202 = vmatpush1.msra.mxu0 %v21
  %203 = vmatprep.subr.mxu0 %v20
  %204 = vmatpush1.msra.mxu0 %v19
  %205 = vmatprep.subr.mxu0 %v18
  %206 = vmatpush1.msra.mxu0 %v17
  %207 = vmatprep.subr.mxu0 %v16
  %208 = vmatpush1.msra.mxu0 %v15
  %209 = vmatprep.subr.mxu0 %v78
  %210 = vmatpush2.msra.mxu0 %v77
  %211 = vmatprep.subr.mxu0 %v76
  %212 = vmatpush2.msra.mxu0 %v75
  %213 = vmatprep.subr.mxu0 %v74
  %214 = vmatpush2.msra.mxu0 %v73
  %215 = vmatprep.subr.mxu0 %v72
  %216 = vmatpush2.msra.mxu0 %v71
  %217 = vmatprep.subr.mxu0 %v70
  %218 = vmatpush2.msra.mxu0 %v69
  %219 = vmatprep.subr.mxu0 %v68
  %220 = vmatpush2.msra.mxu0 %v67
  %221 = vmatprep.subr.mxu0 %v66
  %222 = vmatpush2.msra.mxu0 %v65
  %223 = vmatprep.subr.mxu0 %v64
  %224 = vmatpush2.msra.mxu0 %v63
  %225 = vmatprep.subr.mxu0 %v62
  %226 = vmatpush2.msra.mxu0 %v61
  %227 = vmatprep.subr.mxu0 %v60
  %228 = vmatpush2.msra.mxu0 %v59
  %229 = vmatprep.subr.mxu0 %v58
  %230 = vmatpush2.msra.mxu0 %v57
  %231 = vmatprep.subr.mxu0 %v56
  %232 = vmatpush2.msra.mxu0 %v55
  %233 = vmatprep.subr.mxu0 %v54
  %234 = vmatpush2.msra.mxu0 %v53
  %235 = vmatprep.subr.mxu0 %v52
  %236 = vmatpush2.msra.mxu0 %v51
  %237 = vmatprep.subr.mxu0 %v50
  %238 = vmatpush2.msra.mxu0 %v49
  %239 = vmatprep.subr.mxu0 %v48
  %240 = vmatpush2.msra.mxu0 %v47
  %241 = vmatprep.mubr.f32.mxu0 %v171
  %242 = vmatmul.mubr.f32.gmra.mxu0 %v163
  %v243 = vpop.f32.mrf.mxu0
  %v244 = vadd.f32 %v148, %v243
  %v245 = vpop.f32.mrf.mxu0
  %v246 = vadd.f32 %v152, %v245
  %247 = vdwg.mxu0
  %248 = vmatprep.subr.mxu0 %v110
  %249 = vmatpush1.msra.mxu0 %v109
  %250 = vmatprep.subr.mxu0 %v108
  %251 = vmatpush1.msra.mxu0 %v107
  %252 = vmatprep.subr.mxu0 %v106
  %253 = vmatpush1.msra.mxu0 %v105
  %254 = vmatprep.subr.mxu0 %v104
  %255 = vmatpush1.msra.mxu0 %v103
  %256 = vmatprep.subr.mxu0 %v102
  %257 = vmatpush1.msra.mxu0 %v101
  %258 = vmatprep.subr.mxu0 %v100
  %259 = vmatpush1.msra.mxu0 %v99
  %260 = vmatprep.subr.mxu0 %v98
  %261 = vmatpush1.msra.mxu0 %v97
  %262 = vmatprep.subr.mxu0 %v96
  %263 = vmatpush1.msra.mxu0 %v95
  %264 = vmatprep.subr.mxu0 %v94
  %265 = vmatpush1.msra.mxu0 %v93
  %266 = vmatprep.subr.mxu0 %v92
  %267 = vmatpush1.msra.mxu0 %v91
  %268 = vmatprep.subr.mxu0 %v90
  %269 = vmatpush1.msra.mxu0 %v89
  %270 = vmatprep.subr.mxu0 %v88
  %271 = vmatpush1.msra.mxu0 %v87
  %272 = vmatprep.subr.mxu0 %v86
  %273 = vmatpush1.msra.mxu0 %v85
  %274 = vmatprep.subr.mxu0 %v84
  %275 = vmatpush1.msra.mxu0 %v83
  %276 = vmatprep.subr.mxu0 %v82
  %277 = vmatpush1.msra.mxu0 %v81
  %278 = vmatprep.subr.mxu0 %v80
  %279 = vmatpush1.msra.mxu0 %v79
  %280 = vmatprep.subr.mxu0 %v142
  %281 = vmatpush2.msra.mxu0 %v141
  %282 = vmatprep.subr.mxu0 %v140
  %283 = vmatpush2.msra.mxu0 %v139
  %284 = vmatprep.subr.mxu0 %v138
  %285 = vmatpush2.msra.mxu0 %v137
  %286 = vmatprep.subr.mxu0 %v136
  %287 = vmatpush2.msra.mxu0 %v135
  %288 = vmatprep.subr.mxu0 %v134
  %289 = vmatpush2.msra.mxu0 %v133
  %290 = vmatprep.subr.mxu0 %v132
  %291 = vmatpush2.msra.mxu0 %v131
  %292 = vmatprep.subr.mxu0 %v130
  %293 = vmatpush2.msra.mxu0 %v129
  %294 = vmatprep.subr.mxu0 %v128
  %295 = vmatpush2.msra.mxu0 %v127
  %296 = vmatprep.subr.mxu0 %v126
  %297 = vmatpush2.msra.mxu0 %v125
  %298 = vmatprep.subr.mxu0 %v124
  %299 = vmatpush2.msra.mxu0 %v123
  %300 = vmatprep.subr.mxu0 %v122
  %301 = vmatpush2.msra.mxu0 %v121
  %302 = vmatprep.subr.mxu0 %v120
  %303 = vmatpush2.msra.mxu0 %v119
  %304 = vmatprep.subr.mxu0 %v118
  %305 = vmatpush2.msra.mxu0 %v117
  %306 = vmatprep.subr.mxu0 %v116
  %307 = vmatpush2.msra.mxu0 %v115
  %308 = vmatprep.subr.mxu0 %v114
  %309 = vmatpush2.msra.mxu0 %v113
  %310 = vmatprep.subr.mxu0 %v112
  %311 = vmatpush2.msra.mxu0 %v111
  %312 = vmatprep.mubr.f32.mxu0 %v172
  %313 = vmatmul.mubr.f32.gmra.mxu0 %v170
  %v314 = vpop.f32.mrf.mxu0
  %v315 = vadd.f32 %v244, %v314
  %v316 = vpop.f32.mrf.mxu0
  %v317 = vadd.f32 %v246, %v316
  %318 = vdwg.mxu0
  %v319 = vmax.f32 %v315, 0.0
  %v320 = vmax.f32 %v317, 0.0
  %v323 = vcombine.low %v319, %v320
  %v325 = vunpack.c.l.s4 1983009808
  %v326 = vunpack.c.0.s8 %v325
  %v327 = vlaneseq
  %v328 = vshrl.u32 %v327, 7
  %v329 = vsub.s32 %v326, %v328
  %v330 = vrot.slane %v323, %v329
  %332 = vst [vmem:[%s3] sm:$0xf] %v330
  // Predicated region
  $region14: #{cifar10_deep_net_forward.12} parent=0 // pred_check
    _
  $region15: #{cifar10_deep_net_forward.12} parent=0 // pred_check_branch
    %334 = sbr.rel (0) target = $region17
  $region16: #{cifar10_deep_net_forward.12} parent=0 // pred_region
    _
  $region17: #{cifar10_deep_net_forward.12} parent=0 // pred_fallthru
    _
  // Predicated region
  $region18: #{cifar10_deep_net_forward.12} parent=0 // pred_check
    _
  $region19: #{cifar10_deep_net_forward.12} parent=0 // pred_check_branch
    %336 = sbr.rel (0) target = $region21
  $region20: #{cifar10_deep_net_forward.12} parent=0 // pred_region
    _
  $region21: #{cifar10_deep_net_forward.12} parent=0 // pred_fallthru
    _

// kernel: cifar10_deep_net_forward.13
$region0: #{cifar10_deep_net_forward.13}
  #allocation0 [shape = 'u32[]', space=smem, size = 0x4, offset = 0x4, fixed_abs, tag = 'smem constant byte address 0x4 - core index']
  #allocation1 [shape = 'u32[144,128]{1,0:T(1,128)}', space=vmem, size = 0x12000, scoped, tag = 'internal scratch']
  %s0 = inlined_call_operand.vmem [shape: f32[2,256], index: 0, kind: input, shape index: {}]
  %s1 = inlined_call_operand.vmem [shape: f32[256,10], index: 1, kind: input, shape index: {}]
  %s2 = inlined_call_operand.vmem [shape: f32[1,10], index: 2, kind: input, shape index: {}]
  %s3 = inlined_call_operand.hbm [shape: f32[2,10], index: 3, kind: output, shape index: {}]
  %s4 = sld [smem:[#allocation0]]
  $region22: #{cifar10_deep_net_forward.13} parent=0
    _
  %s6 = ssub.s32 1, %s4
  %s7 = scalar_select 0, %s6, %s4
  $region1: #{cifar10_deep_net_forward.13} parent=0
    #allocation2 [shape = 'u8[1024]{0}', space=vmem, size = 0x400, scoped, tag = 'output window, operand 0, single buffered']
    #allocation3 [shape = 's32[1]{0}', space=sflag, size = 0x4, scoped, tag = 'scoped memory for cifar10_deep_net_forward.13']
    %8 = vsyncpa [#allocation3], 0
    // Predicated region
    $region2: #{cifar10_deep_net_forward.13} parent=1 // pred_check
      _
    $region3: #{cifar10_deep_net_forward.13} parent=1 // pred_check_branch
      %10 = sbr.rel (0) target = $region5
    $region4: #{cifar10_deep_net_forward.13} parent=1 // pred_region
      _
    $region5: #{cifar10_deep_net_forward.13} parent=1 // pred_fallthru
      _
    // Predicated region
    $region6: #{cifar10_deep_net_forward.13} parent=1 // pred_check
      _
    $region7: #{cifar10_deep_net_forward.13} parent=1 // pred_check_branch
      %12 = sbr.rel (0) target = $region9
    $region8: #{cifar10_deep_net_forward.13} parent=1 // pred_region
      _
    $region9: #{cifar10_deep_net_forward.13} parent=1 // pred_fallthru
      _
    // Predicated region
    $region10: #{cifar10_deep_net_forward.13} parent=1 // pred_check
      _
    $region11: #{cifar10_deep_net_forward.13} parent=1 // pred_check_branch
      %14 = sbr.rel (0) target = $region13
    $region12: #{cifar10_deep_net_forward.13} parent=1 // pred_region
      _
    $region13: #{cifar10_deep_net_forward.13} parent=1 // pred_fallthru
      _
    %v15 = vld [vmem:[%s0] sm:$0xf]
    %v16 = vld [vmem:[%s1] sm:$0xff]
    %v17 = vld [vmem:[%s1 + $0x8] sm:$0xff]
    %v18 = vld [vmem:[%s1 + $0x10] sm:$0xff]
    %v19 = vld [vmem:[%s1 + $0x18] sm:$0xff]
    %v20 = vld [vmem:[%s1 + $0x20] sm:$0xff]
    %v21 = vld [vmem:[%s1 + $0x28] sm:$0xff]
    %v22 = vld [vmem:[%s1 + $0x30] sm:$0xff]
    %v23 = vld [vmem:[%s1 + $0x38] sm:$0xff]
    %v24 = vld [vmem:[%s1 + $0x40] sm:$0xff]
    %v25 = vld [vmem:[%s1 + $0x48] sm:$0xff]
    %v26 = vld [vmem:[%s1 + $0x50] sm:$0xff]
    %v27 = vld [vmem:[%s1 + $0x58] sm:$0xff]
    %v28 = vld [vmem:[%s1 + $0x60] sm:$0xff]
    %v29 = vld [vmem:[%s1 + $0x68] sm:$0xff]
    %v30 = vld [vmem:[%s1 + $0x70] sm:$0xff]
    %v31 = vld [vmem:[%s1 + $0x78] sm:$0xff]
    %v32 = vld [vmem:[%s1 + $0x80] sm:$0xff]
    %v33 = vld [vmem:[%s1 + $0x88] sm:$0xff]
    %v34 = vld [vmem:[%s1 + $0x90] sm:$0xff]
    %v35 = vld [vmem:[%s1 + $0x98] sm:$0xff]
    %v36 = vld [vmem:[%s1 + $0xa0] sm:$0xff]
    %v37 = vld [vmem:[%s1 + $0xa8] sm:$0xff]
    %v38 = vld [vmem:[%s1 + $0xb0] sm:$0xff]
    %v39 = vld [vmem:[%s1 + $0xb8] sm:$0xff]
    %v40 = vld [vmem:[%s1 + $0xc0] sm:$0xff]
    %v41 = vld [vmem:[%s1 + $0xc8] sm:$0xff]
    %v42 = vld [vmem:[%s1 + $0xd0] sm:$0xff]
    %v43 = vld [vmem:[%s1 + $0xd8] sm:$0xff]
    %v44 = vld [vmem:[%s1 + $0xe0] sm:$0xff]
    %v45 = vld [vmem:[%s1 + $0xe8] sm:$0xff]
    %v46 = vld [vmem:[%s1 + $0xf0] sm:$0xff]
    %v47 = vld [vmem:[%s1 + $0xf8] sm:$0xff]
    %v48 = vld [vmem:[%s2] sm:$0x1]
    %v50 = vlaneseq
    %v51 = vshrl.u32 %v50, 7
    %v52 = vsub.s32 0, %v51
    %v53 = vrot.slane %v48, %v52
    %v57 = vunpack.c.l.s4 1983009808
    %v58 = vunpack.c.0.s8 %v57
    %v59 = vlaneseq
    %v60 = vshrl.u32 %v59, 7
    %v61 = vsub.s32 %v58, %v60
    %v62 = vrot.slane %v15, %v61
    %v63 = vcombine.high %v62, %v62
    %66 = vmatprep.subr.mxu0 0.0
    %67 = vmatpush1.msra.mxu0 %v31
    %68 = vmatprep.subr.mxu0 0.0
    %69 = vmatpush1.msra.mxu0 %v30
    %70 = vmatprep.subr.mxu0 0.0
    %71 = vmatpush1.msra.mxu0 %v29
    %72 = vmatprep.subr.mxu0 0.0
    %73 = vmatpush1.msra.mxu0 %v28
    %74 = vmatprep.subr.mxu0 0.0
    %75 = vmatpush1.msra.mxu0 %v27
    %76 = vmatprep.subr.mxu0 0.0
    %77 = vmatpush1.msra.mxu0 %v26
    %78 = vmatprep.subr.mxu0 0.0
    %79 = vmatpush1.msra.mxu0 %v25
    %80 = vmatprep.subr.mxu0 0.0
    %81 = vmatpush1.msra.mxu0 %v24
    %82 = vmatprep.subr.mxu0 0.0
    %83 = vmatpush1.msra.mxu0 %v23
    %84 = vmatprep.subr.mxu0 0.0
    %85 = vmatpush1.msra.mxu0 %v22
    %86 = vmatprep.subr.mxu0 0.0
    %87 = vmatpush1.msra.mxu0 %v21
    %88 = vmatprep.subr.mxu0 0.0
    %89 = vmatpush1.msra.mxu0 %v20
    %90 = vmatprep.subr.mxu0 0.0
    %91 = vmatpush1.msra.mxu0 %v19
    %92 = vmatprep.subr.mxu0 0.0
    %93 = vmatpush1.msra.mxu0 %v18
    %94 = vmatprep.subr.mxu0 0.0
    %95 = vmatpush1.msra.mxu0 %v17
    %96 = vmatprep.subr.mxu0 0.0
    %97 = vmatpush1.msra.mxu0 %v16
    %98 = vmatprep.subr.mxu0 0.0
    %99 = vmatpush2.msra.mxu0 %v47
    %100 = vmatprep.subr.mxu0 0.0
    %101 = vmatpush2.msra.mxu0 %v46
    %102 = vmatprep.subr.mxu0 0.0
    %103 = vmatpush2.msra.mxu0 %v45
    %104 = vmatprep.subr.mxu0 0.0
    %105 = vmatpush2.msra.mxu0 %v44
    %106 = vmatprep.subr.mxu0 0.0
    %107 = vmatpush2.msra.mxu0 %v43
    %108 = vmatprep.subr.mxu0 0.0
    %109 = vmatpush2.msra.mxu0 %v42
    %110 = vmatprep.subr.mxu0 0.0
    %111 = vmatpush2.msra.mxu0 %v41
    %112 = vmatprep.subr.mxu0 0.0
    %113 = vmatpush2.msra.mxu0 %v40
    %114 = vmatprep.subr.mxu0 0.0
    %115 = vmatpush2.msra.mxu0 %v39
    %116 = vmatprep.subr.mxu0 0.0
    %117 = vmatpush2.msra.mxu0 %v38
    %118 = vmatprep.subr.mxu0 0.0
    %119 = vmatpush2.msra.mxu0 %v37
    %120 = vmatprep.subr.mxu0 0.0
    %121 = vmatpush2.msra.mxu0 %v36
    %122 = vmatprep.subr.mxu0 0.0
    %123 = vmatpush2.msra.mxu0 %v35
    %124 = vmatprep.subr.mxu0 0.0
    %125 = vmatpush2.msra.mxu0 %v34
    %126 = vmatprep.subr.mxu0 0.0
    %127 = vmatpush2.msra.mxu0 %v33
    %128 = vmatprep.subr.mxu0 0.0
    %129 = vmatpush2.msra.mxu0 %v32
    %130 = vmatprep.mubr.f32.mxu0 %v63
    %131 = vmatmul.mubr.f32.gmra.mxu0 %v62
    %v132 = vpop.f32.mrf.mxu0
    %v133 = vadd.f32 %v53, %v132
    %v134 = vpop.f32.mrf.mxu0
    %135 = vdwg.mxu0
    %vm136 = vcmask 74752
    %v137 = vsel %vm136, %v133, -inf
    %138 = vmax.xlane.f32.xlu0 %v137
    %v139 = vpop.xlane.xlu0 %138
    %v140 = vsub.f32 %v133, %v139
    %v141 = vmul.f32 %v140, 1.442695
    %v142 = vpow.pop %v141
    %v143 = vsel %vm136, %v142, 0.0
    %144 = vadd.xlane.f32.xlu0 %v143
    %v145 = vpop.xlane.xlu0 %144
    %v146 = vlog2.pop %v145
    %v147 = vmul.f32 %v146, 0.6931472
    %v148 = vsub.f32 %v140, %v147
    %149 = vst.msk [vmem:[#allocation2] sm:$0x3] %vm136, %v148
    // Predicated region
    $region14: #{cifar10_deep_net_forward.13} parent=1 // pred_check
      _
    $region15: #{cifar10_deep_net_forward.13} parent=1 // pred_check_branch
      %151 = sbr.rel (0) target = $region17
    $region16: #{cifar10_deep_net_forward.13} parent=1 // pred_region
      %s153 = ssub.s32 32, 32
      %154 = vsyncadd [#allocation3], %s153
      %s156 = sshll.u32 [#allocation2], 4
      %s157 = int_to_ptr.vmem [resolvable:$true] %s156
      %159 = dma.vmem_to_hbm [thread:$0]  %s157, 32, %s3, [#allocation3]
    $region17: #{cifar10_deep_net_forward.13} parent=1 // pred_fallthru
      _
    // Predicated region
    $region18: #{cifar10_deep_net_forward.13} parent=1 // pred_check
      _
    $region19: #{cifar10_deep_net_forward.13} parent=1 // pred_check_branch
      %161 = sbr.rel (0) target = $region21
    $region20: #{cifar10_deep_net_forward.13} parent=1 // pred_region
      %162 = dma.done [#allocation3], 32
    $region21: #{cifar10_deep_net_forward.13} parent=1 // pred_fallthru
      _
    %163 = vsyncpa [#allocation3], 1

// kernel: cifar10_deep_net_forward.11
$region0: #{cifar10_deep_net_forward.11}
  #allocation0 [shape = 'u32[]', space=smem, size = 0x4, offset = 0x4, fixed_abs, tag = 'smem constant byte address 0x4 - core index']
  #allocation1 [shape = 'u32[144,128]{1,0:T(1,128)}', space=vmem, size = 0x12000, scoped, tag = 'internal scratch']
  %s0 = inlined_call_operand.vmem [shape: f32[2,3200], index: 0, kind: input, shape index: {}]
  %s1 = inlined_call_operand.vmem [shape: f32[3200,512], index: 1, kind: input, shape index: {}]
  %s2 = inlined_call_operand.vmem [shape: f32[1,512], index: 2, kind: input, shape index: {}]
  %s3 = inlined_call_operand.vmem [shape: f32[2,512], index: 3, kind: output, shape index: {}]
  %s4 = sld [smem:[#allocation0]]
  $region22: #{cifar10_deep_net_forward.11} parent=0
    _
  %s6 = ssub.s32 1, %s4
  %s7 = scalar_select 0, %s6, %s4
  // Predicated region
  $region2: #{cifar10_deep_net_forward.11} parent=0 // pred_check
    _
  $region3: #{cifar10_deep_net_forward.11} parent=0 // pred_check_branch
    %9 = sbr.rel (0) target = $region5
  $region4: #{cifar10_deep_net_forward.11} parent=0 // pred_region
    _
  $region5: #{cifar10_deep_net_forward.11} parent=0 // pred_fallthru
    _
  // Predicated region
  $region6: #{cifar10_deep_net_forward.11} parent=0 // pred_check
    _
  $region7: #{cifar10_deep_net_forward.11} parent=0 // pred_check_branch
    %11 = sbr.rel (0) target = $region9
  $region8: #{cifar10_deep_net_forward.11} parent=0 // pred_region
    _
  $region9: #{cifar10_deep_net_forward.11} parent=0 // pred_fallthru
    _
  // Predicated region
  $region10: #{cifar10_deep_net_forward.11} parent=0 // pred_check
    _
  $region11: #{cifar10_deep_net_forward.11} parent=0 // pred_check_branch
    %13 = sbr.rel (0) target = $region13
  $region12: #{cifar10_deep_net_forward.11} parent=0 // pred_region
    _
  $region13: #{cifar10_deep_net_forward.11} parent=0 // pred_fallthru
    _
  %v14 = vld [vmem:[%s0] sm:$0xff]
  %v15 = vld [vmem:[%s0 + $0x8] sm:$0xff]
  %v16 = vld [vmem:[%s0 + $0x10] sm:$0xff]
  %v17 = vld [vmem:[%s0 + $0x18] sm:$0xff]
  %v18 = vld [vmem:[%s0 + $0x20] sm:$0xff]
  %v19 = vld [vmem:[%s0 + $0x28] sm:$0xff]
  %v20 = vld [vmem:[%s0 + $0x30] sm:$0x3]
  %v21 = vld [vmem:[%s1] sm:$0xff]
  %v22 = vld [vmem:[%s1 + $0x8] sm:$0xff]
  %v23 = vld [vmem:[%s1 + $0x10] sm:$0xff]
  %v24 = vld [vmem:[%s1 + $0x18] sm:$0xff]
  %v25 = vld [vmem:[%s1 + $0x20] sm:$0xff]
  %v26 = vld [vmem:[%s1 + $0x28] sm:$0xff]
  %v27 = vld [vmem:[%s1 + $0x30] sm:$0xff]
  %v28 = vld [vmem:[%s1 + $0x38] sm:$0xff]
  %v29 = vld [vmem:[%s1 + $0x40] sm:$0xff]
  %v30 = vld [vmem:[%s1 + $0x48] sm:$0xff]
  %v31 = vld [vmem:[%s1 + $0x50] sm:$0xff]
  %v32 = vld [vmem:[%s1 + $0x58] sm:$0xff]
  %v33 = vld [vmem:[%s1 + $0x60] sm:$0xff]
  %v34 = vld [vmem:[%s1 + $0x68] sm:$0xff]
  %v35 = vld [vmem:[%s1 + $0x70] sm:$0xff]
  %v36 = vld [vmem:[%s1 + $0x78] sm:$0xff]
  %v37 = vld [vmem:[%s1 + $0x80] sm:$0xff]
  %v38 = vld [vmem:[%s1 + $0x88] sm:$0xff]
  %v39 = vld [vmem:[%s1 + $0x90] sm:$0xff]
  %v40 = vld [vmem:[%s1 + $0x98] sm:$0xff]
  %v41 = vld [vmem:[%s1 + $0xa0] sm:$0xff]
  %v42 = vld [vmem:[%s1 + $0xa8] sm:$0xff]
  %v43 = vld [vmem:[%s1 + $0xb0] sm:$0xff]
  %v44 = vld [vmem:[%s1 + $0xb8] sm:$0xff]
  %v45 = vld [vmem:[%s1 + $0xc0] sm:$0xff]
  %v46 = vld [vmem:[%s1 + $0xc8] sm:$0xff]
  %v47 = vld [vmem:[%s1 + $0xd0] sm:$0xff]
  %v48 = vld [vmem:[%s1 + $0xd8] sm:$0xff]
  %v49 = vld [vmem:[%s1 + $0xe0] sm:$0xff]
  %v50 = vld [vmem:[%s1 + $0xe8] sm:$0xff]
  %v51 = vld [vmem:[%s1 + $0xf0] sm:$0xff]
  %v52 = vld [vmem:[%s1 + $0xf8] sm:$0xff]
  %v53 = vld [vmem:[%s1 + $0x100] sm:$0xff]
  %v54 = vld [vmem:[%s1 + $0x108] sm:$0xff]
  %v55 = vld [vmem:[%s1 + $0x110] sm:$0xff]
  %v56 = vld [vmem:[%s1 + $0x118] sm:$0xff]
  %v57 = vld [vmem:[%s1 + $0x120] sm:$0xff]
  %v58 = vld [vmem:[%s1 + $0x128] sm:$0xff]
  %v59 = vld [vmem:[%s1 + $0x130] sm:$0xff]
  %v60 = vld [vmem:[%s1 + $0x138] sm:$0xff]
  %v61 = vld [vmem:[%s1 + $0x140] sm:$0xff]
  %v62 = vld [vmem:[%s1 + $0x148] sm:$0xff]
  %v63 = vld [vmem:[%s1 + $0x150] sm:$0xff]
  %v64 = vld [vmem:[%s1 + $0x158] sm:$0xff]
  %v65 = vld [vmem:[%s1 + $0x160] sm:$0xff]
  %v66 = vld [vmem:[%s1 + $0x168] sm:$0xff]
  %v67 = vld [vmem:[%s1 + $0x170] sm:$0xff]
  %v68 = vld [vmem:[%s1 + $0x178] sm:$0xff]
  %v69 = vld [vmem:[%s1 + $0x180] sm:$0xff]
  %v70 = vld [vmem:[%s1 + $0x188] sm:$0xff]
  %v71 = vld [vmem:[%s1 + $0x190] sm:$0xff]
  %v72 = vld [vmem:[%s1 + $0x198] sm:$0xff]
  %v73 = vld [vmem:[%s1 + $0x1a0] sm:$0xff]
  %v74 = vld [vmem:[%s1 + $0x1a8] sm:$0xff]
  %v75 = vld [vmem:[%s1 + $0x1b0] sm:$0xff]
  %v76 = vld [vmem:[%s1 + $0x1b8] sm:$0xff]
  %v77 = vld [vmem:[%s1 + $0x1c0] sm:$0xff]
  %v78 = vld [vmem:[%s1 + $0x1c8] sm:$0xff]
  %v79 = vld [vmem:[%s1 + $0x1d0] sm:$0xff]
  %v80 = vld [vmem:[%s1 + $0x1d8] sm:$0xff]
  %v81 = vld [vmem:[%s1 + $0x1e0] sm:$0xff]
  %v82 = vld [vmem:[%s1 + $0x1e8] sm:$0xff]
  %v83 = vld [vmem:[%s1 + $0x1f0] sm:$0xff]
  %v84 = vld [vmem:[%s1 + $0x1f8] sm:$0xff]
  %v85 = vld [vmem:[%s1 + $0x200] sm:$0xff]
  %v86 = vld [vmem:[%s1 + $0x208] sm:$0xff]
  %v87 = vld [vmem:[%s1 + $0x210] sm:$0xff]
  %v88 = vld [vmem:[%s1 + $0x218] sm:$0xff]
  %v89 = vld [vmem:[%s1 + $0x220] sm:$0xff]
  %v90 = vld [vmem:[%s1 + $0x228] sm:$0xff]
  %v91 = vld [vmem:[%s1 + $0x230] sm:$0xff]
  %v92 = vld [vmem:[%s1 + $0x238] sm:$0xff]
  %v93 = vld [vmem:[%s1 + $0x240] sm:$0xff]
  %v94 = vld [vmem:[%s1 + $0x248] sm:$0xff]
  %v95 = vld [vmem:[%s1 + $0x250] sm:$0xff]
  %v96 = vld [vmem:[%s1 + $0x258] sm:$0xff]
  %v97 = vld [vmem:[%s1 + $0x260] sm:$0xff]
  %v98 = vld [vmem:[%s1 + $0x268] sm:$0xff]
  %v99 = vld [vmem:[%s1 + $0x270] sm:$0xff]
  %v100 = vld [vmem:[%s1 + $0x278] sm:$0xff]
  %v101 = vld [vmem:[%s1 + $0x280] sm:$0xff]
  %v102 = vld [vmem:[%s1 + $0x288] sm:$0xff]
  %v103 = vld [vmem:[%s1 + $0x290] sm:$0xff]
  %v104 = vld [vmem:[%s1 + $0x298] sm:$0xff]
  %v105 = vld [vmem:[%s1 + $0x2a0] sm:$0xff]
  %v106 = vld [vmem:[%s1 + $0x2a8] sm:$0xff]
  %v107 = vld [vmem:[%s1 + $0x2b0] sm:$0xff]
  %v108 = vld [vmem:[%s1 + $0x2b8] sm:$0xff]
  %v109 = vld [vmem:[%s1 + $0x2c0] sm:$0xff]
  %v110 = vld [vmem:[%s1 + $0x2c8] sm:$0xff]
  %v111 = vld [vmem:[%s1 + $0x2d0] sm:$0xff]
  %v112 = vld [vmem:[%s1 + $0x2d8] sm:$0xff]
  %v113 = vld [vmem:[%s1 + $0x2e0] sm:$0xff]
  %v114 = vld [vmem:[%s1 + $0x2e8] sm:$0xff]
  %v115 = vld [vmem:[%s1 + $0x2f0] sm:$0xff]
  %v116 = vld [vmem:[%s1 + $0x2f8] sm:$0xff]
  %v117 = vld [vmem:[%s1 + $0x300] sm:$0xff]
  %v118 = vld [vmem:[%s1 + $0x308] sm:$0xff]
  %v119 = vld [vmem:[%s1 + $0x310] sm:$0xff]
  %v120 = vld [vmem:[%s1 + $0x318] sm:$0xff]
  %v121 = vld [vmem:[%s1 + $0x320] sm:$0xff]
  %v122 = vld [vmem:[%s1 + $0x328] sm:$0xff]
  %v123 = vld [vmem:[%s1 + $0x330] sm:$0xff]
  %v124 = vld [vmem:[%s1 + $0x338] sm:$0xff]
  %v125 = vld [vmem:[%s1 + $0x340] sm:$0xff]
  %v126 = vld [vmem:[%s1 + $0x348] sm:$0xff]
  %v127 = vld [vmem:[%s1 + $0x350] sm:$0xff]
  %v128 = vld [vmem:[%s1 + $0x358] sm:$0xff]
  %v129 = vld [vmem:[%s1 + $0x360] sm:$0xff]
  %v130 = vld [vmem:[%s1 + $0x368] sm:$0xff]
  %v131 = vld [vmem:[%s1 + $0x370] sm:$0xff]
  %v132 = vld [vmem:[%s1 + $0x378] sm:$0xff]
  %v133 = vld [vmem:[%s1 + $0x380] sm:$0xff]
  %v134 = vld [vmem:[%s1 + $0x388] sm:$0xff]
  %v135 = vld [vmem:[%s1 + $0x390] sm:$0xff]
  %v136 = vld [vmem:[%s1 + $0x398] sm:$0xff]
  %v137 = vld [vmem:[%s1 + $0x3a0] sm:$0xff]
  %v138 = vld [vmem:[%s1 + $0x3a8] sm:$0xff]
  %v139 = vld [vmem:[%s1 + $0x3b0] sm:$0xff]
  %v140 = vld [vmem:[%s1 + $0x3b8] sm:$0xff]
  %v141 = vld [vmem:[%s1 + $0x3c0] sm:$0xff]
  %v142 = vld [vmem:[%s1 + $0x3c8] sm:$0xff]
  %v143 = vld [vmem:[%s1 + $0x3d0] sm:$0xff]
  %v144 = vld [vmem:[%s1 + $0x3d8] sm:$0xff]
  %v145 = vld [vmem:[%s1 + $0x3e0] sm:$0xff]
  %v146 = vld [vmem:[%s1 + $0x3e8] sm:$0xff]
  %v147 = vld [vmem:[%s1 + $0x3f0] sm:$0xff]
  %v148 = vld [vmem:[%s1 + $0x3f8] sm:$0xff]
  %v149 = vld [vmem:[%s1 + $0x400] sm:$0xff]
  %v150 = vld [vmem:[%s1 + $0x408] sm:$0xff]
  %v151 = vld [vmem:[%s1 + $0x410] sm:$0xff]
  %v152 = vld [vmem:[%s1 + $0x418] sm:$0xff]
  %v153 = vld [vmem:[%s1 + $0x420] sm:$0xff]
  %v154 = vld [vmem:[%s1 + $0x428] sm:$0xff]
  %v155 = vld [vmem:[%s1 + $0x430] sm:$0xff]
  %v156 = vld [vmem:[%s1 + $0x438] sm:$0xff]
  %v157 = vld [vmem:[%s1 + $0x440] sm:$0xff]
  %v158 = vld [vmem:[%s1 + $0x448] sm:$0xff]
  %v159 = vld [vmem:[%s1 + $0x450] sm:$0xff]
  %v160 = vld [vmem:[%s1 + $0x458] sm:$0xff]
  %v161 = vld [vmem:[%s1 + $0x460] sm:$0xff]
  %v162 = vld [vmem:[%s1 + $0x468] sm:$0xff]
  %v163 = vld [vmem:[%s1 + $0x470] sm:$0xff]
  %v164 = vld [vmem:[%s1 + $0x478] sm:$0xff]
  %v165 = vld [vmem:[%s1 + $0x480] sm:$0xff]
  %v166 = vld [vmem:[%s1 + $0x488] sm:$0xff]
  %v167 = vld [vmem:[%s1 + $0x490] sm:$0xff]
  %v168 = vld [vmem:[%s1 + $0x498] sm:$0xff]
  %v169 = vld [vmem:[%s1 + $0x4a0] sm:$0xff]
  %v170 = vld [vmem:[%s1 + $0x4a8] sm:$0xff]
  %v171 = vld [vmem:[%s1 + $0x4b0] sm:$0xff]
  %v172 = vld [vmem:[%s1 + $0x4b8] sm:$0xff]
  %v173 = vld [vmem:[%s1 + $0x4c0] sm:$0xff]
  %v174 = vld [vmem:[%s1 + $0x4c8] sm:$0xff]
  %v175 = vld [vmem:[%s1 + $0x4d0] sm:$0xff]
  %v176 = vld [vmem:[%s1 + $0x4d8] sm:$0xff]
  %v177 = vld [vmem:[%s1 + $0x4e0] sm:$0xff]
  %v178 = vld [vmem:[%s1 + $0x4e8] sm:$0xff]
  %v179 = vld [vmem:[%s1 + $0x4f0] sm:$0xff]
  %v180 = vld [vmem:[%s1 + $0x4f8] sm:$0xff]
  %v181 = vld [vmem:[%s1 + $0x500] sm:$0xff]
  %v182 = vld [vmem:[%s1 + $0x508] sm:$0xff]
  %v183 = vld [vmem:[%s1 + $0x510] sm:$0xff]
  %v184 = vld [vmem:[%s1 + $0x518] sm:$0xff]
  %v185 = vld [vmem:[%s1 + $0x520] sm:$0xff]
  %v186 = vld [vmem:[%s1 + $0x528] sm:$0xff]
  %v187 = vld [vmem:[%s1 + $0x530] sm:$0xff]
  %v188 = vld [vmem:[%s1 + $0x538] sm:$0xff]
  %v189 = vld [vmem:[%s1 + $0x540] sm:$0xff]
  %v190 = vld [vmem:[%s1 + $0x548] sm:$0xff]
  %v191 = vld [vmem:[%s1 + $0x550] sm:$0xff]
  %v192 = vld [vmem:[%s1 + $0x558] sm:$0xff]
  %v193 = vld [vmem:[%s1 + $0x560] sm:$0xff]
  %v194 = vld [vmem:[%s1 + $0x568] sm:$0xff]
  %v195 = vld [vmem:[%s1 + $0x570] sm:$0xff]
  %v196 = vld [vmem:[%s1 + $0x578] sm:$0xff]
  %v197 = vld [vmem:[%s1 + $0x580] sm:$0xff]
  %v198 = vld [vmem:[%s1 + $0x588] sm:$0xff]
  %v199 = vld [vmem:[%s1 + $0x590] sm:$0xff]
  %v200 = vld [vmem:[%s1 + $0x598] sm:$0xff]
  %v201 = vld [vmem:[%s1 + $0x5a0] sm:$0xff]
  %v202 = vld [vmem:[%s1 + $0x5a8] sm:$0xff]
  %v203 = vld [vmem:[%s1 + $0x5b0] sm:$0xff]
  %v204 = vld [vmem:[%s1 + $0x5b8] sm:$0xff]
  %v205 = vld [vmem:[%s1 + $0x5c0] sm:$0xff]
  %v206 = vld [vmem:[%s1 + $0x5c8] sm:$0xff]
  %v207 = vld [vmem:[%s1 + $0x5d0] sm:$0xff]
  %v208 = vld [vmem:[%s1 + $0x5d8] sm:$0xff]
  %v209 = vld [vmem:[%s1 + $0x5e0] sm:$0xff]
  %v210 = vld [vmem:[%s1 + $0x5e8] sm:$0xff]
  %v211 = vld [vmem:[%s1 + $0x5f0] sm:$0xff]
  %v212 = vld [vmem:[%s1 + $0x5f8] sm:$0xff]
  %v213 = vld [vmem:[%s1 + $0x600] sm:$0xff]
  %v214 = vld [vmem:[%s1 + $0x608] sm:$0xff]
  %v215 = vld [vmem:[%s1 + $0x610] sm:$0xff]
  %v216 = vld [vmem:[%s1 + $0x618] sm:$0xff]
  %v217 = vld [vmem:[%s1 + $0x620] sm:$0xff]
  %v218 = vld [vmem:[%s1 + $0x628] sm:$0xff]
  %v219 = vld [vmem:[%s1 + $0x630] sm:$0xff]
  %v220 = vld [vmem:[%s1 + $0x638] sm:$0xff]
  %v221 = vld [vmem:[%s1 + $0x640] sm:$0xff]
  %v222 = vld [vmem:[%s1 + $0x648] sm:$0xff]
  %v223 = vld [vmem:[%s1 + $0x650] sm:$0xff]
  %v224 = vld [vmem:[%s1 + $0x658] sm:$0xff]
  %v225 = vld [vmem:[%s1 + $0x660] sm:$0xff]
  %v226 = vld [vmem:[%s1 + $0x668] sm:$0xff]
  %v227 = vld [vmem:[%s1 + $0x670] sm:$0xff]
  %v228 = vld [vmem:[%s1 + $0x678] sm:$0xff]
  %v229 = vld [vmem:[%s1 + $0x680] sm:$0xff]
  %v230 = vld [vmem:[%s1 + $0x688] sm:$0xff]
  %v231 = vld [vmem:[%s1 + $0x690] sm:$0xff]
  %v232 = vld [vmem:[%s1 + $0x698] sm:$0xff]
  %v233 = vld [vmem:[%s1 + $0x6a0] sm:$0xff]
  %v234 = vld [vmem:[%s1 + $0x6a8] sm:$0xff]
  %v235 = vld [vmem:[%s1 + $0x6b0] sm:$0xff]
  %v236 = vld [vmem:[%s1 + $0x6b8] sm:$0xff]
  %v237 = vld [vmem:[%s1 + $0x6c0] sm:$0xff]
  %v238 = vld [vmem:[%s1 + $0x6c8] sm:$0xff]
  %v239 = vld [vmem:[%s1 + $0x6d0] sm:$0xff]
  %v240 = vld [vmem:[%s1 + $0x6d8] sm:$0xff]
  %v241 = vld [vmem:[%s1 + $0x6e0] sm:$0xff]
  %v242 = vld [vmem:[%s1 + $0x6e8] sm:$0xff]
  %v243 = vld [vmem:[%s1 + $0x6f0] sm:$0xff]
  %v244 = vld [vmem:[%s1 + $0x6f8] sm:$0xff]
  %v245 = vld [vmem:[%s1 + $0x700] sm:$0xff]
  %v246 = vld [vmem:[%s1 + $0x708] sm:$0xff]
  %v247 = vld [vmem:[%s1 + $0x710] sm:$0xff]
  %v248 = vld [vmem:[%s1 + $0x718] sm:$0xff]
  %v249 = vld [vmem:[%s1 + $0x720] sm:$0xff]
  %v250 = vld [vmem:[%s1 + $0x728] sm:$0xff]
  %v251 = vld [vmem:[%s1 + $0x730] sm:$0xff]
  %v252 = vld [vmem:[%s1 + $0x738] sm:$0xff]
  %v253 = vld [vmem:[%s1 + $0x740] sm:$0xff]
  %v254 = vld [vmem:[%s1 + $0x748] sm:$0xff]
  %v255 = vld [vmem:[%s1 + $0x750] sm:$0xff]
  %v256 = vld [vmem:[%s1 + $0x758] sm:$0xff]
  %v257 = vld [vmem:[%s1 + $0x760] sm:$0xff]
  %v258 = vld [vmem:[%s1 + $0x768] sm:$0xff]
  %v259 = vld [vmem:[%s1 + $0x770] sm:$0xff]
  %v260 = vld [vmem:[%s1 + $0x778] sm:$0xff]
  %v261 = vld [vmem:[%s1 + $0x780] sm:$0xff]
  %v262 = vld [vmem:[%s1 + $0x788] sm:$0xff]
  %v263 = vld [vmem:[%s1 + $0x790] sm:$0xff]
  %v264 = vld [vmem:[%s1 + $0x798] sm:$0xff]
  %v265 = vld [vmem:[%s1 + $0x7a0] sm:$0xff]
  %v266 = vld [vmem:[%s1 + $0x7a8] sm:$0xff]
  %v267 = vld [vmem:[%s1 + $0x7b0] sm:$0xff]
  %v268 = vld [vmem:[%s1 + $0x7b8] sm:$0xff]
  %v269 = vld [vmem:[%s1 + $0x7c0] sm:$0xff]
  %v270 = vld [vmem:[%s1 + $0x7c8] sm:$0xff]
  %v271 = vld [vmem:[%s1 + $0x7d0] sm:$0xff]
  %v272 = vld [vmem:[%s1 + $0x7d8] sm:$0xff]
  %v273 = vld [vmem:[%s1 + $0x7e0] sm:$0xff]
  %v274 = vld [vmem:[%s1 + $0x7e8] sm:$0xff]
  %v275 = vld [vmem:[%s1 + $0x7f0] sm:$0xff]
  %v276 = vld [vmem:[%s1 + $0x7f8] sm:$0xff]
  %v277 = vld [vmem:[%s1 + $0x800] sm:$0xff]
  %v278 = vld [vmem:[%s1 + $0x808] sm:$0xff]
  %v279 = vld [vmem:[%s1 + $0x810] sm:$0xff]
  %v280 = vld [vmem:[%s1 + $0x818] sm:$0xff]
  %v281 = vld [vmem:[%s1 + $0x820] sm:$0xff]
  %v282 = vld [vmem:[%s1 + $0x828] sm:$0xff]
  %v283 = vld [vmem:[%s1 + $0x830] sm:$0xff]
  %v284 = vld [vmem:[%s1 + $0x838] sm:$0xff]
  %v285 = vld [vmem:[%s1 + $0x840] sm:$0xff]
  %v286 = vld [vmem:[%s1 + $0x848] sm:$0xff]
  %v287 = vld [vmem:[%s1 + $0x850] sm:$0xff]
  %v288 = vld [vmem:[%s1 + $0x858] sm:$0xff]
  %v289 = vld [vmem:[%s1 + $0x860] sm:$0xff]
  %v290 = vld [vmem:[%s1 + $0x868] sm:$0xff]
  %v291 = vld [vmem:[%s1 + $0x870] sm:$0xff]
  %v292 = vld [vmem:[%s1 + $0x878] sm:$0xff]
  %v293 = vld [vmem:[%s1 + $0x880] sm:$0xff]
  %v294 = vld [vmem:[%s1 + $0x888] sm:$0xff]
  %v295 = vld [vmem:[%s1 + $0x890] sm:$0xff]
  %v296 = vld [vmem:[%s1 + $0x898] sm:$0xff]
  %v297 = vld [vmem:[%s1 + $0x8a0] sm:$0xff]
  %v298 = vld [vmem:[%s1 + $0x8a8] sm:$0xff]
  %v299 = vld [vmem:[%s1 + $0x8b0] sm:$0xff]
  %v300 = vld [vmem:[%s1 + $0x8b8] sm:$0xff]
  %v301 = vld [vmem:[%s1 + $0x8c0] sm:$0xff]
  %v302 = vld [vmem:[%s1 + $0x8c8] sm:$0xff]
  %v303 = vld [vmem:[%s1 + $0x8d0] sm:$0xff]
  %v304 = vld [vmem:[%s1 + $0x8d8] sm:$0xff]
  %v305 = vld [vmem:[%s1 + $0x8e0] sm:$0xff]
  %v306 = vld [vmem:[%s1 + $0x8e8] sm:$0xff]
  %v307 = vld [vmem:[%s1 + $0x8f0] sm:$0xff]
  %v308 = vld [vmem:[%s1 + $0x8f8] sm:$0xff]
  %v309 = vld [vmem:[%s1 + $0x900] sm:$0xff]
  %v310 = vld [vmem:[%s1 + $0x908] sm:$0xff]
  %v311 = vld [vmem:[%s1 + $0x910] sm:$0xff]
  %v312 = vld [vmem:[%s1 + $0x918] sm:$0xff]
  %v313 = vld [vmem:[%s1 + $0x920] sm:$0xff]
  %v314 = vld [vmem:[%s1 + $0x928] sm:$0xff]
  %v315 = vld [vmem:[%s1 + $0x930] sm:$0xff]
  %v316 = vld [vmem:[%s1 + $0x938] sm:$0xff]
  %v317 = vld [vmem:[%s1 + $0x940] sm:$0xff]
  %v318 = vld [vmem:[%s1 + $0x948] sm:$0xff]
  %v319 = vld [vmem:[%s1 + $0x950] sm:$0xff]
  %v320 = vld [vmem:[%s1 + $0x958] sm:$0xff]
  %v321 = vld [vmem:[%s1 + $0x960] sm:$0xff]
  %v322 = vld [vmem:[%s1 + $0x968] sm:$0xff]
  %v323 = vld [vmem:[%s1 + $0x970] sm:$0xff]
  %v324 = vld [vmem:[%s1 + $0x978] sm:$0xff]
  %v325 = vld [vmem:[%s1 + $0x980] sm:$0xff]
  %v326 = vld [vmem:[%s1 + $0x988] sm:$0xff]
  %v327 = vld [vmem:[%s1 + $0x990] sm:$0xff]
  %v328 = vld [vmem:[%s1 + $0x998] sm:$0xff]
  %v329 = vld [vmem:[%s1 + $0x9a0] sm:$0xff]
  %v330 = vld [vmem:[%s1 + $0x9a8] sm:$0xff]
  %v331 = vld [vmem:[%s1 + $0x9b0] sm:$0xff]
  %v332 = vld [vmem:[%s1 + $0x9b8] sm:$0xff]
  %v333 = vld [vmem:[%s1 + $0x9c0] sm:$0xff]
  %v334 = vld [vmem:[%s1 + $0x9c8] sm:$0xff]
  %v335 = vld [vmem:[%s1 + $0x9d0] sm:$0xff]
  %v336 = vld [vmem:[%s1 + $0x9d8] sm:$0xff]
  %v337 = vld [vmem:[%s1 + $0x9e0] sm:$0xff]
  %v338 = vld [vmem:[%s1 + $0x9e8] sm:$0xff]
  %v339 = vld [vmem:[%s1 + $0x9f0] sm:$0xff]
  %v340 = vld [vmem:[%s1 + $0x9f8] sm:$0xff]
  %v341 = vld [vmem:[%s1 + $0xa00] sm:$0xff]
  %v342 = vld [vmem:[%s1 + $0xa08] sm:$0xff]
  %v343 = vld [vmem:[%s1 + $0xa10] sm:$0xff]
  %v344 = vld [vmem:[%s1 + $0xa18] sm:$0xff]
  %v345 = vld [vmem:[%s1 + $0xa20] sm:$0xff]
  %v346 = vld [vmem:[%s1 + $0xa28] sm:$0xff]
  %v347 = vld [vmem:[%s1 + $0xa30] sm:$0xff]
  %v348 = vld [vmem:[%s1 + $0xa38] sm:$0xff]
  %v349 = vld [vmem:[%s1 + $0xa40] sm:$0xff]
  %v350 = vld [vmem:[%s1 + $0xa48] sm:$0xff]
  %v351 = vld [vmem:[%s1 + $0xa50] sm:$0xff]
  %v352 = vld [vmem:[%s1 + $0xa58] sm:$0xff]
  %v353 = vld [vmem:[%s1 + $0xa60] sm:$0xff]
  %v354 = vld [vmem:[%s1 + $0xa68] sm:$0xff]
  %v355 = vld [vmem:[%s1 + $0xa70] sm:$0xff]
  %v356 = vld [vmem:[%s1 + $0xa78] sm:$0xff]
  %v357 = vld [vmem:[%s1 + $0xa80] sm:$0xff]
  %v358 = vld [vmem:[%s1 + $0xa88] sm:$0xff]
  %v359 = vld [vmem:[%s1 + $0xa90] sm:$0xff]
  %v360 = vld [vmem:[%s1 + $0xa98] sm:$0xff]
  %v361 = vld [vmem:[%s1 + $0xaa0] sm:$0xff]
  %v362 = vld [vmem:[%s1 + $0xaa8] sm:$0xff]
  %v363 = vld [vmem:[%s1 + $0xab0] sm:$0xff]
  %v364 = vld [vmem:[%s1 + $0xab8] sm:$0xff]
  %v365 = vld [vmem:[%s1 + $0xac0] sm:$0xff]
  %v366 = vld [vmem:[%s1 + $0xac8] sm:$0xff]
  %v367 = vld [vmem:[%s1 + $0xad0] sm:$0xff]
  %v368 = vld [vmem:[%s1 + $0xad8] sm:$0xff]
  %v369 = vld [vmem:[%s1 + $0xae0] sm:$0xff]
  %v370 = vld [vmem:[%s1 + $0xae8] sm:$0xff]
  %v371 = vld [vmem:[%s1 + $0xaf0] sm:$0xff]
  %v372 = vld [vmem:[%s1 + $0xaf8] sm:$0xff]
  %v373 = vld [vmem:[%s1 + $0xb00] sm:$0xff]
  %v374 = vld [vmem:[%s1 + $0xb08] sm:$0xff]
  %v375 = vld [vmem:[%s1 + $0xb10] sm:$0xff]
  %v376 = vld [vmem:[%s1 + $0xb18] sm:$0xff]
  %v377 = vld [vmem:[%s1 + $0xb20] sm:$0xff]
  %v378 = vld [vmem:[%s1 + $0xb28] sm:$0xff]
  %v379 = vld [vmem:[%s1 + $0xb30] sm:$0xff]
  %v380 = vld [vmem:[%s1 + $0xb38] sm:$0xff]
  %v381 = vld [vmem:[%s1 + $0xb40] sm:$0xff]
  %v382 = vld [vmem:[%s1 + $0xb48] sm:$0xff]
  %v383 = vld [vmem:[%s1 + $0xb50] sm:$0xff]
  %v384 = vld [vmem:[%s1 + $0xb58] sm:$0xff]
  %v385 = vld [vmem:[%s1 + $0xb60] sm:$0xff]
  %v386 = vld [vmem:[%s1 + $0xb68] sm:$0xff]
  %v387 = vld [vmem:[%s1 + $0xb70] sm:$0xff]
  %v388 = vld [vmem:[%s1 + $0xb78] sm:$0xff]
  %v389 = vld [vmem:[%s1 + $0xb80] sm:$0xff]
  %v390 = vld [vmem:[%s1 + $0xb88] sm:$0xff]
  %v391 = vld [vmem:[%s1 + $0xb90] sm:$0xff]
  %v392 = vld [vmem:[%s1 + $0xb98] sm:$0xff]
  %v393 = vld [vmem:[%s1 + $0xba0] sm:$0xff]
  %v394 = vld [vmem:[%s1 + $0xba8] sm:$0xff]
  %v395 = vld [vmem:[%s1 + $0xbb0] sm:$0xff]
  %v396 = vld [vmem:[%s1 + $0xbb8] sm:$0xff]
  %v397 = vld [vmem:[%s1 + $0xbc0] sm:$0xff]
  %v398 = vld [vmem:[%s1 + $0xbc8] sm:$0xff]
  %v399 = vld [vmem:[%s1 + $0xbd0] sm:$0xff]
  %v400 = vld [vmem:[%s1 + $0xbd8] sm:$0xff]
  %v401 = vld [vmem:[%s1 + $0xbe0] sm:$0xff]
  %v402 = vld [vmem:[%s1 + $0xbe8] sm:$0xff]
  %v403 = vld [vmem:[%s1 + $0xbf0] sm:$0xff]
  %v404 = vld [vmem:[%s1 + $0xbf8] sm:$0xff]
  %v405 = vld [vmem:[%s1 + $0xc00] sm:$0xff]
  %v406 = vld [vmem:[%s1 + $0xc08] sm:$0xff]
  %v407 = vld [vmem:[%s1 + $0xc10] sm:$0xff]
  %v408 = vld [vmem:[%s1 + $0xc18] sm:$0xff]
  %v409 = vld [vmem:[%s1 + $0xc20] sm:$0xff]
  %v410 = vld [vmem:[%s1 + $0xc28] sm:$0xff]
  %v411 = vld [vmem:[%s1 + $0xc30] sm:$0xff]
  %v412 = vld [vmem:[%s1 + $0xc38] sm:$0xff]
  %v413 = vld [vmem:[%s1 + $0xc40] sm:$0xff]
  %v414 = vld [vmem:[%s1 + $0xc48] sm:$0xff]
  %v415 = vld [vmem:[%s1 + $0xc50] sm:$0xff]
  %v416 = vld [vmem:[%s1 + $0xc58] sm:$0xff]
  %v417 = vld [vmem:[%s1 + $0xc60] sm:$0xff]
  %v418 = vld [vmem:[%s1 + $0xc68] sm:$0xff]
  %v419 = vld [vmem:[%s1 + $0xc70] sm:$0xff]
  %v420 = vld [vmem:[%s1 + $0xc78] sm:$0xff]
  %v421 = vld [vmem:[%s1 + $0xc80] sm:$0xff]
  %v422 = vld [vmem:[%s1 + $0xc88] sm:$0xff]
  %v423 = vld [vmem:[%s1 + $0xc90] sm:$0xff]
  %v424 = vld [vmem:[%s1 + $0xc98] sm:$0xff]
  %v425 = vld [vmem:[%s1 + $0xca0] sm:$0xff]
  %v426 = vld [vmem:[%s1 + $0xca8] sm:$0xff]
  %v427 = vld [vmem:[%s1 + $0xcb0] sm:$0xff]
  %v428 = vld [vmem:[%s1 + $0xcb8] sm:$0xff]
  %v429 = vld [vmem:[%s1 + $0xcc0] sm:$0xff]
  %v430 = vld [vmem:[%s1 + $0xcc8] sm:$0xff]
  %v431 = vld [vmem:[%s1 + $0xcd0] sm:$0xff]
  %v432 = vld [vmem:[%s1 + $0xcd8] sm:$0xff]
  %v433 = vld [vmem:[%s1 + $0xce0] sm:$0xff]
  %v434 = vld [vmem:[%s1 + $0xce8] sm:$0xff]
  %v435 = vld [vmem:[%s1 + $0xcf0] sm:$0xff]
  %v436 = vld [vmem:[%s1 + $0xcf8] sm:$0xff]
  %v437 = vld [vmem:[%s1 + $0xd00] sm:$0xff]
  %v438 = vld [vmem:[%s1 + $0xd08] sm:$0xff]
  %v439 = vld [vmem:[%s1 + $0xd10] sm:$0xff]
  %v440 = vld [vmem:[%s1 + $0xd18] sm:$0xff]
  %v441 = vld [vmem:[%s1 + $0xd20] sm:$0xff]
  %v442 = vld [vmem:[%s1 + $0xd28] sm:$0xff]
  %v443 = vld [vmem:[%s1 + $0xd30] sm:$0xff]
  %v444 = vld [vmem:[%s1 + $0xd38] sm:$0xff]
  %v445 = vld [vmem:[%s1 + $0xd40] sm:$0xff]
  %v446 = vld [vmem:[%s1 + $0xd48] sm:$0xff]
  %v447 = vld [vmem:[%s1 + $0xd50] sm:$0xff]
  %v448 = vld [vmem:[%s1 + $0xd58] sm:$0xff]
  %v449 = vld [vmem:[%s1 + $0xd60] sm:$0xff]
  %v450 = vld [vmem:[%s1 + $0xd68] sm:$0xff]
  %v451 = vld [vmem:[%s1 + $0xd70] sm:$0xff]
  %v452 = vld [vmem:[%s1 + $0xd78] sm:$0xff]
  %v453 = vld [vmem:[%s1 + $0xd80] sm:$0xff]
  %v454 = vld [vmem:[%s1 + $0xd88] sm:$0xff]
  %v455 = vld [vmem:[%s1 + $0xd90] sm:$0xff]
  %v456 = vld [vmem:[%s1 + $0xd98] sm:$0xff]
  %v457 = vld [vmem:[%s1 + $0xda0] sm:$0xff]
  %v458 = vld [vmem:[%s1 + $0xda8] sm:$0xff]
  %v459 = vld [vmem:[%s1 + $0xdb0] sm:$0xff]
  %v460 = vld [vmem:[%s1 + $0xdb8] sm:$0xff]
  %v461 = vld [vmem:[%s1 + $0xdc0] sm:$0xff]
  %v462 = vld [vmem:[%s1 + $0xdc8] sm:$0xff]
  %v463 = vld [vmem:[%s1 + $0xdd0] sm:$0xff]
  %v464 = vld [vmem:[%s1 + $0xdd8] sm:$0xff]
  %v465 = vld [vmem:[%s1 + $0xde0] sm:$0xff]
  %v466 = vld [vmem:[%s1 + $0xde8] sm:$0xff]
  %v467 = vld [vmem:[%s1 + $0xdf0] sm:$0xff]
  %v468 = vld [vmem:[%s1 + $0xdf8] sm:$0xff]
  %v469 = vld [vmem:[%s1 + $0xe00] sm:$0xff]
  %v470 = vld [vmem:[%s1 + $0xe08] sm:$0xff]
  %v471 = vld [vmem:[%s1 + $0xe10] sm:$0xff]
  %v472 = vld [vmem:[%s1 + $0xe18] sm:$0xff]
  %v473 = vld [vmem:[%s1 + $0xe20] sm:$0xff]
  %v474 = vld [vmem:[%s1 + $0xe28] sm:$0xff]
  %v475 = vld [vmem:[%s1 + $0xe30] sm:$0xff]
  %v476 = vld [vmem:[%s1 + $0xe38] sm:$0xff]
  %v477 = vld [vmem:[%s1 + $0xe40] sm:$0xff]
  %v478 = vld [vmem:[%s1 + $0xe48] sm:$0xff]
  %v479 = vld [vmem:[%s1 + $0xe50] sm:$0xff]
  %v480 = vld [vmem:[%s1 + $0xe58] sm:$0xff]
  %v481 = vld [vmem:[%s1 + $0xe60] sm:$0xff]
  %v482 = vld [vmem:[%s1 + $0xe68] sm:$0xff]
  %v483 = vld [vmem:[%s1 + $0xe70] sm:$0xff]
  %v484 = vld [vmem:[%s1 + $0xe78] sm:$0xff]
  %v485 = vld [vmem:[%s1 + $0xe80] sm:$0xff]
  %v486 = vld [vmem:[%s1 + $0xe88] sm:$0xff]
  %v487 = vld [vmem:[%s1 + $0xe90] sm:$0xff]
  %v488 = vld [vmem:[%s1 + $0xe98] sm:$0xff]
  %v489 = vld [vmem:[%s1 + $0xea0] sm:$0xff]
  %v490 = vld [vmem:[%s1 + $0xea8] sm:$0xff]
  %v491 = vld [vmem:[%s1 + $0xeb0] sm:$0xff]
  %v492 = vld [vmem:[%s1 + $0xeb8] sm:$0xff]
  %v493 = vld [vmem:[%s1 + $0xec0] sm:$0xff]
  %v494 = vld [vmem:[%s1 + $0xec8] sm:$0xff]
  %v495 = vld [vmem:[%s1 + $0xed0] sm:$0xff]
  %v496 = vld [vmem:[%s1 + $0xed8] sm:$0xff]
  %v497 = vld [vmem:[%s1 + $0xee0] sm:$0xff]
  %v498 = vld [vmem:[%s1 + $0xee8] sm:$0xff]
  %v499 = vld [vmem:[%s1 + $0xef0] sm:$0xff]
  %v500 = vld [vmem:[%s1 + $0xef8] sm:$0xff]
  %v501 = vld [vmem:[%s1 + $0xf00] sm:$0xff]
  %v502 = vld [vmem:[%s1 + $0xf08] sm:$0xff]
  %v503 = vld [vmem:[%s1 + $0xf10] sm:$0xff]
  %v504 = vld [vmem:[%s1 + $0xf18] sm:$0xff]
  %v505 = vld [vmem:[%s1 + $0xf20] sm:$0xff]
  %v506 = vld [vmem:[%s1 + $0xf28] sm:$0xff]
  %v507 = vld [vmem:[%s1 + $0xf30] sm:$0xff]
  %v508 = vld [vmem:[%s1 + $0xf38] sm:$0xff]
  %v509 = vld [vmem:[%s1 + $0xf40] sm:$0xff]
  %v510 = vld [vmem:[%s1 + $0xf48] sm:$0xff]
  %v511 = vld [vmem:[%s1 + $0xf50] sm:$0xff]
  %v512 = vld [vmem:[%s1 + $0xf58] sm:$0xff]
  %v513 = vld [vmem:[%s1 + $0xf60] sm:$0xff]
  %v514 = vld [vmem:[%s1 + $0xf68] sm:$0xff]
  %v515 = vld [vmem:[%s1 + $0xf70] sm:$0xff]
  %v516 = vld [vmem:[%s1 + $0xf78] sm:$0xff]
  %v517 = vld [vmem:[%s1 + $0xf80] sm:$0xff]
  %v518 = vld [vmem:[%s1 + $0xf88] sm:$0xff]
  %v519 = vld [vmem:[%s1 + $0xf90] sm:$0xff]
  %v520 = vld [vmem:[%s1 + $0xf98] sm:$0xff]
  %v521 = vld [vmem:[%s1 + $0xfa0] sm:$0xff]
  %v522 = vld [vmem:[%s1 + $0xfa8] sm:$0xff]
  %v523 = vld [vmem:[%s1 + $0xfb0] sm:$0xff]
  %v524 = vld [vmem:[%s1 + $0xfb8] sm:$0xff]
  %v525 = vld [vmem:[%s1 + $0xfc0] sm:$0xff]
  %v526 = vld [vmem:[%s1 + $0xfc8] sm:$0xff]
  %v527 = vld [vmem:[%s1 + $0xfd0] sm:$0xff]
  %v528 = vld [vmem:[%s1 + $0xfd8] sm:$0xff]
  %v529 = vld [vmem:[%s1 + $0xfe0] sm:$0xff]
  %v530 = vld [vmem:[%s1 + $0xfe8] sm:$0xff]
  %v531 = vld [vmem:[%s1 + $0xff0] sm:$0xff]
  %v532 = vld [vmem:[%s1 + $0xff8] sm:$0xff]
  %v533 = vld [vmem:[%s1 + $0x1000] sm:$0xff]
  %v534 = vld [vmem:[%s1 + $0x1008] sm:$0xff]
  %v535 = vld [vmem:[%s1 + $0x1010] sm:$0xff]
  %v536 = vld [vmem:[%s1 + $0x1018] sm:$0xff]
  %v537 = vld [vmem:[%s1 + $0x1020] sm:$0xff]
  %v538 = vld [vmem:[%s1 + $0x1028] sm:$0xff]
  %v539 = vld [vmem:[%s1 + $0x1030] sm:$0xff]
  %v540 = vld [vmem:[%s1 + $0x1038] sm:$0xff]
  %v541 = vld [vmem:[%s1 + $0x1040] sm:$0xff]
  %v542 = vld [vmem:[%s1 + $0x1048] sm:$0xff]
  %v543 = vld [vmem:[%s1 + $0x1050] sm:$0xff]
  %v544 = vld [vmem:[%s1 + $0x1058] sm:$0xff]
  %v545 = vld [vmem:[%s1 + $0x1060] sm:$0xff]
  %v546 = vld [vmem:[%s1 + $0x1068] sm:$0xff]
  %v547 = vld [vmem:[%s1 + $0x1070] sm:$0xff]
  %v548 = vld [vmem:[%s1 + $0x1078] sm:$0xff]
  %v549 = vld [vmem:[%s1 + $0x1080] sm:$0xff]
  %v550 = vld [vmem:[%s1 + $0x1088] sm:$0xff]
  %v551 = vld [vmem:[%s1 + $0x1090] sm:$0xff]
  %v552 = vld [vmem:[%s1 + $0x1098] sm:$0xff]
  %v553 = vld [vmem:[%s1 + $0x10a0] sm:$0xff]
  %v554 = vld [vmem:[%s1 + $0x10a8] sm:$0xff]
  %v555 = vld [vmem:[%s1 + $0x10b0] sm:$0xff]
  %v556 = vld [vmem:[%s1 + $0x10b8] sm:$0xff]
  %v557 = vld [vmem:[%s1 + $0x10c0] sm:$0xff]
  %v558 = vld [vmem:[%s1 + $0x10c8] sm:$0xff]
  %v559 = vld [vmem:[%s1 + $0x10d0] sm:$0xff]
  %v560 = vld [vmem:[%s1 + $0x10d8] sm:$0xff]
  %v561 = vld [vmem:[%s1 + $0x10e0] sm:$0xff]
  %v562 = vld [vmem:[%s1 + $0x10e8] sm:$0xff]
  %v563 = vld [vmem:[%s1 + $0x10f0] sm:$0xff]
  %v564 = vld [vmem:[%s1 + $0x10f8] sm:$0xff]
  %v565 = vld [vmem:[%s1 + $0x1100] sm:$0xff]
  %v566 = vld [vmem:[%s1 + $0x1108] sm:$0xff]
  %v567 = vld [vmem:[%s1 + $0x1110] sm:$0xff]
  %v568 = vld [vmem:[%s1 + $0x1118] sm:$0xff]
  %v569 = vld [vmem:[%s1 + $0x1120] sm:$0xff]
  %v570 = vld [vmem:[%s1 + $0x1128] sm:$0xff]
  %v571 = vld [vmem:[%s1 + $0x1130] sm:$0xff]
  %v572 = vld [vmem:[%s1 + $0x1138] sm:$0xff]
  %v573 = vld [vmem:[%s1 + $0x1140] sm:$0xff]
  %v574 = vld [vmem:[%s1 + $0x1148] sm:$0xff]
  %v575 = vld [vmem:[%s1 + $0x1150] sm:$0xff]
  %v576 = vld [vmem:[%s1 + $0x1158] sm:$0xff]
  %v577 = vld [vmem:[%s1 + $0x1160] sm:$0xff]
  %v578 = vld [vmem:[%s1 + $0x1168] sm:$0xff]
  %v579 = vld [vmem:[%s1 + $0x1170] sm:$0xff]
  %v580 = vld [vmem:[%s1 + $0x1178] sm:$0xff]
  %v581 = vld [vmem:[%s1 + $0x1180] sm:$0xff]
  %v582 = vld [vmem:[%s1 + $0x1188] sm:$0xff]
  %v583 = vld [vmem:[%s1 + $0x1190] sm:$0xff]
  %v584 = vld [vmem:[%s1 + $0x1198] sm:$0xff]
  %v585 = vld [vmem:[%s1 + $0x11a0] sm:$0xff]
  %v586 = vld [vmem:[%s1 + $0x11a8] sm:$0xff]
  %v587 = vld [vmem:[%s1 + $0x11b0] sm:$0xff]
  %v588 = vld [vmem:[%s1 + $0x11b8] sm:$0xff]
  %v589 = vld [vmem:[%s1 + $0x11c0] sm:$0xff]
  %v590 = vld [vmem:[%s1 + $0x11c8] sm:$0xff]
  %v591 = vld [vmem:[%s1 + $0x11d0] sm:$0xff]
  %v592 = vld [vmem:[%s1 + $0x11d8] sm:$0xff]
  %v593 = vld [vmem:[%s1 + $0x11e0] sm:$0xff]
  %v594 = vld [vmem:[%s1 + $0x11e8] sm:$0xff]
  %v595 = vld [vmem:[%s1 + $0x11f0] sm:$0xff]
  %v596 = vld [vmem:[%s1 + $0x11f8] sm:$0xff]
  %v597 = vld [vmem:[%s1 + $0x1200] sm:$0xff]
  %v598 = vld [vmem:[%s1 + $0x1208] sm:$0xff]
  %v599 = vld [vmem:[%s1 + $0x1210] sm:$0xff]
  %v600 = vld [vmem:[%s1 + $0x1218] sm:$0xff]
  %v601 = vld [vmem:[%s1 + $0x1220] sm:$0xff]
  %v602 = vld [vmem:[%s1 + $0x1228] sm:$0xff]
  %v603 = vld [vmem:[%s1 + $0x1230] sm:$0xff]
  %v604 = vld [vmem:[%s1 + $0x1238] sm:$0xff]
  %v605 = vld [vmem:[%s1 + $0x1240] sm:$0xff]
  %v606 = vld [vmem:[%s1 + $0x1248] sm:$0xff]
  %v607 = vld [vmem:[%s1 + $0x1250] sm:$0xff]
  %v608 = vld [vmem:[%s1 + $0x1258] sm:$0xff]
  %v609 = vld [vmem:[%s1 + $0x1260] sm:$0xff]
  %v610 = vld [vmem:[%s1 + $0x1268] sm:$0xff]
  %v611 = vld [vmem:[%s1 + $0x1270] sm:$0xff]
  %v612 = vld [vmem:[%s1 + $0x1278] sm:$0xff]
  %v613 = vld [vmem:[%s1 + $0x1280] sm:$0xff]
  %v614 = vld [vmem:[%s1 + $0x1288] sm:$0xff]
  %v615 = vld [vmem:[%s1 + $0x1290] sm:$0xff]
  %v616 = vld [vmem:[%s1 + $0x1298] sm:$0xff]
  %v617 = vld [vmem:[%s1 + $0x12a0] sm:$0xff]
  %v618 = vld [vmem:[%s1 + $0x12a8] sm:$0xff]
  %v619 = vld [vmem:[%s1 + $0x12b0] sm:$0xff]
  %v620 = vld [vmem:[%s1 + $0x12b8] sm:$0xff]
  %v621 = vld [vmem:[%s1 + $0x12c0] sm:$0xff]
  %v622 = vld [vmem:[%s1 + $0x12c8] sm:$0xff]
  %v623 = vld [vmem:[%s1 + $0x12d0] sm:$0xff]
  %v624 = vld [vmem:[%s1 + $0x12d8] sm:$0xff]
  %v625 = vld [vmem:[%s1 + $0x12e0] sm:$0xff]
  %v626 = vld [vmem:[%s1 + $0x12e8] sm:$0xff]
  %v627 = vld [vmem:[%s1 + $0x12f0] sm:$0xff]
  %v628 = vld [vmem:[%s1 + $0x12f8] sm:$0xff]
  %v629 = vld [vmem:[%s1 + $0x1300] sm:$0xff]
  %v630 = vld [vmem:[%s1 + $0x1308] sm:$0xff]
  %v631 = vld [vmem:[%s1 + $0x1310] sm:$0xff]
  %v632 = vld [vmem:[%s1 + $0x1318] sm:$0xff]
  %v633 = vld [vmem:[%s1 + $0x1320] sm:$0xff]
  %v634 = vld [vmem:[%s1 + $0x1328] sm:$0xff]
  %v635 = vld [vmem:[%s1 + $0x1330] sm:$0xff]
  %v636 = vld [vmem:[%s1 + $0x1338] sm:$0xff]
  %v637 = vld [vmem:[%s1 + $0x1340] sm:$0xff]
  %v638 = vld [vmem:[%s1 + $0x1348] sm:$0xff]
  %v639 = vld [vmem:[%s1 + $0x1350] sm:$0xff]
  %v640 = vld [vmem:[%s1 + $0x1358] sm:$0xff]
  %v641 = vld [vmem:[%s1 + $0x1360] sm:$0xff]
  %v642 = vld [vmem:[%s1 + $0x1368] sm:$0xff]
  %v643 = vld [vmem:[%s1 + $0x1370] sm:$0xff]
  %v644 = vld [vmem:[%s1 + $0x1378] sm:$0xff]
  %v645 = vld [vmem:[%s1 + $0x1380] sm:$0xff]
  %v646 = vld [vmem:[%s1 + $0x1388] sm:$0xff]
  %v647 = vld [vmem:[%s1 + $0x1390] sm:$0xff]
  %v648 = vld [vmem:[%s1 + $0x1398] sm:$0xff]
  %v649 = vld [vmem:[%s1 + $0x13a0] sm:$0xff]
  %v650 = vld [vmem:[%s1 + $0x13a8] sm:$0xff]
  %v651 = vld [vmem:[%s1 + $0x13b0] sm:$0xff]
  %v652 = vld [vmem:[%s1 + $0x13b8] sm:$0xff]
  %v653 = vld [vmem:[%s1 + $0x13c0] sm:$0xff]
  %v654 = vld [vmem:[%s1 + $0x13c8] sm:$0xff]
  %v655 = vld [vmem:[%s1 + $0x13d0] sm:$0xff]
  %v656 = vld [vmem:[%s1 + $0x13d8] sm:$0xff]
  %v657 = vld [vmem:[%s1 + $0x13e0] sm:$0xff]
  %v658 = vld [vmem:[%s1 + $0x13e8] sm:$0xff]
  %v659 = vld [vmem:[%s1 + $0x13f0] sm:$0xff]
  %v660 = vld [vmem:[%s1 + $0x13f8] sm:$0xff]
  %v661 = vld [vmem:[%s1 + $0x1400] sm:$0xff]
  %v662 = vld [vmem:[%s1 + $0x1408] sm:$0xff]
  %v663 = vld [vmem:[%s1 + $0x1410] sm:$0xff]
  %v664 = vld [vmem:[%s1 + $0x1418] sm:$0xff]
  %v665 = vld [vmem:[%s1 + $0x1420] sm:$0xff]
  %v666 = vld [vmem:[%s1 + $0x1428] sm:$0xff]
  %v667 = vld [vmem:[%s1 + $0x1430] sm:$0xff]
  %v668 = vld [vmem:[%s1 + $0x1438] sm:$0xff]
  %v669 = vld [vmem:[%s1 + $0x1440] sm:$0xff]
  %v670 = vld [vmem:[%s1 + $0x1448] sm:$0xff]
  %v671 = vld [vmem:[%s1 + $0x1450] sm:$0xff]
  %v672 = vld [vmem:[%s1 + $0x1458] sm:$0xff]
  %v673 = vld [vmem:[%s1 + $0x1460] sm:$0xff]
  %v674 = vld [vmem:[%s1 + $0x1468] sm:$0xff]
  %v675 = vld [vmem:[%s1 + $0x1470] sm:$0xff]
  %v676 = vld [vmem:[%s1 + $0x1478] sm:$0xff]
  %v677 = vld [vmem:[%s1 + $0x1480] sm:$0xff]
  %v678 = vld [vmem:[%s1 + $0x1488] sm:$0xff]
  %v679 = vld [vmem:[%s1 + $0x1490] sm:$0xff]
  %v680 = vld [vmem:[%s1 + $0x1498] sm:$0xff]
  %v681 = vld [vmem:[%s1 + $0x14a0] sm:$0xff]
  %v682 = vld [vmem:[%s1 + $0x14a8] sm:$0xff]
  %v683 = vld [vmem:[%s1 + $0x14b0] sm:$0xff]
  %v684 = vld [vmem:[%s1 + $0x14b8] sm:$0xff]
  %v685 = vld [vmem:[%s1 + $0x14c0] sm:$0xff]
  %v686 = vld [vmem:[%s1 + $0x14c8] sm:$0xff]
  %v687 = vld [vmem:[%s1 + $0x14d0] sm:$0xff]
  %v688 = vld [vmem:[%s1 + $0x14d8] sm:$0xff]
  %v689 = vld [vmem:[%s1 + $0x14e0] sm:$0xff]
  %v690 = vld [vmem:[%s1 + $0x14e8] sm:$0xff]
  %v691 = vld [vmem:[%s1 + $0x14f0] sm:$0xff]
  %v692 = vld [vmem:[%s1 + $0x14f8] sm:$0xff]
  %v693 = vld [vmem:[%s1 + $0x1500] sm:$0xff]
  %v694 = vld [vmem:[%s1 + $0x1508] sm:$0xff]
  %v695 = vld [vmem:[%s1 + $0x1510] sm:$0xff]
  %v696 = vld [vmem:[%s1 + $0x1518] sm:$0xff]
  %v697 = vld [vmem:[%s1 + $0x1520] sm:$0xff]
  %v698 = vld [vmem:[%s1 + $0x1528] sm:$0xff]
  %v699 = vld [vmem:[%s1 + $0x1530] sm:$0xff]
  %v700 = vld [vmem:[%s1 + $0x1538] sm:$0xff]
  %v701 = vld [vmem:[%s1 + $0x1540] sm:$0xff]
  %v702 = vld [vmem:[%s1 + $0x1548] sm:$0xff]
  %v703 = vld [vmem:[%s1 + $0x1550] sm:$0xff]
  %v704 = vld [vmem:[%s1 + $0x1558] sm:$0xff]
  %v705 = vld [vmem:[%s1 + $0x1560] sm:$0xff]
  %v706 = vld [vmem:[%s1 + $0x1568] sm:$0xff]
  %v707 = vld [vmem:[%s1 + $0x1570] sm:$0xff]
  %v708 = vld [vmem:[%s1 + $0x1578] sm:$0xff]
  %v709 = vld [vmem:[%s1 + $0x1580] sm:$0xff]
  %v710 = vld [vmem:[%s1 + $0x1588] sm:$0xff]
  %v711 = vld [vmem:[%s1 + $0x1590] sm:$0xff]
  %v712 = vld [vmem:[%s1 + $0x1598] sm:$0xff]
  %v713 = vld [vmem:[%s1 + $0x15a0] sm:$0xff]
  %v714 = vld [vmem:[%s1 + $0x15a8] sm:$0xff]
  %v715 = vld [vmem:[%s1 + $0x15b0] sm:$0xff]
  %v716 = vld [vmem:[%s1 + $0x15b8] sm:$0xff]
  %v717 = vld [vmem:[%s1 + $0x15c0] sm:$0xff]
  %v718 = vld [vmem:[%s1 + $0x15c8] sm:$0xff]
  %v719 = vld [vmem:[%s1 + $0x15d0] sm:$0xff]
  %v720 = vld [vmem:[%s1 + $0x15d8] sm:$0xff]
  %v721 = vld [vmem:[%s1 + $0x15e0] sm:$0xff]
  %v722 = vld [vmem:[%s1 + $0x15e8] sm:$0xff]
  %v723 = vld [vmem:[%s1 + $0x15f0] sm:$0xff]
  %v724 = vld [vmem:[%s1 + $0x15f8] sm:$0xff]
  %v725 = vld [vmem:[%s1 + $0x1600] sm:$0xff]
  %v726 = vld [vmem:[%s1 + $0x1608] sm:$0xff]
  %v727 = vld [vmem:[%s1 + $0x1610] sm:$0xff]
  %v728 = vld [vmem:[%s1 + $0x1618] sm:$0xff]
  %v729 = vld [vmem:[%s1 + $0x1620] sm:$0xff]
  %v730 = vld [vmem:[%s1 + $0x1628] sm:$0xff]
  %v731 = vld [vmem:[%s1 + $0x1630] sm:$0xff]
  %v732 = vld [vmem:[%s1 + $0x1638] sm:$0xff]
  %v733 = vld [vmem:[%s1 + $0x1640] sm:$0xff]
  %v734 = vld [vmem:[%s1 + $0x1648] sm:$0xff]
  %v735 = vld [vmem:[%s1 + $0x1650] sm:$0xff]
  %v736 = vld [vmem:[%s1 + $0x1658] sm:$0xff]
  %v737 = vld [vmem:[%s1 + $0x1660] sm:$0xff]
  %v738 = vld [vmem:[%s1 + $0x1668] sm:$0xff]
  %v739 = vld [vmem:[%s1 + $0x1670] sm:$0xff]
  %v740 = vld [vmem:[%s1 + $0x1678] sm:$0xff]
  %v741 = vld [vmem:[%s1 + $0x1680] sm:$0xff]
  %v742 = vld [vmem:[%s1 + $0x1688] sm:$0xff]
  %v743 = vld [vmem:[%s1 + $0x1690] sm:$0xff]
  %v744 = vld [vmem:[%s1 + $0x1698] sm:$0xff]
  %v745 = vld [vmem:[%s1 + $0x16a0] sm:$0xff]
  %v746 = vld [vmem:[%s1 + $0x16a8] sm:$0xff]
  %v747 = vld [vmem:[%s1 + $0x16b0] sm:$0xff]
  %v748 = vld [vmem:[%s1 + $0x16b8] sm:$0xff]
  %v749 = vld [vmem:[%s1 + $0x16c0] sm:$0xff]
  %v750 = vld [vmem:[%s1 + $0x16c8] sm:$0xff]
  %v751 = vld [vmem:[%s1 + $0x16d0] sm:$0xff]
  %v752 = vld [vmem:[%s1 + $0x16d8] sm:$0xff]
  %v753 = vld [vmem:[%s1 + $0x16e0] sm:$0xff]
  %v754 = vld [vmem:[%s1 + $0x16e8] sm:$0xff]
  %v755 = vld [vmem:[%s1 + $0x16f0] sm:$0xff]
  %v756 = vld [vmem:[%s1 + $0x16f8] sm:$0xff]
  %v757 = vld [vmem:[%s1 + $0x1700] sm:$0xff]
  %v758 = vld [vmem:[%s1 + $0x1708] sm:$0xff]
  %v759 = vld [vmem:[%s1 + $0x1710] sm:$0xff]
  %v760 = vld [vmem:[%s1 + $0x1718] sm:$0xff]
  %v761 = vld [vmem:[%s1 + $0x1720] sm:$0xff]
  %v762 = vld [vmem:[%s1 + $0x1728] sm:$0xff]
  %v763 = vld [vmem:[%s1 + $0x1730] sm:$0xff]
  %v764 = vld [vmem:[%s1 + $0x1738] sm:$0xff]
  %v765 = vld [vmem:[%s1 + $0x1740] sm:$0xff]
  %v766 = vld [vmem:[%s1 + $0x1748] sm:$0xff]
  %v767 = vld [vmem:[%s1 + $0x1750] sm:$0xff]
  %v768 = vld [vmem:[%s1 + $0x1758] sm:$0xff]
  %v769 = vld [vmem:[%s1 + $0x1760] sm:$0xff]
  %v770 = vld [vmem:[%s1 + $0x1768] sm:$0xff]
  %v771 = vld [vmem:[%s1 + $0x1770] sm:$0xff]
  %v772 = vld [vmem:[%s1 + $0x1778] sm:$0xff]
  %v773 = vld [vmem:[%s1 + $0x1780] sm:$0xff]
  %v774 = vld [vmem:[%s1 + $0x1788] sm:$0xff]
  %v775 = vld [vmem:[%s1 + $0x1790] sm:$0xff]
  %v776 = vld [vmem:[%s1 + $0x1798] sm:$0xff]
  %v777 = vld [vmem:[%s1 + $0x17a0] sm:$0xff]
  %v778 = vld [vmem:[%s1 + $0x17a8] sm:$0xff]
  %v779 = vld [vmem:[%s1 + $0x17b0] sm:$0xff]
  %v780 = vld [vmem:[%s1 + $0x17b8] sm:$0xff]
  %v781 = vld [vmem:[%s1 + $0x17c0] sm:$0xff]
  %v782 = vld [vmem:[%s1 + $0x17c8] sm:$0xff]
  %v783 = vld [vmem:[%s1 + $0x17d0] sm:$0xff]
  %v784 = vld [vmem:[%s1 + $0x17d8] sm:$0xff]
  %v785 = vld [vmem:[%s1 + $0x17e0] sm:$0xff]
  %v786 = vld [vmem:[%s1 + $0x17e8] sm:$0xff]
  %v787 = vld [vmem:[%s1 + $0x17f0] sm:$0xff]
  %v788 = vld [vmem:[%s1 + $0x17f8] sm:$0xff]
  %v789 = vld [vmem:[%s1 + $0x1800] sm:$0xff]
  %v790 = vld [vmem:[%s1 + $0x1808] sm:$0xff]
  %v791 = vld [vmem:[%s1 + $0x1810] sm:$0xff]
  %v792 = vld [vmem:[%s1 + $0x1818] sm:$0xff]
  %v793 = vld [vmem:[%s1 + $0x1820] sm:$0xff]
  %v794 = vld [vmem:[%s1 + $0x1828] sm:$0xff]
  %v795 = vld [vmem:[%s1 + $0x1830] sm:$0xff]
  %v796 = vld [vmem:[%s1 + $0x1838] sm:$0xff]
  %v797 = vld [vmem:[%s1 + $0x1840] sm:$0xff]
  %v798 = vld [vmem:[%s1 + $0x1848] sm:$0xff]
  %v799 = vld [vmem:[%s1 + $0x1850] sm:$0xff]
  %v800 = vld [vmem:[%s1 + $0x1858] sm:$0xff]
  %v801 = vld [vmem:[%s1 + $0x1860] sm:$0xff]
  %v802 = vld [vmem:[%s1 + $0x1868] sm:$0xff]
  %v803 = vld [vmem:[%s1 + $0x1870] sm:$0xff]
  %v804 = vld [vmem:[%s1 + $0x1878] sm:$0xff]
  %v805 = vld [vmem:[%s1 + $0x1880] sm:$0xff]
  %v806 = vld [vmem:[%s1 + $0x1888] sm:$0xff]
  %v807 = vld [vmem:[%s1 + $0x1890] sm:$0xff]
  %v808 = vld [vmem:[%s1 + $0x1898] sm:$0xff]
  %v809 = vld [vmem:[%s1 + $0x18a0] sm:$0xff]
  %v810 = vld [vmem:[%s1 + $0x18a8] sm:$0xff]
  %v811 = vld [vmem:[%s1 + $0x18b0] sm:$0xff]
  %v812 = vld [vmem:[%s1 + $0x18b8] sm:$0xff]
  %v813 = vld [vmem:[%s1 + $0x18c0] sm:$0xff]
  %v814 = vld [vmem:[%s1 + $0x18c8] sm:$0xff]
  %v815 = vld [vmem:[%s1 + $0x18d0] sm:$0xff]
  %v816 = vld [vmem:[%s1 + $0x18d8] sm:$0xff]
  %v817 = vld [vmem:[%s1 + $0x18e0] sm:$0xff]
  %v818 = vld [vmem:[%s1 + $0x18e8] sm:$0xff]
  %v819 = vld [vmem:[%s1 + $0x18f0] sm:$0xff]
  %v820 = vld [vmem:[%s1 + $0x18f8] sm:$0xff]
  %v821 = vld [vmem:[%s1 + $0x1900] sm:$0xff]
  %v822 = vld [vmem:[%s1 + $0x1908] sm:$0xff]
  %v823 = vld [vmem:[%s1 + $0x1910] sm:$0xff]
  %v824 = vld [vmem:[%s1 + $0x1918] sm:$0xff]
  %v825 = vld [vmem:[%s1 + $0x1920] sm:$0xff]
  %v826 = vld [vmem:[%s1 + $0x1928] sm:$0xff]
  %v827 = vld [vmem:[%s1 + $0x1930] sm:$0xff]
  %v828 = vld [vmem:[%s1 + $0x1938] sm:$0xff]
  %v829 = vld [vmem:[%s1 + $0x1940] sm:$0xff]
  %v830 = vld [vmem:[%s1 + $0x1948] sm:$0xff]
  %v831 = vld [vmem:[%s1 + $0x1950] sm:$0xff]
  %v832 = vld [vmem:[%s1 + $0x1958] sm:$0xff]
  %v833 = vld [vmem:[%s1 + $0x1960] sm:$0xff]
  %v834 = vld [vmem:[%s1 + $0x1968] sm:$0xff]
  %v835 = vld [vmem:[%s1 + $0x1970] sm:$0xff]
  %v836 = vld [vmem:[%s1 + $0x1978] sm:$0xff]
  %v837 = vld [vmem:[%s1 + $0x1980] sm:$0xff]
  %v838 = vld [vmem:[%s1 + $0x1988] sm:$0xff]
  %v839 = vld [vmem:[%s1 + $0x1990] sm:$0xff]
  %v840 = vld [vmem:[%s1 + $0x1998] sm:$0xff]
  %v841 = vld [vmem:[%s1 + $0x19a0] sm:$0xff]
  %v842 = vld [vmem:[%s1 + $0x19a8] sm:$0xff]
  %v843 = vld [vmem:[%s1 + $0x19b0] sm:$0xff]
  %v844 = vld [vmem:[%s1 + $0x19b8] sm:$0xff]
  %v845 = vld [vmem:[%s1 + $0x19c0] sm:$0xff]
  %v846 = vld [vmem:[%s1 + $0x19c8] sm:$0xff]
  %v847 = vld [vmem:[%s1 + $0x19d0] sm:$0xff]
  %v848 = vld [vmem:[%s1 + $0x19d8] sm:$0xff]
  %v849 = vld [vmem:[%s1 + $0x19e0] sm:$0xff]
  %v850 = vld [vmem:[%s1 + $0x19e8] sm:$0xff]
  %v851 = vld [vmem:[%s1 + $0x19f0] sm:$0xff]
  %v852 = vld [vmem:[%s1 + $0x19f8] sm:$0xff]
  %v853 = vld [vmem:[%s1 + $0x1a00] sm:$0xff]
  %v854 = vld [vmem:[%s1 + $0x1a08] sm:$0xff]
  %v855 = vld [vmem:[%s1 + $0x1a10] sm:$0xff]
  %v856 = vld [vmem:[%s1 + $0x1a18] sm:$0xff]
  %v857 = vld [vmem:[%s1 + $0x1a20] sm:$0xff]
  %v858 = vld [vmem:[%s1 + $0x1a28] sm:$0xff]
  %v859 = vld [vmem:[%s1 + $0x1a30] sm:$0xff]
  %v860 = vld [vmem:[%s1 + $0x1a38] sm:$0xff]
  %v861 = vld [vmem:[%s1 + $0x1a40] sm:$0xff]
  %v862 = vld [vmem:[%s1 + $0x1a48] sm:$0xff]
  %v863 = vld [vmem:[%s1 + $0x1a50] sm:$0xff]
  %v864 = vld [vmem:[%s1 + $0x1a58] sm:$0xff]
  %v865 = vld [vmem:[%s1 + $0x1a60] sm:$0xff]
  %v866 = vld [vmem:[%s1 + $0x1a68] sm:$0xff]
  %v867 = vld [vmem:[%s1 + $0x1a70] sm:$0xff]
  %v868 = vld [vmem:[%s1 + $0x1a78] sm:$0xff]
  %v869 = vld [vmem:[%s1 + $0x1a80] sm:$0xff]
  %v870 = vld [vmem:[%s1 + $0x1a88] sm:$0xff]
  %v871 = vld [vmem:[%s1 + $0x1a90] sm:$0xff]
  %v872 = vld [vmem:[%s1 + $0x1a98] sm:$0xff]
  %v873 = vld [vmem:[%s1 + $0x1aa0] sm:$0xff]
  %v874 = vld [vmem:[%s1 + $0x1aa8] sm:$0xff]
  %v875 = vld [vmem:[%s1 + $0x1ab0] sm:$0xff]
  %v876 = vld [vmem:[%s1 + $0x1ab8] sm:$0xff]
  %v877 = vld [vmem:[%s1 + $0x1ac0] sm:$0xff]
  %v878 = vld [vmem:[%s1 + $0x1ac8] sm:$0xff]
  %v879 = vld [vmem:[%s1 + $0x1ad0] sm:$0xff]
  %v880 = vld [vmem:[%s1 + $0x1ad8] sm:$0xff]
  %v881 = vld [vmem:[%s1 + $0x1ae0] sm:$0xff]
  %v882 = vld [vmem:[%s1 + $0x1ae8] sm:$0xff]
  %v883 = vld [vmem:[%s1 + $0x1af0] sm:$0xff]
  %v884 = vld [vmem:[%s1 + $0x1af8] sm:$0xff]
  %v885 = vld [vmem:[%s1 + $0x1b00] sm:$0xff]
  %v886 = vld [vmem:[%s1 + $0x1b08] sm:$0xff]
  %v887 = vld [vmem:[%s1 + $0x1b10] sm:$0xff]
  %v888 = vld [vmem:[%s1 + $0x1b18] sm:$0xff]
  %v889 = vld [vmem:[%s1 + $0x1b20] sm:$0xff]
  %v890 = vld [vmem:[%s1 + $0x1b28] sm:$0xff]
  %v891 = vld [vmem:[%s1 + $0x1b30] sm:$0xff]
  %v892 = vld [vmem:[%s1 + $0x1b38] sm:$0xff]
  %v893 = vld [vmem:[%s1 + $0x1b40] sm:$0xff]
  %v894 = vld [vmem:[%s1 + $0x1b48] sm:$0xff]
  %v895 = vld [vmem:[%s1 + $0x1b50] sm:$0xff]
  %v896 = vld [vmem:[%s1 + $0x1b58] sm:$0xff]
  %v897 = vld [vmem:[%s1 + $0x1b60] sm:$0xff]
  %v898 = vld [vmem:[%s1 + $0x1b68] sm:$0xff]
  %v899 = vld [vmem:[%s1 + $0x1b70] sm:$0xff]
  %v900 = vld [vmem:[%s1 + $0x1b78] sm:$0xff]
  %v901 = vld [vmem:[%s1 + $0x1b80] sm:$0xff]
  %v902 = vld [vmem:[%s1 + $0x1b88] sm:$0xff]
  %v903 = vld [vmem:[%s1 + $0x1b90] sm:$0xff]
  %v904 = vld [vmem:[%s1 + $0x1b98] sm:$0xff]
  %v905 = vld [vmem:[%s1 + $0x1ba0] sm:$0xff]
  %v906 = vld [vmem:[%s1 + $0x1ba8] sm:$0xff]
  %v907 = vld [vmem:[%s1 + $0x1bb0] sm:$0xff]
  %v908 = vld [vmem:[%s1 + $0x1bb8] sm:$0xff]
  %v909 = vld [vmem:[%s1 + $0x1bc0] sm:$0xff]
  %v910 = vld [vmem:[%s1 + $0x1bc8] sm:$0xff]
  %v911 = vld [vmem:[%s1 + $0x1bd0] sm:$0xff]
  %v912 = vld [vmem:[%s1 + $0x1bd8] sm:$0xff]
  %v913 = vld [vmem:[%s1 + $0x1be0] sm:$0xff]
  %v914 = vld [vmem:[%s1 + $0x1be8] sm:$0xff]
  %v915 = vld [vmem:[%s1 + $0x1bf0] sm:$0xff]
  %v916 = vld [vmem:[%s1 + $0x1bf8] sm:$0xff]
  %v917 = vld [vmem:[%s1 + $0x1c00] sm:$0xff]
  %v918 = vld [vmem:[%s1 + $0x1c08] sm:$0xff]
  %v919 = vld [vmem:[%s1 + $0x1c10] sm:$0xff]
  %v920 = vld [vmem:[%s1 + $0x1c18] sm:$0xff]
  %v921 = vld [vmem:[%s1 + $0x1c20] sm:$0xff]
  %v922 = vld [vmem:[%s1 + $0x1c28] sm:$0xff]
  %v923 = vld [vmem:[%s1 + $0x1c30] sm:$0xff]
  %v924 = vld [vmem:[%s1 + $0x1c38] sm:$0xff]
  %v925 = vld [vmem:[%s1 + $0x1c40] sm:$0xff]
  %v926 = vld [vmem:[%s1 + $0x1c48] sm:$0xff]
  %v927 = vld [vmem:[%s1 + $0x1c50] sm:$0xff]
  %v928 = vld [vmem:[%s1 + $0x1c58] sm:$0xff]
  %v929 = vld [vmem:[%s1 + $0x1c60] sm:$0xff]
  %v930 = vld [vmem:[%s1 + $0x1c68] sm:$0xff]
  %v931 = vld [vmem:[%s1 + $0x1c70] sm:$0xff]
  %v932 = vld [vmem:[%s1 + $0x1c78] sm:$0xff]
  %v933 = vld [vmem:[%s1 + $0x1c80] sm:$0xff]
  %v934 = vld [vmem:[%s1 + $0x1c88] sm:$0xff]
  %v935 = vld [vmem:[%s1 + $0x1c90] sm:$0xff]
  %v936 = vld [vmem:[%s1 + $0x1c98] sm:$0xff]
  %v937 = vld [vmem:[%s1 + $0x1ca0] sm:$0xff]
  %v938 = vld [vmem:[%s1 + $0x1ca8] sm:$0xff]
  %v939 = vld [vmem:[%s1 + $0x1cb0] sm:$0xff]
  %v940 = vld [vmem:[%s1 + $0x1cb8] sm:$0xff]
  %v941 = vld [vmem:[%s1 + $0x1cc0] sm:$0xff]
  %v942 = vld [vmem:[%s1 + $0x1cc8] sm:$0xff]
  %v943 = vld [vmem:[%s1 + $0x1cd0] sm:$0xff]
  %v944 = vld [vmem:[%s1 + $0x1cd8] sm:$0xff]
  %v945 = vld [vmem:[%s1 + $0x1ce0] sm:$0xff]
  %v946 = vld [vmem:[%s1 + $0x1ce8] sm:$0xff]
  %v947 = vld [vmem:[%s1 + $0x1cf0] sm:$0xff]
  %v948 = vld [vmem:[%s1 + $0x1cf8] sm:$0xff]
  %v949 = vld [vmem:[%s1 + $0x1d00] sm:$0xff]
  %v950 = vld [vmem:[%s1 + $0x1d08] sm:$0xff]
  %v951 = vld [vmem:[%s1 + $0x1d10] sm:$0xff]
  %v952 = vld [vmem:[%s1 + $0x1d18] sm:$0xff]
  %v953 = vld [vmem:[%s1 + $0x1d20] sm:$0xff]
  %v954 = vld [vmem:[%s1 + $0x1d28] sm:$0xff]
  %v955 = vld [vmem:[%s1 + $0x1d30] sm:$0xff]
  %v956 = vld [vmem:[%s1 + $0x1d38] sm:$0xff]
  %v957 = vld [vmem:[%s1 + $0x1d40] sm:$0xff]
  %v958 = vld [vmem:[%s1 + $0x1d48] sm:$0xff]
  %v959 = vld [vmem:[%s1 + $0x1d50] sm:$0xff]
  %v960 = vld [vmem:[%s1 + $0x1d58] sm:$0xff]
  %v961 = vld [vmem:[%s1 + $0x1d60] sm:$0xff]
  %v962 = vld [vmem:[%s1 + $0x1d68] sm:$0xff]
  %v963 = vld [vmem:[%s1 + $0x1d70] sm:$0xff]
  %v964 = vld [vmem:[%s1 + $0x1d78] sm:$0xff]
  %v965 = vld [vmem:[%s1 + $0x1d80] sm:$0xff]
  %v966 = vld [vmem:[%s1 + $0x1d88] sm:$0xff]
  %v967 = vld [vmem:[%s1 + $0x1d90] sm:$0xff]
  %v968 = vld [vmem:[%s1 + $0x1d98] sm:$0xff]
  %v969 = vld [vmem:[%s1 + $0x1da0] sm:$0xff]
  %v970 = vld [vmem:[%s1 + $0x1da8] sm:$0xff]
  %v971 = vld [vmem:[%s1 + $0x1db0] sm:$0xff]
  %v972 = vld [vmem:[%s1 + $0x1db8] sm:$0xff]
  %v973 = vld [vmem:[%s1 + $0x1dc0] sm:$0xff]
  %v974 = vld [vmem:[%s1 + $0x1dc8] sm:$0xff]
  %v975 = vld [vmem:[%s1 + $0x1dd0] sm:$0xff]
  %v976 = vld [vmem:[%s1 + $0x1dd8] sm:$0xff]
  %v977 = vld [vmem:[%s1 + $0x1de0] sm:$0xff]
  %v978 = vld [vmem:[%s1 + $0x1de8] sm:$0xff]
  %v979 = vld [vmem:[%s1 + $0x1df0] sm:$0xff]
  %v980 = vld [vmem:[%s1 + $0x1df8] sm:$0xff]
  %v981 = vld [vmem:[%s1 + $0x1e00] sm:$0xff]
  %v982 = vld [vmem:[%s1 + $0x1e08] sm:$0xff]
  %v983 = vld [vmem:[%s1 + $0x1e10] sm:$0xff]
  %v984 = vld [vmem:[%s1 + $0x1e18] sm:$0xff]
  %v985 = vld [vmem:[%s1 + $0x1e20] sm:$0xff]
  %v986 = vld [vmem:[%s1 + $0x1e28] sm:$0xff]
  %v987 = vld [vmem:[%s1 + $0x1e30] sm:$0xff]
  %v988 = vld [vmem:[%s1 + $0x1e38] sm:$0xff]
  %v989 = vld [vmem:[%s1 + $0x1e40] sm:$0xff]
  %v990 = vld [vmem:[%s1 + $0x1e48] sm:$0xff]
  %v991 = vld [vmem:[%s1 + $0x1e50] sm:$0xff]
  %v992 = vld [vmem:[%s1 + $0x1e58] sm:$0xff]
  %v993 = vld [vmem:[%s1 + $0x1e60] sm:$0xff]
  %v994 = vld [vmem:[%s1 + $0x1e68] sm:$0xff]
  %v995 = vld [vmem:[%s1 + $0x1e70] sm:$0xff]
  %v996 = vld [vmem:[%s1 + $0x1e78] sm:$0xff]
  %v997 = vld [vmem:[%s1 + $0x1e80] sm:$0xff]
  %v998 = vld [vmem:[%s1 + $0x1e88] sm:$0xff]
  %v999 = vld [vmem:[%s1 + $0x1e90] sm:$0xff]
  %v1000 = vld [vmem:[%s1 + $0x1e98] sm:$0xff]
  %v1001 = vld [vmem:[%s1 + $0x1ea0] sm:$0xff]
  %v1002 = vld [vmem:[%s1 + $0x1ea8] sm:$0xff]
  %v1003 = vld [vmem:[%s1 + $0x1eb0] sm:$0xff]
  %v1004 = vld [vmem:[%s1 + $0x1eb8] sm:$0xff]
  %v1005 = vld [vmem:[%s1 + $0x1ec0] sm:$0xff]
  %v1006 = vld [vmem:[%s1 + $0x1ec8] sm:$0xff]
  %v1007 = vld [vmem:[%s1 + $0x1ed0] sm:$0xff]
  %v1008 = vld [vmem:[%s1 + $0x1ed8] sm:$0xff]
  %v1009 = vld [vmem:[%s1 + $0x1ee0] sm:$0xff]
  %v1010 = vld [vmem:[%s1 + $0x1ee8] sm:$0xff]
  %v1011 = vld [vmem:[%s1 + $0x1ef0] sm:$0xff]
  %v1012 = vld [vmem:[%s1 + $0x1ef8] sm:$0xff]
  %v1013 = vld [vmem:[%s1 + $0x1f00] sm:$0xff]
  %v1014 = vld [vmem:[%s1 + $0x1f08] sm:$0xff]
  %v1015 = vld [vmem:[%s1 + $0x1f10] sm:$0xff]
  %v1016 = vld [vmem:[%s1 + $0x1f18] sm:$0xff]
  %v1017 = vld [vmem:[%s1 + $0x1f20] sm:$0xff]
  %v1018 = vld [vmem:[%s1 + $0x1f28] sm:$0xff]
  %v1019 = vld [vmem:[%s1 + $0x1f30] sm:$0xff]
  %v1020 = vld [vmem:[%s1 + $0x1f38] sm:$0xff]
  %v1021 = vld [vmem:[%s1 + $0x1f40] sm:$0xff]
  %v1022 = vld [vmem:[%s1 + $0x1f48] sm:$0xff]
  %v1023 = vld [vmem:[%s1 + $0x1f50] sm:$0xff]
  %v1024 = vld [vmem:[%s1 + $0x1f58] sm:$0xff]
  %v1025 = vld [vmem:[%s1 + $0x1f60] sm:$0xff]
  %v1026 = vld [vmem:[%s1 + $0x1f68] sm:$0xff]
  %v1027 = vld [vmem:[%s1 + $0x1f70] sm:$0xff]
  %v1028 = vld [vmem:[%s1 + $0x1f78] sm:$0xff]
  %v1029 = vld [vmem:[%s1 + $0x1f80] sm:$0xff]
  %v1030 = vld [vmem:[%s1 + $0x1f88] sm:$0xff]
  %v1031 = vld [vmem:[%s1 + $0x1f90] sm:$0xff]
  %v1032 = vld [vmem:[%s1 + $0x1f98] sm:$0xff]
  %v1033 = vld [vmem:[%s1 + $0x1fa0] sm:$0xff]
  %v1034 = vld [vmem:[%s1 + $0x1fa8] sm:$0xff]
  %v1035 = vld [vmem:[%s1 + $0x1fb0] sm:$0xff]
  %v1036 = vld [vmem:[%s1 + $0x1fb8] sm:$0xff]
  %v1037 = vld [vmem:[%s1 + $0x1fc0] sm:$0xff]
  %v1038 = vld [vmem:[%s1 + $0x1fc8] sm:$0xff]
  %v1039 = vld [vmem:[%s1 + $0x1fd0] sm:$0xff]
  %v1040 = vld [vmem:[%s1 + $0x1fd8] sm:$0xff]
  %v1041 = vld [vmem:[%s1 + $0x1fe0] sm:$0xff]
  %v1042 = vld [vmem:[%s1 + $0x1fe8] sm:$0xff]
  %v1043 = vld [vmem:[%s1 + $0x1ff0] sm:$0xff]
  %v1044 = vld [vmem:[%s1 + $0x1ff8] sm:$0xff]
  %v1045 = vld [vmem:[%s1 + $0x2000] sm:$0xff]
  %v1046 = vld [vmem:[%s1 + $0x2008] sm:$0xff]
  %v1047 = vld [vmem:[%s1 + $0x2010] sm:$0xff]
  %v1048 = vld [vmem:[%s1 + $0x2018] sm:$0xff]
  %v1049 = vld [vmem:[%s1 + $0x2020] sm:$0xff]
  %v1050 = vld [vmem:[%s1 + $0x2028] sm:$0xff]
  %v1051 = vld [vmem:[%s1 + $0x2030] sm:$0xff]
  %v1052 = vld [vmem:[%s1 + $0x2038] sm:$0xff]
  %v1053 = vld [vmem:[%s1 + $0x2040] sm:$0xff]
  %v1054 = vld [vmem:[%s1 + $0x2048] sm:$0xff]
  %v1055 = vld [vmem:[%s1 + $0x2050] sm:$0xff]
  %v1056 = vld [vmem:[%s1 + $0x2058] sm:$0xff]
  %v1057 = vld [vmem:[%s1 + $0x2060] sm:$0xff]
  %v1058 = vld [vmem:[%s1 + $0x2068] sm:$0xff]
  %v1059 = vld [vmem:[%s1 + $0x2070] sm:$0xff]
  %v1060 = vld [vmem:[%s1 + $0x2078] sm:$0xff]
  %v1061 = vld [vmem:[%s1 + $0x2080] sm:$0xff]
  %v1062 = vld [vmem:[%s1 + $0x2088] sm:$0xff]
  %v1063 = vld [vmem:[%s1 + $0x2090] sm:$0xff]
  %v1064 = vld [vmem:[%s1 + $0x2098] sm:$0xff]
  %v1065 = vld [vmem:[%s1 + $0x20a0] sm:$0xff]
  %v1066 = vld [vmem:[%s1 + $0x20a8] sm:$0xff]
  %v1067 = vld [vmem:[%s1 + $0x20b0] sm:$0xff]
  %v1068 = vld [vmem:[%s1 + $0x20b8] sm:$0xff]
  %v1069 = vld [vmem:[%s1 + $0x20c0] sm:$0xff]
  %v1070 = vld [vmem:[%s1 + $0x20c8] sm:$0xff]
  %v1071 = vld [vmem:[%s1 + $0x20d0] sm:$0xff]
  %v1072 = vld [vmem:[%s1 + $0x20d8] sm:$0xff]
  %v1073 = vld [vmem:[%s1 + $0x20e0] sm:$0xff]
  %v1074 = vld [vmem:[%s1 + $0x20e8] sm:$0xff]
  %v1075 = vld [vmem:[%s1 + $0x20f0] sm:$0xff]
  %v1076 = vld [vmem:[%s1 + $0x20f8] sm:$0xff]
  %v1077 = vld [vmem:[%s1 + $0x2100] sm:$0xff]
  %v1078 = vld [vmem:[%s1 + $0x2108] sm:$0xff]
  %v1079 = vld [vmem:[%s1 + $0x2110] sm:$0xff]
  %v1080 = vld [vmem:[%s1 + $0x2118] sm:$0xff]
  %v1081 = vld [vmem:[%s1 + $0x2120] sm:$0xff]
  %v1082 = vld [vmem:[%s1 + $0x2128] sm:$0xff]
  %v1083 = vld [vmem:[%s1 + $0x2130] sm:$0xff]
  %v1084 = vld [vmem:[%s1 + $0x2138] sm:$0xff]
  %v1085 = vld [vmem:[%s1 + $0x2140] sm:$0xff]
  %v1086 = vld [vmem:[%s1 + $0x2148] sm:$0xff]
  %v1087 = vld [vmem:[%s1 + $0x2150] sm:$0xff]
  %v1088 = vld [vmem:[%s1 + $0x2158] sm:$0xff]
  %v1089 = vld [vmem:[%s1 + $0x2160] sm:$0xff]
  %v1090 = vld [vmem:[%s1 + $0x2168] sm:$0xff]
  %v1091 = vld [vmem:[%s1 + $0x2170] sm:$0xff]
  %v1092 = vld [vmem:[%s1 + $0x2178] sm:$0xff]
  %v1093 = vld [vmem:[%s1 + $0x2180] sm:$0xff]
  %v1094 = vld [vmem:[%s1 + $0x2188] sm:$0xff]
  %v1095 = vld [vmem:[%s1 + $0x2190] sm:$0xff]
  %v1096 = vld [vmem:[%s1 + $0x2198] sm:$0xff]
  %v1097 = vld [vmem:[%s1 + $0x21a0] sm:$0xff]
  %v1098 = vld [vmem:[%s1 + $0x21a8] sm:$0xff]
  %v1099 = vld [vmem:[%s1 + $0x21b0] sm:$0xff]
  %v1100 = vld [vmem:[%s1 + $0x21b8] sm:$0xff]
  %v1101 = vld [vmem:[%s1 + $0x21c0] sm:$0xff]
  %v1102 = vld [vmem:[%s1 + $0x21c8] sm:$0xff]
  %v1103 = vld [vmem:[%s1 + $0x21d0] sm:$0xff]
  %v1104 = vld [vmem:[%s1 + $0x21d8] sm:$0xff]
  %v1105 = vld [vmem:[%s1 + $0x21e0] sm:$0xff]
  %v1106 = vld [vmem:[%s1 + $0x21e8] sm:$0xff]
  %v1107 = vld [vmem:[%s1 + $0x21f0] sm:$0xff]
  %v1108 = vld [vmem:[%s1 + $0x21f8] sm:$0xff]
  %v1109 = vld [vmem:[%s1 + $0x2200] sm:$0xff]
  %v1110 = vld [vmem:[%s1 + $0x2208] sm:$0xff]
  %v1111 = vld [vmem:[%s1 + $0x2210] sm:$0xff]
  %v1112 = vld [vmem:[%s1 + $0x2218] sm:$0xff]
  %v1113 = vld [vmem:[%s1 + $0x2220] sm:$0xff]
  %v1114 = vld [vmem:[%s1 + $0x2228] sm:$0xff]
  %v1115 = vld [vmem:[%s1 + $0x2230] sm:$0xff]
  %v1116 = vld [vmem:[%s1 + $0x2238] sm:$0xff]
  %v1117 = vld [vmem:[%s1 + $0x2240] sm:$0xff]
  %v1118 = vld [vmem:[%s1 + $0x2248] sm:$0xff]
  %v1119 = vld [vmem:[%s1 + $0x2250] sm:$0xff]
  %v1120 = vld [vmem:[%s1 + $0x2258] sm:$0xff]
  %v1121 = vld [vmem:[%s1 + $0x2260] sm:$0xff]
  %v1122 = vld [vmem:[%s1 + $0x2268] sm:$0xff]
  %v1123 = vld [vmem:[%s1 + $0x2270] sm:$0xff]
  %v1124 = vld [vmem:[%s1 + $0x2278] sm:$0xff]
  %v1125 = vld [vmem:[%s1 + $0x2280] sm:$0xff]
  %v1126 = vld [vmem:[%s1 + $0x2288] sm:$0xff]
  %v1127 = vld [vmem:[%s1 + $0x2290] sm:$0xff]
  %v1128 = vld [vmem:[%s1 + $0x2298] sm:$0xff]
  %v1129 = vld [vmem:[%s1 + $0x22a0] sm:$0xff]
  %v1130 = vld [vmem:[%s1 + $0x22a8] sm:$0xff]
  %v1131 = vld [vmem:[%s1 + $0x22b0] sm:$0xff]
  %v1132 = vld [vmem:[%s1 + $0x22b8] sm:$0xff]
  %v1133 = vld [vmem:[%s1 + $0x22c0] sm:$0xff]
  %v1134 = vld [vmem:[%s1 + $0x22c8] sm:$0xff]
  %v1135 = vld [vmem:[%s1 + $0x22d0] sm:$0xff]
  %v1136 = vld [vmem:[%s1 + $0x22d8] sm:$0xff]
  %v1137 = vld [vmem:[%s1 + $0x22e0] sm:$0xff]
  %v1138 = vld [vmem:[%s1 + $0x22e8] sm:$0xff]
  %v1139 = vld [vmem:[%s1 + $0x22f0] sm:$0xff]
  %v1140 = vld [vmem:[%s1 + $0x22f8] sm:$0xff]
  %v1141 = vld [vmem:[%s1 + $0x2300] sm:$0xff]
  %v1142 = vld [vmem:[%s1 + $0x2308] sm:$0xff]
  %v1143 = vld [vmem:[%s1 + $0x2310] sm:$0xff]
  %v1144 = vld [vmem:[%s1 + $0x2318] sm:$0xff]
  %v1145 = vld [vmem:[%s1 + $0x2320] sm:$0xff]
  %v1146 = vld [vmem:[%s1 + $0x2328] sm:$0xff]
  %v1147 = vld [vmem:[%s1 + $0x2330] sm:$0xff]
  %v1148 = vld [vmem:[%s1 + $0x2338] sm:$0xff]
  %v1149 = vld [vmem:[%s1 + $0x2340] sm:$0xff]
  %v1150 = vld [vmem:[%s1 + $0x2348] sm:$0xff]
  %v1151 = vld [vmem:[%s1 + $0x2350] sm:$0xff]
  %v1152 = vld [vmem:[%s1 + $0x2358] sm:$0xff]
  %v1153 = vld [vmem:[%s1 + $0x2360] sm:$0xff]
  %v1154 = vld [vmem:[%s1 + $0x2368] sm:$0xff]
  %v1155 = vld [vmem:[%s1 + $0x2370] sm:$0xff]
  %v1156 = vld [vmem:[%s1 + $0x2378] sm:$0xff]
  %v1157 = vld [vmem:[%s1 + $0x2380] sm:$0xff]
  %v1158 = vld [vmem:[%s1 + $0x2388] sm:$0xff]
  %v1159 = vld [vmem:[%s1 + $0x2390] sm:$0xff]
  %v1160 = vld [vmem:[%s1 + $0x2398] sm:$0xff]
  %v1161 = vld [vmem:[%s1 + $0x23a0] sm:$0xff]
  %v1162 = vld [vmem:[%s1 + $0x23a8] sm:$0xff]
  %v1163 = vld [vmem:[%s1 + $0x23b0] sm:$0xff]
  %v1164 = vld [vmem:[%s1 + $0x23b8] sm:$0xff]
  %v1165 = vld [vmem:[%s1 + $0x23c0] sm:$0xff]
  %v1166 = vld [vmem:[%s1 + $0x23c8] sm:$0xff]
  %v1167 = vld [vmem:[%s1 + $0x23d0] sm:$0xff]
  %v1168 = vld [vmem:[%s1 + $0x23d8] sm:$0xff]
  %v1169 = vld [vmem:[%s1 + $0x23e0] sm:$0xff]
  %v1170 = vld [vmem:[%s1 + $0x23e8] sm:$0xff]
  %v1171 = vld [vmem:[%s1 + $0x23f0] sm:$0xff]
  %v1172 = vld [vmem:[%s1 + $0x23f8] sm:$0xff]
  %v1173 = vld [vmem:[%s1 + $0x2400] sm:$0xff]
  %v1174 = vld [vmem:[%s1 + $0x2408] sm:$0xff]
  %v1175 = vld [vmem:[%s1 + $0x2410] sm:$0xff]
  %v1176 = vld [vmem:[%s1 + $0x2418] sm:$0xff]
  %v1177 = vld [vmem:[%s1 + $0x2420] sm:$0xff]
  %v1178 = vld [vmem:[%s1 + $0x2428] sm:$0xff]
  %v1179 = vld [vmem:[%s1 + $0x2430] sm:$0xff]
  %v1180 = vld [vmem:[%s1 + $0x2438] sm:$0xff]
  %v1181 = vld [vmem:[%s1 + $0x2440] sm:$0xff]
  %v1182 = vld [vmem:[%s1 + $0x2448] sm:$0xff]
  %v1183 = vld [vmem:[%s1 + $0x2450] sm:$0xff]
  %v1184 = vld [vmem:[%s1 + $0x2458] sm:$0xff]
  %v1185 = vld [vmem:[%s1 + $0x2460] sm:$0xff]
  %v1186 = vld [vmem:[%s1 + $0x2468] sm:$0xff]
  %v1187 = vld [vmem:[%s1 + $0x2470] sm:$0xff]
  %v1188 = vld [vmem:[%s1 + $0x2478] sm:$0xff]
  %v1189 = vld [vmem:[%s1 + $0x2480] sm:$0xff]
  %v1190 = vld [vmem:[%s1 + $0x2488] sm:$0xff]
  %v1191 = vld [vmem:[%s1 + $0x2490] sm:$0xff]
  %v1192 = vld [vmem:[%s1 + $0x2498] sm:$0xff]
  %v1193 = vld [vmem:[%s1 + $0x24a0] sm:$0xff]
  %v1194 = vld [vmem:[%s1 + $0x24a8] sm:$0xff]
  %v1195 = vld [vmem:[%s1 + $0x24b0] sm:$0xff]
  %v1196 = vld [vmem:[%s1 + $0x24b8] sm:$0xff]
  %v1197 = vld [vmem:[%s1 + $0x24c0] sm:$0xff]
  %v1198 = vld [vmem:[%s1 + $0x24c8] sm:$0xff]
  %v1199 = vld [vmem:[%s1 + $0x24d0] sm:$0xff]
  %v1200 = vld [vmem:[%s1 + $0x24d8] sm:$0xff]
  %v1201 = vld [vmem:[%s1 + $0x24e0] sm:$0xff]
  %v1202 = vld [vmem:[%s1 + $0x24e8] sm:$0xff]
  %v1203 = vld [vmem:[%s1 + $0x24f0] sm:$0xff]
  %v1204 = vld [vmem:[%s1 + $0x24f8] sm:$0xff]
  %v1205 = vld [vmem:[%s1 + $0x2500] sm:$0xff]
  %v1206 = vld [vmem:[%s1 + $0x2508] sm:$0xff]
  %v1207 = vld [vmem:[%s1 + $0x2510] sm:$0xff]
  %v1208 = vld [vmem:[%s1 + $0x2518] sm:$0xff]
  %v1209 = vld [vmem:[%s1 + $0x2520] sm:$0xff]
  %v1210 = vld [vmem:[%s1 + $0x2528] sm:$0xff]
  %v1211 = vld [vmem:[%s1 + $0x2530] sm:$0xff]
  %v1212 = vld [vmem:[%s1 + $0x2538] sm:$0xff]
  %v1213 = vld [vmem:[%s1 + $0x2540] sm:$0xff]
  %v1214 = vld [vmem:[%s1 + $0x2548] sm:$0xff]
  %v1215 = vld [vmem:[%s1 + $0x2550] sm:$0xff]
  %v1216 = vld [vmem:[%s1 + $0x2558] sm:$0xff]
  %v1217 = vld [vmem:[%s1 + $0x2560] sm:$0xff]
  %v1218 = vld [vmem:[%s1 + $0x2568] sm:$0xff]
  %v1219 = vld [vmem:[%s1 + $0x2570] sm:$0xff]
  %v1220 = vld [vmem:[%s1 + $0x2578] sm:$0xff]
  %v1221 = vld [vmem:[%s1 + $0x2580] sm:$0xff]
  %v1222 = vld [vmem:[%s1 + $0x2588] sm:$0xff]
  %v1223 = vld [vmem:[%s1 + $0x2590] sm:$0xff]
  %v1224 = vld [vmem:[%s1 + $0x2598] sm:$0xff]
  %v1225 = vld [vmem:[%s1 + $0x25a0] sm:$0xff]
  %v1226 = vld [vmem:[%s1 + $0x25a8] sm:$0xff]
  %v1227 = vld [vmem:[%s1 + $0x25b0] sm:$0xff]
  %v1228 = vld [vmem:[%s1 + $0x25b8] sm:$0xff]
  %v1229 = vld [vmem:[%s1 + $0x25c0] sm:$0xff]
  %v1230 = vld [vmem:[%s1 + $0x25c8] sm:$0xff]
  %v1231 = vld [vmem:[%s1 + $0x25d0] sm:$0xff]
  %v1232 = vld [vmem:[%s1 + $0x25d8] sm:$0xff]
  %v1233 = vld [vmem:[%s1 + $0x25e0] sm:$0xff]
  %v1234 = vld [vmem:[%s1 + $0x25e8] sm:$0xff]
  %v1235 = vld [vmem:[%s1 + $0x25f0] sm:$0xff]
  %v1236 = vld [vmem:[%s1 + $0x25f8] sm:$0xff]
  %v1237 = vld [vmem:[%s1 + $0x2600] sm:$0xff]
  %v1238 = vld [vmem:[%s1 + $0x2608] sm:$0xff]
  %v1239 = vld [vmem:[%s1 + $0x2610] sm:$0xff]
  %v1240 = vld [vmem:[%s1 + $0x2618] sm:$0xff]
  %v1241 = vld [vmem:[%s1 + $0x2620] sm:$0xff]
  %v1242 = vld [vmem:[%s1 + $0x2628] sm:$0xff]
  %v1243 = vld [vmem:[%s1 + $0x2630] sm:$0xff]
  %v1244 = vld [vmem:[%s1 + $0x2638] sm:$0xff]
  %v1245 = vld [vmem:[%s1 + $0x2640] sm:$0xff]
  %v1246 = vld [vmem:[%s1 + $0x2648] sm:$0xff]
  %v1247 = vld [vmem:[%s1 + $0x2650] sm:$0xff]
  %v1248 = vld [vmem:[%s1 + $0x2658] sm:$0xff]
  %v1249 = vld [vmem:[%s1 + $0x2660] sm:$0xff]
  %v1250 = vld [vmem:[%s1 + $0x2668] sm:$0xff]
  %v1251 = vld [vmem:[%s1 + $0x2670] sm:$0xff]
  %v1252 = vld [vmem:[%s1 + $0x2678] sm:$0xff]
  %v1253 = vld [vmem:[%s1 + $0x2680] sm:$0xff]
  %v1254 = vld [vmem:[%s1 + $0x2688] sm:$0xff]
  %v1255 = vld [vmem:[%s1 + $0x2690] sm:$0xff]
  %v1256 = vld [vmem:[%s1 + $0x2698] sm:$0xff]
  %v1257 = vld [vmem:[%s1 + $0x26a0] sm:$0xff]
  %v1258 = vld [vmem:[%s1 + $0x26a8] sm:$0xff]
  %v1259 = vld [vmem:[%s1 + $0x26b0] sm:$0xff]
  %v1260 = vld [vmem:[%s1 + $0x26b8] sm:$0xff]
  %v1261 = vld [vmem:[%s1 + $0x26c0] sm:$0xff]
  %v1262 = vld [vmem:[%s1 + $0x26c8] sm:$0xff]
  %v1263 = vld [vmem:[%s1 + $0x26d0] sm:$0xff]
  %v1264 = vld [vmem:[%s1 + $0x26d8] sm:$0xff]
  %v1265 = vld [vmem:[%s1 + $0x26e0] sm:$0xff]
  %v1266 = vld [vmem:[%s1 + $0x26e8] sm:$0xff]
  %v1267 = vld [vmem:[%s1 + $0x26f0] sm:$0xff]
  %v1268 = vld [vmem:[%s1 + $0x26f8] sm:$0xff]
  %v1269 = vld [vmem:[%s1 + $0x2700] sm:$0xff]
  %v1270 = vld [vmem:[%s1 + $0x2708] sm:$0xff]
  %v1271 = vld [vmem:[%s1 + $0x2710] sm:$0xff]
  %v1272 = vld [vmem:[%s1 + $0x2718] sm:$0xff]
  %v1273 = vld [vmem:[%s1 + $0x2720] sm:$0xff]
  %v1274 = vld [vmem:[%s1 + $0x2728] sm:$0xff]
  %v1275 = vld [vmem:[%s1 + $0x2730] sm:$0xff]
  %v1276 = vld [vmem:[%s1 + $0x2738] sm:$0xff]
  %v1277 = vld [vmem:[%s1 + $0x2740] sm:$0xff]
  %v1278 = vld [vmem:[%s1 + $0x2748] sm:$0xff]
  %v1279 = vld [vmem:[%s1 + $0x2750] sm:$0xff]
  %v1280 = vld [vmem:[%s1 + $0x2758] sm:$0xff]
  %v1281 = vld [vmem:[%s1 + $0x2760] sm:$0xff]
  %v1282 = vld [vmem:[%s1 + $0x2768] sm:$0xff]
  %v1283 = vld [vmem:[%s1 + $0x2770] sm:$0xff]
  %v1284 = vld [vmem:[%s1 + $0x2778] sm:$0xff]
  %v1285 = vld [vmem:[%s1 + $0x2780] sm:$0xff]
  %v1286 = vld [vmem:[%s1 + $0x2788] sm:$0xff]
  %v1287 = vld [vmem:[%s1 + $0x2790] sm:$0xff]
  %v1288 = vld [vmem:[%s1 + $0x2798] sm:$0xff]
  %v1289 = vld [vmem:[%s1 + $0x27a0] sm:$0xff]
  %v1290 = vld [vmem:[%s1 + $0x27a8] sm:$0xff]
  %v1291 = vld [vmem:[%s1 + $0x27b0] sm:$0xff]
  %v1292 = vld [vmem:[%s1 + $0x27b8] sm:$0xff]
  %v1293 = vld [vmem:[%s1 + $0x27c0] sm:$0xff]
  %v1294 = vld [vmem:[%s1 + $0x27c8] sm:$0xff]
  %v1295 = vld [vmem:[%s1 + $0x27d0] sm:$0xff]
  %v1296 = vld [vmem:[%s1 + $0x27d8] sm:$0xff]
  %v1297 = vld [vmem:[%s1 + $0x27e0] sm:$0xff]
  %v1298 = vld [vmem:[%s1 + $0x27e8] sm:$0xff]
  %v1299 = vld [vmem:[%s1 + $0x27f0] sm:$0xff]
  %v1300 = vld [vmem:[%s1 + $0x27f8] sm:$0xff]
  %v1301 = vld [vmem:[%s1 + $0x2800] sm:$0xff]
  %v1302 = vld [vmem:[%s1 + $0x2808] sm:$0xff]
  %v1303 = vld [vmem:[%s1 + $0x2810] sm:$0xff]
  %v1304 = vld [vmem:[%s1 + $0x2818] sm:$0xff]
  %v1305 = vld [vmem:[%s1 + $0x2820] sm:$0xff]
  %v1306 = vld [vmem:[%s1 + $0x2828] sm:$0xff]
  %v1307 = vld [vmem:[%s1 + $0x2830] sm:$0xff]
  %v1308 = vld [vmem:[%s1 + $0x2838] sm:$0xff]
  %v1309 = vld [vmem:[%s1 + $0x2840] sm:$0xff]
  %v1310 = vld [vmem:[%s1 + $0x2848] sm:$0xff]
  %v1311 = vld [vmem:[%s1 + $0x2850] sm:$0xff]
  %v1312 = vld [vmem:[%s1 + $0x2858] sm:$0xff]
  %v1313 = vld [vmem:[%s1 + $0x2860] sm:$0xff]
  %v1314 = vld [vmem:[%s1 + $0x2868] sm:$0xff]
  %v1315 = vld [vmem:[%s1 + $0x2870] sm:$0xff]
  %v1316 = vld [vmem:[%s1 + $0x2878] sm:$0xff]
  %v1317 = vld [vmem:[%s1 + $0x2880] sm:$0xff]
  %v1318 = vld [vmem:[%s1 + $0x2888] sm:$0xff]
  %v1319 = vld [vmem:[%s1 + $0x2890] sm:$0xff]
  %v1320 = vld [vmem:[%s1 + $0x2898] sm:$0xff]
  %v1321 = vld [vmem:[%s1 + $0x28a0] sm:$0xff]
  %v1322 = vld [vmem:[%s1 + $0x28a8] sm:$0xff]
  %v1323 = vld [vmem:[%s1 + $0x28b0] sm:$0xff]
  %v1324 = vld [vmem:[%s1 + $0x28b8] sm:$0xff]
  %v1325 = vld [vmem:[%s1 + $0x28c0] sm:$0xff]
  %v1326 = vld [vmem:[%s1 + $0x28c8] sm:$0xff]
  %v1327 = vld [vmem:[%s1 + $0x28d0] sm:$0xff]
  %v1328 = vld [vmem:[%s1 + $0x28d8] sm:$0xff]
  %v1329 = vld [vmem:[%s1 + $0x28e0] sm:$0xff]
  %v1330 = vld [vmem:[%s1 + $0x28e8] sm:$0xff]
  %v1331 = vld [vmem:[%s1 + $0x28f0] sm:$0xff]
  %v1332 = vld [vmem:[%s1 + $0x28f8] sm:$0xff]
  %v1333 = vld [vmem:[%s1 + $0x2900] sm:$0xff]
  %v1334 = vld [vmem:[%s1 + $0x2908] sm:$0xff]
  %v1335 = vld [vmem:[%s1 + $0x2910] sm:$0xff]
  %v1336 = vld [vmem:[%s1 + $0x2918] sm:$0xff]
  %v1337 = vld [vmem:[%s1 + $0x2920] sm:$0xff]
  %v1338 = vld [vmem:[%s1 + $0x2928] sm:$0xff]
  %v1339 = vld [vmem:[%s1 + $0x2930] sm:$0xff]
  %v1340 = vld [vmem:[%s1 + $0x2938] sm:$0xff]
  %v1341 = vld [vmem:[%s1 + $0x2940] sm:$0xff]
  %v1342 = vld [vmem:[%s1 + $0x2948] sm:$0xff]
  %v1343 = vld [vmem:[%s1 + $0x2950] sm:$0xff]
  %v1344 = vld [vmem:[%s1 + $0x2958] sm:$0xff]
  %v1345 = vld [vmem:[%s1 + $0x2960] sm:$0xff]
  %v1346 = vld [vmem:[%s1 + $0x2968] sm:$0xff]
  %v1347 = vld [vmem:[%s1 + $0x2970] sm:$0xff]
  %v1348 = vld [vmem:[%s1 + $0x2978] sm:$0xff]
  %v1349 = vld [vmem:[%s1 + $0x2980] sm:$0xff]
  %v1350 = vld [vmem:[%s1 + $0x2988] sm:$0xff]
  %v1351 = vld [vmem:[%s1 + $0x2990] sm:$0xff]
  %v1352 = vld [vmem:[%s1 + $0x2998] sm:$0xff]
  %v1353 = vld [vmem:[%s1 + $0x29a0] sm:$0xff]
  %v1354 = vld [vmem:[%s1 + $0x29a8] sm:$0xff]
  %v1355 = vld [vmem:[%s1 + $0x29b0] sm:$0xff]
  %v1356 = vld [vmem:[%s1 + $0x29b8] sm:$0xff]
  %v1357 = vld [vmem:[%s1 + $0x29c0] sm:$0xff]
  %v1358 = vld [vmem:[%s1 + $0x29c8] sm:$0xff]
  %v1359 = vld [vmem:[%s1 + $0x29d0] sm:$0xff]
  %v1360 = vld [vmem:[%s1 + $0x29d8] sm:$0xff]
  %v1361 = vld [vmem:[%s1 + $0x29e0] sm:$0xff]
  %v1362 = vld [vmem:[%s1 + $0x29e8] sm:$0xff]
  %v1363 = vld [vmem:[%s1 + $0x29f0] sm:$0xff]
  %v1364 = vld [vmem:[%s1 + $0x29f8] sm:$0xff]
  %v1365 = vld [vmem:[%s1 + $0x2a00] sm:$0xff]
  %v1366 = vld [vmem:[%s1 + $0x2a08] sm:$0xff]
  %v1367 = vld [vmem:[%s1 + $0x2a10] sm:$0xff]
  %v1368 = vld [vmem:[%s1 + $0x2a18] sm:$0xff]
  %v1369 = vld [vmem:[%s1 + $0x2a20] sm:$0xff]
  %v1370 = vld [vmem:[%s1 + $0x2a28] sm:$0xff]
  %v1371 = vld [vmem:[%s1 + $0x2a30] sm:$0xff]
  %v1372 = vld [vmem:[%s1 + $0x2a38] sm:$0xff]
  %v1373 = vld [vmem:[%s1 + $0x2a40] sm:$0xff]
  %v1374 = vld [vmem:[%s1 + $0x2a48] sm:$0xff]
  %v1375 = vld [vmem:[%s1 + $0x2a50] sm:$0xff]
  %v1376 = vld [vmem:[%s1 + $0x2a58] sm:$0xff]
  %v1377 = vld [vmem:[%s1 + $0x2a60] sm:$0xff]
  %v1378 = vld [vmem:[%s1 + $0x2a68] sm:$0xff]
  %v1379 = vld [vmem:[%s1 + $0x2a70] sm:$0xff]
  %v1380 = vld [vmem:[%s1 + $0x2a78] sm:$0xff]
  %v1381 = vld [vmem:[%s1 + $0x2a80] sm:$0xff]
  %v1382 = vld [vmem:[%s1 + $0x2a88] sm:$0xff]
  %v1383 = vld [vmem:[%s1 + $0x2a90] sm:$0xff]
  %v1384 = vld [vmem:[%s1 + $0x2a98] sm:$0xff]
  %v1385 = vld [vmem:[%s1 + $0x2aa0] sm:$0xff]
  %v1386 = vld [vmem:[%s1 + $0x2aa8] sm:$0xff]
  %v1387 = vld [vmem:[%s1 + $0x2ab0] sm:$0xff]
  %v1388 = vld [vmem:[%s1 + $0x2ab8] sm:$0xff]
  %v1389 = vld [vmem:[%s1 + $0x2ac0] sm:$0xff]
  %v1390 = vld [vmem:[%s1 + $0x2ac8] sm:$0xff]
  %v1391 = vld [vmem:[%s1 + $0x2ad0] sm:$0xff]
  %v1392 = vld [vmem:[%s1 + $0x2ad8] sm:$0xff]
  %v1393 = vld [vmem:[%s1 + $0x2ae0] sm:$0xff]
  %v1394 = vld [vmem:[%s1 + $0x2ae8] sm:$0xff]
  %v1395 = vld [vmem:[%s1 + $0x2af0] sm:$0xff]
  %v1396 = vld [vmem:[%s1 + $0x2af8] sm:$0xff]
  %v1397 = vld [vmem:[%s1 + $0x2b00] sm:$0xff]
  %v1398 = vld [vmem:[%s1 + $0x2b08] sm:$0xff]
  %v1399 = vld [vmem:[%s1 + $0x2b10] sm:$0xff]
  %v1400 = vld [vmem:[%s1 + $0x2b18] sm:$0xff]
  %v1401 = vld [vmem:[%s1 + $0x2b20] sm:$0xff]
  %v1402 = vld [vmem:[%s1 + $0x2b28] sm:$0xff]
  %v1403 = vld [vmem:[%s1 + $0x2b30] sm:$0xff]
  %v1404 = vld [vmem:[%s1 + $0x2b38] sm:$0xff]
  %v1405 = vld [vmem:[%s1 + $0x2b40] sm:$0xff]
  %v1406 = vld [vmem:[%s1 + $0x2b48] sm:$0xff]
  %v1407 = vld [vmem:[%s1 + $0x2b50] sm:$0xff]
  %v1408 = vld [vmem:[%s1 + $0x2b58] sm:$0xff]
  %v1409 = vld [vmem:[%s1 + $0x2b60] sm:$0xff]
  %v1410 = vld [vmem:[%s1 + $0x2b68] sm:$0xff]
  %v1411 = vld [vmem:[%s1 + $0x2b70] sm:$0xff]
  %v1412 = vld [vmem:[%s1 + $0x2b78] sm:$0xff]
  %v1413 = vld [vmem:[%s1 + $0x2b80] sm:$0xff]
  %v1414 = vld [vmem:[%s1 + $0x2b88] sm:$0xff]
  %v1415 = vld [vmem:[%s1 + $0x2b90] sm:$0xff]
  %v1416 = vld [vmem:[%s1 + $0x2b98] sm:$0xff]
  %v1417 = vld [vmem:[%s1 + $0x2ba0] sm:$0xff]
  %v1418 = vld [vmem:[%s1 + $0x2ba8] sm:$0xff]
  %v1419 = vld [vmem:[%s1 + $0x2bb0] sm:$0xff]
  %v1420 = vld [vmem:[%s1 + $0x2bb8] sm:$0xff]
  %v1421 = vld [vmem:[%s1 + $0x2bc0] sm:$0xff]
  %v1422 = vld [vmem:[%s1 + $0x2bc8] sm:$0xff]
  %v1423 = vld [vmem:[%s1 + $0x2bd0] sm:$0xff]
  %v1424 = vld [vmem:[%s1 + $0x2bd8] sm:$0xff]
  %v1425 = vld [vmem:[%s1 + $0x2be0] sm:$0xff]
  %v1426 = vld [vmem:[%s1 + $0x2be8] sm:$0xff]
  %v1427 = vld [vmem:[%s1 + $0x2bf0] sm:$0xff]
  %v1428 = vld [vmem:[%s1 + $0x2bf8] sm:$0xff]
  %v1429 = vld [vmem:[%s1 + $0x2c00] sm:$0xff]
  %v1430 = vld [vmem:[%s1 + $0x2c08] sm:$0xff]
  %v1431 = vld [vmem:[%s1 + $0x2c10] sm:$0xff]
  %v1432 = vld [vmem:[%s1 + $0x2c18] sm:$0xff]
  %v1433 = vld [vmem:[%s1 + $0x2c20] sm:$0xff]
  %v1434 = vld [vmem:[%s1 + $0x2c28] sm:$0xff]
  %v1435 = vld [vmem:[%s1 + $0x2c30] sm:$0xff]
  %v1436 = vld [vmem:[%s1 + $0x2c38] sm:$0xff]
  %v1437 = vld [vmem:[%s1 + $0x2c40] sm:$0xff]
  %v1438 = vld [vmem:[%s1 + $0x2c48] sm:$0xff]
  %v1439 = vld [vmem:[%s1 + $0x2c50] sm:$0xff]
  %v1440 = vld [vmem:[%s1 + $0x2c58] sm:$0xff]
  %v1441 = vld [vmem:[%s1 + $0x2c60] sm:$0xff]
  %v1442 = vld [vmem:[%s1 + $0x2c68] sm:$0xff]
  %v1443 = vld [vmem:[%s1 + $0x2c70] sm:$0xff]
  %v1444 = vld [vmem:[%s1 + $0x2c78] sm:$0xff]
  %v1445 = vld [vmem:[%s1 + $0x2c80] sm:$0xff]
  %v1446 = vld [vmem:[%s1 + $0x2c88] sm:$0xff]
  %v1447 = vld [vmem:[%s1 + $0x2c90] sm:$0xff]
  %v1448 = vld [vmem:[%s1 + $0x2c98] sm:$0xff]
  %v1449 = vld [vmem:[%s1 + $0x2ca0] sm:$0xff]
  %v1450 = vld [vmem:[%s1 + $0x2ca8] sm:$0xff]
  %v1451 = vld [vmem:[%s1 + $0x2cb0] sm:$0xff]
  %v1452 = vld [vmem:[%s1 + $0x2cb8] sm:$0xff]
  %v1453 = vld [vmem:[%s1 + $0x2cc0] sm:$0xff]
  %v1454 = vld [vmem:[%s1 + $0x2cc8] sm:$0xff]
  %v1455 = vld [vmem:[%s1 + $0x2cd0] sm:$0xff]
  %v1456 = vld [vmem:[%s1 + $0x2cd8] sm:$0xff]
  %v1457 = vld [vmem:[%s1 + $0x2ce0] sm:$0xff]
  %v1458 = vld [vmem:[%s1 + $0x2ce8] sm:$0xff]
  %v1459 = vld [vmem:[%s1 + $0x2cf0] sm:$0xff]
  %v1460 = vld [vmem:[%s1 + $0x2cf8] sm:$0xff]
  %v1461 = vld [vmem:[%s1 + $0x2d00] sm:$0xff]
  %v1462 = vld [vmem:[%s1 + $0x2d08] sm:$0xff]
  %v1463 = vld [vmem:[%s1 + $0x2d10] sm:$0xff]
  %v1464 = vld [vmem:[%s1 + $0x2d18] sm:$0xff]
  %v1465 = vld [vmem:[%s1 + $0x2d20] sm:$0xff]
  %v1466 = vld [vmem:[%s1 + $0x2d28] sm:$0xff]
  %v1467 = vld [vmem:[%s1 + $0x2d30] sm:$0xff]
  %v1468 = vld [vmem:[%s1 + $0x2d38] sm:$0xff]
  %v1469 = vld [vmem:[%s1 + $0x2d40] sm:$0xff]
  %v1470 = vld [vmem:[%s1 + $0x2d48] sm:$0xff]
  %v1471 = vld [vmem:[%s1 + $0x2d50] sm:$0xff]
  %v1472 = vld [vmem:[%s1 + $0x2d58] sm:$0xff]
  %v1473 = vld [vmem:[%s1 + $0x2d60] sm:$0xff]
  %v1474 = vld [vmem:[%s1 + $0x2d68] sm:$0xff]
  %v1475 = vld [vmem:[%s1 + $0x2d70] sm:$0xff]
  %v1476 = vld [vmem:[%s1 + $0x2d78] sm:$0xff]
  %v1477 = vld [vmem:[%s1 + $0x2d80] sm:$0xff]
  %v1478 = vld [vmem:[%s1 + $0x2d88] sm:$0xff]
  %v1479 = vld [vmem:[%s1 + $0x2d90] sm:$0xff]
  %v1480 = vld [vmem:[%s1 + $0x2d98] sm:$0xff]
  %v1481 = vld [vmem:[%s1 + $0x2da0] sm:$0xff]
  %v1482 = vld [vmem:[%s1 + $0x2da8] sm:$0xff]
  %v1483 = vld [vmem:[%s1 + $0x2db0] sm:$0xff]
  %v1484 = vld [vmem:[%s1 + $0x2db8] sm:$0xff]
  %v1485 = vld [vmem:[%s1 + $0x2dc0] sm:$0xff]
  %v1486 = vld [vmem:[%s1 + $0x2dc8] sm:$0xff]
  %v1487 = vld [vmem:[%s1 + $0x2dd0] sm:$0xff]
  %v1488 = vld [vmem:[%s1 + $0x2dd8] sm:$0xff]
  %v1489 = vld [vmem:[%s1 + $0x2de0] sm:$0xff]
  %v1490 = vld [vmem:[%s1 + $0x2de8] sm:$0xff]
  %v1491 = vld [vmem:[%s1 + $0x2df0] sm:$0xff]
  %v1492 = vld [vmem:[%s1 + $0x2df8] sm:$0xff]
  %v1493 = vld [vmem:[%s1 + $0x2e00] sm:$0xff]
  %v1494 = vld [vmem:[%s1 + $0x2e08] sm:$0xff]
  %v1495 = vld [vmem:[%s1 + $0x2e10] sm:$0xff]
  %v1496 = vld [vmem:[%s1 + $0x2e18] sm:$0xff]
  %v1497 = vld [vmem:[%s1 + $0x2e20] sm:$0xff]
  %v1498 = vld [vmem:[%s1 + $0x2e28] sm:$0xff]
  %v1499 = vld [vmem:[%s1 + $0x2e30] sm:$0xff]
  %v1500 = vld [vmem:[%s1 + $0x2e38] sm:$0xff]
  %v1501 = vld [vmem:[%s1 + $0x2e40] sm:$0xff]
  %v1502 = vld [vmem:[%s1 + $0x2e48] sm:$0xff]
  %v1503 = vld [vmem:[%s1 + $0x2e50] sm:$0xff]
  %v1504 = vld [vmem:[%s1 + $0x2e58] sm:$0xff]
  %v1505 = vld [vmem:[%s1 + $0x2e60] sm:$0xff]
  %v1506 = vld [vmem:[%s1 + $0x2e68] sm:$0xff]
  %v1507 = vld [vmem:[%s1 + $0x2e70] sm:$0xff]
  %v1508 = vld [vmem:[%s1 + $0x2e78] sm:$0xff]
  %v1509 = vld [vmem:[%s1 + $0x2e80] sm:$0xff]
  %v1510 = vld [vmem:[%s1 + $0x2e88] sm:$0xff]
  %v1511 = vld [vmem:[%s1 + $0x2e90] sm:$0xff]
  %v1512 = vld [vmem:[%s1 + $0x2e98] sm:$0xff]
  %v1513 = vld [vmem:[%s1 + $0x2ea0] sm:$0xff]
  %v1514 = vld [vmem:[%s1 + $0x2ea8] sm:$0xff]
  %v1515 = vld [vmem:[%s1 + $0x2eb0] sm:$0xff]
  %v1516 = vld [vmem:[%s1 + $0x2eb8] sm:$0xff]
  %v1517 = vld [vmem:[%s1 + $0x2ec0] sm:$0xff]
  %v1518 = vld [vmem:[%s1 + $0x2ec8] sm:$0xff]
  %v1519 = vld [vmem:[%s1 + $0x2ed0] sm:$0xff]
  %v1520 = vld [vmem:[%s1 + $0x2ed8] sm:$0xff]
  %v1521 = vld [vmem:[%s1 + $0x2ee0] sm:$0xff]
  %v1522 = vld [vmem:[%s1 + $0x2ee8] sm:$0xff]
  %v1523 = vld [vmem:[%s1 + $0x2ef0] sm:$0xff]
  %v1524 = vld [vmem:[%s1 + $0x2ef8] sm:$0xff]
  %v1525 = vld [vmem:[%s1 + $0x2f00] sm:$0xff]
  %v1526 = vld [vmem:[%s1 + $0x2f08] sm:$0xff]
  %v1527 = vld [vmem:[%s1 + $0x2f10] sm:$0xff]
  %v1528 = vld [vmem:[%s1 + $0x2f18] sm:$0xff]
  %v1529 = vld [vmem:[%s1 + $0x2f20] sm:$0xff]
  %v1530 = vld [vmem:[%s1 + $0x2f28] sm:$0xff]
  %v1531 = vld [vmem:[%s1 + $0x2f30] sm:$0xff]
  %v1532 = vld [vmem:[%s1 + $0x2f38] sm:$0xff]
  %v1533 = vld [vmem:[%s1 + $0x2f40] sm:$0xff]
  %v1534 = vld [vmem:[%s1 + $0x2f48] sm:$0xff]
  %v1535 = vld [vmem:[%s1 + $0x2f50] sm:$0xff]
  %v1536 = vld [vmem:[%s1 + $0x2f58] sm:$0xff]
  %v1537 = vld [vmem:[%s1 + $0x2f60] sm:$0xff]
  %v1538 = vld [vmem:[%s1 + $0x2f68] sm:$0xff]
  %v1539 = vld [vmem:[%s1 + $0x2f70] sm:$0xff]
  %v1540 = vld [vmem:[%s1 + $0x2f78] sm:$0xff]
  %v1541 = vld [vmem:[%s1 + $0x2f80] sm:$0xff]
  %v1542 = vld [vmem:[%s1 + $0x2f88] sm:$0xff]
  %v1543 = vld [vmem:[%s1 + $0x2f90] sm:$0xff]
  %v1544 = vld [vmem:[%s1 + $0x2f98] sm:$0xff]
  %v1545 = vld [vmem:[%s1 + $0x2fa0] sm:$0xff]
  %v1546 = vld [vmem:[%s1 + $0x2fa8] sm:$0xff]
  %v1547 = vld [vmem:[%s1 + $0x2fb0] sm:$0xff]
  %v1548 = vld [vmem:[%s1 + $0x2fb8] sm:$0xff]
  %v1549 = vld [vmem:[%s1 + $0x2fc0] sm:$0xff]
  %v1550 = vld [vmem:[%s1 + $0x2fc8] sm:$0xff]
  %v1551 = vld [vmem:[%s1 + $0x2fd0] sm:$0xff]
  %v1552 = vld [vmem:[%s1 + $0x2fd8] sm:$0xff]
  %v1553 = vld [vmem:[%s1 + $0x2fe0] sm:$0xff]
  %v1554 = vld [vmem:[%s1 + $0x2fe8] sm:$0xff]
  %v1555 = vld [vmem:[%s1 + $0x2ff0] sm:$0xff]
  %v1556 = vld [vmem:[%s1 + $0x2ff8] sm:$0xff]
  %v1557 = vld [vmem:[%s1 + $0x3000] sm:$0xff]
  %v1558 = vld [vmem:[%s1 + $0x3008] sm:$0xff]
  %v1559 = vld [vmem:[%s1 + $0x3010] sm:$0xff]
  %v1560 = vld [vmem:[%s1 + $0x3018] sm:$0xff]
  %v1561 = vld [vmem:[%s1 + $0x3020] sm:$0xff]
  %v1562 = vld [vmem:[%s1 + $0x3028] sm:$0xff]
  %v1563 = vld [vmem:[%s1 + $0x3030] sm:$0xff]
  %v1564 = vld [vmem:[%s1 + $0x3038] sm:$0xff]
  %v1565 = vld [vmem:[%s1 + $0x3040] sm:$0xff]
  %v1566 = vld [vmem:[%s1 + $0x3048] sm:$0xff]
  %v1567 = vld [vmem:[%s1 + $0x3050] sm:$0xff]
  %v1568 = vld [vmem:[%s1 + $0x3058] sm:$0xff]
  %v1569 = vld [vmem:[%s1 + $0x3060] sm:$0xff]
  %v1570 = vld [vmem:[%s1 + $0x3068] sm:$0xff]
  %v1571 = vld [vmem:[%s1 + $0x3070] sm:$0xff]
  %v1572 = vld [vmem:[%s1 + $0x3078] sm:$0xff]
  %v1573 = vld [vmem:[%s1 + $0x3080] sm:$0xff]
  %v1574 = vld [vmem:[%s1 + $0x3088] sm:$0xff]
  %v1575 = vld [vmem:[%s1 + $0x3090] sm:$0xff]
  %v1576 = vld [vmem:[%s1 + $0x3098] sm:$0xff]
  %v1577 = vld [vmem:[%s1 + $0x30a0] sm:$0xff]
  %v1578 = vld [vmem:[%s1 + $0x30a8] sm:$0xff]
  %v1579 = vld [vmem:[%s1 + $0x30b0] sm:$0xff]
  %v1580 = vld [vmem:[%s1 + $0x30b8] sm:$0xff]
  %v1581 = vld [vmem:[%s1 + $0x30c0] sm:$0xff]
  %v1582 = vld [vmem:[%s1 + $0x30c8] sm:$0xff]
  %v1583 = vld [vmem:[%s1 + $0x30d0] sm:$0xff]
  %v1584 = vld [vmem:[%s1 + $0x30d8] sm:$0xff]
  %v1585 = vld [vmem:[%s1 + $0x30e0] sm:$0xff]
  %v1586 = vld [vmem:[%s1 + $0x30e8] sm:$0xff]
  %v1587 = vld [vmem:[%s1 + $0x30f0] sm:$0xff]
  %v1588 = vld [vmem:[%s1 + $0x30f8] sm:$0xff]
  %v1589 = vld [vmem:[%s1 + $0x3100] sm:$0xff]
  %v1590 = vld [vmem:[%s1 + $0x3108] sm:$0xff]
  %v1591 = vld [vmem:[%s1 + $0x3110] sm:$0xff]
  %v1592 = vld [vmem:[%s1 + $0x3118] sm:$0xff]
  %v1593 = vld [vmem:[%s1 + $0x3120] sm:$0xff]
  %v1594 = vld [vmem:[%s1 + $0x3128] sm:$0xff]
  %v1595 = vld [vmem:[%s1 + $0x3130] sm:$0xff]
  %v1596 = vld [vmem:[%s1 + $0x3138] sm:$0xff]
  %v1597 = vld [vmem:[%s1 + $0x3140] sm:$0xff]
  %v1598 = vld [vmem:[%s1 + $0x3148] sm:$0xff]
  %v1599 = vld [vmem:[%s1 + $0x3150] sm:$0xff]
  %v1600 = vld [vmem:[%s1 + $0x3158] sm:$0xff]
  %v1601 = vld [vmem:[%s1 + $0x3160] sm:$0xff]
  %v1602 = vld [vmem:[%s1 + $0x3168] sm:$0xff]
  %v1603 = vld [vmem:[%s1 + $0x3170] sm:$0xff]
  %v1604 = vld [vmem:[%s1 + $0x3178] sm:$0xff]
  %v1605 = vld [vmem:[%s1 + $0x3180] sm:$0xff]
  %v1606 = vld [vmem:[%s1 + $0x3188] sm:$0xff]
  %v1607 = vld [vmem:[%s1 + $0x3190] sm:$0xff]
  %v1608 = vld [vmem:[%s1 + $0x3198] sm:$0xff]
  %v1609 = vld [vmem:[%s1 + $0x31a0] sm:$0xff]
  %v1610 = vld [vmem:[%s1 + $0x31a8] sm:$0xff]
  %v1611 = vld [vmem:[%s1 + $0x31b0] sm:$0xff]
  %v1612 = vld [vmem:[%s1 + $0x31b8] sm:$0xff]
  %v1613 = vld [vmem:[%s1 + $0x31c0] sm:$0xff]
  %v1614 = vld [vmem:[%s1 + $0x31c8] sm:$0xff]
  %v1615 = vld [vmem:[%s1 + $0x31d0] sm:$0xff]
  %v1616 = vld [vmem:[%s1 + $0x31d8] sm:$0xff]
  %v1617 = vld [vmem:[%s1 + $0x31e0] sm:$0xff]
  %v1618 = vld [vmem:[%s1 + $0x31e8] sm:$0xff]
  %v1619 = vld [vmem:[%s1 + $0x31f0] sm:$0xff]
  %v1620 = vld [vmem:[%s1 + $0x31f8] sm:$0xff]
  %v1621 = vld [vmem:[%s2] sm:$0xf]
  %v1623 = vlaneseq
  %v1624 = vshrl.u32 %v1623, 7
  %v1625 = vsub.s32 0, %v1624
  %v1626 = vrot.slane %v1621, %v1625
  %v1627 = vlaneseq
  %v1628 = vshrl.u32 %v1627, 7
  %v1629 = vsub.s32 1, %v1628
  %v1630 = vrot.slane %v1621, %v1629
  %v1631 = vlaneseq
  %v1632 = vshrl.u32 %v1631, 7
  %v1633 = vsub.s32 2, %v1632
  %v1634 = vrot.slane %v1621, %v1633
  %v1635 = vlaneseq
  %v1636 = vshrl.u32 %v1635, 7
  %v1637 = vsub.s32 3, %v1636
  %v1638 = vrot.slane %v1621, %v1637
  %v1650 = vcombine.high %v14, %v14
  %v1652 = vunpack.c.l.s4 1983009808
  %v1653 = vunpack.c.0.s8 %v1652
  %v1654 = vlaneseq
  %v1655 = vshrl.u32 %v1654, 7
  %v1656 = vsub.s32 %v1653, %v1655
  %v1657 = vrot.slane %v14, %v1656
  %v1659 = vunpack.c.l.s4 1983009808
  %v1660 = vunpack.c.0.s8 %v1659
  %v1661 = vlaneseq
  %v1662 = vshrl.u32 %v1661, 7
  %v1663 = vsub.s32 %v1660, %v1662
  %v1664 = vrot.slane %v1650, %v1663
  %v1665 = vcombine.high %v1657, %v1657
  %v1666 = vcombine.high %v1664, %v1664
  %v1667 = vcombine.high %v15, %v15
  %v1669 = vunpack.c.l.s4 1983009808
  %v1670 = vunpack.c.0.s8 %v1669
  %v1671 = vlaneseq
  %v1672 = vshrl.u32 %v1671, 7
  %v1673 = vsub.s32 %v1670, %v1672
  %v1674 = vrot.slane %v15, %v1673
  %v1676 = vunpack.c.l.s4 1983009808
  %v1677 = vunpack.c.0.s8 %v1676
  %v1678 = vlaneseq
  %v1679 = vshrl.u32 %v1678, 7
  %v1680 = vsub.s32 %v1677, %v1679
  %v1681 = vrot.slane %v1667, %v1680
  %v1682 = vcombine.high %v1674, %v1674
  %v1683 = vcombine.high %v1681, %v1681
  %v1684 = vcombine.high %v16, %v16
  %v1686 = vunpack.c.l.s4 1983009808
  %v1687 = vunpack.c.0.s8 %v1686
  %v1688 = vlaneseq
  %v1689 = vshrl.u32 %v1688, 7
  %v1690 = vsub.s32 %v1687, %v1689
  %v1691 = vrot.slane %v16, %v1690
  %v1693 = vunpack.c.l.s4 1983009808
  %v1694 = vunpack.c.0.s8 %v1693
  %v1695 = vlaneseq
  %v1696 = vshrl.u32 %v1695, 7
  %v1697 = vsub.s32 %v1694, %v1696
  %v1698 = vrot.slane %v1684, %v1697
  %v1699 = vcombine.high %v1691, %v1691
  %v1700 = vcombine.high %v1698, %v1698
  %v1701 = vcombine.high %v17, %v17
  %v1703 = vunpack.c.l.s4 1983009808
  %v1704 = vunpack.c.0.s8 %v1703
  %v1705 = vlaneseq
  %v1706 = vshrl.u32 %v1705, 7
  %v1707 = vsub.s32 %v1704, %v1706
  %v1708 = vrot.slane %v17, %v1707
  %v1710 = vunpack.c.l.s4 1983009808
  %v1711 = vunpack.c.0.s8 %v1710
  %v1712 = vlaneseq
  %v1713 = vshrl.u32 %v1712, 7
  %v1714 = vsub.s32 %v1711, %v1713
  %v1715 = vrot.slane %v1701, %v1714
  %v1716 = vcombine.high %v1708, %v1708
  %v1717 = vcombine.high %v1715, %v1715
  %v1718 = vcombine.high %v18, %v18
  %v1720 = vunpack.c.l.s4 1983009808
  %v1721 = vunpack.c.0.s8 %v1720
  %v1722 = vlaneseq
  %v1723 = vshrl.u32 %v1722, 7
  %v1724 = vsub.s32 %v1721, %v1723
  %v1725 = vrot.slane %v18, %v1724
  %v1727 = vunpack.c.l.s4 1983009808
  %v1728 = vunpack.c.0.s8 %v1727
  %v1729 = vlaneseq
  %v1730 = vshrl.u32 %v1729, 7
  %v1731 = vsub.s32 %v1728, %v1730
  %v1732 = vrot.slane %v1718, %v1731
  %v1733 = vcombine.high %v1725, %v1725
  %v1734 = vcombine.high %v1732, %v1732
  %v1735 = vcombine.high %v19, %v19
  %v1737 = vunpack.c.l.s4 1983009808
  %v1738 = vunpack.c.0.s8 %v1737
  %v1739 = vlaneseq
  %v1740 = vshrl.u32 %v1739, 7
  %v1741 = vsub.s32 %v1738, %v1740
  %v1742 = vrot.slane %v19, %v1741
  %v1744 = vunpack.c.l.s4 1983009808
  %v1745 = vunpack.c.0.s8 %v1744
  %v1746 = vlaneseq
  %v1747 = vshrl.u32 %v1746, 7
  %v1748 = vsub.s32 %v1745, %v1747
  %v1749 = vrot.slane %v1735, %v1748
  %v1750 = vcombine.high %v1742, %v1742
  %v1751 = vcombine.high %v1749, %v1749
  %v1753 = vunpack.c.l.s4 1983009808
  %v1754 = vunpack.c.0.s8 %v1753
  %v1755 = vlaneseq
  %v1756 = vshrl.u32 %v1755, 7
  %v1757 = vsub.s32 %v1754, %v1756
  %v1758 = vrot.slane %v20, %v1757
  %1784 = vmatprep.subr.mxu0 %v82
  %1785 = vmatpush1.msra.mxu0 %v81
  %1786 = vmatprep.subr.mxu0 %v78
  %1787 = vmatpush1.msra.mxu0 %v77
  %1788 = vmatprep.subr.mxu0 %v74
  %1789 = vmatpush1.msra.mxu0 %v73
  %1790 = vmatprep.subr.mxu0 %v70
  %1791 = vmatpush1.msra.mxu0 %v69
  %1792 = vmatprep.subr.mxu0 %v66
  %1793 = vmatpush1.msra.mxu0 %v65
  %1794 = vmatprep.subr.mxu0 %v62
  %1795 = vmatpush1.msra.mxu0 %v61
  %1796 = vmatprep.subr.mxu0 %v58
  %1797 = vmatpush1.msra.mxu0 %v57
  %1798 = vmatprep.subr.mxu0 %v54
  %1799 = vmatpush1.msra.mxu0 %v53
  %1800 = vmatprep.subr.mxu0 %v50
  %1801 = vmatpush1.msra.mxu0 %v49
  %1802 = vmatprep.subr.mxu0 %v46
  %1803 = vmatpush1.msra.mxu0 %v45
  %1804 = vmatprep.subr.mxu0 %v42
  %1805 = vmatpush1.msra.mxu0 %v41
  %1806 = vmatprep.subr.mxu0 %v38
  %1807 = vmatpush1.msra.mxu0 %v37
  %1808 = vmatprep.subr.mxu0 %v34
  %1809 = vmatpush1.msra.mxu0 %v33
  %1810 = vmatprep.subr.mxu0 %v30
  %1811 = vmatpush1.msra.mxu0 %v29
  %1812 = vmatprep.subr.mxu0 %v26
  %1813 = vmatpush1.msra.mxu0 %v25
  %1814 = vmatprep.subr.mxu0 %v22
  %1815 = vmatpush1.msra.mxu0 %v21
  %1816 = vmatprep.subr.mxu0 %v146
  %1817 = vmatpush2.msra.mxu0 %v145
  %1818 = vmatprep.subr.mxu0 %v142
  %1819 = vmatpush2.msra.mxu0 %v141
  %1820 = vmatprep.subr.mxu0 %v138
  %1821 = vmatpush2.msra.mxu0 %v137
  %1822 = vmatprep.subr.mxu0 %v134
  %1823 = vmatpush2.msra.mxu0 %v133
  %1824 = vmatprep.subr.mxu0 %v130
  %1825 = vmatpush2.msra.mxu0 %v129
  %1826 = vmatprep.subr.mxu0 %v126
  %1827 = vmatpush2.msra.mxu0 %v125
  %1828 = vmatprep.subr.mxu0 %v122
  %1829 = vmatpush2.msra.mxu0 %v121
  %1830 = vmatprep.subr.mxu0 %v118
  %1831 = vmatpush2.msra.mxu0 %v117
  %1832 = vmatprep.subr.mxu0 %v114
  %1833 = vmatpush2.msra.mxu0 %v113
  %1834 = vmatprep.subr.mxu0 %v110
  %1835 = vmatpush2.msra.mxu0 %v109
  %1836 = vmatprep.subr.mxu0 %v106
  %1837 = vmatpush2.msra.mxu0 %v105
  %1838 = vmatprep.subr.mxu0 %v102
  %1839 = vmatpush2.msra.mxu0 %v101
  %1840 = vmatprep.subr.mxu0 %v98
  %1841 = vmatpush2.msra.mxu0 %v97
  %1842 = vmatprep.subr.mxu0 %v94
  %1843 = vmatpush2.msra.mxu0 %v93
  %1844 = vmatprep.subr.mxu0 %v90
  %1845 = vmatpush2.msra.mxu0 %v89
  %1846 = vmatprep.subr.mxu0 %v86
  %1847 = vmatpush2.msra.mxu0 %v85
  %1848 = vmatprep.mubr.f32.mxu0 %v1665
  %1849 = vmatmul.mubr.f32.gmra.mxu0 %v1657
  %v1850 = vpop.f32.mrf.mxu0
  %v1851 = vadd.f32 %v1626, %v1850
  %v1852 = vpop.f32.mrf.mxu0
  %v1853 = vadd.f32 %v1630, %v1852
  %1854 = vdwg.mxu0
  %1855 = vmatprep.subr.mxu0 %v210
  %1856 = vmatpush1.msra.mxu0 %v209
  %1857 = vmatprep.subr.mxu0 %v206
  %1858 = vmatpush1.msra.mxu0 %v205
  %1859 = vmatprep.subr.mxu0 %v202
  %1860 = vmatpush1.msra.mxu0 %v201
  %1861 = vmatprep.subr.mxu0 %v198
  %1862 = vmatpush1.msra.mxu0 %v197
  %1863 = vmatprep.subr.mxu0 %v194
  %1864 = vmatpush1.msra.mxu0 %v193
  %1865 = vmatprep.subr.mxu0 %v190
  %1866 = vmatpush1.msra.mxu0 %v189
  %1867 = vmatprep.subr.mxu0 %v186
  %1868 = vmatpush1.msra.mxu0 %v185
  %1869 = vmatprep.subr.mxu0 %v182
  %1870 = vmatpush1.msra.mxu0 %v181
  %1871 = vmatprep.subr.mxu0 %v178
  %1872 = vmatpush1.msra.mxu0 %v177
  %1873 = vmatprep.subr.mxu0 %v174
  %1874 = vmatpush1.msra.mxu0 %v173
  %1875 = vmatprep.subr.mxu0 %v170
  %1876 = vmatpush1.msra.mxu0 %v169
  %1877 = vmatprep.subr.mxu0 %v166
  %1878 = vmatpush1.msra.mxu0 %v165
  %1879 = vmatprep.subr.mxu0 %v162
  %1880 = vmatpush1.msra.mxu0 %v161
  %1881 = vmatprep.subr.mxu0 %v158
  %1882 = vmatpush1.msra.mxu0 %v157
  %1883 = vmatprep.subr.mxu0 %v154
  %1884 = vmatpush1.msra.mxu0 %v153
  %1885 = vmatprep.subr.mxu0 %v150
  %1886 = vmatpush1.msra.mxu0 %v149
  %1887 = vmatprep.subr.mxu0 %v274
  %1888 = vmatpush2.msra.mxu0 %v273
  %1889 = vmatprep.subr.mxu0 %v270
  %1890 = vmatpush2.msra.mxu0 %v269
  %1891 = vmatprep.subr.mxu0 %v266
  %1892 = vmatpush2.msra.mxu0 %v265
  %1893 = vmatprep.subr.mxu0 %v262
  %1894 = vmatpush2.msra.mxu0 %v261
  %1895 = vmatprep.subr.mxu0 %v258
  %1896 = vmatpush2.msra.mxu0 %v257
  %1897 = vmatprep.subr.mxu0 %v254
  %1898 = vmatpush2.msra.mxu0 %v253
  %1899 = vmatprep.subr.mxu0 %v250
  %1900 = vmatpush2.msra.mxu0 %v249
  %1901 = vmatprep.subr.mxu0 %v246
  %1902 = vmatpush2.msra.mxu0 %v245
  %1903 = vmatprep.subr.mxu0 %v242
  %1904 = vmatpush2.msra.mxu0 %v241
  %1905 = vmatprep.subr.mxu0 %v238
  %1906 = vmatpush2.msra.mxu0 %v237
  %1907 = vmatprep.subr.mxu0 %v234
  %1908 = vmatpush2.msra.mxu0 %v233
  %1909 = vmatprep.subr.mxu0 %v230
  %1910 = vmatpush2.msra.mxu0 %v229
  %1911 = vmatprep.subr.mxu0 %v226
  %1912 = vmatpush2.msra.mxu0 %v225
  %1913 = vmatprep.subr.mxu0 %v222
  %1914 = vmatpush2.msra.mxu0 %v221
  %1915 = vmatprep.subr.mxu0 %v218
  %1916 = vmatpush2.msra.mxu0 %v217
  %1917 = vmatprep.subr.mxu0 %v214
  %1918 = vmatpush2.msra.mxu0 %v213
  %1919 = vmatprep.mubr.f32.mxu0 %v1666
  %1920 = vmatmul.mubr.f32.gmra.mxu0 %v1664
  %v1921 = vpop.f32.mrf.mxu0
  %v1922 = vadd.f32 %v1851, %v1921
  %v1923 = vpop.f32.mrf.mxu0
  %v1924 = vadd.f32 %v1853, %v1923
  %1925 = vdwg.mxu0
  %1926 = vmatprep.subr.mxu0 %v338
  %1927 = vmatpush1.msra.mxu0 %v337
  %1928 = vmatprep.subr.mxu0 %v334
  %1929 = vmatpush1.msra.mxu0 %v333
  %1930 = vmatprep.subr.mxu0 %v330
  %1931 = vmatpush1.msra.mxu0 %v329
  %1932 = vmatprep.subr.mxu0 %v326
  %1933 = vmatpush1.msra.mxu0 %v325
  %1934 = vmatprep.subr.mxu0 %v322
  %1935 = vmatpush1.msra.mxu0 %v321
  %1936 = vmatprep.subr.mxu0 %v318
  %1937 = vmatpush1.msra.mxu0 %v317
  %1938 = vmatprep.subr.mxu0 %v314
  %1939 = vmatpush1.msra.mxu0 %v313
  %1940 = vmatprep.subr.mxu0 %v310
  %1941 = vmatpush1.msra.mxu0 %v309
  %1942 = vmatprep.subr.mxu0 %v306
  %1943 = vmatpush1.msra.mxu0 %v305
  %1944 = vmatprep.subr.mxu0 %v302
  %1945 = vmatpush1.msra.mxu0 %v301
  %1946 = vmatprep.subr.mxu0 %v298
  %1947 = vmatpush1.msra.mxu0 %v297
  %1948 = vmatprep.subr.mxu0 %v294
  %1949 = vmatpush1.msra.mxu0 %v293
  %1950 = vmatprep.subr.mxu0 %v290
  %1951 = vmatpush1.msra.mxu0 %v289
  %1952 = vmatprep.subr.mxu0 %v286
  %1953 = vmatpush1.msra.mxu0 %v285
  %1954 = vmatprep.subr.mxu0 %v282
  %1955 = vmatpush1.msra.mxu0 %v281
  %1956 = vmatprep.subr.mxu0 %v278
  %1957 = vmatpush1.msra.mxu0 %v277
  %1958 = vmatprep.subr.mxu0 %v402
  %1959 = vmatpush2.msra.mxu0 %v401
  %1960 = vmatprep.subr.mxu0 %v398
  %1961 = vmatpush2.msra.mxu0 %v397
  %1962 = vmatprep.subr.mxu0 %v394
  %1963 = vmatpush2.msra.mxu0 %v393
  %1964 = vmatprep.subr.mxu0 %v390
  %1965 = vmatpush2.msra.mxu0 %v389
  %1966 = vmatprep.subr.mxu0 %v386
  %1967 = vmatpush2.msra.mxu0 %v385
  %1968 = vmatprep.subr.mxu0 %v382
  %1969 = vmatpush2.msra.mxu0 %v381
  %1970 = vmatprep.subr.mxu0 %v378
  %1971 = vmatpush2.msra.mxu0 %v377
  %1972 = vmatprep.subr.mxu0 %v374
  %1973 = vmatpush2.msra.mxu0 %v373
  %1974 = vmatprep.subr.mxu0 %v370
  %1975 = vmatpush2.msra.mxu0 %v369
  %1976 = vmatprep.subr.mxu0 %v366
  %1977 = vmatpush2.msra.mxu0 %v365
  %1978 = vmatprep.subr.mxu0 %v362
  %1979 = vmatpush2.msra.mxu0 %v361
  %1980 = vmatprep.subr.mxu0 %v358
  %1981 = vmatpush2.msra.mxu0 %v357
  %1982 = vmatprep.subr.mxu0 %v354
  %1983 = vmatpush2.msra.mxu0 %v353
  %1984 = vmatprep.subr.mxu0 %v350
  %1985 = vmatpush2.msra.mxu0 %v349
  %1986 = vmatprep.subr.mxu0 %v346
  %1987 = vmatpush2.msra.mxu0 %v345
  %1988 = vmatprep.subr.mxu0 %v342
  %1989 = vmatpush2.msra.mxu0 %v341
  %1990 = vmatprep.mubr.f32.mxu0 %v1682
  %1991 = vmatmul.mubr.f32.gmra.mxu0 %v1674
  %v1992 = vpop.f32.mrf.mxu0
  %v1993 = vadd.f32 %v1922, %v1992
  %v1994 = vpop.f32.mrf.mxu0
  %v1995 = vadd.f32 %v1924, %v1994
  %1996 = vdwg.mxu0
  %1997 = vmatprep.subr.mxu0 %v466
  %1998 = vmatpush1.msra.mxu0 %v465
  %1999 = vmatprep.subr.mxu0 %v462
  %2000 = vmatpush1.msra.mxu0 %v461
  %2001 = vmatprep.subr.mxu0 %v458
  %2002 = vmatpush1.msra.mxu0 %v457
  %2003 = vmatprep.subr.mxu0 %v454
  %2004 = vmatpush1.msra.mxu0 %v453
  %2005 = vmatprep.subr.mxu0 %v450
  %2006 = vmatpush1.msra.mxu0 %v449
  %2007 = vmatprep.subr.mxu0 %v446
  %2008 = vmatpush1.msra.mxu0 %v445
  %2009 = vmatprep.subr.mxu0 %v442
  %2010 = vmatpush1.msra.mxu0 %v441
  %2011 = vmatprep.subr.mxu0 %v438
  %2012 = vmatpush1.msra.mxu0 %v437
  %2013 = vmatprep.subr.mxu0 %v434
  %2014 = vmatpush1.msra.mxu0 %v433
  %2015 = vmatprep.subr.mxu0 %v430
  %2016 = vmatpush1.msra.mxu0 %v429
  %2017 = vmatprep.subr.mxu0 %v426
  %2018 = vmatpush1.msra.mxu0 %v425
  %2019 = vmatprep.subr.mxu0 %v422
  %2020 = vmatpush1.msra.mxu0 %v421
  %2021 = vmatprep.subr.mxu0 %v418
  %2022 = vmatpush1.msra.mxu0 %v417
  %2023 = vmatprep.subr.mxu0 %v414
  %2024 = vmatpush1.msra.mxu0 %v413
  %2025 = vmatprep.subr.mxu0 %v410
  %2026 = vmatpush1.msra.mxu0 %v409
  %2027 = vmatprep.subr.mxu0 %v406
  %2028 = vmatpush1.msra.mxu0 %v405
  %2029 = vmatprep.subr.mxu0 %v530
  %2030 = vmatpush2.msra.mxu0 %v529
  %2031 = vmatprep.subr.mxu0 %v526
  %2032 = vmatpush2.msra.mxu0 %v525
  %2033 = vmatprep.subr.mxu0 %v522
  %2034 = vmatpush2.msra.mxu0 %v521
  %2035 = vmatprep.subr.mxu0 %v518
  %2036 = vmatpush2.msra.mxu0 %v517
  %2037 = vmatprep.subr.mxu0 %v514
  %2038 = vmatpush2.msra.mxu0 %v513
  %2039 = vmatprep.subr.mxu0 %v510
  %2040 = vmatpush2.msra.mxu0 %v509
  %2041 = vmatprep.subr.mxu0 %v506
  %2042 = vmatpush2.msra.mxu0 %v505
  %2043 = vmatprep.subr.mxu0 %v502
  %2044 = vmatpush2.msra.mxu0 %v501
  %2045 = vmatprep.subr.mxu0 %v498
  %2046 = vmatpush2.msra.mxu0 %v497
  %2047 = vmatprep.subr.mxu0 %v494
  %2048 = vmatpush2.msra.mxu0 %v493
  %2049 = vmatprep.subr.mxu0 %v490
  %2050 = vmatpush2.msra.mxu0 %v489
  %2051 = vmatprep.subr.mxu0 %v486
  %2052 = vmatpush2.msra.mxu0 %v485
  %2053 = vmatprep.subr.mxu0 %v482
  %2054 = vmatpush2.msra.mxu0 %v481
  %2055 = vmatprep.subr.mxu0 %v478
  %2056 = vmatpush2.msra.mxu0 %v477
  %2057 = vmatprep.subr.mxu0 %v474
  %2058 = vmatpush2.msra.mxu0 %v473
  %2059 = vmatprep.subr.mxu0 %v470
  %2060 = vmatpush2.msra.mxu0 %v469
  %2061 = vmatprep.mubr.f32.mxu0 %v1683
  %2062 = vmatmul.mubr.f32.gmra.mxu0 %v1681
  %v2063 = vpop.f32.mrf.mxu0
  %v2064 = vadd.f32 %v1993, %v2063
  %v2065 = vpop.f32.mrf.mxu0
  %v2066 = vadd.f32 %v1995, %v2065
  %2067 = vdwg.mxu0
  %2068 = vmatprep.subr.mxu0 %v594
  %2069 = vmatpush1.msra.mxu0 %v593
  %2070 = vmatprep.subr.mxu0 %v590
  %2071 = vmatpush1.msra.mxu0 %v589
  %2072 = vmatprep.subr.mxu0 %v586
  %2073 = vmatpush1.msra.mxu0 %v585
  %2074 = vmatprep.subr.mxu0 %v582
  %2075 = vmatpush1.msra.mxu0 %v581
  %2076 = vmatprep.subr.mxu0 %v578
  %2077 = vmatpush1.msra.mxu0 %v577
  %2078 = vmatprep.subr.mxu0 %v574
  %2079 = vmatpush1.msra.mxu0 %v573
  %2080 = vmatprep.subr.mxu0 %v570
  %2081 = vmatpush1.msra.mxu0 %v569
  %2082 = vmatprep.subr.mxu0 %v566
  %2083 = vmatpush1.msra.mxu0 %v565
  %2084 = vmatprep.subr.mxu0 %v562
  %2085 = vmatpush1.msra.mxu0 %v561
  %2086 = vmatprep.subr.mxu0 %v558
  %2087 = vmatpush1.msra.mxu0 %v557
  %2088 = vmatprep.subr.mxu0 %v554
  %2089 = vmatpush1.msra.mxu0 %v553
  %2090 = vmatprep.subr.mxu0 %v550
  %2091 = vmatpush1.msra.mxu0 %v549
  %2092 = vmatprep.subr.mxu0 %v546
  %2093 = vmatpush1.msra.mxu0 %v545
  %2094 = vmatprep.subr.mxu0 %v542
  %2095 = vmatpush1.msra.mxu0 %v541
  %2096 = vmatprep.subr.mxu0 %v538
  %2097 = vmatpush1.msra.mxu0 %v537
  %2098 = vmatprep.subr.mxu0 %v534
  %2099 = vmatpush1.msra.mxu0 %v533
  %2100 = vmatprep.subr.mxu0 %v658
  %2101 = vmatpush2.msra.mxu0 %v657
  %2102 = vmatprep.subr.mxu0 %v654
  %2103 = vmatpush2.msra.mxu0 %v653
  %2104 = vmatprep.subr.mxu0 %v650
  %2105 = vmatpush2.msra.mxu0 %v649
  %2106 = vmatprep.subr.mxu0 %v646
  %2107 = vmatpush2.msra.mxu0 %v645
  %2108 = vmatprep.subr.mxu0 %v642
  %2109 = vmatpush2.msra.mxu0 %v641
  %2110 = vmatprep.subr.mxu0 %v638
  %2111 = vmatpush2.msra.mxu0 %v637
  %2112 = vmatprep.subr.mxu0 %v634
  %2113 = vmatpush2.msra.mxu0 %v633
  %2114 = vmatprep.subr.mxu0 %v630
  %2115 = vmatpush2.msra.mxu0 %v629
  %2116 = vmatprep.subr.mxu0 %v626
  %2117 = vmatpush2.msra.mxu0 %v625
  %2118 = vmatprep.subr.mxu0 %v622
  %2119 = vmatpush2.msra.mxu0 %v621
  %2120 = vmatprep.subr.mxu0 %v618
  %2121 = vmatpush2.msra.mxu0 %v617
  %2122 = vmatprep.subr.mxu0 %v614
  %2123 = vmatpush2.msra.mxu0 %v613
  %2124 = vmatprep.subr.mxu0 %v610
  %2125 = vmatpush2.msra.mxu0 %v609
  %2126 = vmatprep.subr.mxu0 %v606
  %2127 = vmatpush2.msra.mxu0 %v605
  %2128 = vmatprep.subr.mxu0 %v602
  %2129 = vmatpush2.msra.mxu0 %v601
  %2130 = vmatprep.subr.mxu0 %v598
  %2131 = vmatpush2.msra.mxu0 %v597
  %2132 = vmatprep.mubr.f32.mxu0 %v1699
  %2133 = vmatmul.mubr.f32.gmra.mxu0 %v1691
  %v2134 = vpop.f32.mrf.mxu0
  %v2135 = vadd.f32 %v2064, %v2134
  %v2136 = vpop.f32.mrf.mxu0
  %v2137 = vadd.f32 %v2066, %v2136
  %2138 = vdwg.mxu0
  %2139 = vmatprep.subr.mxu0 %v722
  %2140 = vmatpush1.msra.mxu0 %v721
  %2141 = vmatprep.subr.mxu0 %v718
  %2142 = vmatpush1.msra.mxu0 %v717
  %2143 = vmatprep.subr.mxu0 %v714
  %2144 = vmatpush1.msra.mxu0 %v713
  %2145 = vmatprep.subr.mxu0 %v710
  %2146 = vmatpush1.msra.mxu0 %v709
  %2147 = vmatprep.subr.mxu0 %v706
  %2148 = vmatpush1.msra.mxu0 %v705
  %2149 = vmatprep.subr.mxu0 %v702
  %2150 = vmatpush1.msra.mxu0 %v701
  %2151 = vmatprep.subr.mxu0 %v698
  %2152 = vmatpush1.msra.mxu0 %v697
  %2153 = vmatprep.subr.mxu0 %v694
  %2154 = vmatpush1.msra.mxu0 %v693
  %2155 = vmatprep.subr.mxu0 %v690
  %2156 = vmatpush1.msra.mxu0 %v689
  %2157 = vmatprep.subr.mxu0 %v686
  %2158 = vmatpush1.msra.mxu0 %v685
  %2159 = vmatprep.subr.mxu0 %v682
  %2160 = vmatpush1.msra.mxu0 %v681
  %2161 = vmatprep.subr.mxu0 %v678
  %2162 = vmatpush1.msra.mxu0 %v677
  %2163 = vmatprep.subr.mxu0 %v674
  %2164 = vmatpush1.msra.mxu0 %v673
  %2165 = vmatprep.subr.mxu0 %v670
  %2166 = vmatpush1.msra.mxu0 %v669
  %2167 = vmatprep.subr.mxu0 %v666
  %2168 = vmatpush1.msra.mxu0 %v665
  %2169 = vmatprep.subr.mxu0 %v662
  %2170 = vmatpush1.msra.mxu0 %v661
  %2171 = vmatprep.subr.mxu0 %v786
  %2172 = vmatpush2.msra.mxu0 %v785
  %2173 = vmatprep.subr.mxu0 %v782
  %2174 = vmatpush2.msra.mxu0 %v781
  %2175 = vmatprep.subr.mxu0 %v778
  %2176 = vmatpush2.msra.mxu0 %v777
  %2177 = vmatprep.subr.mxu0 %v774
  %2178 = vmatpush2.msra.mxu0 %v773
  %2179 = vmatprep.subr.mxu0 %v770
  %2180 = vmatpush2.msra.mxu0 %v769
  %2181 = vmatprep.subr.mxu0 %v766
  %2182 = vmatpush2.msra.mxu0 %v765
  %2183 = vmatprep.subr.mxu0 %v762
  %2184 = vmatpush2.msra.mxu0 %v761
  %2185 = vmatprep.subr.mxu0 %v758
  %2186 = vmatpush2.msra.mxu0 %v757
  %2187 = vmatprep.subr.mxu0 %v754
  %2188 = vmatpush2.msra.mxu0 %v753
  %2189 = vmatprep.subr.mxu0 %v750
  %2190 = vmatpush2.msra.mxu0 %v749
  %2191 = vmatprep.subr.mxu0 %v746
  %2192 = vmatpush2.msra.mxu0 %v745
  %2193 = vmatprep.subr.mxu0 %v742
  %2194 = vmatpush2.msra.mxu0 %v741
  %2195 = vmatprep.subr.mxu0 %v738
  %2196 = vmatpush2.msra.mxu0 %v737
  %2197 = vmatprep.subr.mxu0 %v734
  %2198 = vmatpush2.msra.mxu0 %v733
  %2199 = vmatprep.subr.mxu0 %v730
  %2200 = vmatpush2.msra.mxu0 %v729
  %2201 = vmatprep.subr.mxu0 %v726
  %2202 = vmatpush2.msra.mxu0 %v725
  %2203 = vmatprep.mubr.f32.mxu0 %v1700
  %2204 = vmatmul.mubr.f32.gmra.mxu0 %v1698
  %v2205 = vpop.f32.mrf.mxu0
  %v2206 = vadd.f32 %v2135, %v2205
  %v2207 = vpop.f32.mrf.mxu0
  %v2208 = vadd.f32 %v2137, %v2207
  %2209 = vdwg.mxu0
  %2210 = vmatprep.subr.mxu0 %v850
  %2211 = vmatpush1.msra.mxu0 %v849
  %2212 = vmatprep.subr.mxu0 %v846
  %2213 = vmatpush1.msra.mxu0 %v845
  %2214 = vmatprep.subr.mxu0 %v842
  %2215 = vmatpush1.msra.mxu0 %v841
  %2216 = vmatprep.subr.mxu0 %v838
  %2217 = vmatpush1.msra.mxu0 %v837
  %2218 = vmatprep.subr.mxu0 %v834
  %2219 = vmatpush1.msra.mxu0 %v833
  %2220 = vmatprep.subr.mxu0 %v830
  %2221 = vmatpush1.msra.mxu0 %v829
  %2222 = vmatprep.subr.mxu0 %v826
  %2223 = vmatpush1.msra.mxu0 %v825
  %2224 = vmatprep.subr.mxu0 %v822
  %2225 = vmatpush1.msra.mxu0 %v821
  %2226 = vmatprep.subr.mxu0 %v818
  %2227 = vmatpush1.msra.mxu0 %v817
  %2228 = vmatprep.subr.mxu0 %v814
  %2229 = vmatpush1.msra.mxu0 %v813
  %2230 = vmatprep.subr.mxu0 %v810
  %2231 = vmatpush1.msra.mxu0 %v809
  %2232 = vmatprep.subr.mxu0 %v806
  %2233 = vmatpush1.msra.mxu0 %v805
  %2234 = vmatprep.subr.mxu0 %v802
  %2235 = vmatpush1.msra.mxu0 %v801
  %2236 = vmatprep.subr.mxu0 %v798
  %2237 = vmatpush1.msra.mxu0 %v797
  %2238 = vmatprep.subr.mxu0 %v794
  %2239 = vmatpush1.msra.mxu0 %v793
  %2240 = vmatprep.subr.mxu0 %v790
  %2241 = vmatpush1.msra.mxu0 %v789
  %2242 = vmatprep.subr.mxu0 %v914
  %2243 = vmatpush2.msra.mxu0 %v913
  %2244 = vmatprep.subr.mxu0 %v910
  %2245 = vmatpush2.msra.mxu0 %v909
  %2246 = vmatprep.subr.mxu0 %v906
  %2247 = vmatpush2.msra.mxu0 %v905
  %2248 = vmatprep.subr.mxu0 %v902
  %2249 = vmatpush2.msra.mxu0 %v901
  %2250 = vmatprep.subr.mxu0 %v898
  %2251 = vmatpush2.msra.mxu0 %v897
  %2252 = vmatprep.subr.mxu0 %v894
  %2253 = vmatpush2.msra.mxu0 %v893
  %2254 = vmatprep.subr.mxu0 %v890
  %2255 = vmatpush2.msra.mxu0 %v889
  %2256 = vmatprep.subr.mxu0 %v886
  %2257 = vmatpush2.msra.mxu0 %v885
  %2258 = vmatprep.subr.mxu0 %v882
  %2259 = vmatpush2.msra.mxu0 %v881
  %2260 = vmatprep.subr.mxu0 %v878
  %2261 = vmatpush2.msra.mxu0 %v877
  %2262 = vmatprep.subr.mxu0 %v874
  %2263 = vmatpush2.msra.mxu0 %v873
  %2264 = vmatprep.subr.mxu0 %v870
  %2265 = vmatpush2.msra.mxu0 %v869
  %2266 = vmatprep.subr.mxu0 %v866
  %2267 = vmatpush2.msra.mxu0 %v865
  %2268 = vmatprep.subr.mxu0 %v862
  %2269 = vmatpush2.msra.mxu0 %v861
  %2270 = vmatprep.subr.mxu0 %v858
  %2271 = vmatpush2.msra.mxu0 %v857
  %2272 = vmatprep.subr.mxu0 %v854
  %2273 = vmatpush2.msra.mxu0 %v853
  %2274 = vmatprep.mubr.f32.mxu0 %v1716
  %2275 = vmatmul.mubr.f32.gmra.mxu0 %v1708
  %v2276 = vpop.f32.mrf.mxu0
  %v2277 = vadd.f32 %v2206, %v2276
  %v2278 = vpop.f32.mrf.mxu0
  %v2279 = vadd.f32 %v2208, %v2278
  %2280 = vdwg.mxu0
  %2281 = vmatprep.subr.mxu0 %v978
  %2282 = vmatpush1.msra.mxu0 %v977
  %2283 = vmatprep.subr.mxu0 %v974
  %2284 = vmatpush1.msra.mxu0 %v973
  %2285 = vmatprep.subr.mxu0 %v970
  %2286 = vmatpush1.msra.mxu0 %v969
  %2287 = vmatprep.subr.mxu0 %v966
  %2288 = vmatpush1.msra.mxu0 %v965
  %2289 = vmatprep.subr.mxu0 %v962
  %2290 = vmatpush1.msra.mxu0 %v961
  %2291 = vmatprep.subr.mxu0 %v958
  %2292 = vmatpush1.msra.mxu0 %v957
  %2293 = vmatprep.subr.mxu0 %v954
  %2294 = vmatpush1.msra.mxu0 %v953
  %2295 = vmatprep.subr.mxu0 %v950
  %2296 = vmatpush1.msra.mxu0 %v949
  %2297 = vmatprep.subr.mxu0 %v946
  %2298 = vmatpush1.msra.mxu0 %v945
  %2299 = vmatprep.subr.mxu0 %v942
  %2300 = vmatpush1.msra.mxu0 %v941
  %2301 = vmatprep.subr.mxu0 %v938
  %2302 = vmatpush1.msra.mxu0 %v937
  %2303 = vmatprep.subr.mxu0 %v934
  %2304 = vmatpush1.msra.mxu0 %v933
  %2305 = vmatprep.subr.mxu0 %v930
  %2306 = vmatpush1.msra.mxu0 %v929
  %2307 = vmatprep.subr.mxu0 %v926
  %2308 = vmatpush1.msra.mxu0 %v925
  %2309 = vmatprep.subr.mxu0 %v922
  %2310 = vmatpush1.msra.mxu0 %v921
  %2311 = vmatprep.subr.mxu0 %v918
  %2312 = vmatpush1.msra.mxu0 %v917
  %2313 = vmatprep.subr.mxu0 %v1042
  %2314 = vmatpush2.msra.mxu0 %v1041
  %2315 = vmatprep.subr.mxu0 %v1038
  %2316 = vmatpush2.msra.mxu0 %v1037
  %2317 = vmatprep.subr.mxu0 %v1034
  %2318 = vmatpush2.msra.mxu0 %v1033
  %2319 = vmatprep.subr.mxu0 %v1030
  %2320 = vmatpush2.msra.mxu0 %v1029
  %2321 = vmatprep.subr.mxu0 %v1026
  %2322 = vmatpush2.msra.mxu0 %v1025
  %2323 = vmatprep.subr.mxu0 %v1022
  %2324 = vmatpush2.msra.mxu0 %v1021
  %2325 = vmatprep.subr.mxu0 %v1018
  %2326 = vmatpush2.msra.mxu0 %v1017
  %2327 = vmatprep.subr.mxu0 %v1014
  %2328 = vmatpush2.msra.mxu0 %v1013
  %2329 = vmatprep.subr.mxu0 %v1010
  %2330 = vmatpush2.msra.mxu0 %v1009
  %2331 = vmatprep.subr.mxu0 %v1006
  %2332 = vmatpush2.msra.mxu0 %v1005
  %2333 = vmatprep.subr.mxu0 %v1002
  %2334 = vmatpush2.msra.mxu0 %v1001
  %2335 = vmatprep.subr.mxu0 %v998
  %2336 = vmatpush2.msra.mxu0 %v997
  %2337 = vmatprep.subr.mxu0 %v994
  %2338 = vmatpush2.msra.mxu0 %v993
  %2339 = vmatprep.subr.mxu0 %v990
  %2340 = vmatpush2.msra.mxu0 %v989
  %2341 = vmatprep.subr.mxu0 %v986
  %2342 = vmatpush2.msra.mxu0 %v985
  %2343 = vmatprep.subr.mxu0 %v982
  %2344 = vmatpush2.msra.mxu0 %v981
  %2345 = vmatprep.mubr.f32.mxu0 %v1717
  %2346 = vmatmul.mubr.f32.gmra.mxu0 %v1715
  %v2347 = vpop.f32.mrf.mxu0
  %v2348 = vadd.f32 %v2277, %v2347
  %v2349 = vpop.f32.mrf.mxu0
  %v2350 = vadd.f32 %v2279, %v2349
  %2351 = vdwg.mxu0
  %2352 = vmatprep.subr.mxu0 %v1106
  %2353 = vmatpush1.msra.mxu0 %v1105
  %2354 = vmatprep.subr.mxu0 %v1102
  %2355 = vmatpush1.msra.mxu0 %v1101
  %2356 = vmatprep.subr.mxu0 %v1098
  %2357 = vmatpush1.msra.mxu0 %v1097
  %2358 = vmatprep.subr.mxu0 %v1094
  %2359 = vmatpush1.msra.mxu0 %v1093
  %2360 = vmatprep.subr.mxu0 %v1090
  %2361 = vmatpush1.msra.mxu0 %v1089
  %2362 = vmatprep.subr.mxu0 %v1086
  %2363 = vmatpush1.msra.mxu0 %v1085
  %2364 = vmatprep.subr.mxu0 %v1082
  %2365 = vmatpush1.msra.mxu0 %v1081
  %2366 = vmatprep.subr.mxu0 %v1078
  %2367 = vmatpush1.msra.mxu0 %v1077
  %2368 = vmatprep.subr.mxu0 %v1074
  %2369 = vmatpush1.msra.mxu0 %v1073
  %2370 = vmatprep.subr.mxu0 %v1070
  %2371 = vmatpush1.msra.mxu0 %v1069
  %2372 = vmatprep.subr.mxu0 %v1066
  %2373 = vmatpush1.msra.mxu0 %v1065
  %2374 = vmatprep.subr.mxu0 %v1062
  %2375 = vmatpush1.msra.mxu0 %v1061
  %2376 = vmatprep.subr.mxu0 %v1058
  %2377 = vmatpush1.msra.mxu0 %v1057
  %2378 = vmatprep.subr.mxu0 %v1054
  %2379 = vmatpush1.msra.mxu0 %v1053
  %2380 = vmatprep.subr.mxu0 %v1050
  %2381 = vmatpush1.msra.mxu0 %v1049
  %2382 = vmatprep.subr.mxu0 %v1046
  %2383 = vmatpush1.msra.mxu0 %v1045
  %2384 = vmatprep.subr.mxu0 %v1170
  %2385 = vmatpush2.msra.mxu0 %v1169
  %2386 = vmatprep.subr.mxu0 %v1166
  %2387 = vmatpush2.msra.mxu0 %v1165
  %2388 = vmatprep.subr.mxu0 %v1162
  %2389 = vmatpush2.msra.mxu0 %v1161
  %2390 = vmatprep.subr.mxu0 %v1158
  %2391 = vmatpush2.msra.mxu0 %v1157
  %2392 = vmatprep.subr.mxu0 %v1154
  %2393 = vmatpush2.msra.mxu0 %v1153
  %2394 = vmatprep.subr.mxu0 %v1150
  %2395 = vmatpush2.msra.mxu0 %v1149
  %2396 = vmatprep.subr.mxu0 %v1146
  %2397 = vmatpush2.msra.mxu0 %v1145
  %2398 = vmatprep.subr.mxu0 %v1142
  %2399 = vmatpush2.msra.mxu0 %v1141
  %2400 = vmatprep.subr.mxu0 %v1138
  %2401 = vmatpush2.msra.mxu0 %v1137
  %2402 = vmatprep.subr.mxu0 %v1134
  %2403 = vmatpush2.msra.mxu0 %v1133
  %2404 = vmatprep.subr.mxu0 %v1130
  %2405 = vmatpush2.msra.mxu0 %v1129
  %2406 = vmatprep.subr.mxu0 %v1126
  %2407 = vmatpush2.msra.mxu0 %v1125
  %2408 = vmatprep.subr.mxu0 %v1122
  %2409 = vmatpush2.msra.mxu0 %v1121
  %2410 = vmatprep.subr.mxu0 %v1118
  %2411 = vmatpush2.msra.mxu0 %v1117
  %2412 = vmatprep.subr.mxu0 %v1114
  %2413 = vmatpush2.msra.mxu0 %v1113
  %2414 = vmatprep.subr.mxu0 %v1110
  %2415 = vmatpush2.msra.mxu0 %v1109
  %2416 = vmatprep.mubr.f32.mxu0 %v1733
  %2417 = vmatmul.mubr.f32.gmra.mxu0 %v1725
  %v2418 = vpop.f32.mrf.mxu0
  %v2419 = vadd.f32 %v2348, %v2418
  %v2420 = vpop.f32.mrf.mxu0
  %v2421 = vadd.f32 %v2350, %v2420
  %2422 = vdwg.mxu0
  %2423 = vmatprep.subr.mxu0 %v1234
  %2424 = vmatpush1.msra.mxu0 %v1233
  %2425 = vmatprep.subr.mxu0 %v1230
  %2426 = vmatpush1.msra.mxu0 %v1229
  %2427 = vmatprep.subr.mxu0 %v1226
  %2428 = vmatpush1.msra.mxu0 %v1225
  %2429 = vmatprep.subr.mxu0 %v1222
  %2430 = vmatpush1.msra.mxu0 %v1221
  %2431 = vmatprep.subr.mxu0 %v1218
  %2432 = vmatpush1.msra.mxu0 %v1217
  %2433 = vmatprep.subr.mxu0 %v1214
  %2434 = vmatpush1.msra.mxu0 %v1213
  %2435 = vmatprep.subr.mxu0 %v1210
  %2436 = vmatpush1.msra.mxu0 %v1209
  %2437 = vmatprep.subr.mxu0 %v1206
  %2438 = vmatpush1.msra.mxu0 %v1205
  %2439 = vmatprep.subr.mxu0 %v1202
  %2440 = vmatpush1.msra.mxu0 %v1201
  %2441 = vmatprep.subr.mxu0 %v1198
  %2442 = vmatpush1.msra.mxu0 %v1197
  %2443 = vmatprep.subr.mxu0 %v1194
  %2444 = vmatpush1.msra.mxu0 %v1193
  %2445 = vmatprep.subr.mxu0 %v1190
  %2446 = vmatpush1.msra.mxu0 %v1189
  %2447 = vmatprep.subr.mxu0 %v1186
  %2448 = vmatpush1.msra.mxu0 %v1185
  %2449 = vmatprep.subr.mxu0 %v1182
  %2450 = vmatpush1.msra.mxu0 %v1181
  %2451 = vmatprep.subr.mxu0 %v1178
  %2452 = vmatpush1.msra.mxu0 %v1177
  %2453 = vmatprep.subr.mxu0 %v1174
  %2454 = vmatpush1.msra.mxu0 %v1173
  %2455 = vmatprep.subr.mxu0 %v1298
  %2456 = vmatpush2.msra.mxu0 %v1297
  %2457 = vmatprep.subr.mxu0 %v1294
  %2458 = vmatpush2.msra.mxu0 %v1293
  %2459 = vmatprep.subr.mxu0 %v1290
  %2460 = vmatpush2.msra.mxu0 %v1289
  %2461 = vmatprep.subr.mxu0 %v1286
  %2462 = vmatpush2.msra.mxu0 %v1285
  %2463 = vmatprep.subr.mxu0 %v1282
  %2464 = vmatpush2.msra.mxu0 %v1281
  %2465 = vmatprep.subr.mxu0 %v1278
  %2466 = vmatpush2.msra.mxu0 %v1277
  %2467 = vmatprep.subr.mxu0 %v1274
  %2468 = vmatpush2.msra.mxu0 %v1273
  %2469 = vmatprep.subr.mxu0 %v1270
  %2470 = vmatpush2.msra.mxu0 %v1269
  %2471 = vmatprep.subr.mxu0 %v1266
  %2472 = vmatpush2.msra.mxu0 %v1265
  %2473 = vmatprep.subr.mxu0 %v1262
  %2474 = vmatpush2.msra.mxu0 %v1261
  %2475 = vmatprep.subr.mxu0 %v1258
  %2476 = vmatpush2.msra.mxu0 %v1257
  %2477 = vmatprep.subr.mxu0 %v1254
  %2478 = vmatpush2.msra.mxu0 %v1253
  %2479 = vmatprep.subr.mxu0 %v1250
  %2480 = vmatpush2.msra.mxu0 %v1249
  %2481 = vmatprep.subr.mxu0 %v1246
  %2482 = vmatpush2.msra.mxu0 %v1245
  %2483 = vmatprep.subr.mxu0 %v1242
  %2484 = vmatpush2.msra.mxu0 %v1241
  %2485 = vmatprep.subr.mxu0 %v1238
  %2486 = vmatpush2.msra.mxu0 %v1237
  %2487 = vmatprep.mubr.f32.mxu0 %v1734
  %2488 = vmatmul.mubr.f32.gmra.mxu0 %v1732
  %v2489 = vpop.f32.mrf.mxu0
  %v2490 = vadd.f32 %v2419, %v2489
  %v2491 = vpop.f32.mrf.mxu0
  %v2492 = vadd.f32 %v2421, %v2491
  %2493 = vdwg.mxu0
  %2494 = vmatprep.subr.mxu0 %v1362
  %2495 = vmatpush1.msra.mxu0 %v1361
  %2496 = vmatprep.subr.mxu0 %v1358
  %2497 = vmatpush1.msra.mxu0 %v1357
  %2498 = vmatprep.subr.mxu0 %v1354
  %2499 = vmatpush1.msra.mxu0 %v1353
  %2500 = vmatprep.subr.mxu0 %v1350
  %2501 = vmatpush1.msra.mxu0 %v1349
  %2502 = vmatprep.subr.mxu0 %v1346
  %2503 = vmatpush1.msra.mxu0 %v1345
  %2504 = vmatprep.subr.mxu0 %v1342
  %2505 = vmatpush1.msra.mxu0 %v1341
  %2506 = vmatprep.subr.mxu0 %v1338
  %2507 = vmatpush1.msra.mxu0 %v1337
  %2508 = vmatprep.subr.mxu0 %v1334
  %2509 = vmatpush1.msra.mxu0 %v1333
  %2510 = vmatprep.subr.mxu0 %v1330
  %2511 = vmatpush1.msra.mxu0 %v1329
  %2512 = vmatprep.subr.mxu0 %v1326
  %2513 = vmatpush1.msra.mxu0 %v1325
  %2514 = vmatprep.subr.mxu0 %v1322
  %2515 = vmatpush1.msra.mxu0 %v1321
  %2516 = vmatprep.subr.mxu0 %v1318
  %2517 = vmatpush1.msra.mxu0 %v1317
  %2518 = vmatprep.subr.mxu0 %v1314
  %2519 = vmatpush1.msra.mxu0 %v1313
  %2520 = vmatprep.subr.mxu0 %v1310
  %2521 = vmatpush1.msra.mxu0 %v1309
  %2522 = vmatprep.subr.mxu0 %v1306
  %2523 = vmatpush1.msra.mxu0 %v1305
  %2524 = vmatprep.subr.mxu0 %v1302
  %2525 = vmatpush1.msra.mxu0 %v1301
  %2526 = vmatprep.subr.mxu0 %v1426
  %2527 = vmatpush2.msra.mxu0 %v1425
  %2528 = vmatprep.subr.mxu0 %v1422
  %2529 = vmatpush2.msra.mxu0 %v1421
  %2530 = vmatprep.subr.mxu0 %v1418
  %2531 = vmatpush2.msra.mxu0 %v1417
  %2532 = vmatprep.subr.mxu0 %v1414
  %2533 = vmatpush2.msra.mxu0 %v1413
  %2534 = vmatprep.subr.mxu0 %v1410
  %2535 = vmatpush2.msra.mxu0 %v1409
  %2536 = vmatprep.subr.mxu0 %v1406
  %2537 = vmatpush2.msra.mxu0 %v1405
  %2538 = vmatprep.subr.mxu0 %v1402
  %2539 = vmatpush2.msra.mxu0 %v1401
  %2540 = vmatprep.subr.mxu0 %v1398
  %2541 = vmatpush2.msra.mxu0 %v1397
  %2542 = vmatprep.subr.mxu0 %v1394
  %2543 = vmatpush2.msra.mxu0 %v1393
  %2544 = vmatprep.subr.mxu0 %v1390
  %2545 = vmatpush2.msra.mxu0 %v1389
  %2546 = vmatprep.subr.mxu0 %v1386
  %2547 = vmatpush2.msra.mxu0 %v1385
  %2548 = vmatprep.subr.mxu0 %v1382
  %2549 = vmatpush2.msra.mxu0 %v1381
  %2550 = vmatprep.subr.mxu0 %v1378
  %2551 = vmatpush2.msra.mxu0 %v1377
  %2552 = vmatprep.subr.mxu0 %v1374
  %2553 = vmatpush2.msra.mxu0 %v1373
  %2554 = vmatprep.subr.mxu0 %v1370
  %2555 = vmatpush2.msra.mxu0 %v1369
  %2556 = vmatprep.subr.mxu0 %v1366
  %2557 = vmatpush2.msra.mxu0 %v1365
  %2558 = vmatprep.mubr.f32.mxu0 %v1750
  %2559 = vmatmul.mubr.f32.gmra.mxu0 %v1742
  %v2560 = vpop.f32.mrf.mxu0
  %v2561 = vadd.f32 %v2490, %v2560
  %v2562 = vpop.f32.mrf.mxu0
  %v2563 = vadd.f32 %v2492, %v2562
  %2564 = vdwg.mxu0
  %2565 = vmatprep.subr.mxu0 %v1490
  %2566 = vmatpush1.msra.mxu0 %v1489
  %2567 = vmatprep.subr.mxu0 %v1486
  %2568 = vmatpush1.msra.mxu0 %v1485
  %2569 = vmatprep.subr.mxu0 %v1482
  %2570 = vmatpush1.msra.mxu0 %v1481
  %2571 = vmatprep.subr.mxu0 %v1478
  %2572 = vmatpush1.msra.mxu0 %v1477
  %2573 = vmatprep.subr.mxu0 %v1474
  %2574 = vmatpush1.msra.mxu0 %v1473
  %2575 = vmatprep.subr.mxu0 %v1470
  %2576 = vmatpush1.msra.mxu0 %v1469
  %2577 = vmatprep.subr.mxu0 %v1466
  %2578 = vmatpush1.msra.mxu0 %v1465
  %2579 = vmatprep.subr.mxu0 %v1462
  %2580 = vmatpush1.msra.mxu0 %v1461
  %2581 = vmatprep.subr.mxu0 %v1458
  %2582 = vmatpush1.msra.mxu0 %v1457
  %2583 = vmatprep.subr.mxu0 %v1454
  %2584 = vmatpush1.msra.mxu0 %v1453
  %2585 = vmatprep.subr.mxu0 %v1450
  %2586 = vmatpush1.msra.mxu0 %v1449
  %2587 = vmatprep.subr.mxu0 %v1446
  %2588 = vmatpush1.msra.mxu0 %v1445
  %2589 = vmatprep.subr.mxu0 %v1442
  %2590 = vmatpush1.msra.mxu0 %v1441
  %2591 = vmatprep.subr.mxu0 %v1438
  %2592 = vmatpush1.msra.mxu0 %v1437
  %2593 = vmatprep.subr.mxu0 %v1434
  %2594 = vmatpush1.msra.mxu0 %v1433
  %2595 = vmatprep.subr.mxu0 %v1430
  %2596 = vmatpush1.msra.mxu0 %v1429
  %2597 = vmatprep.subr.mxu0 %v1554
  %2598 = vmatpush2.msra.mxu0 %v1553
  %2599 = vmatprep.subr.mxu0 %v1550
  %2600 = vmatpush2.msra.mxu0 %v1549
  %2601 = vmatprep.subr.mxu0 %v1546
  %2602 = vmatpush2.msra.mxu0 %v1545
  %2603 = vmatprep.subr.mxu0 %v1542
  %2604 = vmatpush2.msra.mxu0 %v1541
  %2605 = vmatprep.subr.mxu0 %v1538
  %2606 = vmatpush2.msra.mxu0 %v1537
  %2607 = vmatprep.subr.mxu0 %v1534
  %2608 = vmatpush2.msra.mxu0 %v1533
  %2609 = vmatprep.subr.mxu0 %v1530
  %2610 = vmatpush2.msra.mxu0 %v1529
  %2611 = vmatprep.subr.mxu0 %v1526
  %2612 = vmatpush2.msra.mxu0 %v1525
  %2613 = vmatprep.subr.mxu0 %v1522
  %2614 = vmatpush2.msra.mxu0 %v1521
  %2615 = vmatprep.subr.mxu0 %v1518
  %2616 = vmatpush2.msra.mxu0 %v1517
  %2617 = vmatprep.subr.mxu0 %v1514
  %2618 = vmatpush2.msra.mxu0 %v1513
  %2619 = vmatprep.subr.mxu0 %v1510
  %2620 = vmatpush2.msra.mxu0 %v1509
  %2621 = vmatprep.subr.mxu0 %v1506
  %2622 = vmatpush2.msra.mxu0 %v1505
  %2623 = vmatprep.subr.mxu0 %v1502
  %2624 = vmatpush2.msra.mxu0 %v1501
  %2625 = vmatprep.subr.mxu0 %v1498
  %2626 = vmatpush2.msra.mxu0 %v1497
  %2627 = vmatprep.subr.mxu0 %v1494
  %2628 = vmatpush2.msra.mxu0 %v1493
  %2629 = vmatprep.mubr.f32.mxu0 %v1751
  %2630 = vmatmul.mubr.f32.gmra.mxu0 %v1749
  %v2631 = vpop.f32.mrf.mxu0
  %v2632 = vadd.f32 %v2561, %v2631
  %v2633 = vpop.f32.mrf.mxu0
  %v2634 = vadd.f32 %v2563, %v2633
  %2635 = vdwg.mxu0
  %2636 = vmatprep.subr.mxu0 %v1618
  %2637 = vmatpush1.msra.mxu0 %v1617
  %2638 = vmatprep.subr.mxu0 %v1614
  %2639 = vmatpush1.msra.mxu0 %v1613
  %2640 = vmatprep.subr.mxu0 %v1610
  %2641 = vmatpush1.msra.mxu0 %v1609
  %2642 = vmatprep.subr.mxu0 %v1606
  %2643 = vmatpush1.msra.mxu0 %v1605
  %2644 = vmatprep.subr.mxu0 %v1602
  %2645 = vmatpush1.msra.mxu0 %v1601
  %2646 = vmatprep.subr.mxu0 %v1598
  %2647 = vmatpush1.msra.mxu0 %v1597
  %2648 = vmatprep.subr.mxu0 %v1594
  %2649 = vmatpush1.msra.mxu0 %v1593
  %2650 = vmatprep.subr.mxu0 %v1590
  %2651 = vmatpush1.msra.mxu0 %v1589
  %2652 = vmatprep.subr.mxu0 %v1586
  %2653 = vmatpush1.msra.mxu0 %v1585
  %2654 = vmatprep.subr.mxu0 %v1582
  %2655 = vmatpush1.msra.mxu0 %v1581
  %2656 = vmatprep.subr.mxu0 %v1578
  %2657 = vmatpush1.msra.mxu0 %v1577
  %2658 = vmatprep.subr.mxu0 %v1574
  %2659 = vmatpush1.msra.mxu0 %v1573
  %2660 = vmatprep.subr.mxu0 %v1570
  %2661 = vmatpush1.msra.mxu0 %v1569
  %2662 = vmatprep.subr.mxu0 %v1566
  %2663 = vmatpush1.msra.mxu0 %v1565
  %2664 = vmatprep.subr.mxu0 %v1562
  %2665 = vmatpush1.msra.mxu0 %v1561
  %2666 = vmatprep.subr.mxu0 %v1558
  %2667 = vmatpush1.msra.mxu0 %v1557
  %2668 = vmatprep.subr.mxu0 0.0
  %2669 = vmatpush2.msra.mxu0 0.0
  %2670 = vmatprep.subr.mxu0 0.0
  %2671 = vmatpush2.msra.mxu0 0.0
  %2672 = vmatprep.subr.mxu0 0.0
  %2673 = vmatpush2.msra.mxu0 0.0
  %2674 = vmatprep.subr.mxu0 0.0
  %2675 = vmatpush2.msra.mxu0 0.0
  %2676 = vmatprep.subr.mxu0 0.0
  %2677 = vmatpush2.msra.mxu0 0.0
  %2678 = vmatprep.subr.mxu0 0.0
  %2679 = vmatpush2.msra.mxu0 0.0
  %2680 = vmatprep.subr.mxu0 0.0
  %2681 = vmatpush2.msra.mxu0 0.0
  %2682 = vmatprep.subr.mxu0 0.0
  %2683 = vmatpush2.msra.mxu0 0.0
  %2684 = vmatprep.subr.mxu0 0.0
  %2685 = vmatpush2.msra.mxu0 0.0
  %2686 = vmatprep.subr.mxu0 0.0
  %2687 = vmatpush2.msra.mxu0 0.0
  %2688 = vmatprep.subr.mxu0 0.0
  %2689 = vmatpush2.msra.mxu0 0.0
  %2690 = vmatprep.subr.mxu0 0.0
  %2691 = vmatpush2.msra.mxu0 0.0
  %2692 = vmatprep.subr.mxu0 0.0
  %2693 = vmatpush2.msra.mxu0 0.0
  %2694 = vmatprep.subr.mxu0 0.0
  %2695 = vmatpush2.msra.mxu0 0.0
  %2696 = vmatprep.subr.mxu0 0.0
  %2697 = vmatpush2.msra.mxu0 0.0
  %2698 = vmatprep.subr.mxu0 0.0
  %2699 = vmatpush2.msra.mxu0 0.0
  %2700 = vmatprep.mubr.f32.mxu0 0.0
  %2701 = vmatmul.mubr.f32.gmra.mxu0 %v1758
  %v2702 = vpop.f32.mrf.mxu0
  %v2703 = vadd.f32 %v2632, %v2702
  %v2704 = vpop.f32.mrf.mxu0
  %v2705 = vadd.f32 %v2634, %v2704
  %2706 = vdwg.mxu0
  %2707 = vmatprep.subr.mxu0 %v84
  %2708 = vmatpush1.msra.mxu0 %v83
  %2709 = vmatprep.subr.mxu0 %v80
  %2710 = vmatpush1.msra.mxu0 %v79
  %2711 = vmatprep.subr.mxu0 %v76
  %2712 = vmatpush1.msra.mxu0 %v75
  %2713 = vmatprep.subr.mxu0 %v72
  %2714 = vmatpush1.msra.mxu0 %v71
  %2715 = vmatprep.subr.mxu0 %v68
  %2716 = vmatpush1.msra.mxu0 %v67
  %2717 = vmatprep.subr.mxu0 %v64
  %2718 = vmatpush1.msra.mxu0 %v63
  %2719 = vmatprep.subr.mxu0 %v60
  %2720 = vmatpush1.msra.mxu0 %v59
  %2721 = vmatprep.subr.mxu0 %v56
  %2722 = vmatpush1.msra.mxu0 %v55
  %2723 = vmatprep.subr.mxu0 %v52
  %2724 = vmatpush1.msra.mxu0 %v51
  %2725 = vmatprep.subr.mxu0 %v48
  %2726 = vmatpush1.msra.mxu0 %v47
  %2727 = vmatprep.subr.mxu0 %v44
  %2728 = vmatpush1.msra.mxu0 %v43
  %2729 = vmatprep.subr.mxu0 %v40
  %2730 = vmatpush1.msra.mxu0 %v39
  %2731 = vmatprep.subr.mxu0 %v36
  %2732 = vmatpush1.msra.mxu0 %v35
  %2733 = vmatprep.subr.mxu0 %v32
  %2734 = vmatpush1.msra.mxu0 %v31
  %2735 = vmatprep.subr.mxu0 %v28
  %2736 = vmatpush1.msra.mxu0 %v27
  %2737 = vmatprep.subr.mxu0 %v24
  %2738 = vmatpush1.msra.mxu0 %v23
  %2739 = vmatprep.subr.mxu0 %v148
  %2740 = vmatpush2.msra.mxu0 %v147
  %2741 = vmatprep.subr.mxu0 %v144
  %2742 = vmatpush2.msra.mxu0 %v143
  %2743 = vmatprep.subr.mxu0 %v140
  %2744 = vmatpush2.msra.mxu0 %v139
  %2745 = vmatprep.subr.mxu0 %v136
  %2746 = vmatpush2.msra.mxu0 %v135
  %2747 = vmatprep.subr.mxu0 %v132
  %2748 = vmatpush2.msra.mxu0 %v131
  %2749 = vmatprep.subr.mxu0 %v128
  %2750 = vmatpush2.msra.mxu0 %v127
  %2751 = vmatprep.subr.mxu0 %v124
  %2752 = vmatpush2.msra.mxu0 %v123
  %2753 = vmatprep.subr.mxu0 %v120
  %2754 = vmatpush2.msra.mxu0 %v119
  %2755 = vmatprep.subr.mxu0 %v116
  %2756 = vmatpush2.msra.mxu0 %v115
  %2757 = vmatprep.subr.mxu0 %v112
  %2758 = vmatpush2.msra.mxu0 %v111
  %2759 = vmatprep.subr.mxu0 %v108
  %2760 = vmatpush2.msra.mxu0 %v107
  %2761 = vmatprep.subr.mxu0 %v104
  %2762 = vmatpush2.msra.mxu0 %v103
  %2763 = vmatprep.subr.mxu0 %v100
  %2764 = vmatpush2.msra.mxu0 %v99
  %2765 = vmatprep.subr.mxu0 %v96
  %2766 = vmatpush2.msra.mxu0 %v95
  %2767 = vmatprep.subr.mxu0 %v92
  %2768 = vmatpush2.msra.mxu0 %v91
  %2769 = vmatprep.subr.mxu0 %v88
  %2770 = vmatpush2.msra.mxu0 %v87
  %2771 = vmatprep.mubr.f32.mxu0 %v1665
  %2772 = vmatmul.mubr.f32.gmra.mxu0 %v1657
  %v2773 = vpop.f32.mrf.mxu0
  %v2774 = vadd.f32 %v1634, %v2773
  %v2775 = vpop.f32.mrf.mxu0
  %v2776 = vadd.f32 %v1638, %v2775
  %2777 = vdwg.mxu0
  %2778 = vmatprep.subr.mxu0 %v212
  %2779 = vmatpush1.msra.mxu0 %v211
  %2780 = vmatprep.subr.mxu0 %v208
  %2781 = vmatpush1.msra.mxu0 %v207
  %2782 = vmatprep.subr.mxu0 %v204
  %2783 = vmatpush1.msra.mxu0 %v203
  %2784 = vmatprep.subr.mxu0 %v200
  %2785 = vmatpush1.msra.mxu0 %v199
  %2786 = vmatprep.subr.mxu0 %v196
  %2787 = vmatpush1.msra.mxu0 %v195
  %2788 = vmatprep.subr.mxu0 %v192
  %2789 = vmatpush1.msra.mxu0 %v191
  %2790 = vmatprep.subr.mxu0 %v188
  %2791 = vmatpush1.msra.mxu0 %v187
  %2792 = vmatprep.subr.mxu0 %v184
  %2793 = vmatpush1.msra.mxu0 %v183
  %2794 = vmatprep.subr.mxu0 %v180
  %2795 = vmatpush1.msra.mxu0 %v179
  %2796 = vmatprep.subr.mxu0 %v176
  %2797 = vmatpush1.msra.mxu0 %v175
  %2798 = vmatprep.subr.mxu0 %v172
  %2799 = vmatpush1.msra.mxu0 %v171
  %2800 = vmatprep.subr.mxu0 %v168
  %2801 = vmatpush1.msra.mxu0 %v167
  %2802 = vmatprep.subr.mxu0 %v164
  %2803 = vmatpush1.msra.mxu0 %v163
  %2804 = vmatprep.subr.mxu0 %v160
  %2805 = vmatpush1.msra.mxu0 %v159
  %2806 = vmatprep.subr.mxu0 %v156
  %2807 = vmatpush1.msra.mxu0 %v155
  %2808 = vmatprep.subr.mxu0 %v152
  %2809 = vmatpush1.msra.mxu0 %v151
  %2810 = vmatprep.subr.mxu0 %v276
  %2811 = vmatpush2.msra.mxu0 %v275
  %2812 = vmatprep.subr.mxu0 %v272
  %2813 = vmatpush2.msra.mxu0 %v271
  %2814 = vmatprep.subr.mxu0 %v268
  %2815 = vmatpush2.msra.mxu0 %v267
  %2816 = vmatprep.subr.mxu0 %v264
  %2817 = vmatpush2.msra.mxu0 %v263
  %2818 = vmatprep.subr.mxu0 %v260
  %2819 = vmatpush2.msra.mxu0 %v259
  %2820 = vmatprep.subr.mxu0 %v256
  %2821 = vmatpush2.msra.mxu0 %v255
  %2822 = vmatprep.subr.mxu0 %v252
  %2823 = vmatpush2.msra.mxu0 %v251
  %2824 = vmatprep.subr.mxu0 %v248
  %2825 = vmatpush2.msra.mxu0 %v247
  %2826 = vmatprep.subr.mxu0 %v244
  %2827 = vmatpush2.msra.mxu0 %v243
  %2828 = vmatprep.subr.mxu0 %v240
  %2829 = vmatpush2.msra.mxu0 %v239
  %2830 = vmatprep.subr.mxu0 %v236
  %2831 = vmatpush2.msra.mxu0 %v235
  %2832 = vmatprep.subr.mxu0 %v232
  %2833 = vmatpush2.msra.mxu0 %v231
  %2834 = vmatprep.subr.mxu0 %v228
  %2835 = vmatpush2.msra.mxu0 %v227
  %2836 = vmatprep.subr.mxu0 %v224
  %2837 = vmatpush2.msra.mxu0 %v223
  %2838 = vmatprep.subr.mxu0 %v220
  %2839 = vmatpush2.msra.mxu0 %v219
  %2840 = vmatprep.subr.mxu0 %v216
  %2841 = vmatpush2.msra.mxu0 %v215
  %2842 = vmatprep.mubr.f32.mxu0 %v1666
  %2843 = vmatmul.mubr.f32.gmra.mxu0 %v1664
  %v2844 = vpop.f32.mrf.mxu0
  %v2845 = vadd.f32 %v2774, %v2844
  %v2846 = vpop.f32.mrf.mxu0
  %v2847 = vadd.f32 %v2776, %v2846
  %2848 = vdwg.mxu0
  %2849 = vmatprep.subr.mxu0 %v340
  %2850 = vmatpush1.msra.mxu0 %v339
  %2851 = vmatprep.subr.mxu0 %v336
  %2852 = vmatpush1.msra.mxu0 %v335
  %2853 = vmatprep.subr.mxu0 %v332
  %2854 = vmatpush1.msra.mxu0 %v331
  %2855 = vmatprep.subr.mxu0 %v328
  %2856 = vmatpush1.msra.mxu0 %v327
  %2857 = vmatprep.subr.mxu0 %v324
  %2858 = vmatpush1.msra.mxu0 %v323
  %2859 = vmatprep.subr.mxu0 %v320
  %2860 = vmatpush1.msra.mxu0 %v319
  %2861 = vmatprep.subr.mxu0 %v316
  %2862 = vmatpush1.msra.mxu0 %v315
  %2863 = vmatprep.subr.mxu0 %v312
  %2864 = vmatpush1.msra.mxu0 %v311
  %2865 = vmatprep.subr.mxu0 %v308
  %2866 = vmatpush1.msra.mxu0 %v307
  %2867 = vmatprep.subr.mxu0 %v304
  %2868 = vmatpush1.msra.mxu0 %v303
  %2869 = vmatprep.subr.mxu0 %v300
  %2870 = vmatpush1.msra.mxu0 %v299
  %2871 = vmatprep.subr.mxu0 %v296
  %2872 = vmatpush1.msra.mxu0 %v295
  %2873 = vmatprep.subr.mxu0 %v292
  %2874 = vmatpush1.msra.mxu0 %v291
  %2875 = vmatprep.subr.mxu0 %v288
  %2876 = vmatpush1.msra.mxu0 %v287
  %2877 = vmatprep.subr.mxu0 %v284
  %2878 = vmatpush1.msra.mxu0 %v283
  %2879 = vmatprep.subr.mxu0 %v280
  %2880 = vmatpush1.msra.mxu0 %v279
  %2881 = vmatprep.subr.mxu0 %v404
  %2882 = vmatpush2.msra.mxu0 %v403
  %2883 = vmatprep.subr.mxu0 %v400
  %2884 = vmatpush2.msra.mxu0 %v399
  %2885 = vmatprep.subr.mxu0 %v396
  %2886 = vmatpush2.msra.mxu0 %v395
  %2887 = vmatprep.subr.mxu0 %v392
  %2888 = vmatpush2.msra.mxu0 %v391
  %2889 = vmatprep.subr.mxu0 %v388
  %2890 = vmatpush2.msra.mxu0 %v387
  %2891 = vmatprep.subr.mxu0 %v384
  %2892 = vmatpush2.msra.mxu0 %v383
  %2893 = vmatprep.subr.mxu0 %v380
  %2894 = vmatpush2.msra.mxu0 %v379
  %2895 = vmatprep.subr.mxu0 %v376
  %2896 = vmatpush2.msra.mxu0 %v375
  %2897 = vmatprep.subr.mxu0 %v372
  %2898 = vmatpush2.msra.mxu0 %v371
  %2899 = vmatprep.subr.mxu0 %v368
  %2900 = vmatpush2.msra.mxu0 %v367
  %2901 = vmatprep.subr.mxu0 %v364
  %2902 = vmatpush2.msra.mxu0 %v363
  %2903 = vmatprep.subr.mxu0 %v360
  %2904 = vmatpush2.msra.mxu0 %v359
  %2905 = vmatprep.subr.mxu0 %v356
  %2906 = vmatpush2.msra.mxu0 %v355
  %2907 = vmatprep.subr.mxu0 %v352
  %2908 = vmatpush2.msra.mxu0 %v351
  %2909 = vmatprep.subr.mxu0 %v348
  %2910 = vmatpush2.msra.mxu0 %v347
  %2911 = vmatprep.subr.mxu0 %v344
  %2912 = vmatpush2.msra.mxu0 %v343
  %2913 = vmatprep.mubr.f32.mxu0 %v1682
  %2914 = vmatmul.mubr.f32.gmra.mxu0 %v1674
  %v2915 = vpop.f32.mrf.mxu0
  %v2916 = vadd.f32 %v2845, %v2915
  %v2917 = vpop.f32.mrf.mxu0
  %v2918 = vadd.f32 %v2847, %v2917
  %2919 = vdwg.mxu0
  %2920 = vmatprep.subr.mxu0 %v468
  %2921 = vmatpush1.msra.mxu0 %v467
  %2922 = vmatprep.subr.mxu0 %v464
  %2923 = vmatpush1.msra.mxu0 %v463
  %2924 = vmatprep.subr.mxu0 %v460
  %2925 = vmatpush1.msra.mxu0 %v459
  %2926 = vmatprep.subr.mxu0 %v456
  %2927 = vmatpush1.msra.mxu0 %v455
  %2928 = vmatprep.subr.mxu0 %v452
  %2929 = vmatpush1.msra.mxu0 %v451
  %2930 = vmatprep.subr.mxu0 %v448
  %2931 = vmatpush1.msra.mxu0 %v447
  %2932 = vmatprep.subr.mxu0 %v444
  %2933 = vmatpush1.msra.mxu0 %v443
  %2934 = vmatprep.subr.mxu0 %v440
  %2935 = vmatpush1.msra.mxu0 %v439
  %2936 = vmatprep.subr.mxu0 %v436
  %2937 = vmatpush1.msra.mxu0 %v435
  %2938 = vmatprep.subr.mxu0 %v432
  %2939 = vmatpush1.msra.mxu0 %v431
  %2940 = vmatprep.subr.mxu0 %v428
  %2941 = vmatpush1.msra.mxu0 %v427
  %2942 = vmatprep.subr.mxu0 %v424
  %2943 = vmatpush1.msra.mxu0 %v423
  %2944 = vmatprep.subr.mxu0 %v420
  %2945 = vmatpush1.msra.mxu0 %v419
  %2946 = vmatprep.subr.mxu0 %v416
  %2947 = vmatpush1.msra.mxu0 %v415
  %2948 = vmatprep.subr.mxu0 %v412
  %2949 = vmatpush1.msra.mxu0 %v411
  %2950 = vmatprep.subr.mxu0 %v408
  %2951 = vmatpush1.msra.mxu0 %v407
  %2952 = vmatprep.subr.mxu0 %v532
  %2953 = vmatpush2.msra.mxu0 %v531
  %2954 = vmatprep.subr.mxu0 %v528
  %2955 = vmatpush2.msra.mxu0 %v527
  %2956 = vmatprep.subr.mxu0 %v524
  %2957 = vmatpush2.msra.mxu0 %v523
  %2958 = vmatprep.subr.mxu0 %v520
  %2959 = vmatpush2.msra.mxu0 %v519
  %2960 = vmatprep.subr.mxu0 %v516
  %2961 = vmatpush2.msra.mxu0 %v515
  %2962 = vmatprep.subr.mxu0 %v512
  %2963 = vmatpush2.msra.mxu0 %v511
  %2964 = vmatprep.subr.mxu0 %v508
  %2965 = vmatpush2.msra.mxu0 %v507
  %2966 = vmatprep.subr.mxu0 %v504
  %2967 = vmatpush2.msra.mxu0 %v503
  %2968 = vmatprep.subr.mxu0 %v500
  %2969 = vmatpush2.msra.mxu0 %v499
  %2970 = vmatprep.subr.mxu0 %v496
  %2971 = vmatpush2.msra.mxu0 %v495
  %2972 = vmatprep.subr.mxu0 %v492
  %2973 = vmatpush2.msra.mxu0 %v491
  %2974 = vmatprep.subr.mxu0 %v488
  %2975 = vmatpush2.msra.mxu0 %v487
  %2976 = vmatprep.subr.mxu0 %v484
  %2977 = vmatpush2.msra.mxu0 %v483
  %2978 = vmatprep.subr.mxu0 %v480
  %2979 = vmatpush2.msra.mxu0 %v479
  %2980 = vmatprep.subr.mxu0 %v476
  %2981 = vmatpush2.msra.mxu0 %v475
  %2982 = vmatprep.subr.mxu0 %v472
  %2983 = vmatpush2.msra.mxu0 %v471
  %2984 = vmatprep.mubr.f32.mxu0 %v1683
  %2985 = vmatmul.mubr.f32.gmra.mxu0 %v1681
  %v2986 = vpop.f32.mrf.mxu0
  %v2987 = vadd.f32 %v2916, %v2986
  %v2988 = vpop.f32.mrf.mxu0
  %v2989 = vadd.f32 %v2918, %v2988
  %2990 = vdwg.mxu0
  %2991 = vmatprep.subr.mxu0 %v596
  %2992 = vmatpush1.msra.mxu0 %v595
  %2993 = vmatprep.subr.mxu0 %v592
  %2994 = vmatpush1.msra.mxu0 %v591
  %2995 = vmatprep.subr.mxu0 %v588
  %2996 = vmatpush1.msra.mxu0 %v587
  %2997 = vmatprep.subr.mxu0 %v584
  %2998 = vmatpush1.msra.mxu0 %v583
  %2999 = vmatprep.subr.mxu0 %v580
  %3000 = vmatpush1.msra.mxu0 %v579
  %3001 = vmatprep.subr.mxu0 %v576
  %3002 = vmatpush1.msra.mxu0 %v575
  %3003 = vmatprep.subr.mxu0 %v572
  %3004 = vmatpush1.msra.mxu0 %v571
  %3005 = vmatprep.subr.mxu0 %v568
  %3006 = vmatpush1.msra.mxu0 %v567
  %3007 = vmatprep.subr.mxu0 %v564
  %3008 = vmatpush1.msra.mxu0 %v563
  %3009 = vmatprep.subr.mxu0 %v560
  %3010 = vmatpush1.msra.mxu0 %v559
  %3011 = vmatprep.subr.mxu0 %v556
  %3012 = vmatpush1.msra.mxu0 %v555
  %3013 = vmatprep.subr.mxu0 %v552
  %3014 = vmatpush1.msra.mxu0 %v551
  %3015 = vmatprep.subr.mxu0 %v548
  %3016 = vmatpush1.msra.mxu0 %v547
  %3017 = vmatprep.subr.mxu0 %v544
  %3018 = vmatpush1.msra.mxu0 %v543
  %3019 = vmatprep.subr.mxu0 %v540
  %3020 = vmatpush1.msra.mxu0 %v539
  %3021 = vmatprep.subr.mxu0 %v536
  %3022 = vmatpush1.msra.mxu0 %v535
  %3023 = vmatprep.subr.mxu0 %v660
  %3024 = vmatpush2.msra.mxu0 %v659
  %3025 = vmatprep.subr.mxu0 %v656
  %3026 = vmatpush2.msra.mxu0 %v655
  %3027 = vmatprep.subr.mxu0 %v652
  %3028 = vmatpush2.msra.mxu0 %v651
  %3029 = vmatprep.subr.mxu0 %v648
  %3030 = vmatpush2.msra.mxu0 %v647
  %3031 = vmatprep.subr.mxu0 %v644
  %3032 = vmatpush2.msra.mxu0 %v643
  %3033 = vmatprep.subr.mxu0 %v640
  %3034 = vmatpush2.msra.mxu0 %v639
  %3035 = vmatprep.subr.mxu0 %v636
  %3036 = vmatpush2.msra.mxu0 %v635
  %3037 = vmatprep.subr.mxu0 %v632
  %3038 = vmatpush2.msra.mxu0 %v631
  %3039 = vmatprep.subr.mxu0 %v628
  %3040 = vmatpush2.msra.mxu0 %v627
  %3041 = vmatprep.subr.mxu0 %v624
  %3042 = vmatpush2.msra.mxu0 %v623
  %3043 = vmatprep.subr.mxu0 %v620
  %3044 = vmatpush2.msra.mxu0 %v619
  %3045 = vmatprep.subr.mxu0 %v616
  %3046 = vmatpush2.msra.mxu0 %v615
  %3047 = vmatprep.subr.mxu0 %v612
  %3048 = vmatpush2.msra.mxu0 %v611
  %3049 = vmatprep.subr.mxu0 %v608
  %3050 = vmatpush2.msra.mxu0 %v607
  %3051 = vmatprep.subr.mxu0 %v604
  %3052 = vmatpush2.msra.mxu0 %v603
  %3053 = vmatprep.subr.mxu0 %v600
  %3054 = vmatpush2.msra.mxu0 %v599
  %3055 = vmatprep.mubr.f32.mxu0 %v1699
  %3056 = vmatmul.mubr.f32.gmra.mxu0 %v1691
  %v3057 = vpop.f32.mrf.mxu0
  %v3058 = vadd.f32 %v2987, %v3057
  %v3059 = vpop.f32.mrf.mxu0
  %v3060 = vadd.f32 %v2989, %v3059
  %3061 = vdwg.mxu0
  %3062 = vmatprep.subr.mxu0 %v724
  %3063 = vmatpush1.msra.mxu0 %v723
  %3064 = vmatprep.subr.mxu0 %v720
  %3065 = vmatpush1.msra.mxu0 %v719
  %3066 = vmatprep.subr.mxu0 %v716
  %3067 = vmatpush1.msra.mxu0 %v715
  %3068 = vmatprep.subr.mxu0 %v712
  %3069 = vmatpush1.msra.mxu0 %v711
  %3070 = vmatprep.subr.mxu0 %v708
  %3071 = vmatpush1.msra.mxu0 %v707
  %3072 = vmatprep.subr.mxu0 %v704
  %3073 = vmatpush1.msra.mxu0 %v703
  %3074 = vmatprep.subr.mxu0 %v700
  %3075 = vmatpush1.msra.mxu0 %v699
  %3076 = vmatprep.subr.mxu0 %v696
  %3077 = vmatpush1.msra.mxu0 %v695
  %3078 = vmatprep.subr.mxu0 %v692
  %3079 = vmatpush1.msra.mxu0 %v691
  %3080 = vmatprep.subr.mxu0 %v688
  %3081 = vmatpush1.msra.mxu0 %v687
  %3082 = vmatprep.subr.mxu0 %v684
  %3083 = vmatpush1.msra.mxu0 %v683
  %3084 = vmatprep.subr.mxu0 %v680
  %3085 = vmatpush1.msra.mxu0 %v679
  %3086 = vmatprep.subr.mxu0 %v676
  %3087 = vmatpush1.msra.mxu0 %v675
  %3088 = vmatprep.subr.mxu0 %v672
  %3089 = vmatpush1.msra.mxu0 %v671
  %3090 = vmatprep.subr.mxu0 %v668
  %3091 = vmatpush1.msra.mxu0 %v667
  %3092 = vmatprep.subr.mxu0 %v664
  %3093 = vmatpush1.msra.mxu0 %v663
  %3094 = vmatprep.subr.mxu0 %v788
  %3095 = vmatpush2.msra.mxu0 %v787
  %3096 = vmatprep.subr.mxu0 %v784
  %3097 = vmatpush2.msra.mxu0 %v783
  %3098 = vmatprep.subr.mxu0 %v780
  %3099 = vmatpush2.msra.mxu0 %v779
  %3100 = vmatprep.subr.mxu0 %v776
  %3101 = vmatpush2.msra.mxu0 %v775
  %3102 = vmatprep.subr.mxu0 %v772
  %3103 = vmatpush2.msra.mxu0 %v771
  %3104 = vmatprep.subr.mxu0 %v768
  %3105 = vmatpush2.msra.mxu0 %v767
  %3106 = vmatprep.subr.mxu0 %v764
  %3107 = vmatpush2.msra.mxu0 %v763
  %3108 = vmatprep.subr.mxu0 %v760
  %3109 = vmatpush2.msra.mxu0 %v759
  %3110 = vmatprep.subr.mxu0 %v756
  %3111 = vmatpush2.msra.mxu0 %v755
  %3112 = vmatprep.subr.mxu0 %v752
  %3113 = vmatpush2.msra.mxu0 %v751
  %3114 = vmatprep.subr.mxu0 %v748
  %3115 = vmatpush2.msra.mxu0 %v747
  %3116 = vmatprep.subr.mxu0 %v744
  %3117 = vmatpush2.msra.mxu0 %v743
  %3118 = vmatprep.subr.mxu0 %v740
  %3119 = vmatpush2.msra.mxu0 %v739
  %3120 = vmatprep.subr.mxu0 %v736
  %3121 = vmatpush2.msra.mxu0 %v735
  %3122 = vmatprep.subr.mxu0 %v732
  %3123 = vmatpush2.msra.mxu0 %v731
  %3124 = vmatprep.subr.mxu0 %v728
  %3125 = vmatpush2.msra.mxu0 %v727
  %3126 = vmatprep.mubr.f32.mxu0 %v1700
  %3127 = vmatmul.mubr.f32.gmra.mxu0 %v1698
  %v3128 = vpop.f32.mrf.mxu0
  %v3129 = vadd.f32 %v3058, %v3128
  %v3130 = vpop.f32.mrf.mxu0
  %v3131 = vadd.f32 %v3060, %v3130
  %3132 = vdwg.mxu0
  %3133 = vmatprep.subr.mxu0 %v852
  %3134 = vmatpush1.msra.mxu0 %v851
  %3135 = vmatprep.subr.mxu0 %v848
  %3136 = vmatpush1.msra.mxu0 %v847
  %3137 = vmatprep.subr.mxu0 %v844
  %3138 = vmatpush1.msra.mxu0 %v843
  %3139 = vmatprep.subr.mxu0 %v840
  %3140 = vmatpush1.msra.mxu0 %v839
  %3141 = vmatprep.subr.mxu0 %v836
  %3142 = vmatpush1.msra.mxu0 %v835
  %3143 = vmatprep.subr.mxu0 %v832
  %3144 = vmatpush1.msra.mxu0 %v831
  %3145 = vmatprep.subr.mxu0 %v828
  %3146 = vmatpush1.msra.mxu0 %v827
  %3147 = vmatprep.subr.mxu0 %v824
  %3148 = vmatpush1.msra.mxu0 %v823
  %3149 = vmatprep.subr.mxu0 %v820
  %3150 = vmatpush1.msra.mxu0 %v819
  %3151 = vmatprep.subr.mxu0 %v816
  %3152 = vmatpush1.msra.mxu0 %v815
  %3153 = vmatprep.subr.mxu0 %v812
  %3154 = vmatpush1.msra.mxu0 %v811
  %3155 = vmatprep.subr.mxu0 %v808
  %3156 = vmatpush1.msra.mxu0 %v807
  %3157 = vmatprep.subr.mxu0 %v804
  %3158 = vmatpush1.msra.mxu0 %v803
  %3159 = vmatprep.subr.mxu0 %v800
  %3160 = vmatpush1.msra.mxu0 %v799
  %3161 = vmatprep.subr.mxu0 %v796
  %3162 = vmatpush1.msra.mxu0 %v795
  %3163 = vmatprep.subr.mxu0 %v792
  %3164 = vmatpush1.msra.mxu0 %v791
  %3165 = vmatprep.subr.mxu0 %v916
  %3166 = vmatpush2.msra.mxu0 %v915
  %3167 = vmatprep.subr.mxu0 %v912
  %3168 = vmatpush2.msra.mxu0 %v911
  %3169 = vmatprep.subr.mxu0 %v908
  %3170 = vmatpush2.msra.mxu0 %v907
  %3171 = vmatprep.subr.mxu0 %v904
  %3172 = vmatpush2.msra.mxu0 %v903
  %3173 = vmatprep.subr.mxu0 %v900
  %3174 = vmatpush2.msra.mxu0 %v899
  %3175 = vmatprep.subr.mxu0 %v896
  %3176 = vmatpush2.msra.mxu0 %v895
  %3177 = vmatprep.subr.mxu0 %v892
  %3178 = vmatpush2.msra.mxu0 %v891
  %3179 = vmatprep.subr.mxu0 %v888
  %3180 = vmatpush2.msra.mxu0 %v887
  %3181 = vmatprep.subr.mxu0 %v884
  %3182 = vmatpush2.msra.mxu0 %v883
  %3183 = vmatprep.subr.mxu0 %v880
  %3184 = vmatpush2.msra.mxu0 %v879
  %3185 = vmatprep.subr.mxu0 %v876
  %3186 = vmatpush2.msra.mxu0 %v875
  %3187 = vmatprep.subr.mxu0 %v872
  %3188 = vmatpush2.msra.mxu0 %v871
  %3189 = vmatprep.subr.mxu0 %v868
  %3190 = vmatpush2.msra.mxu0 %v867
  %3191 = vmatprep.subr.mxu0 %v864
  %3192 = vmatpush2.msra.mxu0 %v863
  %3193 = vmatprep.subr.mxu0 %v860
  %3194 = vmatpush2.msra.mxu0 %v859
  %3195 = vmatprep.subr.mxu0 %v856
  %3196 = vmatpush2.msra.mxu0 %v855
  %3197 = vmatprep.mubr.f32.mxu0 %v1716
  %3198 = vmatmul.mubr.f32.gmra.mxu0 %v1708
  %v3199 = vpop.f32.mrf.mxu0
  %v3200 = vadd.f32 %v3129, %v3199
  %v3201 = vpop.f32.mrf.mxu0
  %v3202 = vadd.f32 %v3131, %v3201
  %3203 = vdwg.mxu0
  %3204 = vmatprep.subr.mxu0 %v980
  %3205 = vmatpush1.msra.mxu0 %v979
  %3206 = vmatprep.subr.mxu0 %v976
  %3207 = vmatpush1.msra.mxu0 %v975
  %3208 = vmatprep.subr.mxu0 %v972
  %3209 = vmatpush1.msra.mxu0 %v971
  %3210 = vmatprep.subr.mxu0 %v968
  %3211 = vmatpush1.msra.mxu0 %v967
  %3212 = vmatprep.subr.mxu0 %v964
  %3213 = vmatpush1.msra.mxu0 %v963
  %3214 = vmatprep.subr.mxu0 %v960
  %3215 = vmatpush1.msra.mxu0 %v959
  %3216 = vmatprep.subr.mxu0 %v956
  %3217 = vmatpush1.msra.mxu0 %v955
  %3218 = vmatprep.subr.mxu0 %v952
  %3219 = vmatpush1.msra.mxu0 %v951
  %3220 = vmatprep.subr.mxu0 %v948
  %3221 = vmatpush1.msra.mxu0 %v947
  %3222 = vmatprep.subr.mxu0 %v944
  %3223 = vmatpush1.msra.mxu0 %v943
  %3224 = vmatprep.subr.mxu0 %v940
  %3225 = vmatpush1.msra.mxu0 %v939
  %3226 = vmatprep.subr.mxu0 %v936
  %3227 = vmatpush1.msra.mxu0 %v935
  %3228 = vmatprep.subr.mxu0 %v932
  %3229 = vmatpush1.msra.mxu0 %v931
  %3230 = vmatprep.subr.mxu0 %v928
  %3231 = vmatpush1.msra.mxu0 %v927
  %3232 = vmatprep.subr.mxu0 %v924
  %3233 = vmatpush1.msra.mxu0 %v923
  %3234 = vmatprep.subr.mxu0 %v920
  %3235 = vmatpush1.msra.mxu0 %v919
  %3236 = vmatprep.subr.mxu0 %v1044
  %3237 = vmatpush2.msra.mxu0 %v1043
  %3238 = vmatprep.subr.mxu0 %v1040
  %3239 = vmatpush2.msra.mxu0 %v1039
  %3240 = vmatprep.subr.mxu0 %v1036
  %3241 = vmatpush2.msra.mxu0 %v1035
  %3242 = vmatprep.subr.mxu0 %v1032
  %3243 = vmatpush2.msra.mxu0 %v1031
  %3244 = vmatprep.subr.mxu0 %v1028
  %3245 = vmatpush2.msra.mxu0 %v1027
  %3246 = vmatprep.subr.mxu0 %v1024
  %3247 = vmatpush2.msra.mxu0 %v1023
  %3248 = vmatprep.subr.mxu0 %v1020
  %3249 = vmatpush2.msra.mxu0 %v1019
  %3250 = vmatprep.subr.mxu0 %v1016
  %3251 = vmatpush2.msra.mxu0 %v1015
  %3252 = vmatprep.subr.mxu0 %v1012
  %3253 = vmatpush2.msra.mxu0 %v1011
  %3254 = vmatprep.subr.mxu0 %v1008
  %3255 = vmatpush2.msra.mxu0 %v1007
  %3256 = vmatprep.subr.mxu0 %v1004
  %3257 = vmatpush2.msra.mxu0 %v1003
  %3258 = vmatprep.subr.mxu0 %v1000
  %3259 = vmatpush2.msra.mxu0 %v999
  %3260 = vmatprep.subr.mxu0 %v996
  %3261 = vmatpush2.msra.mxu0 %v995
  %3262 = vmatprep.subr.mxu0 %v992
  %3263 = vmatpush2.msra.mxu0 %v991
  %3264 = vmatprep.subr.mxu0 %v988
  %3265 = vmatpush2.msra.mxu0 %v987
  %3266 = vmatprep.subr.mxu0 %v984
  %3267 = vmatpush2.msra.mxu0 %v983
  %3268 = vmatprep.mubr.f32.mxu0 %v1717
  %3269 = vmatmul.mubr.f32.gmra.mxu0 %v1715
  %v3270 = vpop.f32.mrf.mxu0
  %v3271 = vadd.f32 %v3200, %v3270
  %v3272 = vpop.f32.mrf.mxu0
  %v3273 = vadd.f32 %v3202, %v3272
  %3274 = vdwg.mxu0
  %3275 = vmatprep.subr.mxu0 %v1108
  %3276 = vmatpush1.msra.mxu0 %v1107
  %3277 = vmatprep.subr.mxu0 %v1104
  %3278 = vmatpush1.msra.mxu0 %v1103
  %3279 = vmatprep.subr.mxu0 %v1100
  %3280 = vmatpush1.msra.mxu0 %v1099
  %3281 = vmatprep.subr.mxu0 %v1096
  %3282 = vmatpush1.msra.mxu0 %v1095
  %3283 = vmatprep.subr.mxu0 %v1092
  %3284 = vmatpush1.msra.mxu0 %v1091
  %3285 = vmatprep.subr.mxu0 %v1088
  %3286 = vmatpush1.msra.mxu0 %v1087
  %3287 = vmatprep.subr.mxu0 %v1084
  %3288 = vmatpush1.msra.mxu0 %v1083
  %3289 = vmatprep.subr.mxu0 %v1080
  %3290 = vmatpush1.msra.mxu0 %v1079
  %3291 = vmatprep.subr.mxu0 %v1076
  %3292 = vmatpush1.msra.mxu0 %v1075
  %3293 = vmatprep.subr.mxu0 %v1072
  %3294 = vmatpush1.msra.mxu0 %v1071
  %3295 = vmatprep.subr.mxu0 %v1068
  %3296 = vmatpush1.msra.mxu0 %v1067
  %3297 = vmatprep.subr.mxu0 %v1064
  %3298 = vmatpush1.msra.mxu0 %v1063
  %3299 = vmatprep.subr.mxu0 %v1060
  %3300 = vmatpush1.msra.mxu0 %v1059
  %3301 = vmatprep.subr.mxu0 %v1056
  %3302 = vmatpush1.msra.mxu0 %v1055
  %3303 = vmatprep.subr.mxu0 %v1052
  %3304 = vmatpush1.msra.mxu0 %v1051
  %3305 = vmatprep.subr.mxu0 %v1048
  %3306 = vmatpush1.msra.mxu0 %v1047
  %3307 = vmatprep.subr.mxu0 %v1172
  %3308 = vmatpush2.msra.mxu0 %v1171
  %3309 = vmatprep.subr.mxu0 %v1168
  %3310 = vmatpush2.msra.mxu0 %v1167
  %3311 = vmatprep.subr.mxu0 %v1164
  %3312 = vmatpush2.msra.mxu0 %v1163
  %3313 = vmatprep.subr.mxu0 %v1160
  %3314 = vmatpush2.msra.mxu0 %v1159
  %3315 = vmatprep.subr.mxu0 %v1156
  %3316 = vmatpush2.msra.mxu0 %v1155
  %3317 = vmatprep.subr.mxu0 %v1152
  %3318 = vmatpush2.msra.mxu0 %v1151
  %3319 = vmatprep.subr.mxu0 %v1148
  %3320 = vmatpush2.msra.mxu0 %v1147
  %3321 = vmatprep.subr.mxu0 %v1144
  %3322 = vmatpush2.msra.mxu0 %v1143
  %3323 = vmatprep.subr.mxu0 %v1140
  %3324 = vmatpush2.msra.mxu0 %v1139
  %3325 = vmatprep.subr.mxu0 %v1136
  %3326 = vmatpush2.msra.mxu0 %v1135
  %3327 = vmatprep.subr.mxu0 %v1132
  %3328 = vmatpush2.msra.mxu0 %v1131
  %3329 = vmatprep.subr.mxu0 %v1128
  %3330 = vmatpush2.msra.mxu0 %v1127
  %3331 = vmatprep.subr.mxu0 %v1124
  %3332 = vmatpush2.msra.mxu0 %v1123
  %3333 = vmatprep.subr.mxu0 %v1120
  %3334 = vmatpush2.msra.mxu0 %v1119
  %3335 = vmatprep.subr.mxu0 %v1116
  %3336 = vmatpush2.msra.mxu0 %v1115
  %3337 = vmatprep.subr.mxu0 %v1112
  %3338 = vmatpush2.msra.mxu0 %v1111
  %3339 = vmatprep.mubr.f32.mxu0 %v1733
  %3340 = vmatmul.mubr.f32.gmra.mxu0 %v1725
  %v3341 = vpop.f32.mrf.mxu0
  %v3342 = vadd.f32 %v3271, %v3341
  %v3343 = vpop.f32.mrf.mxu0
  %v3344 = vadd.f32 %v3273, %v3343
  %3345 = vdwg.mxu0
  %3346 = vmatprep.subr.mxu0 %v1236
  %3347 = vmatpush1.msra.mxu0 %v1235
  %3348 = vmatprep.subr.mxu0 %v1232
  %3349 = vmatpush1.msra.mxu0 %v1231
  %3350 = vmatprep.subr.mxu0 %v1228
  %3351 = vmatpush1.msra.mxu0 %v1227
  %3352 = vmatprep.subr.mxu0 %v1224
  %3353 = vmatpush1.msra.mxu0 %v1223
  %3354 = vmatprep.subr.mxu0 %v1220
  %3355 = vmatpush1.msra.mxu0 %v1219
  %3356 = vmatprep.subr.mxu0 %v1216
  %3357 = vmatpush1.msra.mxu0 %v1215
  %3358 = vmatprep.subr.mxu0 %v1212
  %3359 = vmatpush1.msra.mxu0 %v1211
  %3360 = vmatprep.subr.mxu0 %v1208
  %3361 = vmatpush1.msra.mxu0 %v1207
  %3362 = vmatprep.subr.mxu0 %v1204
  %3363 = vmatpush1.msra.mxu0 %v1203
  %3364 = vmatprep.subr.mxu0 %v1200
  %3365 = vmatpush1.msra.mxu0 %v1199
  %3366 = vmatprep.subr.mxu0 %v1196
  %3367 = vmatpush1.msra.mxu0 %v1195
  %3368 = vmatprep.subr.mxu0 %v1192
  %3369 = vmatpush1.msra.mxu0 %v1191
  %3370 = vmatprep.subr.mxu0 %v1188
  %3371 = vmatpush1.msra.mxu0 %v1187
  %3372 = vmatprep.subr.mxu0 %v1184
  %3373 = vmatpush1.msra.mxu0 %v1183
  %3374 = vmatprep.subr.mxu0 %v1180
  %3375 = vmatpush1.msra.mxu0 %v1179
  %3376 = vmatprep.subr.mxu0 %v1176
  %3377 = vmatpush1.msra.mxu0 %v1175
  %3378 = vmatprep.subr.mxu0 %v1300
  %3379 = vmatpush2.msra.mxu0 %v1299
  %3380 = vmatprep.subr.mxu0 %v1296
  %3381 = vmatpush2.msra.mxu0 %v1295
  %3382 = vmatprep.subr.mxu0 %v1292
  %3383 = vmatpush2.msra.mxu0 %v1291
  %3384 = vmatprep.subr.mxu0 %v1288
  %3385 = vmatpush2.msra.mxu0 %v1287
  %3386 = vmatprep.subr.mxu0 %v1284
  %3387 = vmatpush2.msra.mxu0 %v1283
  %3388 = vmatprep.subr.mxu0 %v1280
  %3389 = vmatpush2.msra.mxu0 %v1279
  %3390 = vmatprep.subr.mxu0 %v1276
  %3391 = vmatpush2.msra.mxu0 %v1275
  %3392 = vmatprep.subr.mxu0 %v1272
  %3393 = vmatpush2.msra.mxu0 %v1271
  %3394 = vmatprep.subr.mxu0 %v1268
  %3395 = vmatpush2.msra.mxu0 %v1267
  %3396 = vmatprep.subr.mxu0 %v1264
  %3397 = vmatpush2.msra.mxu0 %v1263
  %3398 = vmatprep.subr.mxu0 %v1260
  %3399 = vmatpush2.msra.mxu0 %v1259
  %3400 = vmatprep.subr.mxu0 %v1256
  %3401 = vmatpush2.msra.mxu0 %v1255
  %3402 = vmatprep.subr.mxu0 %v1252
  %3403 = vmatpush2.msra.mxu0 %v1251
  %3404 = vmatprep.subr.mxu0 %v1248
  %3405 = vmatpush2.msra.mxu0 %v1247
  %3406 = vmatprep.subr.mxu0 %v1244
  %3407 = vmatpush2.msra.mxu0 %v1243
  %3408 = vmatprep.subr.mxu0 %v1240
  %3409 = vmatpush2.msra.mxu0 %v1239
  %3410 = vmatprep.mubr.f32.mxu0 %v1734
  %3411 = vmatmul.mubr.f32.gmra.mxu0 %v1732
  %v3412 = vpop.f32.mrf.mxu0
  %v3413 = vadd.f32 %v3342, %v3412
  %v3414 = vpop.f32.mrf.mxu0
  %v3415 = vadd.f32 %v3344, %v3414
  %3416 = vdwg.mxu0
  %3417 = vmatprep.subr.mxu0 %v1364
  %3418 = vmatpush1.msra.mxu0 %v1363
  %3419 = vmatprep.subr.mxu0 %v1360
  %3420 = vmatpush1.msra.mxu0 %v1359
  %3421 = vmatprep.subr.mxu0 %v1356
  %3422 = vmatpush1.msra.mxu0 %v1355
  %3423 = vmatprep.subr.mxu0 %v1352
  %3424 = vmatpush1.msra.mxu0 %v1351
  %3425 = vmatprep.subr.mxu0 %v1348
  %3426 = vmatpush1.msra.mxu0 %v1347
  %3427 = vmatprep.subr.mxu0 %v1344
  %3428 = vmatpush1.msra.mxu0 %v1343
  %3429 = vmatprep.subr.mxu0 %v1340
  %3430 = vmatpush1.msra.mxu0 %v1339
  %3431 = vmatprep.subr.mxu0 %v1336
  %3432 = vmatpush1.msra.mxu0 %v1335
  %3433 = vmatprep.subr.mxu0 %v1332
  %3434 = vmatpush1.msra.mxu0 %v1331
  %3435 = vmatprep.subr.mxu0 %v1328
  %3436 = vmatpush1.msra.mxu0 %v1327
  %3437 = vmatprep.subr.mxu0 %v1324
  %3438 = vmatpush1.msra.mxu0 %v1323
  %3439 = vmatprep.subr.mxu0 %v1320
  %3440 = vmatpush1.msra.mxu0 %v1319
  %3441 = vmatprep.subr.mxu0 %v1316
  %3442 = vmatpush1.msra.mxu0 %v1315
  %3443 = vmatprep.subr.mxu0 %v1312
  %3444 = vmatpush1.msra.mxu0 %v1311
  %3445 = vmatprep.subr.mxu0 %v1308
  %3446 = vmatpush1.msra.mxu0 %v1307
  %3447 = vmatprep.subr.mxu0 %v1304
  %3448 = vmatpush1.msra.mxu0 %v1303
  %3449 = vmatprep.subr.mxu0 %v1428
  %3450 = vmatpush2.msra.mxu0 %v1427
  %3451 = vmatprep.subr.mxu0 %v1424
  %3452 = vmatpush2.msra.mxu0 %v1423
  %3453 = vmatprep.subr.mxu0 %v1420
  %3454 = vmatpush2.msra.mxu0 %v1419
  %3455 = vmatprep.subr.mxu0 %v1416
  %3456 = vmatpush2.msra.mxu0 %v1415
  %3457 = vmatprep.subr.mxu0 %v1412
  %3458 = vmatpush2.msra.mxu0 %v1411
  %3459 = vmatprep.subr.mxu0 %v1408
  %3460 = vmatpush2.msra.mxu0 %v1407
  %3461 = vmatprep.subr.mxu0 %v1404
  %3462 = vmatpush2.msra.mxu0 %v1403
  %3463 = vmatprep.subr.mxu0 %v1400
  %3464 = vmatpush2.msra.mxu0 %v1399
  %3465 = vmatprep.subr.mxu0 %v1396
  %3466 = vmatpush2.msra.mxu0 %v1395
  %3467 = vmatprep.subr.mxu0 %v1392
  %3468 = vmatpush2.msra.mxu0 %v1391
  %3469 = vmatprep.subr.mxu0 %v1388
  %3470 = vmatpush2.msra.mxu0 %v1387
  %3471 = vmatprep.subr.mxu0 %v1384
  %3472 = vmatpush2.msra.mxu0 %v1383
  %3473 = vmatprep.subr.mxu0 %v1380
  %3474 = vmatpush2.msra.mxu0 %v1379
  %3475 = vmatprep.subr.mxu0 %v1376
  %3476 = vmatpush2.msra.mxu0 %v1375
  %3477 = vmatprep.subr.mxu0 %v1372
  %3478 = vmatpush2.msra.mxu0 %v1371
  %3479 = vmatprep.subr.mxu0 %v1368
  %3480 = vmatpush2.msra.mxu0 %v1367
  %3481 = vmatprep.mubr.f32.mxu0 %v1750
  %3482 = vmatmul.mubr.f32.gmra.mxu0 %v1742
  %v3483 = vpop.f32.mrf.mxu0
  %v3484 = vadd.f32 %v3413, %v3483
  %v3485 = vpop.f32.mrf.mxu0
  %v3486 = vadd.f32 %v3415, %v3485
  %3487 = vdwg.mxu0
  %3488 = vmatprep.subr.mxu0 %v1492
  %3489 = vmatpush1.msra.mxu0 %v1491
  %3490 = vmatprep.subr.mxu0 %v1488
  %3491 = vmatpush1.msra.mxu0 %v1487
  %3492 = vmatprep.subr.mxu0 %v1484
  %3493 = vmatpush1.msra.mxu0 %v1483
  %3494 = vmatprep.subr.mxu0 %v1480
  %3495 = vmatpush1.msra.mxu0 %v1479
  %3496 = vmatprep.subr.mxu0 %v1476
  %3497 = vmatpush1.msra.mxu0 %v1475
  %3498 = vmatprep.subr.mxu0 %v1472
  %3499 = vmatpush1.msra.mxu0 %v1471
  %3500 = vmatprep.subr.mxu0 %v1468
  %3501 = vmatpush1.msra.mxu0 %v1467
  %3502 = vmatprep.subr.mxu0 %v1464
  %3503 = vmatpush1.msra.mxu0 %v1463
  %3504 = vmatprep.subr.mxu0 %v1460
  %3505 = vmatpush1.msra.mxu0 %v1459
  %3506 = vmatprep.subr.mxu0 %v1456
  %3507 = vmatpush1.msra.mxu0 %v1455
  %3508 = vmatprep.subr.mxu0 %v1452
  %3509 = vmatpush1.msra.mxu0 %v1451
  %3510 = vmatprep.subr.mxu0 %v1448
  %3511 = vmatpush1.msra.mxu0 %v1447
  %3512 = vmatprep.subr.mxu0 %v1444
  %3513 = vmatpush1.msra.mxu0 %v1443
  %3514 = vmatprep.subr.mxu0 %v1440
  %3515 = vmatpush1.msra.mxu0 %v1439
  %3516 = vmatprep.subr.mxu0 %v1436
  %3517 = vmatpush1.msra.mxu0 %v1435
  %3518 = vmatprep.subr.mxu0 %v1432
  %3519 = vmatpush1.msra.mxu0 %v1431
  %3520 = vmatprep.subr.mxu0 %v1556
  %3521 = vmatpush2.msra.mxu0 %v1555
  %3522 = vmatprep.subr.mxu0 %v1552
  %3523 = vmatpush2.msra.mxu0 %v1551
  %3524 = vmatprep.subr.mxu0 %v1548
  %3525 = vmatpush2.msra.mxu0 %v1547
  %3526 = vmatprep.subr.mxu0 %v1544
  %3527 = vmatpush2.msra.mxu0 %v1543
  %3528 = vmatprep.subr.mxu0 %v1540
  %3529 = vmatpush2.msra.mxu0 %v1539
  %3530 = vmatprep.subr.mxu0 %v1536
  %3531 = vmatpush2.msra.mxu0 %v1535
  %3532 = vmatprep.subr.mxu0 %v1532
  %3533 = vmatpush2.msra.mxu0 %v1531
  %3534 = vmatprep.subr.mxu0 %v1528
  %3535 = vmatpush2.msra.mxu0 %v1527
  %3536 = vmatprep.subr.mxu0 %v1524
  %3537 = vmatpush2.msra.mxu0 %v1523
  %3538 = vmatprep.subr.mxu0 %v1520
  %3539 = vmatpush2.msra.mxu0 %v1519
  %3540 = vmatprep.subr.mxu0 %v1516
  %3541 = vmatpush2.msra.mxu0 %v1515
  %3542 = vmatprep.subr.mxu0 %v1512
  %3543 = vmatpush2.msra.mxu0 %v1511
  %3544 = vmatprep.subr.mxu0 %v1508
  %3545 = vmatpush2.msra.mxu0 %v1507
  %3546 = vmatprep.subr.mxu0 %v1504
  %3547 = vmatpush2.msra.mxu0 %v1503
  %3548 = vmatprep.subr.mxu0 %v1500
  %3549 = vmatpush2.msra.mxu0 %v1499
  %3550 = vmatprep.subr.mxu0 %v1496
  %3551 = vmatpush2.msra.mxu0 %v1495
  %3552 = vmatprep.mubr.f32.mxu0 %v1751
  %3553 = vmatmul.mubr.f32.gmra.mxu0 %v1749
  %v3554 = vpop.f32.mrf.mxu0
  %v3555 = vadd.f32 %v3484, %v3554
  %v3556 = vpop.f32.mrf.mxu0
  %v3557 = vadd.f32 %v3486, %v3556
  %3558 = vdwg.mxu0
  %3559 = vmatprep.subr.mxu0 %v1620
  %3560 = vmatpush1.msra.mxu0 %v1619
  %3561 = vmatprep.subr.mxu0 %v1616
  %3562 = vmatpush1.msra.mxu0 %v1615
  %3563 = vmatprep.subr.mxu0 %v1612
  %3564 = vmatpush1.msra.mxu0 %v1611
  %3565 = vmatprep.subr.mxu0 %v1608
  %3566 = vmatpush1.msra.mxu0 %v1607
  %3567 = vmatprep.subr.mxu0 %v1604
  %3568 = vmatpush1.msra.mxu0 %v1603
  %3569 = vmatprep.subr.mxu0 %v1600
  %3570 = vmatpush1.msra.mxu0 %v1599
  %3571 = vmatprep.subr.mxu0 %v1596
  %3572 = vmatpush1.msra.mxu0 %v1595
  %3573 = vmatprep.subr.mxu0 %v1592
  %3574 = vmatpush1.msra.mxu0 %v1591
  %3575 = vmatprep.subr.mxu0 %v1588
  %3576 = vmatpush1.msra.mxu0 %v1587
  %3577 = vmatprep.subr.mxu0 %v1584
  %3578 = vmatpush1.msra.mxu0 %v1583
  %3579 = vmatprep.subr.mxu0 %v1580
  %3580 = vmatpush1.msra.mxu0 %v1579
  %3581 = vmatprep.subr.mxu0 %v1576
  %3582 = vmatpush1.msra.mxu0 %v1575
  %3583 = vmatprep.subr.mxu0 %v1572
  %3584 = vmatpush1.msra.mxu0 %v1571
  %3585 = vmatprep.subr.mxu0 %v1568
  %3586 = vmatpush1.msra.mxu0 %v1567
  %3587 = vmatprep.subr.mxu0 %v1564
  %3588 = vmatpush1.msra.mxu0 %v1563
  %3589 = vmatprep.subr.mxu0 %v1560
  %3590 = vmatpush1.msra.mxu0 %v1559
  %3591 = vmatprep.subr.mxu0 0.0
  %3592 = vmatpush2.msra.mxu0 0.0
  %3593 = vmatprep.subr.mxu0 0.0
  %3594 = vmatpush2.msra.mxu0 0.0
  %3595 = vmatprep.subr.mxu0 0.0
  %3596 = vmatpush2.msra.mxu0 0.0
  %3597 = vmatprep.subr.mxu0 0.0
  %3598 = vmatpush2.msra.mxu0 0.0
  %3599 = vmatprep.subr.mxu0 0.0
  %3600 = vmatpush2.msra.mxu0 0.0
  %3601 = vmatprep.subr.mxu0 0.0
  %3602 = vmatpush2.msra.mxu0 0.0
  %3603 = vmatprep.subr.mxu0 0.0
  %3604 = vmatpush2.msra.mxu0 0.0
  %3605 = vmatprep.subr.mxu0 0.0
  %3606 = vmatpush2.msra.mxu0 0.0
  %3607 = vmatprep.subr.mxu0 0.0
  %3608 = vmatpush2.msra.mxu0 0.0
  %3609 = vmatprep.subr.mxu0 0.0
  %3610 = vmatpush2.msra.mxu0 0.0
  %3611 = vmatprep.subr.mxu0 0.0
  %3612 = vmatpush2.msra.mxu0 0.0
  %3613 = vmatprep.subr.mxu0 0.0
  %3614 = vmatpush2.msra.mxu0 0.0
  %3615 = vmatprep.subr.mxu0 0.0
  %3616 = vmatpush2.msra.mxu0 0.0
  %3617 = vmatprep.subr.mxu0 0.0
  %3618 = vmatpush2.msra.mxu0 0.0
  %3619 = vmatprep.subr.mxu0 0.0
  %3620 = vmatpush2.msra.mxu0 0.0
  %3621 = vmatprep.subr.mxu0 0.0
  %3622 = vmatpush2.msra.mxu0 0.0
  %3623 = vmatprep.mubr.f32.mxu0 0.0
  %3624 = vmatmul.mubr.f32.gmra.mxu0 %v1758
  %v3625 = vpop.f32.mrf.mxu0
  %v3626 = vadd.f32 %v3555, %v3625
  %v3627 = vpop.f32.mrf.mxu0
  %v3628 = vadd.f32 %v3557, %v3627
  %3629 = vdwg.mxu0
  %v3630 = vmax.f32 %v2703, 0.0
  %v3631 = vmax.f32 %v2705, 0.0
  %v3632 = vmax.f32 %v3626, 0.0
  %v3633 = vmax.f32 %v3628, 0.0
  %v3638 = vcombine.low %v3630, %v3631
  %v3639 = vcombine.low %v3632, %v3633
  %v3641 = vunpack.c.l.s4 1983009808
  %v3642 = vunpack.c.0.s8 %v3641
  %v3643 = vlaneseq
  %v3644 = vshrl.u32 %v3643, 7
  %v3645 = vsub.s32 %v3642, %v3644
  %v3646 = vrot.slane %v3638, %v3645
  %v3648 = vunpack.c.l.s4 1983009808
  %v3649 = vunpack.c.0.s8 %v3648
  %v3650 = vlaneseq
  %v3651 = vshrl.u32 %v3650, 7
  %v3652 = vsub.s32 %v3649, %v3651
  %v3653 = vrot.slane %v3639, %v3652
  %v3654 = vcombine.low %v3646, %v3653
  %3656 = vst [vmem:[%s3] sm:$0xff] %v3654
  // Predicated region
  $region14: #{cifar10_deep_net_forward.11} parent=0 // pred_check
    _
  $region15: #{cifar10_deep_net_forward.11} parent=0 // pred_check_branch
    %3658 = sbr.rel (0) target = $region17
  $region16: #{cifar10_deep_net_forward.11} parent=0 // pred_region
    _
  $region17: #{cifar10_deep_net_forward.11} parent=0 // pred_fallthru
    _
  // Predicated region
  $region18: #{cifar10_deep_net_forward.11} parent=0 // pred_check
    _
  $region19: #{cifar10_deep_net_forward.11} parent=0 // pred_check_branch
    %3660 = sbr.rel (0) target = $region21
  $region20: #{cifar10_deep_net_forward.11} parent=0 // pred_region
    _
  $region21: #{cifar10_deep_net_forward.11} parent=0 // pred_fallthru
    _

</llo_original>
